<compile_context>
chip_gen: v7x
topology: tpu7x:2x2x1
jax: 0.10.0
libtpu: 0.0.40
codegen_flags: <defaults>
</compile_context>

<pallas_src>
import numpy as np
import jax
import jax.numpy as jnp
from jax import lax
from jax.experimental import pallas as pl
from jax.experimental.pallas import tpu as pltpu

H1, H2 = 100, 200          # module hidden sizes
H1P, H2P = 128, 208        # padded hidden sizes (lane-aligned / sublane-aligned)
LC = 128                   # in-kernel lane-chunk width (one lane-tile)
SUB = 8 * LC               # multi-tile batch tiles must be a multiple of this


def _round_up(n, m):
    return ((n + m - 1) // m) * m


def _prelu(z, alpha):
    # 3 VPU ops (mul, cmp, select) instead of max + alpha*min (4 ops).
    return jnp.where(z > 0, z, alpha * z)


def reci_ann_kernel(scalars_ref,              # SMEM (2,) f32: [alpha, b3]
                    x_ref,                    # VMEM (TB/LC, LC)
                    w1c_ref, b1c_ref,         # VMEM (H1P, 1), (H1P, 1)
                    w2t_ref, b2c_ref,         # VMEM (H2P, H1P), (H2P, 1)
                    w3r_ref,                  # VMEM (1, H2P)
                    o_ref):                   # VMEM out (TB/LC, LC)
    alpha = scalars_ref[0]
    b3 = scalars_ref[1]

    n_chunks = x_ref.shape[0]

    def body(c, carry):
        x = x_ref[pl.ds(c, 1), :]                                  # (1, LC)

        # layer 1: K=1 "matmul" as a VPU broadcast outer product.
        z1 = w1c_ref[...] * x + b1c_ref[...]                       # (H1P, LC)
        h1 = _prelu(z1, alpha)

        # layer 2: the only real matmul -> MXU, f32 accumulation.
        z2 = jnp.dot(w2t_ref[...], h1,
                     preferred_element_type=jnp.float32) + b2c_ref[...]
        h2 = _prelu(z2, alpha)                                     # (H2P, LC)

        # output layer: (1, H2P) @ (H2P, LC) + b3 -> lane-dense row store.
        o = jnp.dot(w3r_ref[...], h2,
                    preferred_element_type=jnp.float32) + b3       # (1, LC)
        o_ref[pl.ds(c, 1), :] = o.astype(o_ref.dtype)
        return carry

    lax.fori_loop(0, n_chunks, body, 0, unroll=min(n_chunks, 8))


def prepack_params(params):
    """One-time repack of module-layout params into kernel layout.
    Call once and reuse the result across forward calls."""
    w1c = jnp.zeros((H1P, 1), jnp.float32).at[:H1, 0].set(params["w1"][0, :])
    b1c = jnp.zeros((H1P, 1), jnp.float32).at[:H1, 0].set(params["b1"][0, :])
    w2t = jnp.zeros((H2P, H1P), jnp.float32).at[:H2, :H1].set(params["w2"].T)
    b2c = jnp.zeros((H2P, 1), jnp.float32).at[:H2, 0].set(params["b2"][0, :])
    w3r = jnp.zeros((1, H2P), jnp.float32).at[0, :H2].set(params["w3"][:, 0])
    scalars = jnp.concatenate(
        [params["alpha"].reshape(1), params["b3"].reshape(1)]
    ).astype(jnp.float32)                                           # (2,)
    return dict(w1c=w1c, b1c=b1c, w2t=w2t, b2c=b2c, w3r=w3r, scalars=scalars)


def reci_ann_forward(x, packed, tb=4096):
    """x: (B, 1) f32.  packed: output of prepack_params()."""
    B = x.shape[0]

    # Tile selection: single tile (== full array, any lane-aligned size) when
    # the batch fits, otherwise a multiple of 1024 so (tb/128, 128) blocks are
    # (8,128)-legal.  For very large B keep tb <= Bp/2 (ideally Bp/8) so the
    # "parallel" batch axis feeds both v7x TensorCores.
    Bp_lc = _round_up(max(B, 1), LC)
    if Bp_lc <= tb:
        tb = Bp_lc
        Bp = Bp_lc
    else:
        tb = _round_up(min(tb, Bp_lc), SUB)
        Bp = _round_up(B, tb)
    grid = (Bp // tb,)

    # Per-call work: pad + reshape x only (weights are prepacked).
    x_flat = jnp.zeros((Bp,), jnp.float32).at[:B].set(
        x.reshape(-1).astype(jnp.float32))
    x2d = x_flat.reshape(Bp // LC, LC)

    out = pl.pallas_call(
        reci_ann_kernel,
        out_shape=jax.ShapeDtypeStruct((Bp // LC, LC), jnp.float32),
        grid=grid,
        in_specs=[
            pl.BlockSpec(memory_space=pltpu.MemorySpace.SMEM),   # [alpha, b3]
            pl.BlockSpec((tb // LC, LC), lambda i: (i, 0)),      # x tile
            pl.BlockSpec((H1P, 1), lambda i: (0, 0)),            # W1 column
            pl.BlockSpec((H1P, 1), lambda i: (0, 0)),            # b1 column
            pl.BlockSpec((H2P, H1P), lambda i: (0, 0)),          # W2^T
            pl.BlockSpec((H2P, 1), lambda i: (0, 0)),            # b2 column
            pl.BlockSpec((1, H2P), lambda i: (0, 0)),            # W3 row
        ],
        out_specs=pl.BlockSpec((tb // LC, LC), lambda i: (i, 0)),
        compiler_params=pltpu.CompilerParams(
            dimension_semantics=("parallel",),
            vmem_limit_bytes=32 * 1024 * 1024),
    )(packed["scalars"], x2d, packed["w1c"], packed["b1c"],
      packed["w2t"], packed["b2c"], packed["w3r"])

    return out.reshape(Bp)[:B].reshape(B, 1)


def init_params(key):
    """Deterministic init mimicking PyTorch nn.Linear defaults:
    U(-1/sqrt(fan_in), 1/sqrt(fan_in)) for weights and biases."""
    ks = jax.random.split(key, 6)

    def lin(kw, kb, fan_in, fan_out):
        bound = 1.0 / np.sqrt(fan_in)
        w = jax.random.uniform(kw, (fan_in, fan_out), jnp.float32,
                               minval=-bound, maxval=bound)
        b = jax.random.uniform(kb, (1, fan_out), jnp.float32,
                               minval=-bound, maxval=bound)
        return w, b

    w1, b1 = lin(ks[0], ks[1], 1, H1)
    w2, b2 = lin(ks[2], ks[3], H1, H2)
    w3, b3 = lin(ks[4], ks[5], H2, 1)
    alpha = jnp.full((1,), 0.25, jnp.float32)   # PReLU default init
    return dict(w1=w1, b1=b1, w2=w2, b2=b2, w3=w3, b3=b3, alpha=alpha)


def _reference(x, p):
    a = p["alpha"][0]
    h1 = _prelu(x @ p["w1"] + p["b1"], a)
    h2 = _prelu(h1 @ p["w2"] + p["b2"], a)
    return h2 @ p["w3"] + p["b3"]


if __name__ == "__main__":
    key = jax.random.PRNGKey(0)
    kp, kx = jax.random.split(key)
    params = init_params(kp)
    packed = prepack_params(params)            # one-time prepack (hoisted)

    # B not a multiple of the tile -> exercises batch padding, the in-kernel
    # lane-chunk loop, and (with tb=1024) a 3-step pipelined grid.
    B = 2500
    x = jax.random.normal(kx, (B, 1), jnp.float32)
    ref = _reference(x, params)

    # multi-step grid path (grid = 3, 8 lane-chunks per tile)
    out_a = jax.block_until_ready(reci_ann_forward(x, packed, tb=1024))
    # default large-tile path (single tile, 20 lane-chunks)
    out_b = jax.block_until_ready(reci_ann_forward(x, packed))

    assert out_a.shape == (B, 1) and out_b.shape == (B, 1)
    np.testing.assert_allclose(np.asarray(out_a), np.asarray(ref),
                               rtol=1e-5, atol=1e-5)
    np.testing.assert_allclose(np.asarray(out_b), np.asarray(ref),
                               rtol=1e-5, atol=1e-5)
    print("KERNEL_OK")
</pallas_src>

<mosaic_0001>
module attributes {stable_mosaic.version = 11 : i64} {
  func.func @reci_ann_kernel(%arg0: i32, %arg1: memref<2xf32, #tpu.memory_space<smem>>, %arg2: memref<8x128xf32, #tpu.memory_space<vmem>>, %arg3: memref<128x1xf32, #tpu.memory_space<vmem>>, %arg4: memref<128x1xf32, #tpu.memory_space<vmem>>, %arg5: memref<208x128xf32, #tpu.memory_space<vmem>>, %arg6: memref<208x1xf32, #tpu.memory_space<vmem>>, %arg7: memref<1x208xf32, #tpu.memory_space<vmem>>, %arg8: memref<8x128xf32, #tpu.memory_space<vmem>>) attributes {dimension_semantics = [#tpu.dimension_semantics<parallel>], iteration_bounds = array<i64: 3>, scalar_prefetch = 0 : i64, scratch_operands = 0 : i64, tpu.core_type = #tpu.core_type<tc>, window_params = [{transform_indices = @transform_0, window_bounds = array<i64: 2>}, {transform_indices = @transform_1, window_bounds = array<i64: 8, 128>}, {pipeline_mode = #tpu.pipeline_mode<synchronous>, transform_indices = @transform_2, window_bounds = array<i64: 128, 1>}, {pipeline_mode = #tpu.pipeline_mode<synchronous>, transform_indices = @transform_3, window_bounds = array<i64: 128, 1>}, {pipeline_mode = #tpu.pipeline_mode<synchronous>, transform_indices = @transform_4, window_bounds = array<i64: 208, 128>}, {pipeline_mode = #tpu.pipeline_mode<synchronous>, transform_indices = @transform_5, window_bounds = array<i64: 208, 1>}, {pipeline_mode = #tpu.pipeline_mode<synchronous>, transform_indices = @transform_6, window_bounds = array<i64: 1, 208>}, {transform_indices = @transform_7, window_bounds = array<i64: 8, 128>}]} {
    %c0 = arith.constant 0 : index
    %0 = memref.load %arg1[%c0] : memref<2xf32, #tpu.memory_space<smem>>
    %c1 = arith.constant 1 : index
    %1 = memref.load %arg1[%c1] : memref<2xf32, #tpu.memory_space<smem>>
    %c0_i32 = arith.constant 0 : i32
    %2 = arith.index_cast %c0_i32 : i32 to index
    %c0_0 = arith.constant 0 : index
    %3 = vector.load %arg2[%2, %c0_0] : memref<8x128xf32, #tpu.memory_space<vmem>>, vector<1x128xf32>
    %c0_1 = arith.constant 0 : index
    %c0_2 = arith.constant 0 : index
    %4 = vector.load %arg3[%c0_1, %c0_2] : memref<128x1xf32, #tpu.memory_space<vmem>>, vector<128x1xf32>
    %5 = vector.broadcast %4 : vector<128x1xf32> to vector<128x128xf32>
    %6 = vector.broadcast %3 : vector<1x128xf32> to vector<128x128xf32>
    %7 = arith.mulf %5, %6 : vector<128x128xf32>
    %c0_3 = arith.constant 0 : index
    %c0_4 = arith.constant 0 : index
    %8 = vector.load %arg4[%c0_3, %c0_4] : memref<128x1xf32, #tpu.memory_space<vmem>>, vector<128x1xf32>
    %9 = vector.broadcast %8 : vector<128x1xf32> to vector<128x128xf32>
    %10 = arith.addf %7, %9 : vector<128x128xf32>
    %cst = arith.constant 0.000000e+00 : f32
    %11 = vector.broadcast %cst : f32 to vector<128x128xf32>
    %12 = arith.cmpf ogt, %10, %11 : vector<128x128xf32>
    %13 = vector.broadcast %0 : f32 to vector<128x128xf32>
    %14 = arith.mulf %13, %10 : vector<128x128xf32>
    %15 = arith.select %12, %10, %14 : vector<128x128xi1>, vector<128x128xf32>
    %c0_5 = arith.constant 0 : index
    %c0_6 = arith.constant 0 : index
    %16 = vector.load %arg5[%c0_5, %c0_6] : memref<208x128xf32, #tpu.memory_space<vmem>>, vector<208x128xf32>
    %cst_7 = arith.constant dense<0.000000e+00> : vector<208x128xf32>
    %17 = tpu.matmul %16, %15, %cst_7 {dimension_numbers = #tpu.dot_dimension_numbers<[1], [0], [0], [1], [0, 0, 1, 1], [], []>} : vector<208x128xf32>, vector<128x128xf32>, vector<208x128xf32> -> vector<208x128xf32>
    %c0_8 = arith.constant 0 : index
    %c0_9 = arith.constant 0 : index
    %18 = vector.load %arg6[%c0_8, %c0_9] : memref<208x1xf32, #tpu.memory_space<vmem>>, vector<208x1xf32>
    %19 = vector.broadcast %18 : vector<208x1xf32> to vector<208x128xf32>
    %20 = arith.addf %17, %19 : vector<208x128xf32>
    %cst_10 = arith.constant 0.000000e+00 : f32
    %21 = vector.broadcast %cst_10 : f32 to vector<208x128xf32>
    %22 = arith.cmpf ogt, %20, %21 : vector<208x128xf32>
    %23 = vector.broadcast %0 : f32 to vector<208x128xf32>
    %24 = arith.mulf %23, %20 : vector<208x128xf32>
    %25 = arith.select %22, %20, %24 : vector<208x128xi1>, vector<208x128xf32>
    %c0_11 = arith.constant 0 : index
    %c0_12 = arith.constant 0 : index
    %26 = vector.load %arg7[%c0_11, %c0_12] : memref<1x208xf32, #tpu.memory_space<vmem>>, vector<1x208xf32>
    %cst_13 = arith.constant dense<0.000000e+00> : vector<1x128xf32>
    %27 = tpu.matmul %26, %25, %cst_13 {dimension_numbers = #tpu.dot_dimension_numbers<[1], [0], [0], [1], [0, 0, 1, 1], [], []>} : vector<1x208xf32>, vector<208x128xf32>, vector<1x128xf32> -> vector<1x128xf32>
    %28 = vector.broadcast %1 : f32 to vector<1x128xf32>
    %29 = arith.addf %27, %28 : vector<1x128xf32>
    %30 = arith.index_cast %c0_i32 : i32 to index
    %c0_14 = arith.constant 0 : index
    %31 = vector.load %arg8[%30, %c0_14] : memref<8x128xf32, #tpu.memory_space<vmem>>, vector<1x128xf32>
    tpu.vector_store %arg8[%30, %c0_14], %29 {strides = array<i32>} : memref<8x128xf32, #tpu.memory_space<vmem>>, vector<1x128xf32>,
    %c1_i32 = arith.constant 1 : i32
    %32 = arith.index_cast %c1_i32 : i32 to index
    %c0_15 = arith.constant 0 : index
    %33 = vector.load %arg2[%32, %c0_15] : memref<8x128xf32, #tpu.memory_space<vmem>>, vector<1x128xf32>
    %c0_16 = arith.constant 0 : index
    %c0_17 = arith.constant 0 : index
    %34 = vector.load %arg3[%c0_16, %c0_17] : memref<128x1xf32, #tpu.memory_space<vmem>>, vector<128x1xf32>
    %35 = vector.broadcast %34 : vector<128x1xf32> to vector<128x128xf32>
    %36 = vector.broadcast %33 : vector<1x128xf32> to vector<128x128xf32>
    %37 = arith.mulf %35, %36 : vector<128x128xf32>
    %c0_18 = arith.constant 0 : index
    %c0_19 = arith.constant 0 : index
    %38 = vector.load %arg4[%c0_18, %c0_19] : memref<128x1xf32, #tpu.memory_space<vmem>>, vector<128x1xf32>
    %39 = vector.broadcast %38 : vector<128x1xf32> to vector<128x128xf32>
    %40 = arith.addf %37, %39 : vector<128x128xf32>
    %cst_20 = arith.constant 0.000000e+00 : f32
    %41 = vector.broadcast %cst_20 : f32 to vector<128x128xf32>
    %42 = arith.cmpf ogt, %40, %41 : vector<128x128xf32>
    %43 = vector.broadcast %0 : f32 to vector<128x128xf32>
    %44 = arith.mulf %43, %40 : vector<128x128xf32>
    %45 = arith.select %42, %40, %44 : vector<128x128xi1>, vector<128x128xf32>
    %c0_21 = arith.constant 0 : index
    %c0_22 = arith.constant 0 : index
    %46 = vector.load %arg5[%c0_21, %c0_22] : memref<208x128xf32, #tpu.memory_space<vmem>>, vector<208x128xf32>
    %cst_23 = arith.constant dense<0.000000e+00> : vector<208x128xf32>
    %47 = tpu.matmul %46, %45, %cst_23 {dimension_numbers = #tpu.dot_dimension_numbers<[1], [0], [0], [1], [0, 0, 1, 1], [], []>} : vector<208x128xf32>, vector<128x128xf32>, vector<208x128xf32> -> vector<208x128xf32>
    %c0_24 = arith.constant 0 : index
    %c0_25 = arith.constant 0 : index
    %48 = vector.load %arg6[%c0_24, %c0_25] : memref<208x1xf32, #tpu.memory_space<vmem>>, vector<208x1xf32>
    %49 = vector.broadcast %48 : vector<208x1xf32> to vector<208x128xf32>
    %50 = arith.addf %47, %49 : vector<208x128xf32>
    %cst_26 = arith.constant 0.000000e+00 : f32
    %51 = vector.broadcast %cst_26 : f32 to vector<208x128xf32>
    %52 = arith.cmpf ogt, %50, %51 : vector<208x128xf32>
    %53 = vector.broadcast %0 : f32 to vector<208x128xf32>
    %54 = arith.mulf %53, %50 : vector<208x128xf32>
    %55 = arith.select %52, %50, %54 : vector<208x128xi1>, vector<208x128xf32>
    %c0_27 = arith.constant 0 : index
    %c0_28 = arith.constant 0 : index
    %56 = vector.load %arg7[%c0_27, %c0_28] : memref<1x208xf32, #tpu.memory_space<vmem>>, vector<1x208xf32>
    %cst_29 = arith.constant dense<0.000000e+00> : vector<1x128xf32>
    %57 = tpu.matmul %56, %55, %cst_29 {dimension_numbers = #tpu.dot_dimension_numbers<[1], [0], [0], [1], [0, 0, 1, 1], [], []>} : vector<1x208xf32>, vector<208x128xf32>, vector<1x128xf32> -> vector<1x128xf32>
    %58 = vector.broadcast %1 : f32 to vector<1x128xf32>
    %59 = arith.addf %57, %58 : vector<1x128xf32>
    %60 = arith.index_cast %c1_i32 : i32 to index
    %c0_30 = arith.constant 0 : index
    %61 = vector.load %arg8[%60, %c0_30] : memref<8x128xf32, #tpu.memory_space<vmem>>, vector<1x128xf32>
    tpu.vector_store %arg8[%60, %c0_30], %59 {strides = array<i32>} : memref<8x128xf32, #tpu.memory_space<vmem>>, vector<1x128xf32>,
    %c2_i32 = arith.constant 2 : i32
    %62 = arith.index_cast %c2_i32 : i32 to index
    %c0_31 = arith.constant 0 : index
    %63 = vector.load %arg2[%62, %c0_31] : memref<8x128xf32, #tpu.memory_space<vmem>>, vector<1x128xf32>
    %c0_32 = arith.constant 0 : index
    %c0_33 = arith.constant 0 : index
    %64 = vector.load %arg3[%c0_32, %c0_33] : memref<128x1xf32, #tpu.memory_space<vmem>>, vector<128x1xf32>
    %65 = vector.broadcast %64 : vector<128x1xf32> to vector<128x128xf32>
    %66 = vector.broadcast %63 : vector<1x128xf32> to vector<128x128xf32>
    %67 = arith.mulf %65, %66 : vector<128x128xf32>
    %c0_34 = arith.constant 0 : index
    %c0_35 = arith.constant 0 : index
    %68 = vector.load %arg4[%c0_34, %c0_35] : memref<128x1xf32, #tpu.memory_space<vmem>>, vector<128x1xf32>
    %69 = vector.broadcast %68 : vector<128x1xf32> to vector<128x128xf32>
    %70 = arith.addf %67, %69 : vector<128x128xf32>
    %cst_36 = arith.constant 0.000000e+00 : f32
    %71 = vector.broadcast %cst_36 : f32 to vector<128x128xf32>
    %72 = arith.cmpf ogt, %70, %71 : vector<128x128xf32>
    %73 = vector.broadcast %0 : f32 to vector<128x128xf32>
    %74 = arith.mulf %73, %70 : vector<128x128xf32>
    %75 = arith.select %72, %70, %74 : vector<128x128xi1>, vector<128x128xf32>
    %c0_37 = arith.constant 0 : index
    %c0_38 = arith.constant 0 : index
    %76 = vector.load %arg5[%c0_37, %c0_38] : memref<208x128xf32, #tpu.memory_space<vmem>>, vector<208x128xf32>
    %cst_39 = arith.constant dense<0.000000e+00> : vector<208x128xf32>
    %77 = tpu.matmul %76, %75, %cst_39 {dimension_numbers = #tpu.dot_dimension_numbers<[1], [0], [0], [1], [0, 0, 1, 1], [], []>} : vector<208x128xf32>, vector<128x128xf32>, vector<208x128xf32> -> vector<208x128xf32>
    %c0_40 = arith.constant 0 : index
    %c0_41 = arith.constant 0 : index
    %78 = vector.load %arg6[%c0_40, %c0_41] : memref<208x1xf32, #tpu.memory_space<vmem>>, vector<208x1xf32>
    %79 = vector.broadcast %78 : vector<208x1xf32> to vector<208x128xf32>
    %80 = arith.addf %77, %79 : vector<208x128xf32>
    %cst_42 = arith.constant 0.000000e+00 : f32
    %81 = vector.broadcast %cst_42 : f32 to vector<208x128xf32>
    %82 = arith.cmpf ogt, %80, %81 : vector<208x128xf32>
    %83 = vector.broadcast %0 : f32 to vector<208x128xf32>
    %84 = arith.mulf %83, %80 : vector<208x128xf32>
    %85 = arith.select %82, %80, %84 : vector<208x128xi1>, vector<208x128xf32>
    %c0_43 = arith.constant 0 : index
    %c0_44 = arith.constant 0 : index
    %86 = vector.load %arg7[%c0_43, %c0_44] : memref<1x208xf32, #tpu.memory_space<vmem>>, vector<1x208xf32>
    %cst_45 = arith.constant dense<0.000000e+00> : vector<1x128xf32>
    %87 = tpu.matmul %86, %85, %cst_45 {dimension_numbers = #tpu.dot_dimension_numbers<[1], [0], [0], [1], [0, 0, 1, 1], [], []>} : vector<1x208xf32>, vector<208x128xf32>, vector<1x128xf32> -> vector<1x128xf32>
    %88 = vector.broadcast %1 : f32 to vector<1x128xf32>
    %89 = arith.addf %87, %88 : vector<1x128xf32>
    %90 = arith.index_cast %c2_i32 : i32 to index
    %c0_46 = arith.constant 0 : index
    %91 = vector.load %arg8[%90, %c0_46] : memref<8x128xf32, #tpu.memory_space<vmem>>, vector<1x128xf32>
    tpu.vector_store %arg8[%90, %c0_46], %89 {strides = array<i32>} : memref<8x128xf32, #tpu.memory_space<vmem>>, vector<1x128xf32>,
    %c3_i32 = arith.constant 3 : i32
    %92 = arith.index_cast %c3_i32 : i32 to index
    %c0_47 = arith.constant 0 : index
    %93 = vector.load %arg2[%92, %c0_47] : memref<8x128xf32, #tpu.memory_space<vmem>>, vector<1x128xf32>
    %c0_48 = arith.constant 0 : index
    %c0_49 = arith.constant 0 : index
    %94 = vector.load %arg3[%c0_48, %c0_49] : memref<128x1xf32, #tpu.memory_space<vmem>>, vector<128x1xf32>
    %95 = vector.broadcast %94 : vector<128x1xf32> to vector<128x128xf32>
    %96 = vector.broadcast %93 : vector<1x128xf32> to vector<128x128xf32>
    %97 = arith.mulf %95, %96 : vector<128x128xf32>
    %c0_50 = arith.constant 0 : index
    %c0_51 = arith.constant 0 : index
    %98 = vector.load %arg4[%c0_50, %c0_51] : memref<128x1xf32, #tpu.memory_space<vmem>>, vector<128x1xf32>
    %99 = vector.broadcast %98 : vector<128x1xf32> to vector<128x128xf32>
    %100 = arith.addf %97, %99 : vector<128x128xf32>
    %cst_52 = arith.constant 0.000000e+00 : f32
    %101 = vector.broadcast %cst_52 : f32 to vector<128x128xf32>
    %102 = arith.cmpf ogt, %100, %101 : vector<128x128xf32>
    %103 = vector.broadcast %0 : f32 to vector<128x128xf32>
    %104 = arith.mulf %103, %100 : vector<128x128xf32>
    %105 = arith.select %102, %100, %104 : vector<128x128xi1>, vector<128x128xf32>
    %c0_53 = arith.constant 0 : index
    %c0_54 = arith.constant 0 : index
    %106 = vector.load %arg5[%c0_53, %c0_54] : memref<208x128xf32, #tpu.memory_space<vmem>>, vector<208x128xf32>
    %cst_55 = arith.constant dense<0.000000e+00> : vector<208x128xf32>
    %107 = tpu.matmul %106, %105, %cst_55 {dimension_numbers = #tpu.dot_dimension_numbers<[1], [0], [0], [1], [0, 0, 1, 1], [], []>} : vector<208x128xf32>, vector<128x128xf32>, vector<208x128xf32> -> vector<208x128xf32>
    %c0_56 = arith.constant 0 : index
    %c0_57 = arith.constant 0 : index
    %108 = vector.load %arg6[%c0_56, %c0_57] : memref<208x1xf32, #tpu.memory_space<vmem>>, vector<208x1xf32>
    %109 = vector.broadcast %108 : vector<208x1xf32> to vector<208x128xf32>
    %110 = arith.addf %107, %109 : vector<208x128xf32>
    %cst_58 = arith.constant 0.000000e+00 : f32
    %111 = vector.broadcast %cst_58 : f32 to vector<208x128xf32>
    %112 = arith.cmpf ogt, %110, %111 : vector<208x128xf32>
    %113 = vector.broadcast %0 : f32 to vector<208x128xf32>
    %114 = arith.mulf %113, %110 : vector<208x128xf32>
    %115 = arith.select %112, %110, %114 : vector<208x128xi1>, vector<208x128xf32>
    %c0_59 = arith.constant 0 : index
    %c0_60 = arith.constant 0 : index
    %116 = vector.load %arg7[%c0_59, %c0_60] : memref<1x208xf32, #tpu.memory_space<vmem>>, vector<1x208xf32>
    %cst_61 = arith.constant dense<0.000000e+00> : vector<1x128xf32>
    %117 = tpu.matmul %116, %115, %cst_61 {dimension_numbers = #tpu.dot_dimension_numbers<[1], [0], [0], [1], [0, 0, 1, 1], [], []>} : vector<1x208xf32>, vector<208x128xf32>, vector<1x128xf32> -> vector<1x128xf32>
    %118 = vector.broadcast %1 : f32 to vector<1x128xf32>
    %119 = arith.addf %117, %118 : vector<1x128xf32>
    %120 = arith.index_cast %c3_i32 : i32 to index
    %c0_62 = arith.constant 0 : index
    %121 = vector.load %arg8[%120, %c0_62] : memref<8x128xf32, #tpu.memory_space<vmem>>, vector<1x128xf32>
    tpu.vector_store %arg8[%120, %c0_62], %119 {strides = array<i32>} : memref<8x128xf32, #tpu.memory_space<vmem>>, vector<1x128xf32>,
    %c4_i32 = arith.constant 4 : i32
    %122 = arith.index_cast %c4_i32 : i32 to index
    %c0_63 = arith.constant 0 : index
    %123 = vector.load %arg2[%122, %c0_63] : memref<8x128xf32, #tpu.memory_space<vmem>>, vector<1x128xf32>
    %c0_64 = arith.constant 0 : index
    %c0_65 = arith.constant 0 : index
    %124 = vector.load %arg3[%c0_64, %c0_65] : memref<128x1xf32, #tpu.memory_space<vmem>>, vector<128x1xf32>
    %125 = vector.broadcast %124 : vector<128x1xf32> to vector<128x128xf32>
    %126 = vector.broadcast %123 : vector<1x128xf32> to vector<128x128xf32>
    %127 = arith.mulf %125, %126 : vector<128x128xf32>
    %c0_66 = arith.constant 0 : index
    %c0_67 = arith.constant 0 : index
    %128 = vector.load %arg4[%c0_66, %c0_67] : memref<128x1xf32, #tpu.memory_space<vmem>>, vector<128x1xf32>
    %129 = vector.broadcast %128 : vector<128x1xf32> to vector<128x128xf32>
    %130 = arith.addf %127, %129 : vector<128x128xf32>
    %cst_68 = arith.constant 0.000000e+00 : f32
    %131 = vector.broadcast %cst_68 : f32 to vector<128x128xf32>
    %132 = arith.cmpf ogt, %130, %131 : vector<128x128xf32>
    %133 = vector.broadcast %0 : f32 to vector<128x128xf32>
    %134 = arith.mulf %133, %130 : vector<128x128xf32>
    %135 = arith.select %132, %130, %134 : vector<128x128xi1>, vector<128x128xf32>
    %c0_69 = arith.constant 0 : index
    %c0_70 = arith.constant 0 : index
    %136 = vector.load %arg5[%c0_69, %c0_70] : memref<208x128xf32, #tpu.memory_space<vmem>>, vector<208x128xf32>
    %cst_71 = arith.constant dense<0.000000e+00> : vector<208x128xf32>
    %137 = tpu.matmul %136, %135, %cst_71 {dimension_numbers = #tpu.dot_dimension_numbers<[1], [0], [0], [1], [0, 0, 1, 1], [], []>} : vector<208x128xf32>, vector<128x128xf32>, vector<208x128xf32> -> vector<208x128xf32>
    %c0_72 = arith.constant 0 : index
    %c0_73 = arith.constant 0 : index
    %138 = vector.load %arg6[%c0_72, %c0_73] : memref<208x1xf32, #tpu.memory_space<vmem>>, vector<208x1xf32>
    %139 = vector.broadcast %138 : vector<208x1xf32> to vector<208x128xf32>
    %140 = arith.addf %137, %139 : vector<208x128xf32>
    %cst_74 = arith.constant 0.000000e+00 : f32
    %141 = vector.broadcast %cst_74 : f32 to vector<208x128xf32>
    %142 = arith.cmpf ogt, %140, %141 : vector<208x128xf32>
    %143 = vector.broadcast %0 : f32 to vector<208x128xf32>
    %144 = arith.mulf %143, %140 : vector<208x128xf32>
    %145 = arith.select %142, %140, %144 : vector<208x128xi1>, vector<208x128xf32>
    %c0_75 = arith.constant 0 : index
    %c0_76 = arith.constant 0 : index
    %146 = vector.load %arg7[%c0_75, %c0_76] : memref<1x208xf32, #tpu.memory_space<vmem>>, vector<1x208xf32>
    %cst_77 = arith.constant dense<0.000000e+00> : vector<1x128xf32>
    %147 = tpu.matmul %146, %145, %cst_77 {dimension_numbers = #tpu.dot_dimension_numbers<[1], [0], [0], [1], [0, 0, 1, 1], [], []>} : vector<1x208xf32>, vector<208x128xf32>, vector<1x128xf32> -> vector<1x128xf32>
    %148 = vector.broadcast %1 : f32 to vector<1x128xf32>
    %149 = arith.addf %147, %148 : vector<1x128xf32>
    %150 = arith.index_cast %c4_i32 : i32 to index
    %c0_78 = arith.constant 0 : index
    %151 = vector.load %arg8[%150, %c0_78] : memref<8x128xf32, #tpu.memory_space<vmem>>, vector<1x128xf32>
    tpu.vector_store %arg8[%150, %c0_78], %149 {strides = array<i32>} : memref<8x128xf32, #tpu.memory_space<vmem>>, vector<1x128xf32>,
    %c5_i32 = arith.constant 5 : i32
    %152 = arith.index_cast %c5_i32 : i32 to index
    %c0_79 = arith.constant 0 : index
    %153 = vector.load %arg2[%152, %c0_79] : memref<8x128xf32, #tpu.memory_space<vmem>>, vector<1x128xf32>
    %c0_80 = arith.constant 0 : index
    %c0_81 = arith.constant 0 : index
    %154 = vector.load %arg3[%c0_80, %c0_81] : memref<128x1xf32, #tpu.memory_space<vmem>>, vector<128x1xf32>
    %155 = vector.broadcast %154 : vector<128x1xf32> to vector<128x128xf32>
    %156 = vector.broadcast %153 : vector<1x128xf32> to vector<128x128xf32>
    %157 = arith.mulf %155, %156 : vector<128x128xf32>
    %c0_82 = arith.constant 0 : index
    %c0_83 = arith.constant 0 : index
    %158 = vector.load %arg4[%c0_82, %c0_83] : memref<128x1xf32, #tpu.memory_space<vmem>>, vector<128x1xf32>
    %159 = vector.broadcast %158 : vector<128x1xf32> to vector<128x128xf32>
    %160 = arith.addf %157, %159 : vector<128x128xf32>
    %cst_84 = arith.constant 0.000000e+00 : f32
    %161 = vector.broadcast %cst_84 : f32 to vector<128x128xf32>
    %162 = arith.cmpf ogt, %160, %161 : vector<128x128xf32>
    %163 = vector.broadcast %0 : f32 to vector<128x128xf32>
    %164 = arith.mulf %163, %160 : vector<128x128xf32>
    %165 = arith.select %162, %160, %164 : vector<128x128xi1>, vector<128x128xf32>
    %c0_85 = arith.constant 0 : index
    %c0_86 = arith.constant 0 : index
    %166 = vector.load %arg5[%c0_85, %c0_86] : memref<208x128xf32, #tpu.memory_space<vmem>>, vector<208x128xf32>
    %cst_87 = arith.constant dense<0.000000e+00> : vector<208x128xf32>
    %167 = tpu.matmul %166, %165, %cst_87 {dimension_numbers = #tpu.dot_dimension_numbers<[1], [0], [0], [1], [0, 0, 1, 1], [], []>} : vector<208x128xf32>, vector<128x128xf32>, vector<208x128xf32> -> vector<208x128xf32>
    %c0_88 = arith.constant 0 : index
    %c0_89 = arith.constant 0 : index
    %168 = vector.load %arg6[%c0_88, %c0_89] : memref<208x1xf32, #tpu.memory_space<vmem>>, vector<208x1xf32>
    %169 = vector.broadcast %168 : vector<208x1xf32> to vector<208x128xf32>
    %170 = arith.addf %167, %169 : vector<208x128xf32>
    %cst_90 = arith.constant 0.000000e+00 : f32
    %171 = vector.broadcast %cst_90 : f32 to vector<208x128xf32>
    %172 = arith.cmpf ogt, %170, %171 : vector<208x128xf32>
    %173 = vector.broadcast %0 : f32 to vector<208x128xf32>
    %174 = arith.mulf %173, %170 : vector<208x128xf32>
    %175 = arith.select %172, %170, %174 : vector<208x128xi1>, vector<208x128xf32>
    %c0_91 = arith.constant 0 : index
    %c0_92 = arith.constant 0 : index
    %176 = vector.load %arg7[%c0_91, %c0_92] : memref<1x208xf32, #tpu.memory_space<vmem>>, vector<1x208xf32>
    %cst_93 = arith.constant dense<0.000000e+00> : vector<1x128xf32>
    %177 = tpu.matmul %176, %175, %cst_93 {dimension_numbers = #tpu.dot_dimension_numbers<[1], [0], [0], [1], [0, 0, 1, 1], [], []>} : vector<1x208xf32>, vector<208x128xf32>, vector<1x128xf32> -> vector<1x128xf32>
    %178 = vector.broadcast %1 : f32 to vector<1x128xf32>
    %179 = arith.addf %177, %178 : vector<1x128xf32>
    %180 = arith.index_cast %c5_i32 : i32 to index
    %c0_94 = arith.constant 0 : index
    %181 = vector.load %arg8[%180, %c0_94] : memref<8x128xf32, #tpu.memory_space<vmem>>, vector<1x128xf32>
    tpu.vector_store %arg8[%180, %c0_94], %179 {strides = array<i32>} : memref<8x128xf32, #tpu.memory_space<vmem>>, vector<1x128xf32>,
    %c6_i32 = arith.constant 6 : i32
    %182 = arith.index_cast %c6_i32 : i32 to index
    %c0_95 = arith.constant 0 : index
    %183 = vector.load %arg2[%182, %c0_95] : memref<8x128xf32, #tpu.memory_space<vmem>>, vector<1x128xf32>
    %c0_96 = arith.constant 0 : index
    %c0_97 = arith.constant 0 : index
    %184 = vector.load %arg3[%c0_96, %c0_97] : memref<128x1xf32, #tpu.memory_space<vmem>>, vector<128x1xf32>
    %185 = vector.broadcast %184 : vector<128x1xf32> to vector<128x128xf32>
    %186 = vector.broadcast %183 : vector<1x128xf32> to vector<128x128xf32>
    %187 = arith.mulf %185, %186 : vector<128x128xf32>
    %c0_98 = arith.constant 0 : index
    %c0_99 = arith.constant 0 : index
    %188 = vector.load %arg4[%c0_98, %c0_99] : memref<128x1xf32, #tpu.memory_space<vmem>>, vector<128x1xf32>
    %189 = vector.broadcast %188 : vector<128x1xf32> to vector<128x128xf32>
    %190 = arith.addf %187, %189 : vector<128x128xf32>
    %cst_100 = arith.constant 0.000000e+00 : f32
    %191 = vector.broadcast %cst_100 : f32 to vector<128x128xf32>
    %192 = arith.cmpf ogt, %190, %191 : vector<128x128xf32>
    %193 = vector.broadcast %0 : f32 to vector<128x128xf32>
    %194 = arith.mulf %193, %190 : vector<128x128xf32>
    %195 = arith.select %192, %190, %194 : vector<128x128xi1>, vector<128x128xf32>
    %c0_101 = arith.constant 0 : index
    %c0_102 = arith.constant 0 : index
    %196 = vector.load %arg5[%c0_101, %c0_102] : memref<208x128xf32, #tpu.memory_space<vmem>>, vector<208x128xf32>
    %cst_103 = arith.constant dense<0.000000e+00> : vector<208x128xf32>
    %197 = tpu.matmul %196, %195, %cst_103 {dimension_numbers = #tpu.dot_dimension_numbers<[1], [0], [0], [1], [0, 0, 1, 1], [], []>} : vector<208x128xf32>, vector<128x128xf32>, vector<208x128xf32> -> vector<208x128xf32>
    %c0_104 = arith.constant 0 : index
    %c0_105 = arith.constant 0 : index
    %198 = vector.load %arg6[%c0_104, %c0_105] : memref<208x1xf32, #tpu.memory_space<vmem>>, vector<208x1xf32>
    %199 = vector.broadcast %198 : vector<208x1xf32> to vector<208x128xf32>
    %200 = arith.addf %197, %199 : vector<208x128xf32>
    %cst_106 = arith.constant 0.000000e+00 : f32
    %201 = vector.broadcast %cst_106 : f32 to vector<208x128xf32>
    %202 = arith.cmpf ogt, %200, %201 : vector<208x128xf32>
    %203 = vector.broadcast %0 : f32 to vector<208x128xf32>
    %204 = arith.mulf %203, %200 : vector<208x128xf32>
    %205 = arith.select %202, %200, %204 : vector<208x128xi1>, vector<208x128xf32>
    %c0_107 = arith.constant 0 : index
    %c0_108 = arith.constant 0 : index
    %206 = vector.load %arg7[%c0_107, %c0_108] : memref<1x208xf32, #tpu.memory_space<vmem>>, vector<1x208xf32>
    %cst_109 = arith.constant dense<0.000000e+00> : vector<1x128xf32>
    %207 = tpu.matmul %206, %205, %cst_109 {dimension_numbers = #tpu.dot_dimension_numbers<[1], [0], [0], [1], [0, 0, 1, 1], [], []>} : vector<1x208xf32>, vector<208x128xf32>, vector<1x128xf32> -> vector<1x128xf32>
    %208 = vector.broadcast %1 : f32 to vector<1x128xf32>
    %209 = arith.addf %207, %208 : vector<1x128xf32>
    %210 = arith.index_cast %c6_i32 : i32 to index
    %c0_110 = arith.constant 0 : index
    %211 = vector.load %arg8[%210, %c0_110] : memref<8x128xf32, #tpu.memory_space<vmem>>, vector<1x128xf32>
    tpu.vector_store %arg8[%210, %c0_110], %209 {strides = array<i32>} : memref<8x128xf32, #tpu.memory_space<vmem>>, vector<1x128xf32>,
    %c7_i32 = arith.constant 7 : i32
    %212 = arith.index_cast %c7_i32 : i32 to index
    %c0_111 = arith.constant 0 : index
    %213 = vector.load %arg2[%212, %c0_111] : memref<8x128xf32, #tpu.memory_space<vmem>>, vector<1x128xf32>
    %c0_112 = arith.constant 0 : index
    %c0_113 = arith.constant 0 : index
    %214 = vector.load %arg3[%c0_112, %c0_113] : memref<128x1xf32, #tpu.memory_space<vmem>>, vector<128x1xf32>
    %215 = vector.broadcast %214 : vector<128x1xf32> to vector<128x128xf32>
    %216 = vector.broadcast %213 : vector<1x128xf32> to vector<128x128xf32>
    %217 = arith.mulf %215, %216 : vector<128x128xf32>
    %c0_114 = arith.constant 0 : index
    %c0_115 = arith.constant 0 : index
    %218 = vector.load %arg4[%c0_114, %c0_115] : memref<128x1xf32, #tpu.memory_space<vmem>>, vector<128x1xf32>
    %219 = vector.broadcast %218 : vector<128x1xf32> to vector<128x128xf32>
    %220 = arith.addf %217, %219 : vector<128x128xf32>
    %cst_116 = arith.constant 0.000000e+00 : f32
    %221 = vector.broadcast %cst_116 : f32 to vector<128x128xf32>
    %222 = arith.cmpf ogt, %220, %221 : vector<128x128xf32>
    %223 = vector.broadcast %0 : f32 to vector<128x128xf32>
    %224 = arith.mulf %223, %220 : vector<128x128xf32>
    %225 = arith.select %222, %220, %224 : vector<128x128xi1>, vector<128x128xf32>
    %c0_117 = arith.constant 0 : index
    %c0_118 = arith.constant 0 : index
    %226 = vector.load %arg5[%c0_117, %c0_118] : memref<208x128xf32, #tpu.memory_space<vmem>>, vector<208x128xf32>
    %cst_119 = arith.constant dense<0.000000e+00> : vector<208x128xf32>
    %227 = tpu.matmul %226, %225, %cst_119 {dimension_numbers = #tpu.dot_dimension_numbers<[1], [0], [0], [1], [0, 0, 1, 1], [], []>} : vector<208x128xf32>, vector<128x128xf32>, vector<208x128xf32> -> vector<208x128xf32>
    %c0_120 = arith.constant 0 : index
    %c0_121 = arith.constant 0 : index
    %228 = vector.load %arg6[%c0_120, %c0_121] : memref<208x1xf32, #tpu.memory_space<vmem>>, vector<208x1xf32>
    %229 = vector.broadcast %228 : vector<208x1xf32> to vector<208x128xf32>
    %230 = arith.addf %227, %229 : vector<208x128xf32>
    %cst_122 = arith.constant 0.000000e+00 : f32
    %231 = vector.broadcast %cst_122 : f32 to vector<208x128xf32>
    %232 = arith.cmpf ogt, %230, %231 : vector<208x128xf32>
    %233 = vector.broadcast %0 : f32 to vector<208x128xf32>
    %234 = arith.mulf %233, %230 : vector<208x128xf32>
    %235 = arith.select %232, %230, %234 : vector<208x128xi1>, vector<208x128xf32>
    %c0_123 = arith.constant 0 : index
    %c0_124 = arith.constant 0 : index
    %236 = vector.load %arg7[%c0_123, %c0_124] : memref<1x208xf32, #tpu.memory_space<vmem>>, vector<1x208xf32>
    %cst_125 = arith.constant dense<0.000000e+00> : vector<1x128xf32>
    %237 = tpu.matmul %236, %235, %cst_125 {dimension_numbers = #tpu.dot_dimension_numbers<[1], [0], [0], [1], [0, 0, 1, 1], [], []>} : vector<1x208xf32>, vector<208x128xf32>, vector<1x128xf32> -> vector<1x128xf32>
    %238 = vector.broadcast %1 : f32 to vector<1x128xf32>
    %239 = arith.addf %237, %238 : vector<1x128xf32>
    %240 = arith.index_cast %c7_i32 : i32 to index
    %c0_126 = arith.constant 0 : index
    %241 = vector.load %arg8[%240, %c0_126] : memref<8x128xf32, #tpu.memory_space<vmem>>, vector<1x128xf32>
    tpu.vector_store %arg8[%240, %c0_126], %239 {strides = array<i32>} : memref<8x128xf32, #tpu.memory_space<vmem>>, vector<1x128xf32>,
    %c8_i32 = arith.constant 8 : i32
    return
  }
  func.func @transform_0(%arg0: i32) -> i32 {
    %c0_i32 = arith.constant 0 : i32
    %c0_i32_0 = arith.constant 0 : i32
    return %c0_i32 : i32
  }
  func.func @transform_1(%arg0: i32) -> (i32, i32) {
    %c0_i32 = arith.constant 0 : i32
    %c0_i32_0 = arith.constant 0 : i32
    return %arg0, %c0_i32 : i32, i32
  }
  func.func @transform_2(%arg0: i32) -> (i32, i32) {
    %c0_i32 = arith.constant 0 : i32
    %c0_i32_0 = arith.constant 0 : i32
    %c0_i32_1 = arith.constant 0 : i32
    return %c0_i32, %c0_i32_0 : i32, i32
  }
  func.func @transform_3(%arg0: i32) -> (i32, i32) {
    %c0_i32 = arith.constant 0 : i32
    %c0_i32_0 = arith.constant 0 : i32
    %c0_i32_1 = arith.constant 0 : i32
    return %c0_i32, %c0_i32_0 : i32, i32
  }
  func.func @transform_4(%arg0: i32) -> (i32, i32) {
    %c0_i32 = arith.constant 0 : i32
    %c0_i32_0 = arith.constant 0 : i32
    %c0_i32_1 = arith.constant 0 : i32
    return %c0_i32, %c0_i32_0 : i32, i32
  }
  func.func @transform_5(%arg0: i32) -> (i32, i32) {
    %c0_i32 = arith.constant 0 : i32
    %c0_i32_0 = arith.constant 0 : i32
    %c0_i32_1 = arith.constant 0 : i32
    return %c0_i32, %c0_i32_0 : i32, i32
  }
  func.func @transform_6(%arg0: i32) -> (i32, i32) {
    %c0_i32 = arith.constant 0 : i32
    %c0_i32_0 = arith.constant 0 : i32
    %c0_i32_1 = arith.constant 0 : i32
    return %c0_i32, %c0_i32_0 : i32, i32
  }
  func.func @transform_7(%arg0: i32) -> (i32, i32) {
    %c0_i32 = arith.constant 0 : i32
    %c0_i32_0 = arith.constant 0 : i32
    return %arg0, %c0_i32 : i32, i32
  }
}

</mosaic_0001>

<llo_original>
// kernel: tpu_custom_call.1
$region0: #{tpu_custom_call.1}
  #allocation0 [shape = 'u32[]', space=smem, size = 0x4, offset = 0x4, fixed_abs, tag = 'smem constant byte address 0x4 - core index']
  #allocation1 [shape = 'u32[144,128]{1,0:T(1,128)}', space=vmem, size = 0x12000, scoped, tag = 'internal scratch']
  %s0 = inlined_call_operand.vmem [shape: f32[2], index: 0, kind: input, shape index: {}]
  %s1 = inlined_call_operand.vmem [shape: f32[24,128], index: 1, kind: input, shape index: {}]
  %s2 = inlined_call_operand.vmem [shape: f32[128,1], index: 2, kind: input, shape index: {}]
  %s3 = inlined_call_operand.vmem [shape: f32[128,1], index: 3, kind: input, shape index: {}]
  %s4 = inlined_call_operand.vmem [shape: f32[208,128], index: 4, kind: input, shape index: {}]
  %s5 = inlined_call_operand.vmem [shape: f32[208,1], index: 5, kind: input, shape index: {}]
  %s6 = inlined_call_operand.vmem [shape: f32[1,208], index: 6, kind: input, shape index: {}]
  %s7 = inlined_call_operand.hbm [shape: f32[24,128], index: 7, kind: output, shape index: {}]
  %s8 = sld [smem:[#allocation0]]
  $region65: #{tpu_custom_call.1} parent=0
    _
  %s10 = ssub.s32 1, %s8
  %s11 = scalar_select 0, %s10, %s8
  $region1: #{tpu_custom_call.1} parent=0
    #allocation2 [shape = 'u8[512]{0}', space=smem, size = 0x200, scoped, tag = 'input window, operand 0, single buffered']
    #allocation3 [shape = 's32[2]{0}', space=sflag, size = 0x8, scoped, tag = 'scoped memory for tpu_custom_call.1']
    #allocation4 [shape = 's32[2]{0}', space=sflag, size = 0x8, scoped, tag = 'scoped memory for tpu_custom_call.1']
    #allocation5 [shape = 'u8[8192]{0}', space=vmem, size = 0x2000, scoped, tag = 'output window, operand 0']
    %12 = vsyncpa [#allocation4], 0
    %13 = vsyncpa [#allocation3], 0
    %s14 = scalar_lea.sflag [#allocation3], 1
    %15 = vsyncpa %s14, 0
    loop: start=0, step=1, limit=5
    $region2: #{tpu_custom_call.1} parent=1 // loop_pre_header
      _
    $region3: #{tpu_custom_call.1} parent=1 // loop_header
      %s17 = sphi 0, %s21
      %p18 = scmp.ge.s32.totalorder %s17, 5
      %s25 = sphi 0, %s25
      %s27 = sphi 0, %s25
      %s28 = sphi 0, %s27
      %s42 = sphi 0, %s28
      %s48 = sphi 0, %s50
      %s51 = sphi 0, %s48
      %s52 = sphi 0, %s51
      %s68 = sphi 0, %s52
      %s72 = sphi 0, %s72
      %s74 = sphi 0, %s72
      %s75 = sphi 0, %s74
      %s89 = sphi 0, %s75
      %s93 = sphi 0, %s93
      %s95 = sphi 0, %s93
      %s96 = sphi 0, %s95
      %s110 = sphi 0, %s96
      %s114 = sphi 0, %s114
      %s116 = sphi 0, %s114
      %s117 = sphi 0, %s116
      %s131 = sphi 0, %s117
      %s135 = sphi 0, %s135
      %s137 = sphi 0, %s135
      %s138 = sphi 0, %s137
      %s152 = sphi 0, %s138
      %s156 = sphi 0, %s156
      %s158 = sphi 0, %s156
      %s159 = sphi 0, %s158
      %s173 = sphi 0, %s159
      %s179 = sphi 0, %s181
      %s182 = sphi 0, %s179
      %s183 = sphi 0, %s182
      %s199 = sphi 0, %s183
    $region4: #{tpu_custom_call.1} parent=1 // loop_header_branch
      %20 = sbr.rel (%p18) target = $region8
    $region5: #{tpu_custom_call.1} parent=1 // loop_body
      %s22 = ssub.s32 %s17, 1
      %s23 = ssub.s32 %s17, 2
      %s24 = sadd.s32 %s17, 1
      %s26 = sadd.s32 %s25, 1
      %p29 = scmp.eq.s32.totalorder %s17, 2
      %p30 = scmp.ne.s32.totalorder %s25, %s27
      %p31 = scmp.eq.s32.totalorder %s17, 0
      %p32 = por %p30, %p31
      %p33 = scmp.ne.s32.totalorder %s25, %s27
      %p34 = scmp.eq.s32.totalorder %s22, 2
      %p35 = por %p33, %p34
      %p36 = scmp.ne.s32.totalorder %s27, %s28
      %p37 = scmp.eq.s32.totalorder %s22, 0
      %p38 = por %p36, %p37
      %p39 = scmp.ne.s32.totalorder %s27, %s28
      %p40 = scmp.eq.s32.totalorder %s23, 2
      %p41 = por %p39, %p40
      %p43 = scmp.ne.s32.totalorder %s28, %s42
      %p44 = scmp.eq.s32.totalorder %s23, 0
      %p45 = por %p43, %p44
      %s46 = ssub.s32 %s17, %s24
      %p47 = scmp.eq.s32.totalorder %s46, 0
      %s49 = sadd.s32 %s48, 1
      %s50 = scalar_select %p47, %s48, %s49
      %p53 = pneg %p47
      %p54 = scmp.eq.s32.totalorder %s17, 2
      %p55 = por %p53, %p54
      %p56 = scmp.ne.s32.totalorder %s48, %s51
      %p57 = scmp.eq.s32.totalorder %s17, 0
      %p58 = por %p56, %p57
      %p59 = scmp.ne.s32.totalorder %s48, %s51
      %p60 = scmp.eq.s32.totalorder %s22, 2
      %p61 = por %p59, %p60
      %p62 = scmp.ne.s32.totalorder %s51, %s52
      %p63 = scmp.eq.s32.totalorder %s22, 0
      %p64 = por %p62, %p63
      %p65 = scmp.ne.s32.totalorder %s51, %s52
      %p66 = scmp.eq.s32.totalorder %s23, 2
      %p67 = por %p65, %p66
      %p69 = scmp.ne.s32.totalorder %s52, %s68
      %p70 = scmp.eq.s32.totalorder %s23, 0
      %p71 = por %p69, %p70
      %s73 = sadd.s32 %s72, 1
      %p76 = scmp.eq.s32.totalorder %s17, 2
      %p77 = scmp.ne.s32.totalorder %s72, %s74
      %p78 = scmp.eq.s32.totalorder %s17, 0
      %p79 = por %p77, %p78
      %p80 = scmp.ne.s32.totalorder %s72, %s74
      %p81 = scmp.eq.s32.totalorder %s22, 2
      %p82 = por %p80, %p81
      %p83 = scmp.ne.s32.totalorder %s74, %s75
      %p84 = scmp.eq.s32.totalorder %s22, 0
      %p85 = por %p83, %p84
      %p86 = scmp.ne.s32.totalorder %s74, %s75
      %p87 = scmp.eq.s32.totalorder %s23, 2
      %p88 = por %p86, %p87
      %p90 = scmp.ne.s32.totalorder %s75, %s89
      %p91 = scmp.eq.s32.totalorder %s23, 0
      %p92 = por %p90, %p91
      %s94 = sadd.s32 %s93, 1
      %p97 = scmp.eq.s32.totalorder %s17, 2
      %p98 = scmp.ne.s32.totalorder %s93, %s95
      %p99 = scmp.eq.s32.totalorder %s17, 0
      %p100 = por %p98, %p99
      %p101 = scmp.ne.s32.totalorder %s93, %s95
      %p102 = scmp.eq.s32.totalorder %s22, 2
      %p103 = por %p101, %p102
      %p104 = scmp.ne.s32.totalorder %s95, %s96
      %p105 = scmp.eq.s32.totalorder %s22, 0
      %p106 = por %p104, %p105
      %p107 = scmp.ne.s32.totalorder %s95, %s96
      %p108 = scmp.eq.s32.totalorder %s23, 2
      %p109 = por %p107, %p108
      %p111 = scmp.ne.s32.totalorder %s96, %s110
      %p112 = scmp.eq.s32.totalorder %s23, 0
      %p113 = por %p111, %p112
      %s115 = sadd.s32 %s114, 1
      %p118 = scmp.eq.s32.totalorder %s17, 2
      %p119 = scmp.ne.s32.totalorder %s114, %s116
      %p120 = scmp.eq.s32.totalorder %s17, 0
      %p121 = por %p119, %p120
      %p122 = scmp.ne.s32.totalorder %s114, %s116
      %p123 = scmp.eq.s32.totalorder %s22, 2
      %p124 = por %p122, %p123
      %p125 = scmp.ne.s32.totalorder %s116, %s117
      %p126 = scmp.eq.s32.totalorder %s22, 0
      %p127 = por %p125, %p126
      %p128 = scmp.ne.s32.totalorder %s116, %s117
      %p129 = scmp.eq.s32.totalorder %s23, 2
      %p130 = por %p128, %p129
      %p132 = scmp.ne.s32.totalorder %s117, %s131
      %p133 = scmp.eq.s32.totalorder %s23, 0
      %p134 = por %p132, %p133
      %s136 = sadd.s32 %s135, 1
      %p139 = scmp.eq.s32.totalorder %s17, 2
      %p140 = scmp.ne.s32.totalorder %s135, %s137
      %p141 = scmp.eq.s32.totalorder %s17, 0
      %p142 = por %p140, %p141
      %p143 = scmp.ne.s32.totalorder %s135, %s137
      %p144 = scmp.eq.s32.totalorder %s22, 2
      %p145 = por %p143, %p144
      %p146 = scmp.ne.s32.totalorder %s137, %s138
      %p147 = scmp.eq.s32.totalorder %s22, 0
      %p148 = por %p146, %p147
      %p149 = scmp.ne.s32.totalorder %s137, %s138
      %p150 = scmp.eq.s32.totalorder %s23, 2
      %p151 = por %p149, %p150
      %p153 = scmp.ne.s32.totalorder %s138, %s152
      %p154 = scmp.eq.s32.totalorder %s23, 0
      %p155 = por %p153, %p154
      %s157 = sadd.s32 %s156, 1
      %p160 = scmp.eq.s32.totalorder %s17, 2
      %p161 = scmp.ne.s32.totalorder %s156, %s158
      %p162 = scmp.eq.s32.totalorder %s17, 0
      %p163 = por %p161, %p162
      %p164 = scmp.ne.s32.totalorder %s156, %s158
      %p165 = scmp.eq.s32.totalorder %s22, 2
      %p166 = por %p164, %p165
      %p167 = scmp.ne.s32.totalorder %s158, %s159
      %p168 = scmp.eq.s32.totalorder %s22, 0
      %p169 = por %p167, %p168
      %p170 = scmp.ne.s32.totalorder %s158, %s159
      %p171 = scmp.eq.s32.totalorder %s23, 2
      %p172 = por %p170, %p171
      %p174 = scmp.ne.s32.totalorder %s159, %s173
      %p175 = scmp.eq.s32.totalorder %s23, 0
      %p176 = por %p174, %p175
      %s177 = ssub.s32 %s17, %s24
      %p178 = scmp.eq.s32.totalorder %s177, 0
      %s180 = sadd.s32 %s179, 1
      %s181 = scalar_select %p178, %s179, %s180
      %p184 = pneg %p178
      %p185 = scmp.eq.s32.totalorder %s17, 2
      %p186 = por %p184, %p185
      %p187 = scmp.ne.s32.totalorder %s179, %s182
      %p188 = scmp.eq.s32.totalorder %s17, 0
      %p189 = por %p187, %p188
      %p190 = scmp.ne.s32.totalorder %s179, %s182
      %p191 = scmp.eq.s32.totalorder %s22, 2
      %p192 = por %p190, %p191
      %p193 = scmp.ne.s32.totalorder %s182, %s183
      %p194 = scmp.eq.s32.totalorder %s22, 0
      %p195 = por %p193, %p194
      %p196 = scmp.ne.s32.totalorder %s182, %s183
      %p197 = scmp.eq.s32.totalorder %s23, 2
      %p198 = por %p196, %p197
      %p200 = scmp.ne.s32.totalorder %s183, %s199
      %p201 = scmp.eq.s32.totalorder %s23, 0
      %p202 = por %p200, %p201
      %p203 = scmp.le.s32.totalorder 1, %s17
      %p204 = scmp.lt.s32.totalorder %s17, 4
      %p205 = pnand %p203, %p204
      %p206 = pneg %p205
      // Predicated region
      $region9: #{tpu_custom_call.1} parent=5 // pred_check
        _
      $region10: #{tpu_custom_call.1} parent=5 // pred_check_branch
        %208 = sbr.rel (%p205) target = $region12
      $region11: #{tpu_custom_call.1} parent=5 // pred_region
        %s209 = ssub.s32 %s17, 1
        // Predicated region
        $region13: #{tpu_custom_call.1} parent=11 // pred_check
          %p210 = pneg %p38
        $region14: #{tpu_custom_call.1} parent=11 // pred_check_branch
          %212 = sbr.rel (%p210) target = $region16
        $region15: #{tpu_custom_call.1} parent=11 // pred_region
          %s214 = ssub.s32 16, 16
          %215 = vsyncadd [#allocation4], %s214
          %s217 = sshll.u32 %s0, 4
          %s218 = int_to_ptr.vmem [resolvable:$true] %s217
          %220 = dma.vmem_to_smem %s218, 16, [#allocation2], [#allocation4]
        $region16: #{tpu_custom_call.1} parent=11 // pred_fallthru
          _
        // Predicated region
        $region17: #{tpu_custom_call.1} parent=11 // pred_check
          %p221 = pneg %p85
        $region18: #{tpu_custom_call.1} parent=11 // pred_check_branch
          %223 = sbr.rel (%p221) target = $region20
        $region19: #{tpu_custom_call.1} parent=11 // pred_region
          _
        $region20: #{tpu_custom_call.1} parent=11 // pred_fallthru
          _
        // Predicated region
        $region21: #{tpu_custom_call.1} parent=11 // pred_check
          %p224 = pneg %p106
        $region22: #{tpu_custom_call.1} parent=11 // pred_check_branch
          %226 = sbr.rel (%p224) target = $region24
        $region23: #{tpu_custom_call.1} parent=11 // pred_region
          _
        $region24: #{tpu_custom_call.1} parent=11 // pred_fallthru
          _
        // Predicated region
        $region25: #{tpu_custom_call.1} parent=11 // pred_check
          %p227 = pneg %p127
        $region26: #{tpu_custom_call.1} parent=11 // pred_check_branch
          %229 = sbr.rel (%p227) target = $region28
        $region27: #{tpu_custom_call.1} parent=11 // pred_region
          _
        $region28: #{tpu_custom_call.1} parent=11 // pred_fallthru
          _
        // Predicated region
        $region29: #{tpu_custom_call.1} parent=11 // pred_check
          %p230 = pneg %p148
        $region30: #{tpu_custom_call.1} parent=11 // pred_check_branch
          %232 = sbr.rel (%p230) target = $region32
        $region31: #{tpu_custom_call.1} parent=11 // pred_region
          _
        $region32: #{tpu_custom_call.1} parent=11 // pred_fallthru
          _
        // Predicated region
        $region33: #{tpu_custom_call.1} parent=11 // pred_check
          %p233 = pneg %p169
        $region34: #{tpu_custom_call.1} parent=11 // pred_check_branch
          %235 = sbr.rel (%p233) target = $region36
        $region35: #{tpu_custom_call.1} parent=11 // pred_region
          _
        $region36: #{tpu_custom_call.1} parent=11 // pred_fallthru
          _
      $region12: #{tpu_custom_call.1} parent=5 // pred_fallthru
        _
      %p236 = scmp.lt.s32.totalorder %s17, 3
      // Predicated region
      $region37: #{tpu_custom_call.1} parent=5 // pred_check
        %p237 = pneg %p236
      $region38: #{tpu_custom_call.1} parent=5 // pred_check_branch
        %239 = sbr.rel (%p237) target = $region40
      $region39: #{tpu_custom_call.1} parent=5 // pred_region
        // Predicated region
        $region41: #{tpu_custom_call.1} parent=39 // pred_check
          %p240 = pneg %p58
        $region42: #{tpu_custom_call.1} parent=39 // pred_check_branch
          %242 = sbr.rel (%p240) target = $region44
        $region43: #{tpu_custom_call.1} parent=39 // pred_region
          %p243 = scmp.lt.s32.totalorder %s17, 2
          %s244 = scalar_select %p243, %s17, 2
          %s245 = smul.addr %s244, 8
          %s246 = scalar_lea.vmem %s1, %s245
        $region44: #{tpu_custom_call.1} parent=39 // pred_fallthru
          _
      $region40: #{tpu_custom_call.1} parent=5 // pred_fallthru
        _
      %p247 = scmp.le.s32.totalorder 1, %s17
      %p248 = scmp.lt.s32.totalorder %s17, 4
      %p249 = pnand %p247, %p248
      %p250 = pneg %p249
      // Predicated region
      $region45: #{tpu_custom_call.1} parent=5 // pred_check
        _
      $region46: #{tpu_custom_call.1} parent=5 // pred_check_branch
        %252 = sbr.rel (%p249) target = $region48
      $region47: #{tpu_custom_call.1} parent=5 // pred_region
        %s253 = ssub.s32 %s17, 1
        // Predicated region
        $region49: #{tpu_custom_call.1} parent=47 // pred_check
          %p254 = pneg %p38
        $region50: #{tpu_custom_call.1} parent=47 // pred_check_branch
          %256 = sbr.rel (%p254) target = $region52
        $region51: #{tpu_custom_call.1} parent=47 // pred_region
          %257 = dma.done [#allocation4], 16
        $region52: #{tpu_custom_call.1} parent=47 // pred_fallthru
          _
        %258 = sfence
        %p259 = pneg %p38
        %p260 = pneg %p35
        %p261 = scmp.lt.s32.totalorder %s22, 2
        %s262 = scalar_select %p261, %s22, 2
        %s263 = smul.addr %s262, 8
        %s264 = scalar_lea.vmem %s1, %s263
        %p265 = pneg %p64
        %p266 = pneg %p61
        %p267 = pneg %p85
        %p268 = pneg %p82
        %p269 = pneg %p106
        %p270 = pneg %p103
        %p271 = pneg %p127
        %p272 = pneg %p124
        %p273 = pneg %p148
        %p274 = pneg %p145
        %p275 = pneg %p169
        %p276 = pneg %p166
        %p277 = pneg %p195
        %p278 = pneg %p192
        %s279 = sand.u32 %s182, 1
        %s280 = scalar_lea.sflag [#allocation3], %s279
        %s281 = sand.u32 %s182, 1
        %s282 = smul.addr %s281, 8
        %s283 = scalar_lea.vmem [#allocation5], %s282
        %p284 = scmp.lt.s32.totalorder %s22, 2
        %s285 = scalar_select %p284, %s22, 2
        %s286 = smul.addr %s285, 8
        %s287 = scalar_lea.vmem %s1, %s286
        %s288 = sld [smem:[#allocation2]]
        %s289 = sld [smem:[#allocation2 + $0x1]]
        %v290 = vld [vmem:[%s287] sm:$0x1]
        %v291 = vld [vmem:[%s2] sm:$0xff]
        %v292 = vld [vmem:[%s2 + $0x8] sm:$0xff]
        %v293 = vld [vmem:[%s2 + $0x10] sm:$0xff]
        %v294 = vld [vmem:[%s2 + $0x18] sm:$0xff]
        %v295 = vld [vmem:[%s2 + $0x20] sm:$0xff]
        %v296 = vld [vmem:[%s2 + $0x28] sm:$0xff]
        %v297 = vld [vmem:[%s2 + $0x30] sm:$0xff]
        %v298 = vld [vmem:[%s2 + $0x38] sm:$0xff]
        %v299 = vld [vmem:[%s2 + $0x40] sm:$0xff]
        %v300 = vld [vmem:[%s2 + $0x48] sm:$0xff]
        %v301 = vld [vmem:[%s2 + $0x50] sm:$0xff]
        %v302 = vld [vmem:[%s2 + $0x58] sm:$0xff]
        %v303 = vld [vmem:[%s2 + $0x60] sm:$0xff]
        %v304 = vld [vmem:[%s2 + $0x68] sm:$0xff]
        %v305 = vld [vmem:[%s2 + $0x70] sm:$0xff]
        %v306 = vld [vmem:[%s2 + $0x78] sm:$0xff]
        %308 = vset.pattern.permute.xlu0 0
        %309 = vperm.xlu0 %308, %v291
        %v310 = vpop.permute.xlu0 %309
        %313 = vset.pattern.permute.xlu0 0
        %314 = vperm.xlu0 %313, %v292
        %v315 = vpop.permute.xlu0 %314
        %318 = vset.pattern.permute.xlu0 0
        %319 = vperm.xlu0 %318, %v293
        %v320 = vpop.permute.xlu0 %319
        %323 = vset.pattern.permute.xlu0 0
        %324 = vperm.xlu0 %323, %v294
        %v325 = vpop.permute.xlu0 %324
        %328 = vset.pattern.permute.xlu0 0
        %329 = vperm.xlu0 %328, %v295
        %v330 = vpop.permute.xlu0 %329
        %333 = vset.pattern.permute.xlu0 0
        %334 = vperm.xlu0 %333, %v296
        %v335 = vpop.permute.xlu0 %334
        %338 = vset.pattern.permute.xlu0 0
        %339 = vperm.xlu0 %338, %v297
        %v340 = vpop.permute.xlu0 %339
        %343 = vset.pattern.permute.xlu0 0
        %344 = vperm.xlu0 %343, %v298
        %v345 = vpop.permute.xlu0 %344
        %348 = vset.pattern.permute.xlu0 0
        %349 = vperm.xlu0 %348, %v299
        %v350 = vpop.permute.xlu0 %349
        %353 = vset.pattern.permute.xlu0 0
        %354 = vperm.xlu0 %353, %v300
        %v355 = vpop.permute.xlu0 %354
        %358 = vset.pattern.permute.xlu0 0
        %359 = vperm.xlu0 %358, %v301
        %v360 = vpop.permute.xlu0 %359
        %363 = vset.pattern.permute.xlu0 0
        %364 = vperm.xlu0 %363, %v302
        %v365 = vpop.permute.xlu0 %364
        %368 = vset.pattern.permute.xlu0 0
        %369 = vperm.xlu0 %368, %v303
        %v370 = vpop.permute.xlu0 %369
        %373 = vset.pattern.permute.xlu0 0
        %374 = vperm.xlu0 %373, %v304
        %v375 = vpop.permute.xlu0 %374
        %378 = vset.pattern.permute.xlu0 0
        %379 = vperm.xlu0 %378, %v305
        %v380 = vpop.permute.xlu0 %379
        %383 = vset.pattern.permute.xlu0 0
        %384 = vperm.xlu0 %383, %v306
        %v385 = vpop.permute.xlu0 %384
        %v387 = vlaneseq
        %v388 = vshrl.u32 %v387, 7
        %v389 = vsub.s32 0, %v388
        %v390 = vrot.slane %v290, %v389
        %v391 = vmul.f32 %v310, %v390
        %v392 = vmul.f32 %v315, %v390
        %v393 = vmul.f32 %v320, %v390
        %v394 = vmul.f32 %v325, %v390
        %v395 = vmul.f32 %v330, %v390
        %v396 = vmul.f32 %v335, %v390
        %v397 = vmul.f32 %v340, %v390
        %v398 = vmul.f32 %v345, %v390
        %v399 = vmul.f32 %v350, %v390
        %v400 = vmul.f32 %v355, %v390
        %v401 = vmul.f32 %v360, %v390
        %v402 = vmul.f32 %v365, %v390
        %v403 = vmul.f32 %v370, %v390
        %v404 = vmul.f32 %v375, %v390
        %v405 = vmul.f32 %v380, %v390
        %v406 = vmul.f32 %v385, %v390
        %v407 = vld [vmem:[%s3] sm:$0xff]
        %v408 = vld [vmem:[%s3 + $0x8] sm:$0xff]
        %v409 = vld [vmem:[%s3 + $0x10] sm:$0xff]
        %v410 = vld [vmem:[%s3 + $0x18] sm:$0xff]
        %v411 = vld [vmem:[%s3 + $0x20] sm:$0xff]
        %v412 = vld [vmem:[%s3 + $0x28] sm:$0xff]
        %v413 = vld [vmem:[%s3 + $0x30] sm:$0xff]
        %v414 = vld [vmem:[%s3 + $0x38] sm:$0xff]
        %v415 = vld [vmem:[%s3 + $0x40] sm:$0xff]
        %v416 = vld [vmem:[%s3 + $0x48] sm:$0xff]
        %v417 = vld [vmem:[%s3 + $0x50] sm:$0xff]
        %v418 = vld [vmem:[%s3 + $0x58] sm:$0xff]
        %v419 = vld [vmem:[%s3 + $0x60] sm:$0xff]
        %v420 = vld [vmem:[%s3 + $0x68] sm:$0xff]
        %v421 = vld [vmem:[%s3 + $0x70] sm:$0xff]
        %v422 = vld [vmem:[%s3 + $0x78] sm:$0xff]
        %424 = vset.pattern.permute.xlu0 0
        %425 = vperm.xlu0 %424, %v407
        %v426 = vpop.permute.xlu0 %425
        %429 = vset.pattern.permute.xlu0 0
        %430 = vperm.xlu0 %429, %v408
        %v431 = vpop.permute.xlu0 %430
        %434 = vset.pattern.permute.xlu0 0
        %435 = vperm.xlu0 %434, %v409
        %v436 = vpop.permute.xlu0 %435
        %439 = vset.pattern.permute.xlu0 0
        %440 = vperm.xlu0 %439, %v410
        %v441 = vpop.permute.xlu0 %440
        %444 = vset.pattern.permute.xlu0 0
        %445 = vperm.xlu0 %444, %v411
        %v446 = vpop.permute.xlu0 %445
        %449 = vset.pattern.permute.xlu0 0
        %450 = vperm.xlu0 %449, %v412
        %v451 = vpop.permute.xlu0 %450
        %454 = vset.pattern.permute.xlu0 0
        %455 = vperm.xlu0 %454, %v413
        %v456 = vpop.permute.xlu0 %455
        %459 = vset.pattern.permute.xlu0 0
        %460 = vperm.xlu0 %459, %v414
        %v461 = vpop.permute.xlu0 %460
        %464 = vset.pattern.permute.xlu0 0
        %465 = vperm.xlu0 %464, %v415
        %v466 = vpop.permute.xlu0 %465
        %469 = vset.pattern.permute.xlu0 0
        %470 = vperm.xlu0 %469, %v416
        %v471 = vpop.permute.xlu0 %470
        %474 = vset.pattern.permute.xlu0 0
        %475 = vperm.xlu0 %474, %v417
        %v476 = vpop.permute.xlu0 %475
        %479 = vset.pattern.permute.xlu0 0
        %480 = vperm.xlu0 %479, %v418
        %v481 = vpop.permute.xlu0 %480
        %484 = vset.pattern.permute.xlu0 0
        %485 = vperm.xlu0 %484, %v419
        %v486 = vpop.permute.xlu0 %485
        %489 = vset.pattern.permute.xlu0 0
        %490 = vperm.xlu0 %489, %v420
        %v491 = vpop.permute.xlu0 %490
        %494 = vset.pattern.permute.xlu0 0
        %495 = vperm.xlu0 %494, %v421
        %v496 = vpop.permute.xlu0 %495
        %499 = vset.pattern.permute.xlu0 0
        %500 = vperm.xlu0 %499, %v422
        %v501 = vpop.permute.xlu0 %500
        %v503 = vadd.f32 %v391, %v426
        %v504 = vadd.f32 %v392, %v431
        %v505 = vadd.f32 %v393, %v436
        %v506 = vadd.f32 %v394, %v441
        %v507 = vadd.f32 %v395, %v446
        %v508 = vadd.f32 %v396, %v451
        %v509 = vadd.f32 %v397, %v456
        %v510 = vadd.f32 %v398, %v461
        %v511 = vadd.f32 %v399, %v466
        %v512 = vadd.f32 %v400, %v471
        %v513 = vadd.f32 %v401, %v476
        %v514 = vadd.f32 %v402, %v481
        %v515 = vadd.f32 %v403, %v486
        %v516 = vadd.f32 %v404, %v491
        %v517 = vadd.f32 %v405, %v496
        %v518 = vadd.f32 %v406, %v501
        %vm519 = vcmp.gt.f32.partialorder %v503, 0.0
        %vm520 = vcmp.gt.f32.partialorder %v504, 0.0
        %vm521 = vcmp.gt.f32.partialorder %v505, 0.0
        %vm522 = vcmp.gt.f32.partialorder %v506, 0.0
        %vm523 = vcmp.gt.f32.partialorder %v507, 0.0
        %vm524 = vcmp.gt.f32.partialorder %v508, 0.0
        %vm525 = vcmp.gt.f32.partialorder %v509, 0.0
        %vm526 = vcmp.gt.f32.partialorder %v510, 0.0
        %vm527 = vcmp.gt.f32.partialorder %v511, 0.0
        %vm528 = vcmp.gt.f32.partialorder %v512, 0.0
        %vm529 = vcmp.gt.f32.partialorder %v513, 0.0
        %vm530 = vcmp.gt.f32.partialorder %v514, 0.0
        %vm531 = vcmp.gt.f32.partialorder %v515, 0.0
        %vm532 = vcmp.gt.f32.partialorder %v516, 0.0
        %vm533 = vcmp.gt.f32.partialorder %v517, 0.0
        %vm534 = vcmp.gt.f32.partialorder %v518, 0.0
        %v535 = vstv %s288
        %v536 = vmul.f32 %v535, %v503
        %v537 = vmul.f32 %v535, %v504
        %v538 = vmul.f32 %v535, %v505
        %v539 = vmul.f32 %v535, %v506
        %v540 = vmul.f32 %v535, %v507
        %v541 = vmul.f32 %v535, %v508
        %v542 = vmul.f32 %v535, %v509
        %v543 = vmul.f32 %v535, %v510
        %v544 = vmul.f32 %v535, %v511
        %v545 = vmul.f32 %v535, %v512
        %v546 = vmul.f32 %v535, %v513
        %v547 = vmul.f32 %v535, %v514
        %v548 = vmul.f32 %v535, %v515
        %v549 = vmul.f32 %v535, %v516
        %v550 = vmul.f32 %v535, %v517
        %v551 = vmul.f32 %v535, %v518
        %v552 = vsel %vm519, %v503, %v536
        %v553 = vsel %vm520, %v504, %v537
        %v554 = vsel %vm521, %v505, %v538
        %v555 = vsel %vm522, %v506, %v539
        %v556 = vsel %vm523, %v507, %v540
        %v557 = vsel %vm524, %v508, %v541
        %v558 = vsel %vm525, %v509, %v542
        %v559 = vsel %vm526, %v510, %v543
        %v560 = vsel %vm527, %v511, %v544
        %v561 = vsel %vm528, %v512, %v545
        %v562 = vsel %vm529, %v513, %v546
        %v563 = vsel %vm530, %v514, %v547
        %v564 = vsel %vm531, %v515, %v548
        %v565 = vsel %vm532, %v516, %v549
        %v566 = vsel %vm533, %v517, %v550
        %v567 = vsel %vm534, %v518, %v551
        %v568 = vld [vmem:[%s4] sm:$0xff]
        %v569 = vld [vmem:[%s4 + $0x8] sm:$0xff]
        %v570 = vld [vmem:[%s4 + $0x10] sm:$0xff]
        %v571 = vld [vmem:[%s4 + $0x18] sm:$0xff]
        %v572 = vld [vmem:[%s4 + $0x20] sm:$0xff]
        %v573 = vld [vmem:[%s4 + $0x28] sm:$0xff]
        %v574 = vld [vmem:[%s4 + $0x30] sm:$0xff]
        %v575 = vld [vmem:[%s4 + $0x38] sm:$0xff]
        %v576 = vld [vmem:[%s4 + $0x40] sm:$0xff]
        %v577 = vld [vmem:[%s4 + $0x48] sm:$0xff]
        %v578 = vld [vmem:[%s4 + $0x50] sm:$0xff]
        %v579 = vld [vmem:[%s4 + $0x58] sm:$0xff]
        %v580 = vld [vmem:[%s4 + $0x60] sm:$0xff]
        %v581 = vld [vmem:[%s4 + $0x68] sm:$0xff]
        %v582 = vld [vmem:[%s4 + $0x70] sm:$0xff]
        %v583 = vld [vmem:[%s4 + $0x78] sm:$0xff]
        %v584 = vld [vmem:[%s4 + $0x80] sm:$0xff]
        %v585 = vld [vmem:[%s4 + $0x88] sm:$0xff]
        %v586 = vld [vmem:[%s4 + $0x90] sm:$0xff]
        %v587 = vld [vmem:[%s4 + $0x98] sm:$0xff]
        %v588 = vld [vmem:[%s4 + $0xa0] sm:$0xff]
        %v589 = vld [vmem:[%s4 + $0xa8] sm:$0xff]
        %v590 = vld [vmem:[%s4 + $0xb0] sm:$0xff]
        %v591 = vld [vmem:[%s4 + $0xb8] sm:$0xff]
        %v592 = vld [vmem:[%s4 + $0xc0] sm:$0xff]
        %v593 = vld [vmem:[%s4 + $0xc8] sm:$0xff]
        %v594 = vld [vmem:[%s5] sm:$0xff]
        %v595 = vld [vmem:[%s5 + $0x8] sm:$0xff]
        %v596 = vld [vmem:[%s5 + $0x10] sm:$0xff]
        %v597 = vld [vmem:[%s5 + $0x18] sm:$0xff]
        %v598 = vld [vmem:[%s5 + $0x20] sm:$0xff]
        %v599 = vld [vmem:[%s5 + $0x28] sm:$0xff]
        %v600 = vld [vmem:[%s5 + $0x30] sm:$0xff]
        %v601 = vld [vmem:[%s5 + $0x38] sm:$0xff]
        %v602 = vld [vmem:[%s5 + $0x40] sm:$0xff]
        %v603 = vld [vmem:[%s5 + $0x48] sm:$0xff]
        %v604 = vld [vmem:[%s5 + $0x50] sm:$0xff]
        %v605 = vld [vmem:[%s5 + $0x58] sm:$0xff]
        %v606 = vld [vmem:[%s5 + $0x60] sm:$0xff]
        %v607 = vld [vmem:[%s5 + $0x68] sm:$0xff]
        %v608 = vld [vmem:[%s5 + $0x70] sm:$0xff]
        %v609 = vld [vmem:[%s5 + $0x78] sm:$0xff]
        %v610 = vld [vmem:[%s5 + $0x80] sm:$0xff]
        %v611 = vld [vmem:[%s5 + $0x88] sm:$0xff]
        %v612 = vld [vmem:[%s5 + $0x90] sm:$0xff]
        %v613 = vld [vmem:[%s5 + $0x98] sm:$0xff]
        %v614 = vld [vmem:[%s5 + $0xa0] sm:$0xff]
        %v615 = vld [vmem:[%s5 + $0xa8] sm:$0xff]
        %v616 = vld [vmem:[%s5 + $0xb0] sm:$0xff]
        %v617 = vld [vmem:[%s5 + $0xb8] sm:$0xff]
        %v618 = vld [vmem:[%s5 + $0xc0] sm:$0xff]
        %v619 = vld [vmem:[%s5 + $0xc8] sm:$0xff]
        %621 = vset.pattern.permute.xlu0 0
        %622 = vperm.xlu0 %621, %v594
        %v623 = vpop.permute.xlu0 %622
        %626 = vset.pattern.permute.xlu0 0
        %627 = vperm.xlu0 %626, %v595
        %v628 = vpop.permute.xlu0 %627
        %631 = vset.pattern.permute.xlu0 0
        %632 = vperm.xlu0 %631, %v596
        %v633 = vpop.permute.xlu0 %632
        %636 = vset.pattern.permute.xlu0 0
        %637 = vperm.xlu0 %636, %v597
        %v638 = vpop.permute.xlu0 %637
        %641 = vset.pattern.permute.xlu0 0
        %642 = vperm.xlu0 %641, %v598
        %v643 = vpop.permute.xlu0 %642
        %646 = vset.pattern.permute.xlu0 0
        %647 = vperm.xlu0 %646, %v599
        %v648 = vpop.permute.xlu0 %647
        %651 = vset.pattern.permute.xlu0 0
        %652 = vperm.xlu0 %651, %v600
        %v653 = vpop.permute.xlu0 %652
        %656 = vset.pattern.permute.xlu0 0
        %657 = vperm.xlu0 %656, %v601
        %v658 = vpop.permute.xlu0 %657
        %661 = vset.pattern.permute.xlu0 0
        %662 = vperm.xlu0 %661, %v602
        %v663 = vpop.permute.xlu0 %662
        %666 = vset.pattern.permute.xlu0 0
        %667 = vperm.xlu0 %666, %v603
        %v668 = vpop.permute.xlu0 %667
        %671 = vset.pattern.permute.xlu0 0
        %672 = vperm.xlu0 %671, %v604
        %v673 = vpop.permute.xlu0 %672
        %676 = vset.pattern.permute.xlu0 0
        %677 = vperm.xlu0 %676, %v605
        %v678 = vpop.permute.xlu0 %677
        %681 = vset.pattern.permute.xlu0 0
        %682 = vperm.xlu0 %681, %v606
        %v683 = vpop.permute.xlu0 %682
        %686 = vset.pattern.permute.xlu0 0
        %687 = vperm.xlu0 %686, %v607
        %v688 = vpop.permute.xlu0 %687
        %691 = vset.pattern.permute.xlu0 0
        %692 = vperm.xlu0 %691, %v608
        %v693 = vpop.permute.xlu0 %692
        %696 = vset.pattern.permute.xlu0 0
        %697 = vperm.xlu0 %696, %v609
        %v698 = vpop.permute.xlu0 %697
        %701 = vset.pattern.permute.xlu0 0
        %702 = vperm.xlu0 %701, %v610
        %v703 = vpop.permute.xlu0 %702
        %706 = vset.pattern.permute.xlu0 0
        %707 = vperm.xlu0 %706, %v611
        %v708 = vpop.permute.xlu0 %707
        %711 = vset.pattern.permute.xlu0 0
        %712 = vperm.xlu0 %711, %v612
        %v713 = vpop.permute.xlu0 %712
        %716 = vset.pattern.permute.xlu0 0
        %717 = vperm.xlu0 %716, %v613
        %v718 = vpop.permute.xlu0 %717
        %721 = vset.pattern.permute.xlu0 0
        %722 = vperm.xlu0 %721, %v614
        %v723 = vpop.permute.xlu0 %722
        %726 = vset.pattern.permute.xlu0 0
        %727 = vperm.xlu0 %726, %v615
        %v728 = vpop.permute.xlu0 %727
        %731 = vset.pattern.permute.xlu0 0
        %732 = vperm.xlu0 %731, %v616
        %v733 = vpop.permute.xlu0 %732
        %736 = vset.pattern.permute.xlu0 0
        %737 = vperm.xlu0 %736, %v617
        %v738 = vpop.permute.xlu0 %737
        %741 = vset.pattern.permute.xlu0 0
        %742 = vperm.xlu0 %741, %v618
        %v743 = vpop.permute.xlu0 %742
        %746 = vset.pattern.permute.xlu0 0
        %747 = vperm.xlu0 %746, %v619
        %v748 = vpop.permute.xlu0 %747
        %750 = vmatprep.subr.mxu0 0.0
        %751 = vmatpush1.msra.mxu0 %v552
        %752 = vmatprep.subr.mxu0 0.0
        %753 = vmatpush1.msra.mxu0 %v553
        %754 = vmatprep.subr.mxu0 0.0
        %755 = vmatpush1.msra.mxu0 %v554
        %756 = vmatprep.subr.mxu0 0.0
        %757 = vmatpush1.msra.mxu0 %v555
        %758 = vmatprep.subr.mxu0 0.0
        %759 = vmatpush1.msra.mxu0 %v556
        %760 = vmatprep.subr.mxu0 0.0
        %761 = vmatpush1.msra.mxu0 %v557
        %762 = vmatprep.subr.mxu0 0.0
        %763 = vmatpush1.msra.mxu0 %v558
        %764 = vmatprep.subr.mxu0 0.0
        %765 = vmatpush1.msra.mxu0 %v559
        %766 = vmatprep.subr.mxu0 0.0
        %767 = vmatpush1.msra.mxu0 %v560
        %768 = vmatprep.subr.mxu0 0.0
        %769 = vmatpush1.msra.mxu0 %v561
        %770 = vmatprep.subr.mxu0 0.0
        %771 = vmatpush1.msra.mxu0 %v562
        %772 = vmatprep.subr.mxu0 0.0
        %773 = vmatpush1.msra.mxu0 %v563
        %774 = vmatprep.subr.mxu0 0.0
        %775 = vmatpush1.msra.mxu0 %v564
        %776 = vmatprep.subr.mxu0 0.0
        %777 = vmatpush1.msra.mxu0 %v565
        %778 = vmatprep.subr.mxu0 0.0
        %779 = vmatpush1.msra.mxu0 %v566
        %780 = vmatprep.subr.mxu0 0.0
        %781 = vmatpush1.msra.mxu0 %v567
        %782 = vmatprep.subr.mxu0 0.0
        %783 = vmatpush1.msra.mxu0 0.0
        %784 = vmatprep.subr.mxu0 0.0
        %785 = vmatpush1.msra.mxu0 0.0
        %786 = vmatprep.subr.mxu0 0.0
        %787 = vmatpush1.msra.mxu0 0.0
        %788 = vmatprep.subr.mxu0 0.0
        %789 = vmatpush1.msra.mxu0 0.0
        %790 = vmatprep.subr.mxu0 0.0
        %791 = vmatpush1.msra.mxu0 0.0
        %792 = vmatprep.subr.mxu0 0.0
        %793 = vmatpush1.msra.mxu0 0.0
        %794 = vmatprep.subr.mxu0 0.0
        %795 = vmatpush1.msra.mxu0 0.0
        %796 = vmatprep.subr.mxu0 0.0
        %797 = vmatpush1.msra.mxu0 0.0
        %798 = vmatprep.subr.mxu0 0.0
        %799 = vmatpush1.msra.mxu0 0.0
        %800 = vmatprep.subr.mxu0 0.0
        %801 = vmatpush1.msra.mxu0 0.0
        %802 = vmatprep.subr.mxu0 0.0
        %803 = vmatpush1.msra.mxu0 0.0
        %804 = vmatprep.subr.mxu0 0.0
        %805 = vmatpush1.msra.mxu0 0.0
        %806 = vmatprep.subr.mxu0 0.0
        %807 = vmatpush1.msra.mxu0 0.0
        %808 = vmatprep.subr.mxu0 0.0
        %809 = vmatpush1.msra.mxu0 0.0
        %810 = vmatprep.subr.mxu0 0.0
        %811 = vmatpush1.msra.mxu0 0.0
        %812 = vmatprep.subr.mxu0 0.0
        %813 = vmatpush1.msra.mxu0 0.0
        %814 = vmatprep.mubr.f32.mxu0 0.0
        %815 = vmatmul.mubr.f32.gmra.mrb[0].mxu0 %v568
        %v816 = vpop.f32.mrb[0].mxu0
        %v817 = vadd.f32 %v623, %v816
        %v818 = vpop.f32.mrb[0].mxu0
        %819 = vmatprep.mubr.f32.mxu0 0.0
        %820 = vmatmul.mubr.f32.gmra.mrb[0].mxu0 %v569
        %v821 = vpop.f32.mrb[0].mxu0
        %v822 = vadd.f32 %v628, %v821
        %v823 = vpop.f32.mrb[0].mxu0
        %824 = vmatprep.mubr.f32.mxu0 0.0
        %825 = vmatmul.mubr.f32.gmra.mrb[0].mxu0 %v570
        %v826 = vpop.f32.mrb[0].mxu0
        %v827 = vadd.f32 %v633, %v826
        %v828 = vpop.f32.mrb[0].mxu0
        %829 = vmatprep.mubr.f32.mxu0 0.0
        %830 = vmatmul.mubr.f32.gmra.mrb[0].mxu0 %v571
        %v831 = vpop.f32.mrb[0].mxu0
        %v832 = vadd.f32 %v638, %v831
        %v833 = vpop.f32.mrb[0].mxu0
        %834 = vmatprep.mubr.f32.mxu0 0.0
        %835 = vmatmul.mubr.f32.gmra.mrb[0].mxu0 %v572
        %v836 = vpop.f32.mrb[0].mxu0
        %v837 = vadd.f32 %v643, %v836
        %v838 = vpop.f32.mrb[0].mxu0
        %839 = vmatprep.mubr.f32.mxu0 0.0
        %840 = vmatmul.mubr.f32.gmra.mrb[0].mxu0 %v573
        %v841 = vpop.f32.mrb[0].mxu0
        %v842 = vadd.f32 %v648, %v841
        %v843 = vpop.f32.mrb[0].mxu0
        %844 = vmatprep.mubr.f32.mxu0 0.0
        %845 = vmatmul.mubr.f32.gmra.mrb[0].mxu0 %v574
        %v846 = vpop.f32.mrb[0].mxu0
        %v847 = vadd.f32 %v653, %v846
        %v848 = vpop.f32.mrb[0].mxu0
        %849 = vmatprep.mubr.f32.mxu0 0.0
        %850 = vmatmul.mubr.f32.gmra.mrb[0].mxu0 %v575
        %v851 = vpop.f32.mrb[0].mxu0
        %v852 = vadd.f32 %v658, %v851
        %v853 = vpop.f32.mrb[0].mxu0
        %854 = vmatprep.mubr.f32.mxu0 0.0
        %855 = vmatmul.mubr.f32.gmra.mrb[0].mxu0 %v576
        %v856 = vpop.f32.mrb[0].mxu0
        %v857 = vadd.f32 %v663, %v856
        %v858 = vpop.f32.mrb[0].mxu0
        %859 = vmatprep.mubr.f32.mxu0 0.0
        %860 = vmatmul.mubr.f32.gmra.mrb[0].mxu0 %v577
        %v861 = vpop.f32.mrb[0].mxu0
        %v862 = vadd.f32 %v668, %v861
        %v863 = vpop.f32.mrb[0].mxu0
        %864 = vmatprep.mubr.f32.mxu0 0.0
        %865 = vmatmul.mubr.f32.gmra.mrb[0].mxu0 %v578
        %v866 = vpop.f32.mrb[0].mxu0
        %v867 = vadd.f32 %v673, %v866
        %v868 = vpop.f32.mrb[0].mxu0
        %869 = vmatprep.mubr.f32.mxu0 0.0
        %870 = vmatmul.mubr.f32.gmra.mrb[0].mxu0 %v579
        %v871 = vpop.f32.mrb[0].mxu0
        %v872 = vadd.f32 %v678, %v871
        %v873 = vpop.f32.mrb[0].mxu0
        %874 = vmatprep.mubr.f32.mxu0 0.0
        %875 = vmatmul.mubr.f32.gmra.mrb[0].mxu0 %v580
        %v876 = vpop.f32.mrb[0].mxu0
        %v877 = vadd.f32 %v683, %v876
        %v878 = vpop.f32.mrb[0].mxu0
        %879 = vmatprep.mubr.f32.mxu0 0.0
        %880 = vmatmul.mubr.f32.gmra.mrb[0].mxu0 %v581
        %v881 = vpop.f32.mrb[0].mxu0
        %v882 = vadd.f32 %v688, %v881
        %v883 = vpop.f32.mrb[0].mxu0
        %884 = vmatprep.mubr.f32.mxu0 0.0
        %885 = vmatmul.mubr.f32.gmra.mrb[0].mxu0 %v582
        %v886 = vpop.f32.mrb[0].mxu0
        %v887 = vadd.f32 %v693, %v886
        %v888 = vpop.f32.mrb[0].mxu0
        %889 = vmatprep.mubr.f32.mxu0 0.0
        %890 = vmatmul.mubr.f32.gmra.mrb[0].mxu0 %v583
        %v891 = vpop.f32.mrb[0].mxu0
        %v892 = vadd.f32 %v698, %v891
        %v893 = vpop.f32.mrb[0].mxu0
        %894 = vmatprep.mubr.f32.mxu0 0.0
        %895 = vmatmul.mubr.f32.gmra.mrb[0].mxu0 %v584
        %v896 = vpop.f32.mrb[0].mxu0
        %v897 = vadd.f32 %v703, %v896
        %v898 = vpop.f32.mrb[0].mxu0
        %899 = vmatprep.mubr.f32.mxu0 0.0
        %900 = vmatmul.mubr.f32.gmra.mrb[0].mxu0 %v585
        %v901 = vpop.f32.mrb[0].mxu0
        %v902 = vadd.f32 %v708, %v901
        %v903 = vpop.f32.mrb[0].mxu0
        %904 = vmatprep.mubr.f32.mxu0 0.0
        %905 = vmatmul.mubr.f32.gmra.mrb[0].mxu0 %v586
        %v906 = vpop.f32.mrb[0].mxu0
        %v907 = vadd.f32 %v713, %v906
        %v908 = vpop.f32.mrb[0].mxu0
        %909 = vmatprep.mubr.f32.mxu0 0.0
        %910 = vmatmul.mubr.f32.gmra.mrb[0].mxu0 %v587
        %v911 = vpop.f32.mrb[0].mxu0
        %v912 = vadd.f32 %v718, %v911
        %v913 = vpop.f32.mrb[0].mxu0
        %914 = vmatprep.mubr.f32.mxu0 0.0
        %915 = vmatmul.mubr.f32.gmra.mrb[0].mxu0 %v588
        %v916 = vpop.f32.mrb[0].mxu0
        %v917 = vadd.f32 %v723, %v916
        %v918 = vpop.f32.mrb[0].mxu0
        %919 = vmatprep.mubr.f32.mxu0 0.0
        %920 = vmatmul.mubr.f32.gmra.mrb[0].mxu0 %v589
        %v921 = vpop.f32.mrb[0].mxu0
        %v922 = vadd.f32 %v728, %v921
        %v923 = vpop.f32.mrb[0].mxu0
        %924 = vmatprep.mubr.f32.mxu0 0.0
        %925 = vmatmul.mubr.f32.gmra.mrb[0].mxu0 %v590
        %v926 = vpop.f32.mrb[0].mxu0
        %v927 = vadd.f32 %v733, %v926
        %v928 = vpop.f32.mrb[0].mxu0
        %929 = vmatprep.mubr.f32.mxu0 0.0
        %930 = vmatmul.mubr.f32.gmra.mrb[0].mxu0 %v591
        %v931 = vpop.f32.mrb[0].mxu0
        %v932 = vadd.f32 %v738, %v931
        %v933 = vpop.f32.mrb[0].mxu0
        %934 = vmatprep.mubr.f32.mxu0 0.0
        %935 = vmatmul.mubr.f32.gmra.mrb[0].mxu0 %v592
        %v936 = vpop.f32.mrb[0].mxu0
        %v937 = vadd.f32 %v743, %v936
        %v938 = vpop.f32.mrb[0].mxu0
        %939 = vmatprep.mubr.f32.mxu0 0.0
        %940 = vmatmul.mubr.f32.gmra.mrb[0].mxu0 %v593
        %v941 = vpop.f32.mrb[0].mxu0
        %v942 = vadd.f32 %v748, %v941
        %v943 = vpop.f32.mrb[0].mxu0
        %944 = vdwg.mxu0
        %vm945 = vcmp.gt.f32.partialorder %v817, 0.0
        %vm946 = vcmp.gt.f32.partialorder %v822, 0.0
        %vm947 = vcmp.gt.f32.partialorder %v827, 0.0
        %vm948 = vcmp.gt.f32.partialorder %v832, 0.0
        %vm949 = vcmp.gt.f32.partialorder %v837, 0.0
        %vm950 = vcmp.gt.f32.partialorder %v842, 0.0
        %vm951 = vcmp.gt.f32.partialorder %v847, 0.0
        %vm952 = vcmp.gt.f32.partialorder %v852, 0.0
        %vm953 = vcmp.gt.f32.partialorder %v857, 0.0
        %vm954 = vcmp.gt.f32.partialorder %v862, 0.0
        %vm955 = vcmp.gt.f32.partialorder %v867, 0.0
        %vm956 = vcmp.gt.f32.partialorder %v872, 0.0
        %vm957 = vcmp.gt.f32.partialorder %v877, 0.0
        %vm958 = vcmp.gt.f32.partialorder %v882, 0.0
        %vm959 = vcmp.gt.f32.partialorder %v887, 0.0
        %vm960 = vcmp.gt.f32.partialorder %v892, 0.0
        %vm961 = vcmp.gt.f32.partialorder %v897, 0.0
        %vm962 = vcmp.gt.f32.partialorder %v902, 0.0
        %vm963 = vcmp.gt.f32.partialorder %v907, 0.0
        %vm964 = vcmp.gt.f32.partialorder %v912, 0.0
        %vm965 = vcmp.gt.f32.partialorder %v917, 0.0
        %vm966 = vcmp.gt.f32.partialorder %v922, 0.0
        %vm967 = vcmp.gt.f32.partialorder %v927, 0.0
        %vm968 = vcmp.gt.f32.partialorder %v932, 0.0
        %vm969 = vcmp.gt.f32.partialorder %v937, 0.0
        %vm970 = vcmp.gt.f32.partialorder %v942, 0.0
        %v971 = vmul.f32 %v535, %v817
        %v972 = vmul.f32 %v535, %v822
        %v973 = vmul.f32 %v535, %v827
        %v974 = vmul.f32 %v535, %v832
        %v975 = vmul.f32 %v535, %v837
        %v976 = vmul.f32 %v535, %v842
        %v977 = vmul.f32 %v535, %v847
        %v978 = vmul.f32 %v535, %v852
        %v979 = vmul.f32 %v535, %v857
        %v980 = vmul.f32 %v535, %v862
        %v981 = vmul.f32 %v535, %v867
        %v982 = vmul.f32 %v535, %v872
        %v983 = vmul.f32 %v535, %v877
        %v984 = vmul.f32 %v535, %v882
        %v985 = vmul.f32 %v535, %v887
        %v986 = vmul.f32 %v535, %v892
        %v987 = vmul.f32 %v535, %v897
        %v988 = vmul.f32 %v535, %v902
        %v989 = vmul.f32 %v535, %v907
        %v990 = vmul.f32 %v535, %v912
        %v991 = vmul.f32 %v535, %v917
        %v992 = vmul.f32 %v535, %v922
        %v993 = vmul.f32 %v535, %v927
        %v994 = vmul.f32 %v535, %v932
        %v995 = vmul.f32 %v535, %v937
        %v996 = vmul.f32 %v535, %v942
        %v997 = vsel %vm945, %v817, %v971
        %v998 = vsel %vm946, %v822, %v972
        %v999 = vsel %vm947, %v827, %v973
        %v1000 = vsel %vm948, %v832, %v974
        %v1001 = vsel %vm949, %v837, %v975
        %v1002 = vsel %vm950, %v842, %v976
        %v1003 = vsel %vm951, %v847, %v977
        %v1004 = vsel %vm952, %v852, %v978
        %v1005 = vsel %vm953, %v857, %v979
        %v1006 = vsel %vm954, %v862, %v980
        %v1007 = vsel %vm955, %v867, %v981
        %v1008 = vsel %vm956, %v872, %v982
        %v1009 = vsel %vm957, %v877, %v983
        %v1010 = vsel %vm958, %v882, %v984
        %v1011 = vsel %vm959, %v887, %v985
        %v1012 = vsel %vm960, %v892, %v986
        %v1013 = vsel %vm961, %v897, %v987
        %v1014 = vsel %vm962, %v902, %v988
        %v1015 = vsel %vm963, %v907, %v989
        %v1016 = vsel %vm964, %v912, %v990
        %v1017 = vsel %vm965, %v917, %v991
        %v1018 = vsel %vm966, %v922, %v992
        %v1019 = vsel %vm967, %v927, %v993
        %v1020 = vsel %vm968, %v932, %v994
        %v1021 = vsel %vm969, %v937, %v995
        %v1022 = vsel %vm970, %v942, %v996
        %v1023 = vld [vmem:[%s6] sm:$0x3]
        %v1024 = vstv %s289
        %v1026 = vlaneseq
        %v1027 = vshrl.u32 %v1026, 7
        %v1028 = vsub.s32 0, %v1027
        %v1029 = vrot.slane %v1023, %v1028
        %v1030 = vlaneseq
        %v1031 = vshrl.u32 %v1030, 7
        %v1032 = vsub.s32 1, %v1031
        %v1033 = vrot.slane %v1023, %v1032
        %vm1035 = vcmask 654336
        %v1036 = vsel %vm1035, %v1033, 0
        %1038 = vmatprep.subr.mxu0 0.0
        %1039 = vmatpush1.msra.mxu0 %v997
        %1040 = vmatprep.subr.mxu0 0.0
        %1041 = vmatpush1.msra.mxu0 %v998
        %1042 = vmatprep.subr.mxu0 0.0
        %1043 = vmatpush1.msra.mxu0 %v999
        %1044 = vmatprep.subr.mxu0 0.0
        %1045 = vmatpush1.msra.mxu0 %v1000
        %1046 = vmatprep.subr.mxu0 0.0
        %1047 = vmatpush1.msra.mxu0 %v1001
        %1048 = vmatprep.subr.mxu0 0.0
        %1049 = vmatpush1.msra.mxu0 %v1002
        %1050 = vmatprep.subr.mxu0 0.0
        %1051 = vmatpush1.msra.mxu0 %v1003
        %1052 = vmatprep.subr.mxu0 0.0
        %1053 = vmatpush1.msra.mxu0 %v1004
        %1054 = vmatprep.subr.mxu0 0.0
        %1055 = vmatpush1.msra.mxu0 %v1005
        %1056 = vmatprep.subr.mxu0 0.0
        %1057 = vmatpush1.msra.mxu0 %v1006
        %1058 = vmatprep.subr.mxu0 0.0
        %1059 = vmatpush1.msra.mxu0 %v1007
        %1060 = vmatprep.subr.mxu0 0.0
        %1061 = vmatpush1.msra.mxu0 %v1008
        %1062 = vmatprep.subr.mxu0 0.0
        %1063 = vmatpush1.msra.mxu0 %v1009
        %1064 = vmatprep.subr.mxu0 0.0
        %1065 = vmatpush1.msra.mxu0 %v1010
        %1066 = vmatprep.subr.mxu0 0.0
        %1067 = vmatpush1.msra.mxu0 %v1011
        %1068 = vmatprep.subr.mxu0 0.0
        %1069 = vmatpush1.msra.mxu0 %v1012
        %1070 = vmatprep.subr.mxu0 0.0
        %1071 = vmatpush1.msra.mxu0 %v1013
        %1072 = vmatprep.subr.mxu0 0.0
        %1073 = vmatpush1.msra.mxu0 %v1014
        %1074 = vmatprep.subr.mxu0 0.0
        %1075 = vmatpush1.msra.mxu0 %v1015
        %1076 = vmatprep.subr.mxu0 0.0
        %1077 = vmatpush1.msra.mxu0 %v1016
        %1078 = vmatprep.subr.mxu0 0.0
        %1079 = vmatpush1.msra.mxu0 %v1017
        %1080 = vmatprep.subr.mxu0 0.0
        %1081 = vmatpush1.msra.mxu0 %v1018
        %1082 = vmatprep.subr.mxu0 0.0
        %1083 = vmatpush1.msra.mxu0 %v1019
        %1084 = vmatprep.subr.mxu0 0.0
        %1085 = vmatpush1.msra.mxu0 %v1020
        %1086 = vmatprep.subr.mxu0 0.0
        %1087 = vmatpush1.msra.mxu0 %v1021
        %1088 = vmatprep.subr.mxu0 0.0
        %1089 = vmatpush1.msra.mxu0 %v1022
        %1090 = vmatprep.subr.mxu0 0.0
        %1091 = vmatpush1.msra.mxu0 0.0
        %1092 = vmatprep.subr.mxu0 0.0
        %1093 = vmatpush1.msra.mxu0 0.0
        %1094 = vmatprep.subr.mxu0 0.0
        %1095 = vmatpush1.msra.mxu0 0.0
        %1096 = vmatprep.subr.mxu0 0.0
        %1097 = vmatpush1.msra.mxu0 0.0
        %1098 = vmatprep.subr.mxu0 0.0
        %1099 = vmatpush1.msra.mxu0 0.0
        %1100 = vmatprep.subr.mxu0 0.0
        %1101 = vmatpush1.msra.mxu0 0.0
        %1102 = vmatprep.mubr.f32.mxu0 %v1036
        %1103 = vmatmul.mubr.f32.gmra.mrb[0].mxu0 %v1029
        %v1104 = vpop.f32.mrb[0].mxu0
        %v1105 = vadd.f32 %v1024, %v1104
        %v1106 = vpop.f32.mrb[0].mxu0
        %1107 = vdwg.mxu0
        %1108 = vst [vmem:[%s283] sm:$0x1] %v1105
        %v1109 = vld [vmem:[%s287 + $0x1] sm:$0x1]
        %v1110 = vld [vmem:[%s2] sm:$0xff]
        %v1111 = vld [vmem:[%s2 + $0x8] sm:$0xff]
        %v1112 = vld [vmem:[%s2 + $0x10] sm:$0xff]
        %v1113 = vld [vmem:[%s2 + $0x18] sm:$0xff]
        %v1114 = vld [vmem:[%s2 + $0x20] sm:$0xff]
        %v1115 = vld [vmem:[%s2 + $0x28] sm:$0xff]
        %v1116 = vld [vmem:[%s2 + $0x30] sm:$0xff]
        %v1117 = vld [vmem:[%s2 + $0x38] sm:$0xff]
        %v1118 = vld [vmem:[%s2 + $0x40] sm:$0xff]
        %v1119 = vld [vmem:[%s2 + $0x48] sm:$0xff]
        %v1120 = vld [vmem:[%s2 + $0x50] sm:$0xff]
        %v1121 = vld [vmem:[%s2 + $0x58] sm:$0xff]
        %v1122 = vld [vmem:[%s2 + $0x60] sm:$0xff]
        %v1123 = vld [vmem:[%s2 + $0x68] sm:$0xff]
        %v1124 = vld [vmem:[%s2 + $0x70] sm:$0xff]
        %v1125 = vld [vmem:[%s2 + $0x78] sm:$0xff]
        %1127 = vset.pattern.permute.xlu0 0
        %1128 = vperm.xlu0 %1127, %v1110
        %v1129 = vpop.permute.xlu0 %1128
        %1132 = vset.pattern.permute.xlu0 0
        %1133 = vperm.xlu0 %1132, %v1111
        %v1134 = vpop.permute.xlu0 %1133
        %1137 = vset.pattern.permute.xlu0 0
        %1138 = vperm.xlu0 %1137, %v1112
        %v1139 = vpop.permute.xlu0 %1138
        %1142 = vset.pattern.permute.xlu0 0
        %1143 = vperm.xlu0 %1142, %v1113
        %v1144 = vpop.permute.xlu0 %1143
        %1147 = vset.pattern.permute.xlu0 0
        %1148 = vperm.xlu0 %1147, %v1114
        %v1149 = vpop.permute.xlu0 %1148
        %1152 = vset.pattern.permute.xlu0 0
        %1153 = vperm.xlu0 %1152, %v1115
        %v1154 = vpop.permute.xlu0 %1153
        %1157 = vset.pattern.permute.xlu0 0
        %1158 = vperm.xlu0 %1157, %v1116
        %v1159 = vpop.permute.xlu0 %1158
        %1162 = vset.pattern.permute.xlu0 0
        %1163 = vperm.xlu0 %1162, %v1117
        %v1164 = vpop.permute.xlu0 %1163
        %1167 = vset.pattern.permute.xlu0 0
        %1168 = vperm.xlu0 %1167, %v1118
        %v1169 = vpop.permute.xlu0 %1168
        %1172 = vset.pattern.permute.xlu0 0
        %1173 = vperm.xlu0 %1172, %v1119
        %v1174 = vpop.permute.xlu0 %1173
        %1177 = vset.pattern.permute.xlu0 0
        %1178 = vperm.xlu0 %1177, %v1120
        %v1179 = vpop.permute.xlu0 %1178
        %1182 = vset.pattern.permute.xlu0 0
        %1183 = vperm.xlu0 %1182, %v1121
        %v1184 = vpop.permute.xlu0 %1183
        %1187 = vset.pattern.permute.xlu0 0
        %1188 = vperm.xlu0 %1187, %v1122
        %v1189 = vpop.permute.xlu0 %1188
        %1192 = vset.pattern.permute.xlu0 0
        %1193 = vperm.xlu0 %1192, %v1123
        %v1194 = vpop.permute.xlu0 %1193
        %1197 = vset.pattern.permute.xlu0 0
        %1198 = vperm.xlu0 %1197, %v1124
        %v1199 = vpop.permute.xlu0 %1198
        %1202 = vset.pattern.permute.xlu0 0
        %1203 = vperm.xlu0 %1202, %v1125
        %v1204 = vpop.permute.xlu0 %1203
        %v1206 = vlaneseq
        %v1207 = vshrl.u32 %v1206, 7
        %v1208 = vsub.s32 0, %v1207
        %v1209 = vrot.slane %v1109, %v1208
        %v1210 = vmul.f32 %v1129, %v1209
        %v1211 = vmul.f32 %v1134, %v1209
        %v1212 = vmul.f32 %v1139, %v1209
        %v1213 = vmul.f32 %v1144, %v1209
        %v1214 = vmul.f32 %v1149, %v1209
        %v1215 = vmul.f32 %v1154, %v1209
        %v1216 = vmul.f32 %v1159, %v1209
        %v1217 = vmul.f32 %v1164, %v1209
        %v1218 = vmul.f32 %v1169, %v1209
        %v1219 = vmul.f32 %v1174, %v1209
        %v1220 = vmul.f32 %v1179, %v1209
        %v1221 = vmul.f32 %v1184, %v1209
        %v1222 = vmul.f32 %v1189, %v1209
        %v1223 = vmul.f32 %v1194, %v1209
        %v1224 = vmul.f32 %v1199, %v1209
        %v1225 = vmul.f32 %v1204, %v1209
        %v1226 = vld [vmem:[%s3] sm:$0xff]
        %v1227 = vld [vmem:[%s3 + $0x8] sm:$0xff]
        %v1228 = vld [vmem:[%s3 + $0x10] sm:$0xff]
        %v1229 = vld [vmem:[%s3 + $0x18] sm:$0xff]
        %v1230 = vld [vmem:[%s3 + $0x20] sm:$0xff]
        %v1231 = vld [vmem:[%s3 + $0x28] sm:$0xff]
        %v1232 = vld [vmem:[%s3 + $0x30] sm:$0xff]
        %v1233 = vld [vmem:[%s3 + $0x38] sm:$0xff]
        %v1234 = vld [vmem:[%s3 + $0x40] sm:$0xff]
        %v1235 = vld [vmem:[%s3 + $0x48] sm:$0xff]
        %v1236 = vld [vmem:[%s3 + $0x50] sm:$0xff]
        %v1237 = vld [vmem:[%s3 + $0x58] sm:$0xff]
        %v1238 = vld [vmem:[%s3 + $0x60] sm:$0xff]
        %v1239 = vld [vmem:[%s3 + $0x68] sm:$0xff]
        %v1240 = vld [vmem:[%s3 + $0x70] sm:$0xff]
        %v1241 = vld [vmem:[%s3 + $0x78] sm:$0xff]
        %1243 = vset.pattern.permute.xlu0 0
        %1244 = vperm.xlu0 %1243, %v1226
        %v1245 = vpop.permute.xlu0 %1244
        %1248 = vset.pattern.permute.xlu0 0
        %1249 = vperm.xlu0 %1248, %v1227
        %v1250 = vpop.permute.xlu0 %1249
        %1253 = vset.pattern.permute.xlu0 0
        %1254 = vperm.xlu0 %1253, %v1228
        %v1255 = vpop.permute.xlu0 %1254
        %1258 = vset.pattern.permute.xlu0 0
        %1259 = vperm.xlu0 %1258, %v1229
        %v1260 = vpop.permute.xlu0 %1259
        %1263 = vset.pattern.permute.xlu0 0
        %1264 = vperm.xlu0 %1263, %v1230
        %v1265 = vpop.permute.xlu0 %1264
        %1268 = vset.pattern.permute.xlu0 0
        %1269 = vperm.xlu0 %1268, %v1231
        %v1270 = vpop.permute.xlu0 %1269
        %1273 = vset.pattern.permute.xlu0 0
        %1274 = vperm.xlu0 %1273, %v1232
        %v1275 = vpop.permute.xlu0 %1274
        %1278 = vset.pattern.permute.xlu0 0
        %1279 = vperm.xlu0 %1278, %v1233
        %v1280 = vpop.permute.xlu0 %1279
        %1283 = vset.pattern.permute.xlu0 0
        %1284 = vperm.xlu0 %1283, %v1234
        %v1285 = vpop.permute.xlu0 %1284
        %1288 = vset.pattern.permute.xlu0 0
        %1289 = vperm.xlu0 %1288, %v1235
        %v1290 = vpop.permute.xlu0 %1289
        %1293 = vset.pattern.permute.xlu0 0
        %1294 = vperm.xlu0 %1293, %v1236
        %v1295 = vpop.permute.xlu0 %1294
        %1298 = vset.pattern.permute.xlu0 0
        %1299 = vperm.xlu0 %1298, %v1237
        %v1300 = vpop.permute.xlu0 %1299
        %1303 = vset.pattern.permute.xlu0 0
        %1304 = vperm.xlu0 %1303, %v1238
        %v1305 = vpop.permute.xlu0 %1304
        %1308 = vset.pattern.permute.xlu0 0
        %1309 = vperm.xlu0 %1308, %v1239
        %v1310 = vpop.permute.xlu0 %1309
        %1313 = vset.pattern.permute.xlu0 0
        %1314 = vperm.xlu0 %1313, %v1240
        %v1315 = vpop.permute.xlu0 %1314
        %1318 = vset.pattern.permute.xlu0 0
        %1319 = vperm.xlu0 %1318, %v1241
        %v1320 = vpop.permute.xlu0 %1319
        %v1322 = vadd.f32 %v1210, %v1245
        %v1323 = vadd.f32 %v1211, %v1250
        %v1324 = vadd.f32 %v1212, %v1255
        %v1325 = vadd.f32 %v1213, %v1260
        %v1326 = vadd.f32 %v1214, %v1265
        %v1327 = vadd.f32 %v1215, %v1270
        %v1328 = vadd.f32 %v1216, %v1275
        %v1329 = vadd.f32 %v1217, %v1280
        %v1330 = vadd.f32 %v1218, %v1285
        %v1331 = vadd.f32 %v1219, %v1290
        %v1332 = vadd.f32 %v1220, %v1295
        %v1333 = vadd.f32 %v1221, %v1300
        %v1334 = vadd.f32 %v1222, %v1305
        %v1335 = vadd.f32 %v1223, %v1310
        %v1336 = vadd.f32 %v1224, %v1315
        %v1337 = vadd.f32 %v1225, %v1320
        %vm1338 = vcmp.gt.f32.partialorder %v1322, 0.0
        %vm1339 = vcmp.gt.f32.partialorder %v1323, 0.0
        %vm1340 = vcmp.gt.f32.partialorder %v1324, 0.0
        %vm1341 = vcmp.gt.f32.partialorder %v1325, 0.0
        %vm1342 = vcmp.gt.f32.partialorder %v1326, 0.0
        %vm1343 = vcmp.gt.f32.partialorder %v1327, 0.0
        %vm1344 = vcmp.gt.f32.partialorder %v1328, 0.0
        %vm1345 = vcmp.gt.f32.partialorder %v1329, 0.0
        %vm1346 = vcmp.gt.f32.partialorder %v1330, 0.0
        %vm1347 = vcmp.gt.f32.partialorder %v1331, 0.0
        %vm1348 = vcmp.gt.f32.partialorder %v1332, 0.0
        %vm1349 = vcmp.gt.f32.partialorder %v1333, 0.0
        %vm1350 = vcmp.gt.f32.partialorder %v1334, 0.0
        %vm1351 = vcmp.gt.f32.partialorder %v1335, 0.0
        %vm1352 = vcmp.gt.f32.partialorder %v1336, 0.0
        %vm1353 = vcmp.gt.f32.partialorder %v1337, 0.0
        %v1354 = vmul.f32 %v535, %v1322
        %v1355 = vmul.f32 %v535, %v1323
        %v1356 = vmul.f32 %v535, %v1324
        %v1357 = vmul.f32 %v535, %v1325
        %v1358 = vmul.f32 %v535, %v1326
        %v1359 = vmul.f32 %v535, %v1327
        %v1360 = vmul.f32 %v535, %v1328
        %v1361 = vmul.f32 %v535, %v1329
        %v1362 = vmul.f32 %v535, %v1330
        %v1363 = vmul.f32 %v535, %v1331
        %v1364 = vmul.f32 %v535, %v1332
        %v1365 = vmul.f32 %v535, %v1333
        %v1366 = vmul.f32 %v535, %v1334
        %v1367 = vmul.f32 %v535, %v1335
        %v1368 = vmul.f32 %v535, %v1336
        %v1369 = vmul.f32 %v535, %v1337
        %v1370 = vsel %vm1338, %v1322, %v1354
        %v1371 = vsel %vm1339, %v1323, %v1355
        %v1372 = vsel %vm1340, %v1324, %v1356
        %v1373 = vsel %vm1341, %v1325, %v1357
        %v1374 = vsel %vm1342, %v1326, %v1358
        %v1375 = vsel %vm1343, %v1327, %v1359
        %v1376 = vsel %vm1344, %v1328, %v1360
        %v1377 = vsel %vm1345, %v1329, %v1361
        %v1378 = vsel %vm1346, %v1330, %v1362
        %v1379 = vsel %vm1347, %v1331, %v1363
        %v1380 = vsel %vm1348, %v1332, %v1364
        %v1381 = vsel %vm1349, %v1333, %v1365
        %v1382 = vsel %vm1350, %v1334, %v1366
        %v1383 = vsel %vm1351, %v1335, %v1367
        %v1384 = vsel %vm1352, %v1336, %v1368
        %v1385 = vsel %vm1353, %v1337, %v1369
        %v1386 = vld [vmem:[%s4] sm:$0xff]
        %v1387 = vld [vmem:[%s4 + $0x8] sm:$0xff]
        %v1388 = vld [vmem:[%s4 + $0x10] sm:$0xff]
        %v1389 = vld [vmem:[%s4 + $0x18] sm:$0xff]
        %v1390 = vld [vmem:[%s4 + $0x20] sm:$0xff]
        %v1391 = vld [vmem:[%s4 + $0x28] sm:$0xff]
        %v1392 = vld [vmem:[%s4 + $0x30] sm:$0xff]
        %v1393 = vld [vmem:[%s4 + $0x38] sm:$0xff]
        %v1394 = vld [vmem:[%s4 + $0x40] sm:$0xff]
        %v1395 = vld [vmem:[%s4 + $0x48] sm:$0xff]
        %v1396 = vld [vmem:[%s4 + $0x50] sm:$0xff]
        %v1397 = vld [vmem:[%s4 + $0x58] sm:$0xff]
        %v1398 = vld [vmem:[%s4 + $0x60] sm:$0xff]
        %v1399 = vld [vmem:[%s4 + $0x68] sm:$0xff]
        %v1400 = vld [vmem:[%s4 + $0x70] sm:$0xff]
        %v1401 = vld [vmem:[%s4 + $0x78] sm:$0xff]
        %v1402 = vld [vmem:[%s4 + $0x80] sm:$0xff]
        %v1403 = vld [vmem:[%s4 + $0x88] sm:$0xff]
        %v1404 = vld [vmem:[%s4 + $0x90] sm:$0xff]
        %v1405 = vld [vmem:[%s4 + $0x98] sm:$0xff]
        %v1406 = vld [vmem:[%s4 + $0xa0] sm:$0xff]
        %v1407 = vld [vmem:[%s4 + $0xa8] sm:$0xff]
        %v1408 = vld [vmem:[%s4 + $0xb0] sm:$0xff]
        %v1409 = vld [vmem:[%s4 + $0xb8] sm:$0xff]
        %v1410 = vld [vmem:[%s4 + $0xc0] sm:$0xff]
        %v1411 = vld [vmem:[%s4 + $0xc8] sm:$0xff]
        %v1412 = vld [vmem:[%s5] sm:$0xff]
        %v1413 = vld [vmem:[%s5 + $0x8] sm:$0xff]
        %v1414 = vld [vmem:[%s5 + $0x10] sm:$0xff]
        %v1415 = vld [vmem:[%s5 + $0x18] sm:$0xff]
        %v1416 = vld [vmem:[%s5 + $0x20] sm:$0xff]
        %v1417 = vld [vmem:[%s5 + $0x28] sm:$0xff]
        %v1418 = vld [vmem:[%s5 + $0x30] sm:$0xff]
        %v1419 = vld [vmem:[%s5 + $0x38] sm:$0xff]
        %v1420 = vld [vmem:[%s5 + $0x40] sm:$0xff]
        %v1421 = vld [vmem:[%s5 + $0x48] sm:$0xff]
        %v1422 = vld [vmem:[%s5 + $0x50] sm:$0xff]
        %v1423 = vld [vmem:[%s5 + $0x58] sm:$0xff]
        %v1424 = vld [vmem:[%s5 + $0x60] sm:$0xff]
        %v1425 = vld [vmem:[%s5 + $0x68] sm:$0xff]
        %v1426 = vld [vmem:[%s5 + $0x70] sm:$0xff]
        %v1427 = vld [vmem:[%s5 + $0x78] sm:$0xff]
        %v1428 = vld [vmem:[%s5 + $0x80] sm:$0xff]
        %v1429 = vld [vmem:[%s5 + $0x88] sm:$0xff]
        %v1430 = vld [vmem:[%s5 + $0x90] sm:$0xff]
        %v1431 = vld [vmem:[%s5 + $0x98] sm:$0xff]
        %v1432 = vld [vmem:[%s5 + $0xa0] sm:$0xff]
        %v1433 = vld [vmem:[%s5 + $0xa8] sm:$0xff]
        %v1434 = vld [vmem:[%s5 + $0xb0] sm:$0xff]
        %v1435 = vld [vmem:[%s5 + $0xb8] sm:$0xff]
        %v1436 = vld [vmem:[%s5 + $0xc0] sm:$0xff]
        %v1437 = vld [vmem:[%s5 + $0xc8] sm:$0xff]
        %1439 = vset.pattern.permute.xlu0 0
        %1440 = vperm.xlu0 %1439, %v1412
        %v1441 = vpop.permute.xlu0 %1440
        %1444 = vset.pattern.permute.xlu0 0
        %1445 = vperm.xlu0 %1444, %v1413
        %v1446 = vpop.permute.xlu0 %1445
        %1449 = vset.pattern.permute.xlu0 0
        %1450 = vperm.xlu0 %1449, %v1414
        %v1451 = vpop.permute.xlu0 %1450
        %1454 = vset.pattern.permute.xlu0 0
        %1455 = vperm.xlu0 %1454, %v1415
        %v1456 = vpop.permute.xlu0 %1455
        %1459 = vset.pattern.permute.xlu0 0
        %1460 = vperm.xlu0 %1459, %v1416
        %v1461 = vpop.permute.xlu0 %1460
        %1464 = vset.pattern.permute.xlu0 0
        %1465 = vperm.xlu0 %1464, %v1417
        %v1466 = vpop.permute.xlu0 %1465
        %1469 = vset.pattern.permute.xlu0 0
        %1470 = vperm.xlu0 %1469, %v1418
        %v1471 = vpop.permute.xlu0 %1470
        %1474 = vset.pattern.permute.xlu0 0
        %1475 = vperm.xlu0 %1474, %v1419
        %v1476 = vpop.permute.xlu0 %1475
        %1479 = vset.pattern.permute.xlu0 0
        %1480 = vperm.xlu0 %1479, %v1420
        %v1481 = vpop.permute.xlu0 %1480
        %1484 = vset.pattern.permute.xlu0 0
        %1485 = vperm.xlu0 %1484, %v1421
        %v1486 = vpop.permute.xlu0 %1485
        %1489 = vset.pattern.permute.xlu0 0
        %1490 = vperm.xlu0 %1489, %v1422
        %v1491 = vpop.permute.xlu0 %1490
        %1494 = vset.pattern.permute.xlu0 0
        %1495 = vperm.xlu0 %1494, %v1423
        %v1496 = vpop.permute.xlu0 %1495
        %1499 = vset.pattern.permute.xlu0 0
        %1500 = vperm.xlu0 %1499, %v1424
        %v1501 = vpop.permute.xlu0 %1500
        %1504 = vset.pattern.permute.xlu0 0
        %1505 = vperm.xlu0 %1504, %v1425
        %v1506 = vpop.permute.xlu0 %1505
        %1509 = vset.pattern.permute.xlu0 0
        %1510 = vperm.xlu0 %1509, %v1426
        %v1511 = vpop.permute.xlu0 %1510
        %1514 = vset.pattern.permute.xlu0 0
        %1515 = vperm.xlu0 %1514, %v1427
        %v1516 = vpop.permute.xlu0 %1515
        %1519 = vset.pattern.permute.xlu0 0
        %1520 = vperm.xlu0 %1519, %v1428
        %v1521 = vpop.permute.xlu0 %1520
        %1524 = vset.pattern.permute.xlu0 0
        %1525 = vperm.xlu0 %1524, %v1429
        %v1526 = vpop.permute.xlu0 %1525
        %1529 = vset.pattern.permute.xlu0 0
        %1530 = vperm.xlu0 %1529, %v1430
        %v1531 = vpop.permute.xlu0 %1530
        %1534 = vset.pattern.permute.xlu0 0
        %1535 = vperm.xlu0 %1534, %v1431
        %v1536 = vpop.permute.xlu0 %1535
        %1539 = vset.pattern.permute.xlu0 0
        %1540 = vperm.xlu0 %1539, %v1432
        %v1541 = vpop.permute.xlu0 %1540
        %1544 = vset.pattern.permute.xlu0 0
        %1545 = vperm.xlu0 %1544, %v1433
        %v1546 = vpop.permute.xlu0 %1545
        %1549 = vset.pattern.permute.xlu0 0
        %1550 = vperm.xlu0 %1549, %v1434
        %v1551 = vpop.permute.xlu0 %1550
        %1554 = vset.pattern.permute.xlu0 0
        %1555 = vperm.xlu0 %1554, %v1435
        %v1556 = vpop.permute.xlu0 %1555
        %1559 = vset.pattern.permute.xlu0 0
        %1560 = vperm.xlu0 %1559, %v1436
        %v1561 = vpop.permute.xlu0 %1560
        %1564 = vset.pattern.permute.xlu0 0
        %1565 = vperm.xlu0 %1564, %v1437
        %v1566 = vpop.permute.xlu0 %1565
        %1568 = vmatprep.subr.mxu0 0.0
        %1569 = vmatpush1.msra.mxu0 %v1370
        %1570 = vmatprep.subr.mxu0 0.0
        %1571 = vmatpush1.msra.mxu0 %v1371
        %1572 = vmatprep.subr.mxu0 0.0
        %1573 = vmatpush1.msra.mxu0 %v1372
        %1574 = vmatprep.subr.mxu0 0.0
        %1575 = vmatpush1.msra.mxu0 %v1373
        %1576 = vmatprep.subr.mxu0 0.0
        %1577 = vmatpush1.msra.mxu0 %v1374
        %1578 = vmatprep.subr.mxu0 0.0
        %1579 = vmatpush1.msra.mxu0 %v1375
        %1580 = vmatprep.subr.mxu0 0.0
        %1581 = vmatpush1.msra.mxu0 %v1376
        %1582 = vmatprep.subr.mxu0 0.0
        %1583 = vmatpush1.msra.mxu0 %v1377
        %1584 = vmatprep.subr.mxu0 0.0
        %1585 = vmatpush1.msra.mxu0 %v1378
        %1586 = vmatprep.subr.mxu0 0.0
        %1587 = vmatpush1.msra.mxu0 %v1379
        %1588 = vmatprep.subr.mxu0 0.0
        %1589 = vmatpush1.msra.mxu0 %v1380
        %1590 = vmatprep.subr.mxu0 0.0
        %1591 = vmatpush1.msra.mxu0 %v1381
        %1592 = vmatprep.subr.mxu0 0.0
        %1593 = vmatpush1.msra.mxu0 %v1382
        %1594 = vmatprep.subr.mxu0 0.0
        %1595 = vmatpush1.msra.mxu0 %v1383
        %1596 = vmatprep.subr.mxu0 0.0
        %1597 = vmatpush1.msra.mxu0 %v1384
        %1598 = vmatprep.subr.mxu0 0.0
        %1599 = vmatpush1.msra.mxu0 %v1385
        %1600 = vmatprep.subr.mxu0 0.0
        %1601 = vmatpush1.msra.mxu0 0.0
        %1602 = vmatprep.subr.mxu0 0.0
        %1603 = vmatpush1.msra.mxu0 0.0
        %1604 = vmatprep.subr.mxu0 0.0
        %1605 = vmatpush1.msra.mxu0 0.0
        %1606 = vmatprep.subr.mxu0 0.0
        %1607 = vmatpush1.msra.mxu0 0.0
        %1608 = vmatprep.subr.mxu0 0.0
        %1609 = vmatpush1.msra.mxu0 0.0
        %1610 = vmatprep.subr.mxu0 0.0
        %1611 = vmatpush1.msra.mxu0 0.0
        %1612 = vmatprep.subr.mxu0 0.0
        %1613 = vmatpush1.msra.mxu0 0.0
        %1614 = vmatprep.subr.mxu0 0.0
        %1615 = vmatpush1.msra.mxu0 0.0
        %1616 = vmatprep.subr.mxu0 0.0
        %1617 = vmatpush1.msra.mxu0 0.0
        %1618 = vmatprep.subr.mxu0 0.0
        %1619 = vmatpush1.msra.mxu0 0.0
        %1620 = vmatprep.subr.mxu0 0.0
        %1621 = vmatpush1.msra.mxu0 0.0
        %1622 = vmatprep.subr.mxu0 0.0
        %1623 = vmatpush1.msra.mxu0 0.0
        %1624 = vmatprep.subr.mxu0 0.0
        %1625 = vmatpush1.msra.mxu0 0.0
        %1626 = vmatprep.subr.mxu0 0.0
        %1627 = vmatpush1.msra.mxu0 0.0
        %1628 = vmatprep.subr.mxu0 0.0
        %1629 = vmatpush1.msra.mxu0 0.0
        %1630 = vmatprep.subr.mxu0 0.0
        %1631 = vmatpush1.msra.mxu0 0.0
        %1632 = vmatprep.mubr.f32.mxu0 0.0
        %1633 = vmatmul.mubr.f32.gmra.mrb[0].mxu0 %v1386
        %v1634 = vpop.f32.mrb[0].mxu0
        %v1635 = vadd.f32 %v1441, %v1634
        %v1636 = vpop.f32.mrb[0].mxu0
        %1637 = vmatprep.mubr.f32.mxu0 0.0
        %1638 = vmatmul.mubr.f32.gmra.mrb[0].mxu0 %v1387
        %v1639 = vpop.f32.mrb[0].mxu0
        %v1640 = vadd.f32 %v1446, %v1639
        %v1641 = vpop.f32.mrb[0].mxu0
        %1642 = vmatprep.mubr.f32.mxu0 0.0
        %1643 = vmatmul.mubr.f32.gmra.mrb[0].mxu0 %v1388
        %v1644 = vpop.f32.mrb[0].mxu0
        %v1645 = vadd.f32 %v1451, %v1644
        %v1646 = vpop.f32.mrb[0].mxu0
        %1647 = vmatprep.mubr.f32.mxu0 0.0
        %1648 = vmatmul.mubr.f32.gmra.mrb[0].mxu0 %v1389
        %v1649 = vpop.f32.mrb[0].mxu0
        %v1650 = vadd.f32 %v1456, %v1649
        %v1651 = vpop.f32.mrb[0].mxu0
        %1652 = vmatprep.mubr.f32.mxu0 0.0
        %1653 = vmatmul.mubr.f32.gmra.mrb[0].mxu0 %v1390
        %v1654 = vpop.f32.mrb[0].mxu0
        %v1655 = vadd.f32 %v1461, %v1654
        %v1656 = vpop.f32.mrb[0].mxu0
        %1657 = vmatprep.mubr.f32.mxu0 0.0
        %1658 = vmatmul.mubr.f32.gmra.mrb[0].mxu0 %v1391
        %v1659 = vpop.f32.mrb[0].mxu0
        %v1660 = vadd.f32 %v1466, %v1659
        %v1661 = vpop.f32.mrb[0].mxu0
        %1662 = vmatprep.mubr.f32.mxu0 0.0
        %1663 = vmatmul.mubr.f32.gmra.mrb[0].mxu0 %v1392
        %v1664 = vpop.f32.mrb[0].mxu0
        %v1665 = vadd.f32 %v1471, %v1664
        %v1666 = vpop.f32.mrb[0].mxu0
        %1667 = vmatprep.mubr.f32.mxu0 0.0
        %1668 = vmatmul.mubr.f32.gmra.mrb[0].mxu0 %v1393
        %v1669 = vpop.f32.mrb[0].mxu0
        %v1670 = vadd.f32 %v1476, %v1669
        %v1671 = vpop.f32.mrb[0].mxu0
        %1672 = vmatprep.mubr.f32.mxu0 0.0
        %1673 = vmatmul.mubr.f32.gmra.mrb[0].mxu0 %v1394
        %v1674 = vpop.f32.mrb[0].mxu0
        %v1675 = vadd.f32 %v1481, %v1674
        %v1676 = vpop.f32.mrb[0].mxu0
        %1677 = vmatprep.mubr.f32.mxu0 0.0
        %1678 = vmatmul.mubr.f32.gmra.mrb[0].mxu0 %v1395
        %v1679 = vpop.f32.mrb[0].mxu0
        %v1680 = vadd.f32 %v1486, %v1679
        %v1681 = vpop.f32.mrb[0].mxu0
        %1682 = vmatprep.mubr.f32.mxu0 0.0
        %1683 = vmatmul.mubr.f32.gmra.mrb[0].mxu0 %v1396
        %v1684 = vpop.f32.mrb[0].mxu0
        %v1685 = vadd.f32 %v1491, %v1684
        %v1686 = vpop.f32.mrb[0].mxu0
        %1687 = vmatprep.mubr.f32.mxu0 0.0
        %1688 = vmatmul.mubr.f32.gmra.mrb[0].mxu0 %v1397
        %v1689 = vpop.f32.mrb[0].mxu0
        %v1690 = vadd.f32 %v1496, %v1689
        %v1691 = vpop.f32.mrb[0].mxu0
        %1692 = vmatprep.mubr.f32.mxu0 0.0
        %1693 = vmatmul.mubr.f32.gmra.mrb[0].mxu0 %v1398
        %v1694 = vpop.f32.mrb[0].mxu0
        %v1695 = vadd.f32 %v1501, %v1694
        %v1696 = vpop.f32.mrb[0].mxu0
        %1697 = vmatprep.mubr.f32.mxu0 0.0
        %1698 = vmatmul.mubr.f32.gmra.mrb[0].mxu0 %v1399
        %v1699 = vpop.f32.mrb[0].mxu0
        %v1700 = vadd.f32 %v1506, %v1699
        %v1701 = vpop.f32.mrb[0].mxu0
        %1702 = vmatprep.mubr.f32.mxu0 0.0
        %1703 = vmatmul.mubr.f32.gmra.mrb[0].mxu0 %v1400
        %v1704 = vpop.f32.mrb[0].mxu0
        %v1705 = vadd.f32 %v1511, %v1704
        %v1706 = vpop.f32.mrb[0].mxu0
        %1707 = vmatprep.mubr.f32.mxu0 0.0
        %1708 = vmatmul.mubr.f32.gmra.mrb[0].mxu0 %v1401
        %v1709 = vpop.f32.mrb[0].mxu0
        %v1710 = vadd.f32 %v1516, %v1709
        %v1711 = vpop.f32.mrb[0].mxu0
        %1712 = vmatprep.mubr.f32.mxu0 0.0
        %1713 = vmatmul.mubr.f32.gmra.mrb[0].mxu0 %v1402
        %v1714 = vpop.f32.mrb[0].mxu0
        %v1715 = vadd.f32 %v1521, %v1714
        %v1716 = vpop.f32.mrb[0].mxu0
        %1717 = vmatprep.mubr.f32.mxu0 0.0
        %1718 = vmatmul.mubr.f32.gmra.mrb[0].mxu0 %v1403
        %v1719 = vpop.f32.mrb[0].mxu0
        %v1720 = vadd.f32 %v1526, %v1719
        %v1721 = vpop.f32.mrb[0].mxu0
        %1722 = vmatprep.mubr.f32.mxu0 0.0
        %1723 = vmatmul.mubr.f32.gmra.mrb[0].mxu0 %v1404
        %v1724 = vpop.f32.mrb[0].mxu0
        %v1725 = vadd.f32 %v1531, %v1724
        %v1726 = vpop.f32.mrb[0].mxu0
        %1727 = vmatprep.mubr.f32.mxu0 0.0
        %1728 = vmatmul.mubr.f32.gmra.mrb[0].mxu0 %v1405
        %v1729 = vpop.f32.mrb[0].mxu0
        %v1730 = vadd.f32 %v1536, %v1729
        %v1731 = vpop.f32.mrb[0].mxu0
        %1732 = vmatprep.mubr.f32.mxu0 0.0
        %1733 = vmatmul.mubr.f32.gmra.mrb[0].mxu0 %v1406
        %v1734 = vpop.f32.mrb[0].mxu0
        %v1735 = vadd.f32 %v1541, %v1734
        %v1736 = vpop.f32.mrb[0].mxu0
        %1737 = vmatprep.mubr.f32.mxu0 0.0
        %1738 = vmatmul.mubr.f32.gmra.mrb[0].mxu0 %v1407
        %v1739 = vpop.f32.mrb[0].mxu0
        %v1740 = vadd.f32 %v1546, %v1739
        %v1741 = vpop.f32.mrb[0].mxu0
        %1742 = vmatprep.mubr.f32.mxu0 0.0
        %1743 = vmatmul.mubr.f32.gmra.mrb[0].mxu0 %v1408
        %v1744 = vpop.f32.mrb[0].mxu0
        %v1745 = vadd.f32 %v1551, %v1744
        %v1746 = vpop.f32.mrb[0].mxu0
        %1747 = vmatprep.mubr.f32.mxu0 0.0
        %1748 = vmatmul.mubr.f32.gmra.mrb[0].mxu0 %v1409
        %v1749 = vpop.f32.mrb[0].mxu0
        %v1750 = vadd.f32 %v1556, %v1749
        %v1751 = vpop.f32.mrb[0].mxu0
        %1752 = vmatprep.mubr.f32.mxu0 0.0
        %1753 = vmatmul.mubr.f32.gmra.mrb[0].mxu0 %v1410
        %v1754 = vpop.f32.mrb[0].mxu0
        %v1755 = vadd.f32 %v1561, %v1754
        %v1756 = vpop.f32.mrb[0].mxu0
        %1757 = vmatprep.mubr.f32.mxu0 0.0
        %1758 = vmatmul.mubr.f32.gmra.mrb[0].mxu0 %v1411
        %v1759 = vpop.f32.mrb[0].mxu0
        %v1760 = vadd.f32 %v1566, %v1759
        %v1761 = vpop.f32.mrb[0].mxu0
        %1762 = vdwg.mxu0
        %vm1763 = vcmp.gt.f32.partialorder %v1635, 0.0
        %vm1764 = vcmp.gt.f32.partialorder %v1640, 0.0
        %vm1765 = vcmp.gt.f32.partialorder %v1645, 0.0
        %vm1766 = vcmp.gt.f32.partialorder %v1650, 0.0
        %vm1767 = vcmp.gt.f32.partialorder %v1655, 0.0
        %vm1768 = vcmp.gt.f32.partialorder %v1660, 0.0
        %vm1769 = vcmp.gt.f32.partialorder %v1665, 0.0
        %vm1770 = vcmp.gt.f32.partialorder %v1670, 0.0
        %vm1771 = vcmp.gt.f32.partialorder %v1675, 0.0
        %vm1772 = vcmp.gt.f32.partialorder %v1680, 0.0
        %vm1773 = vcmp.gt.f32.partialorder %v1685, 0.0
        %vm1774 = vcmp.gt.f32.partialorder %v1690, 0.0
        %vm1775 = vcmp.gt.f32.partialorder %v1695, 0.0
        %vm1776 = vcmp.gt.f32.partialorder %v1700, 0.0
        %vm1777 = vcmp.gt.f32.partialorder %v1705, 0.0
        %vm1778 = vcmp.gt.f32.partialorder %v1710, 0.0
        %vm1779 = vcmp.gt.f32.partialorder %v1715, 0.0
        %vm1780 = vcmp.gt.f32.partialorder %v1720, 0.0
        %vm1781 = vcmp.gt.f32.partialorder %v1725, 0.0
        %vm1782 = vcmp.gt.f32.partialorder %v1730, 0.0
        %vm1783 = vcmp.gt.f32.partialorder %v1735, 0.0
        %vm1784 = vcmp.gt.f32.partialorder %v1740, 0.0
        %vm1785 = vcmp.gt.f32.partialorder %v1745, 0.0
        %vm1786 = vcmp.gt.f32.partialorder %v1750, 0.0
        %vm1787 = vcmp.gt.f32.partialorder %v1755, 0.0
        %vm1788 = vcmp.gt.f32.partialorder %v1760, 0.0
        %v1789 = vmul.f32 %v535, %v1635
        %v1790 = vmul.f32 %v535, %v1640
        %v1791 = vmul.f32 %v535, %v1645
        %v1792 = vmul.f32 %v535, %v1650
        %v1793 = vmul.f32 %v535, %v1655
        %v1794 = vmul.f32 %v535, %v1660
        %v1795 = vmul.f32 %v535, %v1665
        %v1796 = vmul.f32 %v535, %v1670
        %v1797 = vmul.f32 %v535, %v1675
        %v1798 = vmul.f32 %v535, %v1680
        %v1799 = vmul.f32 %v535, %v1685
        %v1800 = vmul.f32 %v535, %v1690
        %v1801 = vmul.f32 %v535, %v1695
        %v1802 = vmul.f32 %v535, %v1700
        %v1803 = vmul.f32 %v535, %v1705
        %v1804 = vmul.f32 %v535, %v1710
        %v1805 = vmul.f32 %v535, %v1715
        %v1806 = vmul.f32 %v535, %v1720
        %v1807 = vmul.f32 %v535, %v1725
        %v1808 = vmul.f32 %v535, %v1730
        %v1809 = vmul.f32 %v535, %v1735
        %v1810 = vmul.f32 %v535, %v1740
        %v1811 = vmul.f32 %v535, %v1745
        %v1812 = vmul.f32 %v535, %v1750
        %v1813 = vmul.f32 %v535, %v1755
        %v1814 = vmul.f32 %v535, %v1760
        %v1815 = vsel %vm1763, %v1635, %v1789
        %v1816 = vsel %vm1764, %v1640, %v1790
        %v1817 = vsel %vm1765, %v1645, %v1791
        %v1818 = vsel %vm1766, %v1650, %v1792
        %v1819 = vsel %vm1767, %v1655, %v1793
        %v1820 = vsel %vm1768, %v1660, %v1794
        %v1821 = vsel %vm1769, %v1665, %v1795
        %v1822 = vsel %vm1770, %v1670, %v1796
        %v1823 = vsel %vm1771, %v1675, %v1797
        %v1824 = vsel %vm1772, %v1680, %v1798
        %v1825 = vsel %vm1773, %v1685, %v1799
        %v1826 = vsel %vm1774, %v1690, %v1800
        %v1827 = vsel %vm1775, %v1695, %v1801
        %v1828 = vsel %vm1776, %v1700, %v1802
        %v1829 = vsel %vm1777, %v1705, %v1803
        %v1830 = vsel %vm1778, %v1710, %v1804
        %v1831 = vsel %vm1779, %v1715, %v1805
        %v1832 = vsel %vm1780, %v1720, %v1806
        %v1833 = vsel %vm1781, %v1725, %v1807
        %v1834 = vsel %vm1782, %v1730, %v1808
        %v1835 = vsel %vm1783, %v1735, %v1809
        %v1836 = vsel %vm1784, %v1740, %v1810
        %v1837 = vsel %vm1785, %v1745, %v1811
        %v1838 = vsel %vm1786, %v1750, %v1812
        %v1839 = vsel %vm1787, %v1755, %v1813
        %v1840 = vsel %vm1788, %v1760, %v1814
        %v1841 = vld [vmem:[%s6] sm:$0x3]
        %v1843 = vlaneseq
        %v1844 = vshrl.u32 %v1843, 7
        %v1845 = vsub.s32 0, %v1844
        %v1846 = vrot.slane %v1841, %v1845
        %v1847 = vlaneseq
        %v1848 = vshrl.u32 %v1847, 7
        %v1849 = vsub.s32 1, %v1848
        %v1850 = vrot.slane %v1841, %v1849
        %v1852 = vsel %vm1035, %v1850, 0
        %1854 = vmatprep.subr.mxu0 0.0
        %1855 = vmatpush1.msra.mxu0 %v1815
        %1856 = vmatprep.subr.mxu0 0.0
        %1857 = vmatpush1.msra.mxu0 %v1816
        %1858 = vmatprep.subr.mxu0 0.0
        %1859 = vmatpush1.msra.mxu0 %v1817
        %1860 = vmatprep.subr.mxu0 0.0
        %1861 = vmatpush1.msra.mxu0 %v1818
        %1862 = vmatprep.subr.mxu0 0.0
        %1863 = vmatpush1.msra.mxu0 %v1819
        %1864 = vmatprep.subr.mxu0 0.0
        %1865 = vmatpush1.msra.mxu0 %v1820
        %1866 = vmatprep.subr.mxu0 0.0
        %1867 = vmatpush1.msra.mxu0 %v1821
        %1868 = vmatprep.subr.mxu0 0.0
        %1869 = vmatpush1.msra.mxu0 %v1822
        %1870 = vmatprep.subr.mxu0 0.0
        %1871 = vmatpush1.msra.mxu0 %v1823
        %1872 = vmatprep.subr.mxu0 0.0
        %1873 = vmatpush1.msra.mxu0 %v1824
        %1874 = vmatprep.subr.mxu0 0.0
        %1875 = vmatpush1.msra.mxu0 %v1825
        %1876 = vmatprep.subr.mxu0 0.0
        %1877 = vmatpush1.msra.mxu0 %v1826
        %1878 = vmatprep.subr.mxu0 0.0
        %1879 = vmatpush1.msra.mxu0 %v1827
        %1880 = vmatprep.subr.mxu0 0.0
        %1881 = vmatpush1.msra.mxu0 %v1828
        %1882 = vmatprep.subr.mxu0 0.0
        %1883 = vmatpush1.msra.mxu0 %v1829
        %1884 = vmatprep.subr.mxu0 0.0
        %1885 = vmatpush1.msra.mxu0 %v1830
        %1886 = vmatprep.subr.mxu0 0.0
        %1887 = vmatpush1.msra.mxu0 %v1831
        %1888 = vmatprep.subr.mxu0 0.0
        %1889 = vmatpush1.msra.mxu0 %v1832
        %1890 = vmatprep.subr.mxu0 0.0
        %1891 = vmatpush1.msra.mxu0 %v1833
        %1892 = vmatprep.subr.mxu0 0.0
        %1893 = vmatpush1.msra.mxu0 %v1834
        %1894 = vmatprep.subr.mxu0 0.0
        %1895 = vmatpush1.msra.mxu0 %v1835
        %1896 = vmatprep.subr.mxu0 0.0
        %1897 = vmatpush1.msra.mxu0 %v1836
        %1898 = vmatprep.subr.mxu0 0.0
        %1899 = vmatpush1.msra.mxu0 %v1837
        %1900 = vmatprep.subr.mxu0 0.0
        %1901 = vmatpush1.msra.mxu0 %v1838
        %1902 = vmatprep.subr.mxu0 0.0
        %1903 = vmatpush1.msra.mxu0 %v1839
        %1904 = vmatprep.subr.mxu0 0.0
        %1905 = vmatpush1.msra.mxu0 %v1840
        %1906 = vmatprep.subr.mxu0 0.0
        %1907 = vmatpush1.msra.mxu0 0.0
        %1908 = vmatprep.subr.mxu0 0.0
        %1909 = vmatpush1.msra.mxu0 0.0
        %1910 = vmatprep.subr.mxu0 0.0
        %1911 = vmatpush1.msra.mxu0 0.0
        %1912 = vmatprep.subr.mxu0 0.0
        %1913 = vmatpush1.msra.mxu0 0.0
        %1914 = vmatprep.subr.mxu0 0.0
        %1915 = vmatpush1.msra.mxu0 0.0
        %1916 = vmatprep.subr.mxu0 0.0
        %1917 = vmatpush1.msra.mxu0 0.0
        %1918 = vmatprep.mubr.f32.mxu0 %v1852
        %1919 = vmatmul.mubr.f32.gmra.mrb[0].mxu0 %v1846
        %v1920 = vpop.f32.mrb[0].mxu0
        %v1921 = vadd.f32 %v1024, %v1920
        %v1922 = vpop.f32.mrb[0].mxu0
        %1923 = vdwg.mxu0
        %1924 = vst [vmem:[%s283 + $0x1] sm:$0x1] %v1921
        %v1925 = vld [vmem:[%s287 + $0x2] sm:$0x1]
        %v1926 = vld [vmem:[%s2] sm:$0xff]
        %v1927 = vld [vmem:[%s2 + $0x8] sm:$0xff]
        %v1928 = vld [vmem:[%s2 + $0x10] sm:$0xff]
        %v1929 = vld [vmem:[%s2 + $0x18] sm:$0xff]
        %v1930 = vld [vmem:[%s2 + $0x20] sm:$0xff]
        %v1931 = vld [vmem:[%s2 + $0x28] sm:$0xff]
        %v1932 = vld [vmem:[%s2 + $0x30] sm:$0xff]
        %v1933 = vld [vmem:[%s2 + $0x38] sm:$0xff]
        %v1934 = vld [vmem:[%s2 + $0x40] sm:$0xff]
        %v1935 = vld [vmem:[%s2 + $0x48] sm:$0xff]
        %v1936 = vld [vmem:[%s2 + $0x50] sm:$0xff]
        %v1937 = vld [vmem:[%s2 + $0x58] sm:$0xff]
        %v1938 = vld [vmem:[%s2 + $0x60] sm:$0xff]
        %v1939 = vld [vmem:[%s2 + $0x68] sm:$0xff]
        %v1940 = vld [vmem:[%s2 + $0x70] sm:$0xff]
        %v1941 = vld [vmem:[%s2 + $0x78] sm:$0xff]
        %1943 = vset.pattern.permute.xlu0 0
        %1944 = vperm.xlu0 %1943, %v1926
        %v1945 = vpop.permute.xlu0 %1944
        %1948 = vset.pattern.permute.xlu0 0
        %1949 = vperm.xlu0 %1948, %v1927
        %v1950 = vpop.permute.xlu0 %1949
        %1953 = vset.pattern.permute.xlu0 0
        %1954 = vperm.xlu0 %1953, %v1928
        %v1955 = vpop.permute.xlu0 %1954
        %1958 = vset.pattern.permute.xlu0 0
        %1959 = vperm.xlu0 %1958, %v1929
        %v1960 = vpop.permute.xlu0 %1959
        %1963 = vset.pattern.permute.xlu0 0
        %1964 = vperm.xlu0 %1963, %v1930
        %v1965 = vpop.permute.xlu0 %1964
        %1968 = vset.pattern.permute.xlu0 0
        %1969 = vperm.xlu0 %1968, %v1931
        %v1970 = vpop.permute.xlu0 %1969
        %1973 = vset.pattern.permute.xlu0 0
        %1974 = vperm.xlu0 %1973, %v1932
        %v1975 = vpop.permute.xlu0 %1974
        %1978 = vset.pattern.permute.xlu0 0
        %1979 = vperm.xlu0 %1978, %v1933
        %v1980 = vpop.permute.xlu0 %1979
        %1983 = vset.pattern.permute.xlu0 0
        %1984 = vperm.xlu0 %1983, %v1934
        %v1985 = vpop.permute.xlu0 %1984
        %1988 = vset.pattern.permute.xlu0 0
        %1989 = vperm.xlu0 %1988, %v1935
        %v1990 = vpop.permute.xlu0 %1989
        %1993 = vset.pattern.permute.xlu0 0
        %1994 = vperm.xlu0 %1993, %v1936
        %v1995 = vpop.permute.xlu0 %1994
        %1998 = vset.pattern.permute.xlu0 0
        %1999 = vperm.xlu0 %1998, %v1937
        %v2000 = vpop.permute.xlu0 %1999
        %2003 = vset.pattern.permute.xlu0 0
        %2004 = vperm.xlu0 %2003, %v1938
        %v2005 = vpop.permute.xlu0 %2004
        %2008 = vset.pattern.permute.xlu0 0
        %2009 = vperm.xlu0 %2008, %v1939
        %v2010 = vpop.permute.xlu0 %2009
        %2013 = vset.pattern.permute.xlu0 0
        %2014 = vperm.xlu0 %2013, %v1940
        %v2015 = vpop.permute.xlu0 %2014
        %2018 = vset.pattern.permute.xlu0 0
        %2019 = vperm.xlu0 %2018, %v1941
        %v2020 = vpop.permute.xlu0 %2019
        %v2022 = vlaneseq
        %v2023 = vshrl.u32 %v2022, 7
        %v2024 = vsub.s32 0, %v2023
        %v2025 = vrot.slane %v1925, %v2024
        %v2026 = vmul.f32 %v1945, %v2025
        %v2027 = vmul.f32 %v1950, %v2025
        %v2028 = vmul.f32 %v1955, %v2025
        %v2029 = vmul.f32 %v1960, %v2025
        %v2030 = vmul.f32 %v1965, %v2025
        %v2031 = vmul.f32 %v1970, %v2025
        %v2032 = vmul.f32 %v1975, %v2025
        %v2033 = vmul.f32 %v1980, %v2025
        %v2034 = vmul.f32 %v1985, %v2025
        %v2035 = vmul.f32 %v1990, %v2025
        %v2036 = vmul.f32 %v1995, %v2025
        %v2037 = vmul.f32 %v2000, %v2025
        %v2038 = vmul.f32 %v2005, %v2025
        %v2039 = vmul.f32 %v2010, %v2025
        %v2040 = vmul.f32 %v2015, %v2025
        %v2041 = vmul.f32 %v2020, %v2025
        %v2042 = vld [vmem:[%s3] sm:$0xff]
        %v2043 = vld [vmem:[%s3 + $0x8] sm:$0xff]
        %v2044 = vld [vmem:[%s3 + $0x10] sm:$0xff]
        %v2045 = vld [vmem:[%s3 + $0x18] sm:$0xff]
        %v2046 = vld [vmem:[%s3 + $0x20] sm:$0xff]
        %v2047 = vld [vmem:[%s3 + $0x28] sm:$0xff]
        %v2048 = vld [vmem:[%s3 + $0x30] sm:$0xff]
        %v2049 = vld [vmem:[%s3 + $0x38] sm:$0xff]
        %v2050 = vld [vmem:[%s3 + $0x40] sm:$0xff]
        %v2051 = vld [vmem:[%s3 + $0x48] sm:$0xff]
        %v2052 = vld [vmem:[%s3 + $0x50] sm:$0xff]
        %v2053 = vld [vmem:[%s3 + $0x58] sm:$0xff]
        %v2054 = vld [vmem:[%s3 + $0x60] sm:$0xff]
        %v2055 = vld [vmem:[%s3 + $0x68] sm:$0xff]
        %v2056 = vld [vmem:[%s3 + $0x70] sm:$0xff]
        %v2057 = vld [vmem:[%s3 + $0x78] sm:$0xff]
        %2059 = vset.pattern.permute.xlu0 0
        %2060 = vperm.xlu0 %2059, %v2042
        %v2061 = vpop.permute.xlu0 %2060
        %2064 = vset.pattern.permute.xlu0 0
        %2065 = vperm.xlu0 %2064, %v2043
        %v2066 = vpop.permute.xlu0 %2065
        %2069 = vset.pattern.permute.xlu0 0
        %2070 = vperm.xlu0 %2069, %v2044
        %v2071 = vpop.permute.xlu0 %2070
        %2074 = vset.pattern.permute.xlu0 0
        %2075 = vperm.xlu0 %2074, %v2045
        %v2076 = vpop.permute.xlu0 %2075
        %2079 = vset.pattern.permute.xlu0 0
        %2080 = vperm.xlu0 %2079, %v2046
        %v2081 = vpop.permute.xlu0 %2080
        %2084 = vset.pattern.permute.xlu0 0
        %2085 = vperm.xlu0 %2084, %v2047
        %v2086 = vpop.permute.xlu0 %2085
        %2089 = vset.pattern.permute.xlu0 0
        %2090 = vperm.xlu0 %2089, %v2048
        %v2091 = vpop.permute.xlu0 %2090
        %2094 = vset.pattern.permute.xlu0 0
        %2095 = vperm.xlu0 %2094, %v2049
        %v2096 = vpop.permute.xlu0 %2095
        %2099 = vset.pattern.permute.xlu0 0
        %2100 = vperm.xlu0 %2099, %v2050
        %v2101 = vpop.permute.xlu0 %2100
        %2104 = vset.pattern.permute.xlu0 0
        %2105 = vperm.xlu0 %2104, %v2051
        %v2106 = vpop.permute.xlu0 %2105
        %2109 = vset.pattern.permute.xlu0 0
        %2110 = vperm.xlu0 %2109, %v2052
        %v2111 = vpop.permute.xlu0 %2110
        %2114 = vset.pattern.permute.xlu0 0
        %2115 = vperm.xlu0 %2114, %v2053
        %v2116 = vpop.permute.xlu0 %2115
        %2119 = vset.pattern.permute.xlu0 0
        %2120 = vperm.xlu0 %2119, %v2054
        %v2121 = vpop.permute.xlu0 %2120
        %2124 = vset.pattern.permute.xlu0 0
        %2125 = vperm.xlu0 %2124, %v2055
        %v2126 = vpop.permute.xlu0 %2125
        %2129 = vset.pattern.permute.xlu0 0
        %2130 = vperm.xlu0 %2129, %v2056
        %v2131 = vpop.permute.xlu0 %2130
        %2134 = vset.pattern.permute.xlu0 0
        %2135 = vperm.xlu0 %2134, %v2057
        %v2136 = vpop.permute.xlu0 %2135
        %v2138 = vadd.f32 %v2026, %v2061
        %v2139 = vadd.f32 %v2027, %v2066
        %v2140 = vadd.f32 %v2028, %v2071
        %v2141 = vadd.f32 %v2029, %v2076
        %v2142 = vadd.f32 %v2030, %v2081
        %v2143 = vadd.f32 %v2031, %v2086
        %v2144 = vadd.f32 %v2032, %v2091
        %v2145 = vadd.f32 %v2033, %v2096
        %v2146 = vadd.f32 %v2034, %v2101
        %v2147 = vadd.f32 %v2035, %v2106
        %v2148 = vadd.f32 %v2036, %v2111
        %v2149 = vadd.f32 %v2037, %v2116
        %v2150 = vadd.f32 %v2038, %v2121
        %v2151 = vadd.f32 %v2039, %v2126
        %v2152 = vadd.f32 %v2040, %v2131
        %v2153 = vadd.f32 %v2041, %v2136
        %vm2154 = vcmp.gt.f32.partialorder %v2138, 0.0
        %vm2155 = vcmp.gt.f32.partialorder %v2139, 0.0
        %vm2156 = vcmp.gt.f32.partialorder %v2140, 0.0
        %vm2157 = vcmp.gt.f32.partialorder %v2141, 0.0
        %vm2158 = vcmp.gt.f32.partialorder %v2142, 0.0
        %vm2159 = vcmp.gt.f32.partialorder %v2143, 0.0
        %vm2160 = vcmp.gt.f32.partialorder %v2144, 0.0
        %vm2161 = vcmp.gt.f32.partialorder %v2145, 0.0
        %vm2162 = vcmp.gt.f32.partialorder %v2146, 0.0
        %vm2163 = vcmp.gt.f32.partialorder %v2147, 0.0
        %vm2164 = vcmp.gt.f32.partialorder %v2148, 0.0
        %vm2165 = vcmp.gt.f32.partialorder %v2149, 0.0
        %vm2166 = vcmp.gt.f32.partialorder %v2150, 0.0
        %vm2167 = vcmp.gt.f32.partialorder %v2151, 0.0
        %vm2168 = vcmp.gt.f32.partialorder %v2152, 0.0
        %vm2169 = vcmp.gt.f32.partialorder %v2153, 0.0
        %v2170 = vmul.f32 %v535, %v2138
        %v2171 = vmul.f32 %v535, %v2139
        %v2172 = vmul.f32 %v535, %v2140
        %v2173 = vmul.f32 %v535, %v2141
        %v2174 = vmul.f32 %v535, %v2142
        %v2175 = vmul.f32 %v535, %v2143
        %v2176 = vmul.f32 %v535, %v2144
        %v2177 = vmul.f32 %v535, %v2145
        %v2178 = vmul.f32 %v535, %v2146
        %v2179 = vmul.f32 %v535, %v2147
        %v2180 = vmul.f32 %v535, %v2148
        %v2181 = vmul.f32 %v535, %v2149
        %v2182 = vmul.f32 %v535, %v2150
        %v2183 = vmul.f32 %v535, %v2151
        %v2184 = vmul.f32 %v535, %v2152
        %v2185 = vmul.f32 %v535, %v2153
        %v2186 = vsel %vm2154, %v2138, %v2170
        %v2187 = vsel %vm2155, %v2139, %v2171
        %v2188 = vsel %vm2156, %v2140, %v2172
        %v2189 = vsel %vm2157, %v2141, %v2173
        %v2190 = vsel %vm2158, %v2142, %v2174
        %v2191 = vsel %vm2159, %v2143, %v2175
        %v2192 = vsel %vm2160, %v2144, %v2176
        %v2193 = vsel %vm2161, %v2145, %v2177
        %v2194 = vsel %vm2162, %v2146, %v2178
        %v2195 = vsel %vm2163, %v2147, %v2179
        %v2196 = vsel %vm2164, %v2148, %v2180
        %v2197 = vsel %vm2165, %v2149, %v2181
        %v2198 = vsel %vm2166, %v2150, %v2182
        %v2199 = vsel %vm2167, %v2151, %v2183
        %v2200 = vsel %vm2168, %v2152, %v2184
        %v2201 = vsel %vm2169, %v2153, %v2185
        %v2202 = vld [vmem:[%s4] sm:$0xff]
        %v2203 = vld [vmem:[%s4 + $0x8] sm:$0xff]
        %v2204 = vld [vmem:[%s4 + $0x10] sm:$0xff]
        %v2205 = vld [vmem:[%s4 + $0x18] sm:$0xff]
        %v2206 = vld [vmem:[%s4 + $0x20] sm:$0xff]
        %v2207 = vld [vmem:[%s4 + $0x28] sm:$0xff]
        %v2208 = vld [vmem:[%s4 + $0x30] sm:$0xff]
        %v2209 = vld [vmem:[%s4 + $0x38] sm:$0xff]
        %v2210 = vld [vmem:[%s4 + $0x40] sm:$0xff]
        %v2211 = vld [vmem:[%s4 + $0x48] sm:$0xff]
        %v2212 = vld [vmem:[%s4 + $0x50] sm:$0xff]
        %v2213 = vld [vmem:[%s4 + $0x58] sm:$0xff]
        %v2214 = vld [vmem:[%s4 + $0x60] sm:$0xff]
        %v2215 = vld [vmem:[%s4 + $0x68] sm:$0xff]
        %v2216 = vld [vmem:[%s4 + $0x70] sm:$0xff]
        %v2217 = vld [vmem:[%s4 + $0x78] sm:$0xff]
        %v2218 = vld [vmem:[%s4 + $0x80] sm:$0xff]
        %v2219 = vld [vmem:[%s4 + $0x88] sm:$0xff]
        %v2220 = vld [vmem:[%s4 + $0x90] sm:$0xff]
        %v2221 = vld [vmem:[%s4 + $0x98] sm:$0xff]
        %v2222 = vld [vmem:[%s4 + $0xa0] sm:$0xff]
        %v2223 = vld [vmem:[%s4 + $0xa8] sm:$0xff]
        %v2224 = vld [vmem:[%s4 + $0xb0] sm:$0xff]
        %v2225 = vld [vmem:[%s4 + $0xb8] sm:$0xff]
        %v2226 = vld [vmem:[%s4 + $0xc0] sm:$0xff]
        %v2227 = vld [vmem:[%s4 + $0xc8] sm:$0xff]
        %v2228 = vld [vmem:[%s5] sm:$0xff]
        %v2229 = vld [vmem:[%s5 + $0x8] sm:$0xff]
        %v2230 = vld [vmem:[%s5 + $0x10] sm:$0xff]
        %v2231 = vld [vmem:[%s5 + $0x18] sm:$0xff]
        %v2232 = vld [vmem:[%s5 + $0x20] sm:$0xff]
        %v2233 = vld [vmem:[%s5 + $0x28] sm:$0xff]
        %v2234 = vld [vmem:[%s5 + $0x30] sm:$0xff]
        %v2235 = vld [vmem:[%s5 + $0x38] sm:$0xff]
        %v2236 = vld [vmem:[%s5 + $0x40] sm:$0xff]
        %v2237 = vld [vmem:[%s5 + $0x48] sm:$0xff]
        %v2238 = vld [vmem:[%s5 + $0x50] sm:$0xff]
        %v2239 = vld [vmem:[%s5 + $0x58] sm:$0xff]
        %v2240 = vld [vmem:[%s5 + $0x60] sm:$0xff]
        %v2241 = vld [vmem:[%s5 + $0x68] sm:$0xff]
        %v2242 = vld [vmem:[%s5 + $0x70] sm:$0xff]
        %v2243 = vld [vmem:[%s5 + $0x78] sm:$0xff]
        %v2244 = vld [vmem:[%s5 + $0x80] sm:$0xff]
        %v2245 = vld [vmem:[%s5 + $0x88] sm:$0xff]
        %v2246 = vld [vmem:[%s5 + $0x90] sm:$0xff]
        %v2247 = vld [vmem:[%s5 + $0x98] sm:$0xff]
        %v2248 = vld [vmem:[%s5 + $0xa0] sm:$0xff]
        %v2249 = vld [vmem:[%s5 + $0xa8] sm:$0xff]
        %v2250 = vld [vmem:[%s5 + $0xb0] sm:$0xff]
        %v2251 = vld [vmem:[%s5 + $0xb8] sm:$0xff]
        %v2252 = vld [vmem:[%s5 + $0xc0] sm:$0xff]
        %v2253 = vld [vmem:[%s5 + $0xc8] sm:$0xff]
        %2255 = vset.pattern.permute.xlu0 0
        %2256 = vperm.xlu0 %2255, %v2228
        %v2257 = vpop.permute.xlu0 %2256
        %2260 = vset.pattern.permute.xlu0 0
        %2261 = vperm.xlu0 %2260, %v2229
        %v2262 = vpop.permute.xlu0 %2261
        %2265 = vset.pattern.permute.xlu0 0
        %2266 = vperm.xlu0 %2265, %v2230
        %v2267 = vpop.permute.xlu0 %2266
        %2270 = vset.pattern.permute.xlu0 0
        %2271 = vperm.xlu0 %2270, %v2231
        %v2272 = vpop.permute.xlu0 %2271
        %2275 = vset.pattern.permute.xlu0 0
        %2276 = vperm.xlu0 %2275, %v2232
        %v2277 = vpop.permute.xlu0 %2276
        %2280 = vset.pattern.permute.xlu0 0
        %2281 = vperm.xlu0 %2280, %v2233
        %v2282 = vpop.permute.xlu0 %2281
        %2285 = vset.pattern.permute.xlu0 0
        %2286 = vperm.xlu0 %2285, %v2234
        %v2287 = vpop.permute.xlu0 %2286
        %2290 = vset.pattern.permute.xlu0 0
        %2291 = vperm.xlu0 %2290, %v2235
        %v2292 = vpop.permute.xlu0 %2291
        %2295 = vset.pattern.permute.xlu0 0
        %2296 = vperm.xlu0 %2295, %v2236
        %v2297 = vpop.permute.xlu0 %2296
        %2300 = vset.pattern.permute.xlu0 0
        %2301 = vperm.xlu0 %2300, %v2237
        %v2302 = vpop.permute.xlu0 %2301
        %2305 = vset.pattern.permute.xlu0 0
        %2306 = vperm.xlu0 %2305, %v2238
        %v2307 = vpop.permute.xlu0 %2306
        %2310 = vset.pattern.permute.xlu0 0
        %2311 = vperm.xlu0 %2310, %v2239
        %v2312 = vpop.permute.xlu0 %2311
        %2315 = vset.pattern.permute.xlu0 0
        %2316 = vperm.xlu0 %2315, %v2240
        %v2317 = vpop.permute.xlu0 %2316
        %2320 = vset.pattern.permute.xlu0 0
        %2321 = vperm.xlu0 %2320, %v2241
        %v2322 = vpop.permute.xlu0 %2321
        %2325 = vset.pattern.permute.xlu0 0
        %2326 = vperm.xlu0 %2325, %v2242
        %v2327 = vpop.permute.xlu0 %2326
        %2330 = vset.pattern.permute.xlu0 0
        %2331 = vperm.xlu0 %2330, %v2243
        %v2332 = vpop.permute.xlu0 %2331
        %2335 = vset.pattern.permute.xlu0 0
        %2336 = vperm.xlu0 %2335, %v2244
        %v2337 = vpop.permute.xlu0 %2336
        %2340 = vset.pattern.permute.xlu0 0
        %2341 = vperm.xlu0 %2340, %v2245
        %v2342 = vpop.permute.xlu0 %2341
        %2345 = vset.pattern.permute.xlu0 0
        %2346 = vperm.xlu0 %2345, %v2246
        %v2347 = vpop.permute.xlu0 %2346
        %2350 = vset.pattern.permute.xlu0 0
        %2351 = vperm.xlu0 %2350, %v2247
        %v2352 = vpop.permute.xlu0 %2351
        %2355 = vset.pattern.permute.xlu0 0
        %2356 = vperm.xlu0 %2355, %v2248
        %v2357 = vpop.permute.xlu0 %2356
        %2360 = vset.pattern.permute.xlu0 0
        %2361 = vperm.xlu0 %2360, %v2249
        %v2362 = vpop.permute.xlu0 %2361
        %2365 = vset.pattern.permute.xlu0 0
        %2366 = vperm.xlu0 %2365, %v2250
        %v2367 = vpop.permute.xlu0 %2366
        %2370 = vset.pattern.permute.xlu0 0
        %2371 = vperm.xlu0 %2370, %v2251
        %v2372 = vpop.permute.xlu0 %2371
        %2375 = vset.pattern.permute.xlu0 0
        %2376 = vperm.xlu0 %2375, %v2252
        %v2377 = vpop.permute.xlu0 %2376
        %2380 = vset.pattern.permute.xlu0 0
        %2381 = vperm.xlu0 %2380, %v2253
        %v2382 = vpop.permute.xlu0 %2381
        %2384 = vmatprep.subr.mxu0 0.0
        %2385 = vmatpush1.msra.mxu0 %v2186
        %2386 = vmatprep.subr.mxu0 0.0
        %2387 = vmatpush1.msra.mxu0 %v2187
        %2388 = vmatprep.subr.mxu0 0.0
        %2389 = vmatpush1.msra.mxu0 %v2188
        %2390 = vmatprep.subr.mxu0 0.0
        %2391 = vmatpush1.msra.mxu0 %v2189
        %2392 = vmatprep.subr.mxu0 0.0
        %2393 = vmatpush1.msra.mxu0 %v2190
        %2394 = vmatprep.subr.mxu0 0.0
        %2395 = vmatpush1.msra.mxu0 %v2191
        %2396 = vmatprep.subr.mxu0 0.0
        %2397 = vmatpush1.msra.mxu0 %v2192
        %2398 = vmatprep.subr.mxu0 0.0
        %2399 = vmatpush1.msra.mxu0 %v2193
        %2400 = vmatprep.subr.mxu0 0.0
        %2401 = vmatpush1.msra.mxu0 %v2194
        %2402 = vmatprep.subr.mxu0 0.0
        %2403 = vmatpush1.msra.mxu0 %v2195
        %2404 = vmatprep.subr.mxu0 0.0
        %2405 = vmatpush1.msra.mxu0 %v2196
        %2406 = vmatprep.subr.mxu0 0.0
        %2407 = vmatpush1.msra.mxu0 %v2197
        %2408 = vmatprep.subr.mxu0 0.0
        %2409 = vmatpush1.msra.mxu0 %v2198
        %2410 = vmatprep.subr.mxu0 0.0
        %2411 = vmatpush1.msra.mxu0 %v2199
        %2412 = vmatprep.subr.mxu0 0.0
        %2413 = vmatpush1.msra.mxu0 %v2200
        %2414 = vmatprep.subr.mxu0 0.0
        %2415 = vmatpush1.msra.mxu0 %v2201
        %2416 = vmatprep.subr.mxu0 0.0
        %2417 = vmatpush1.msra.mxu0 0.0
        %2418 = vmatprep.subr.mxu0 0.0
        %2419 = vmatpush1.msra.mxu0 0.0
        %2420 = vmatprep.subr.mxu0 0.0
        %2421 = vmatpush1.msra.mxu0 0.0
        %2422 = vmatprep.subr.mxu0 0.0
        %2423 = vmatpush1.msra.mxu0 0.0
        %2424 = vmatprep.subr.mxu0 0.0
        %2425 = vmatpush1.msra.mxu0 0.0
        %2426 = vmatprep.subr.mxu0 0.0
        %2427 = vmatpush1.msra.mxu0 0.0
        %2428 = vmatprep.subr.mxu0 0.0
        %2429 = vmatpush1.msra.mxu0 0.0
        %2430 = vmatprep.subr.mxu0 0.0
        %2431 = vmatpush1.msra.mxu0 0.0
        %2432 = vmatprep.subr.mxu0 0.0
        %2433 = vmatpush1.msra.mxu0 0.0
        %2434 = vmatprep.subr.mxu0 0.0
        %2435 = vmatpush1.msra.mxu0 0.0
        %2436 = vmatprep.subr.mxu0 0.0
        %2437 = vmatpush1.msra.mxu0 0.0
        %2438 = vmatprep.subr.mxu0 0.0
        %2439 = vmatpush1.msra.mxu0 0.0
        %2440 = vmatprep.subr.mxu0 0.0
        %2441 = vmatpush1.msra.mxu0 0.0
        %2442 = vmatprep.subr.mxu0 0.0
        %2443 = vmatpush1.msra.mxu0 0.0
        %2444 = vmatprep.subr.mxu0 0.0
        %2445 = vmatpush1.msra.mxu0 0.0
        %2446 = vmatprep.subr.mxu0 0.0
        %2447 = vmatpush1.msra.mxu0 0.0
        %2448 = vmatprep.mubr.f32.mxu0 0.0
        %2449 = vmatmul.mubr.f32.gmra.mrb[0].mxu0 %v2202
        %v2450 = vpop.f32.mrb[0].mxu0
        %v2451 = vadd.f32 %v2257, %v2450
        %v2452 = vpop.f32.mrb[0].mxu0
        %2453 = vmatprep.mubr.f32.mxu0 0.0
        %2454 = vmatmul.mubr.f32.gmra.mrb[0].mxu0 %v2203
        %v2455 = vpop.f32.mrb[0].mxu0
        %v2456 = vadd.f32 %v2262, %v2455
        %v2457 = vpop.f32.mrb[0].mxu0
        %2458 = vmatprep.mubr.f32.mxu0 0.0
        %2459 = vmatmul.mubr.f32.gmra.mrb[0].mxu0 %v2204
        %v2460 = vpop.f32.mrb[0].mxu0
        %v2461 = vadd.f32 %v2267, %v2460
        %v2462 = vpop.f32.mrb[0].mxu0
        %2463 = vmatprep.mubr.f32.mxu0 0.0
        %2464 = vmatmul.mubr.f32.gmra.mrb[0].mxu0 %v2205
        %v2465 = vpop.f32.mrb[0].mxu0
        %v2466 = vadd.f32 %v2272, %v2465
        %v2467 = vpop.f32.mrb[0].mxu0
        %2468 = vmatprep.mubr.f32.mxu0 0.0
        %2469 = vmatmul.mubr.f32.gmra.mrb[0].mxu0 %v2206
        %v2470 = vpop.f32.mrb[0].mxu0
        %v2471 = vadd.f32 %v2277, %v2470
        %v2472 = vpop.f32.mrb[0].mxu0
        %2473 = vmatprep.mubr.f32.mxu0 0.0
        %2474 = vmatmul.mubr.f32.gmra.mrb[0].mxu0 %v2207
        %v2475 = vpop.f32.mrb[0].mxu0
        %v2476 = vadd.f32 %v2282, %v2475
        %v2477 = vpop.f32.mrb[0].mxu0
        %2478 = vmatprep.mubr.f32.mxu0 0.0
        %2479 = vmatmul.mubr.f32.gmra.mrb[0].mxu0 %v2208
        %v2480 = vpop.f32.mrb[0].mxu0
        %v2481 = vadd.f32 %v2287, %v2480
        %v2482 = vpop.f32.mrb[0].mxu0
        %2483 = vmatprep.mubr.f32.mxu0 0.0
        %2484 = vmatmul.mubr.f32.gmra.mrb[0].mxu0 %v2209
        %v2485 = vpop.f32.mrb[0].mxu0
        %v2486 = vadd.f32 %v2292, %v2485
        %v2487 = vpop.f32.mrb[0].mxu0
        %2488 = vmatprep.mubr.f32.mxu0 0.0
        %2489 = vmatmul.mubr.f32.gmra.mrb[0].mxu0 %v2210
        %v2490 = vpop.f32.mrb[0].mxu0
        %v2491 = vadd.f32 %v2297, %v2490
        %v2492 = vpop.f32.mrb[0].mxu0
        %2493 = vmatprep.mubr.f32.mxu0 0.0
        %2494 = vmatmul.mubr.f32.gmra.mrb[0].mxu0 %v2211
        %v2495 = vpop.f32.mrb[0].mxu0
        %v2496 = vadd.f32 %v2302, %v2495
        %v2497 = vpop.f32.mrb[0].mxu0
        %2498 = vmatprep.mubr.f32.mxu0 0.0
        %2499 = vmatmul.mubr.f32.gmra.mrb[0].mxu0 %v2212
        %v2500 = vpop.f32.mrb[0].mxu0
        %v2501 = vadd.f32 %v2307, %v2500
        %v2502 = vpop.f32.mrb[0].mxu0
        %2503 = vmatprep.mubr.f32.mxu0 0.0
        %2504 = vmatmul.mubr.f32.gmra.mrb[0].mxu0 %v2213
        %v2505 = vpop.f32.mrb[0].mxu0
        %v2506 = vadd.f32 %v2312, %v2505
        %v2507 = vpop.f32.mrb[0].mxu0
        %2508 = vmatprep.mubr.f32.mxu0 0.0
        %2509 = vmatmul.mubr.f32.gmra.mrb[0].mxu0 %v2214
        %v2510 = vpop.f32.mrb[0].mxu0
        %v2511 = vadd.f32 %v2317, %v2510
        %v2512 = vpop.f32.mrb[0].mxu0
        %2513 = vmatprep.mubr.f32.mxu0 0.0
        %2514 = vmatmul.mubr.f32.gmra.mrb[0].mxu0 %v2215
        %v2515 = vpop.f32.mrb[0].mxu0
        %v2516 = vadd.f32 %v2322, %v2515
        %v2517 = vpop.f32.mrb[0].mxu0
        %2518 = vmatprep.mubr.f32.mxu0 0.0
        %2519 = vmatmul.mubr.f32.gmra.mrb[0].mxu0 %v2216
        %v2520 = vpop.f32.mrb[0].mxu0
        %v2521 = vadd.f32 %v2327, %v2520
        %v2522 = vpop.f32.mrb[0].mxu0
        %2523 = vmatprep.mubr.f32.mxu0 0.0
        %2524 = vmatmul.mubr.f32.gmra.mrb[0].mxu0 %v2217
        %v2525 = vpop.f32.mrb[0].mxu0
        %v2526 = vadd.f32 %v2332, %v2525
        %v2527 = vpop.f32.mrb[0].mxu0
        %2528 = vmatprep.mubr.f32.mxu0 0.0
        %2529 = vmatmul.mubr.f32.gmra.mrb[0].mxu0 %v2218
        %v2530 = vpop.f32.mrb[0].mxu0
        %v2531 = vadd.f32 %v2337, %v2530
        %v2532 = vpop.f32.mrb[0].mxu0
        %2533 = vmatprep.mubr.f32.mxu0 0.0
        %2534 = vmatmul.mubr.f32.gmra.mrb[0].mxu0 %v2219
        %v2535 = vpop.f32.mrb[0].mxu0
        %v2536 = vadd.f32 %v2342, %v2535
        %v2537 = vpop.f32.mrb[0].mxu0
        %2538 = vmatprep.mubr.f32.mxu0 0.0
        %2539 = vmatmul.mubr.f32.gmra.mrb[0].mxu0 %v2220
        %v2540 = vpop.f32.mrb[0].mxu0
        %v2541 = vadd.f32 %v2347, %v2540
        %v2542 = vpop.f32.mrb[0].mxu0
        %2543 = vmatprep.mubr.f32.mxu0 0.0
        %2544 = vmatmul.mubr.f32.gmra.mrb[0].mxu0 %v2221
        %v2545 = vpop.f32.mrb[0].mxu0
        %v2546 = vadd.f32 %v2352, %v2545
        %v2547 = vpop.f32.mrb[0].mxu0
        %2548 = vmatprep.mubr.f32.mxu0 0.0
        %2549 = vmatmul.mubr.f32.gmra.mrb[0].mxu0 %v2222
        %v2550 = vpop.f32.mrb[0].mxu0
        %v2551 = vadd.f32 %v2357, %v2550
        %v2552 = vpop.f32.mrb[0].mxu0
        %2553 = vmatprep.mubr.f32.mxu0 0.0
        %2554 = vmatmul.mubr.f32.gmra.mrb[0].mxu0 %v2223
        %v2555 = vpop.f32.mrb[0].mxu0
        %v2556 = vadd.f32 %v2362, %v2555
        %v2557 = vpop.f32.mrb[0].mxu0
        %2558 = vmatprep.mubr.f32.mxu0 0.0
        %2559 = vmatmul.mubr.f32.gmra.mrb[0].mxu0 %v2224
        %v2560 = vpop.f32.mrb[0].mxu0
        %v2561 = vadd.f32 %v2367, %v2560
        %v2562 = vpop.f32.mrb[0].mxu0
        %2563 = vmatprep.mubr.f32.mxu0 0.0
        %2564 = vmatmul.mubr.f32.gmra.mrb[0].mxu0 %v2225
        %v2565 = vpop.f32.mrb[0].mxu0
        %v2566 = vadd.f32 %v2372, %v2565
        %v2567 = vpop.f32.mrb[0].mxu0
        %2568 = vmatprep.mubr.f32.mxu0 0.0
        %2569 = vmatmul.mubr.f32.gmra.mrb[0].mxu0 %v2226
        %v2570 = vpop.f32.mrb[0].mxu0
        %v2571 = vadd.f32 %v2377, %v2570
        %v2572 = vpop.f32.mrb[0].mxu0
        %2573 = vmatprep.mubr.f32.mxu0 0.0
        %2574 = vmatmul.mubr.f32.gmra.mrb[0].mxu0 %v2227
        %v2575 = vpop.f32.mrb[0].mxu0
        %v2576 = vadd.f32 %v2382, %v2575
        %v2577 = vpop.f32.mrb[0].mxu0
        %2578 = vdwg.mxu0
        %vm2579 = vcmp.gt.f32.partialorder %v2451, 0.0
        %vm2580 = vcmp.gt.f32.partialorder %v2456, 0.0
        %vm2581 = vcmp.gt.f32.partialorder %v2461, 0.0
        %vm2582 = vcmp.gt.f32.partialorder %v2466, 0.0
        %vm2583 = vcmp.gt.f32.partialorder %v2471, 0.0
        %vm2584 = vcmp.gt.f32.partialorder %v2476, 0.0
        %vm2585 = vcmp.gt.f32.partialorder %v2481, 0.0
        %vm2586 = vcmp.gt.f32.partialorder %v2486, 0.0
        %vm2587 = vcmp.gt.f32.partialorder %v2491, 0.0
        %vm2588 = vcmp.gt.f32.partialorder %v2496, 0.0
        %vm2589 = vcmp.gt.f32.partialorder %v2501, 0.0
        %vm2590 = vcmp.gt.f32.partialorder %v2506, 0.0
        %vm2591 = vcmp.gt.f32.partialorder %v2511, 0.0
        %vm2592 = vcmp.gt.f32.partialorder %v2516, 0.0
        %vm2593 = vcmp.gt.f32.partialorder %v2521, 0.0
        %vm2594 = vcmp.gt.f32.partialorder %v2526, 0.0
        %vm2595 = vcmp.gt.f32.partialorder %v2531, 0.0
        %vm2596 = vcmp.gt.f32.partialorder %v2536, 0.0
        %vm2597 = vcmp.gt.f32.partialorder %v2541, 0.0
        %vm2598 = vcmp.gt.f32.partialorder %v2546, 0.0
        %vm2599 = vcmp.gt.f32.partialorder %v2551, 0.0
        %vm2600 = vcmp.gt.f32.partialorder %v2556, 0.0
        %vm2601 = vcmp.gt.f32.partialorder %v2561, 0.0
        %vm2602 = vcmp.gt.f32.partialorder %v2566, 0.0
        %vm2603 = vcmp.gt.f32.partialorder %v2571, 0.0
        %vm2604 = vcmp.gt.f32.partialorder %v2576, 0.0
        %v2605 = vmul.f32 %v535, %v2451
        %v2606 = vmul.f32 %v535, %v2456
        %v2607 = vmul.f32 %v535, %v2461
        %v2608 = vmul.f32 %v535, %v2466
        %v2609 = vmul.f32 %v535, %v2471
        %v2610 = vmul.f32 %v535, %v2476
        %v2611 = vmul.f32 %v535, %v2481
        %v2612 = vmul.f32 %v535, %v2486
        %v2613 = vmul.f32 %v535, %v2491
        %v2614 = vmul.f32 %v535, %v2496
        %v2615 = vmul.f32 %v535, %v2501
        %v2616 = vmul.f32 %v535, %v2506
        %v2617 = vmul.f32 %v535, %v2511
        %v2618 = vmul.f32 %v535, %v2516
        %v2619 = vmul.f32 %v535, %v2521
        %v2620 = vmul.f32 %v535, %v2526
        %v2621 = vmul.f32 %v535, %v2531
        %v2622 = vmul.f32 %v535, %v2536
        %v2623 = vmul.f32 %v535, %v2541
        %v2624 = vmul.f32 %v535, %v2546
        %v2625 = vmul.f32 %v535, %v2551
        %v2626 = vmul.f32 %v535, %v2556
        %v2627 = vmul.f32 %v535, %v2561
        %v2628 = vmul.f32 %v535, %v2566
        %v2629 = vmul.f32 %v535, %v2571
        %v2630 = vmul.f32 %v535, %v2576
        %v2631 = vsel %vm2579, %v2451, %v2605
        %v2632 = vsel %vm2580, %v2456, %v2606
        %v2633 = vsel %vm2581, %v2461, %v2607
        %v2634 = vsel %vm2582, %v2466, %v2608
        %v2635 = vsel %vm2583, %v2471, %v2609
        %v2636 = vsel %vm2584, %v2476, %v2610
        %v2637 = vsel %vm2585, %v2481, %v2611
        %v2638 = vsel %vm2586, %v2486, %v2612
        %v2639 = vsel %vm2587, %v2491, %v2613
        %v2640 = vsel %vm2588, %v2496, %v2614
        %v2641 = vsel %vm2589, %v2501, %v2615
        %v2642 = vsel %vm2590, %v2506, %v2616
        %v2643 = vsel %vm2591, %v2511, %v2617
        %v2644 = vsel %vm2592, %v2516, %v2618
        %v2645 = vsel %vm2593, %v2521, %v2619
        %v2646 = vsel %vm2594, %v2526, %v2620
        %v2647 = vsel %vm2595, %v2531, %v2621
        %v2648 = vsel %vm2596, %v2536, %v2622
        %v2649 = vsel %vm2597, %v2541, %v2623
        %v2650 = vsel %vm2598, %v2546, %v2624
        %v2651 = vsel %vm2599, %v2551, %v2625
        %v2652 = vsel %vm2600, %v2556, %v2626
        %v2653 = vsel %vm2601, %v2561, %v2627
        %v2654 = vsel %vm2602, %v2566, %v2628
        %v2655 = vsel %vm2603, %v2571, %v2629
        %v2656 = vsel %vm2604, %v2576, %v2630
        %v2657 = vld [vmem:[%s6] sm:$0x3]
        %v2659 = vlaneseq
        %v2660 = vshrl.u32 %v2659, 7
        %v2661 = vsub.s32 0, %v2660
        %v2662 = vrot.slane %v2657, %v2661
        %v2663 = vlaneseq
        %v2664 = vshrl.u32 %v2663, 7
        %v2665 = vsub.s32 1, %v2664
        %v2666 = vrot.slane %v2657, %v2665
        %v2668 = vsel %vm1035, %v2666, 0
        %2670 = vmatprep.subr.mxu0 0.0
        %2671 = vmatpush1.msra.mxu0 %v2631
        %2672 = vmatprep.subr.mxu0 0.0
        %2673 = vmatpush1.msra.mxu0 %v2632
        %2674 = vmatprep.subr.mxu0 0.0
        %2675 = vmatpush1.msra.mxu0 %v2633
        %2676 = vmatprep.subr.mxu0 0.0
        %2677 = vmatpush1.msra.mxu0 %v2634
        %2678 = vmatprep.subr.mxu0 0.0
        %2679 = vmatpush1.msra.mxu0 %v2635
        %2680 = vmatprep.subr.mxu0 0.0
        %2681 = vmatpush1.msra.mxu0 %v2636
        %2682 = vmatprep.subr.mxu0 0.0
        %2683 = vmatpush1.msra.mxu0 %v2637
        %2684 = vmatprep.subr.mxu0 0.0
        %2685 = vmatpush1.msra.mxu0 %v2638
        %2686 = vmatprep.subr.mxu0 0.0
        %2687 = vmatpush1.msra.mxu0 %v2639
        %2688 = vmatprep.subr.mxu0 0.0
        %2689 = vmatpush1.msra.mxu0 %v2640
        %2690 = vmatprep.subr.mxu0 0.0
        %2691 = vmatpush1.msra.mxu0 %v2641
        %2692 = vmatprep.subr.mxu0 0.0
        %2693 = vmatpush1.msra.mxu0 %v2642
        %2694 = vmatprep.subr.mxu0 0.0
        %2695 = vmatpush1.msra.mxu0 %v2643
        %2696 = vmatprep.subr.mxu0 0.0
        %2697 = vmatpush1.msra.mxu0 %v2644
        %2698 = vmatprep.subr.mxu0 0.0
        %2699 = vmatpush1.msra.mxu0 %v2645
        %2700 = vmatprep.subr.mxu0 0.0
        %2701 = vmatpush1.msra.mxu0 %v2646
        %2702 = vmatprep.subr.mxu0 0.0
        %2703 = vmatpush1.msra.mxu0 %v2647
        %2704 = vmatprep.subr.mxu0 0.0
        %2705 = vmatpush1.msra.mxu0 %v2648
        %2706 = vmatprep.subr.mxu0 0.0
        %2707 = vmatpush1.msra.mxu0 %v2649
        %2708 = vmatprep.subr.mxu0 0.0
        %2709 = vmatpush1.msra.mxu0 %v2650
        %2710 = vmatprep.subr.mxu0 0.0
        %2711 = vmatpush1.msra.mxu0 %v2651
        %2712 = vmatprep.subr.mxu0 0.0
        %2713 = vmatpush1.msra.mxu0 %v2652
        %2714 = vmatprep.subr.mxu0 0.0
        %2715 = vmatpush1.msra.mxu0 %v2653
        %2716 = vmatprep.subr.mxu0 0.0
        %2717 = vmatpush1.msra.mxu0 %v2654
        %2718 = vmatprep.subr.mxu0 0.0
        %2719 = vmatpush1.msra.mxu0 %v2655
        %2720 = vmatprep.subr.mxu0 0.0
        %2721 = vmatpush1.msra.mxu0 %v2656
        %2722 = vmatprep.subr.mxu0 0.0
        %2723 = vmatpush1.msra.mxu0 0.0
        %2724 = vmatprep.subr.mxu0 0.0
        %2725 = vmatpush1.msra.mxu0 0.0
        %2726 = vmatprep.subr.mxu0 0.0
        %2727 = vmatpush1.msra.mxu0 0.0
        %2728 = vmatprep.subr.mxu0 0.0
        %2729 = vmatpush1.msra.mxu0 0.0
        %2730 = vmatprep.subr.mxu0 0.0
        %2731 = vmatpush1.msra.mxu0 0.0
        %2732 = vmatprep.subr.mxu0 0.0
        %2733 = vmatpush1.msra.mxu0 0.0
        %2734 = vmatprep.mubr.f32.mxu0 %v2668
        %2735 = vmatmul.mubr.f32.gmra.mrb[0].mxu0 %v2662
        %v2736 = vpop.f32.mrb[0].mxu0
        %v2737 = vadd.f32 %v1024, %v2736
        %v2738 = vpop.f32.mrb[0].mxu0
        %2739 = vdwg.mxu0
        %2740 = vst [vmem:[%s283 + $0x2] sm:$0x1] %v2737
        %v2741 = vld [vmem:[%s287 + $0x3] sm:$0x1]
        %v2742 = vld [vmem:[%s2] sm:$0xff]
        %v2743 = vld [vmem:[%s2 + $0x8] sm:$0xff]
        %v2744 = vld [vmem:[%s2 + $0x10] sm:$0xff]
        %v2745 = vld [vmem:[%s2 + $0x18] sm:$0xff]
        %v2746 = vld [vmem:[%s2 + $0x20] sm:$0xff]
        %v2747 = vld [vmem:[%s2 + $0x28] sm:$0xff]
        %v2748 = vld [vmem:[%s2 + $0x30] sm:$0xff]
        %v2749 = vld [vmem:[%s2 + $0x38] sm:$0xff]
        %v2750 = vld [vmem:[%s2 + $0x40] sm:$0xff]
        %v2751 = vld [vmem:[%s2 + $0x48] sm:$0xff]
        %v2752 = vld [vmem:[%s2 + $0x50] sm:$0xff]
        %v2753 = vld [vmem:[%s2 + $0x58] sm:$0xff]
        %v2754 = vld [vmem:[%s2 + $0x60] sm:$0xff]
        %v2755 = vld [vmem:[%s2 + $0x68] sm:$0xff]
        %v2756 = vld [vmem:[%s2 + $0x70] sm:$0xff]
        %v2757 = vld [vmem:[%s2 + $0x78] sm:$0xff]
        %2759 = vset.pattern.permute.xlu0 0
        %2760 = vperm.xlu0 %2759, %v2742
        %v2761 = vpop.permute.xlu0 %2760
        %2764 = vset.pattern.permute.xlu0 0
        %2765 = vperm.xlu0 %2764, %v2743
        %v2766 = vpop.permute.xlu0 %2765
        %2769 = vset.pattern.permute.xlu0 0
        %2770 = vperm.xlu0 %2769, %v2744
        %v2771 = vpop.permute.xlu0 %2770
        %2774 = vset.pattern.permute.xlu0 0
        %2775 = vperm.xlu0 %2774, %v2745
        %v2776 = vpop.permute.xlu0 %2775
        %2779 = vset.pattern.permute.xlu0 0
        %2780 = vperm.xlu0 %2779, %v2746
        %v2781 = vpop.permute.xlu0 %2780
        %2784 = vset.pattern.permute.xlu0 0
        %2785 = vperm.xlu0 %2784, %v2747
        %v2786 = vpop.permute.xlu0 %2785
        %2789 = vset.pattern.permute.xlu0 0
        %2790 = vperm.xlu0 %2789, %v2748
        %v2791 = vpop.permute.xlu0 %2790
        %2794 = vset.pattern.permute.xlu0 0
        %2795 = vperm.xlu0 %2794, %v2749
        %v2796 = vpop.permute.xlu0 %2795
        %2799 = vset.pattern.permute.xlu0 0
        %2800 = vperm.xlu0 %2799, %v2750
        %v2801 = vpop.permute.xlu0 %2800
        %2804 = vset.pattern.permute.xlu0 0
        %2805 = vperm.xlu0 %2804, %v2751
        %v2806 = vpop.permute.xlu0 %2805
        %2809 = vset.pattern.permute.xlu0 0
        %2810 = vperm.xlu0 %2809, %v2752
        %v2811 = vpop.permute.xlu0 %2810
        %2814 = vset.pattern.permute.xlu0 0
        %2815 = vperm.xlu0 %2814, %v2753
        %v2816 = vpop.permute.xlu0 %2815
        %2819 = vset.pattern.permute.xlu0 0
        %2820 = vperm.xlu0 %2819, %v2754
        %v2821 = vpop.permute.xlu0 %2820
        %2824 = vset.pattern.permute.xlu0 0
        %2825 = vperm.xlu0 %2824, %v2755
        %v2826 = vpop.permute.xlu0 %2825
        %2829 = vset.pattern.permute.xlu0 0
        %2830 = vperm.xlu0 %2829, %v2756
        %v2831 = vpop.permute.xlu0 %2830
        %2834 = vset.pattern.permute.xlu0 0
        %2835 = vperm.xlu0 %2834, %v2757
        %v2836 = vpop.permute.xlu0 %2835
        %v2838 = vlaneseq
        %v2839 = vshrl.u32 %v2838, 7
        %v2840 = vsub.s32 0, %v2839
        %v2841 = vrot.slane %v2741, %v2840
        %v2842 = vmul.f32 %v2761, %v2841
        %v2843 = vmul.f32 %v2766, %v2841
        %v2844 = vmul.f32 %v2771, %v2841
        %v2845 = vmul.f32 %v2776, %v2841
        %v2846 = vmul.f32 %v2781, %v2841
        %v2847 = vmul.f32 %v2786, %v2841
        %v2848 = vmul.f32 %v2791, %v2841
        %v2849 = vmul.f32 %v2796, %v2841
        %v2850 = vmul.f32 %v2801, %v2841
        %v2851 = vmul.f32 %v2806, %v2841
        %v2852 = vmul.f32 %v2811, %v2841
        %v2853 = vmul.f32 %v2816, %v2841
        %v2854 = vmul.f32 %v2821, %v2841
        %v2855 = vmul.f32 %v2826, %v2841
        %v2856 = vmul.f32 %v2831, %v2841
        %v2857 = vmul.f32 %v2836, %v2841
        %v2858 = vld [vmem:[%s3] sm:$0xff]
        %v2859 = vld [vmem:[%s3 + $0x8] sm:$0xff]
        %v2860 = vld [vmem:[%s3 + $0x10] sm:$0xff]
        %v2861 = vld [vmem:[%s3 + $0x18] sm:$0xff]
        %v2862 = vld [vmem:[%s3 + $0x20] sm:$0xff]
        %v2863 = vld [vmem:[%s3 + $0x28] sm:$0xff]
        %v2864 = vld [vmem:[%s3 + $0x30] sm:$0xff]
        %v2865 = vld [vmem:[%s3 + $0x38] sm:$0xff]
        %v2866 = vld [vmem:[%s3 + $0x40] sm:$0xff]
        %v2867 = vld [vmem:[%s3 + $0x48] sm:$0xff]
        %v2868 = vld [vmem:[%s3 + $0x50] sm:$0xff]
        %v2869 = vld [vmem:[%s3 + $0x58] sm:$0xff]
        %v2870 = vld [vmem:[%s3 + $0x60] sm:$0xff]
        %v2871 = vld [vmem:[%s3 + $0x68] sm:$0xff]
        %v2872 = vld [vmem:[%s3 + $0x70] sm:$0xff]
        %v2873 = vld [vmem:[%s3 + $0x78] sm:$0xff]
        %2875 = vset.pattern.permute.xlu0 0
        %2876 = vperm.xlu0 %2875, %v2858
        %v2877 = vpop.permute.xlu0 %2876
        %2880 = vset.pattern.permute.xlu0 0
        %2881 = vperm.xlu0 %2880, %v2859
        %v2882 = vpop.permute.xlu0 %2881
        %2885 = vset.pattern.permute.xlu0 0
        %2886 = vperm.xlu0 %2885, %v2860
        %v2887 = vpop.permute.xlu0 %2886
        %2890 = vset.pattern.permute.xlu0 0
        %2891 = vperm.xlu0 %2890, %v2861
        %v2892 = vpop.permute.xlu0 %2891
        %2895 = vset.pattern.permute.xlu0 0
        %2896 = vperm.xlu0 %2895, %v2862
        %v2897 = vpop.permute.xlu0 %2896
        %2900 = vset.pattern.permute.xlu0 0
        %2901 = vperm.xlu0 %2900, %v2863
        %v2902 = vpop.permute.xlu0 %2901
        %2905 = vset.pattern.permute.xlu0 0
        %2906 = vperm.xlu0 %2905, %v2864
        %v2907 = vpop.permute.xlu0 %2906
        %2910 = vset.pattern.permute.xlu0 0
        %2911 = vperm.xlu0 %2910, %v2865
        %v2912 = vpop.permute.xlu0 %2911
        %2915 = vset.pattern.permute.xlu0 0
        %2916 = vperm.xlu0 %2915, %v2866
        %v2917 = vpop.permute.xlu0 %2916
        %2920 = vset.pattern.permute.xlu0 0
        %2921 = vperm.xlu0 %2920, %v2867
        %v2922 = vpop.permute.xlu0 %2921
        %2925 = vset.pattern.permute.xlu0 0
        %2926 = vperm.xlu0 %2925, %v2868
        %v2927 = vpop.permute.xlu0 %2926
        %2930 = vset.pattern.permute.xlu0 0
        %2931 = vperm.xlu0 %2930, %v2869
        %v2932 = vpop.permute.xlu0 %2931
        %2935 = vset.pattern.permute.xlu0 0
        %2936 = vperm.xlu0 %2935, %v2870
        %v2937 = vpop.permute.xlu0 %2936
        %2940 = vset.pattern.permute.xlu0 0
        %2941 = vperm.xlu0 %2940, %v2871
        %v2942 = vpop.permute.xlu0 %2941
        %2945 = vset.pattern.permute.xlu0 0
        %2946 = vperm.xlu0 %2945, %v2872
        %v2947 = vpop.permute.xlu0 %2946
        %2950 = vset.pattern.permute.xlu0 0
        %2951 = vperm.xlu0 %2950, %v2873
        %v2952 = vpop.permute.xlu0 %2951
        %v2954 = vadd.f32 %v2842, %v2877
        %v2955 = vadd.f32 %v2843, %v2882
        %v2956 = vadd.f32 %v2844, %v2887
        %v2957 = vadd.f32 %v2845, %v2892
        %v2958 = vadd.f32 %v2846, %v2897
        %v2959 = vadd.f32 %v2847, %v2902
        %v2960 = vadd.f32 %v2848, %v2907
        %v2961 = vadd.f32 %v2849, %v2912
        %v2962 = vadd.f32 %v2850, %v2917
        %v2963 = vadd.f32 %v2851, %v2922
        %v2964 = vadd.f32 %v2852, %v2927
        %v2965 = vadd.f32 %v2853, %v2932
        %v2966 = vadd.f32 %v2854, %v2937
        %v2967 = vadd.f32 %v2855, %v2942
        %v2968 = vadd.f32 %v2856, %v2947
        %v2969 = vadd.f32 %v2857, %v2952
        %vm2970 = vcmp.gt.f32.partialorder %v2954, 0.0
        %vm2971 = vcmp.gt.f32.partialorder %v2955, 0.0
        %vm2972 = vcmp.gt.f32.partialorder %v2956, 0.0
        %vm2973 = vcmp.gt.f32.partialorder %v2957, 0.0
        %vm2974 = vcmp.gt.f32.partialorder %v2958, 0.0
        %vm2975 = vcmp.gt.f32.partialorder %v2959, 0.0
        %vm2976 = vcmp.gt.f32.partialorder %v2960, 0.0
        %vm2977 = vcmp.gt.f32.partialorder %v2961, 0.0
        %vm2978 = vcmp.gt.f32.partialorder %v2962, 0.0
        %vm2979 = vcmp.gt.f32.partialorder %v2963, 0.0
        %vm2980 = vcmp.gt.f32.partialorder %v2964, 0.0
        %vm2981 = vcmp.gt.f32.partialorder %v2965, 0.0
        %vm2982 = vcmp.gt.f32.partialorder %v2966, 0.0
        %vm2983 = vcmp.gt.f32.partialorder %v2967, 0.0
        %vm2984 = vcmp.gt.f32.partialorder %v2968, 0.0
        %vm2985 = vcmp.gt.f32.partialorder %v2969, 0.0
        %v2986 = vmul.f32 %v535, %v2954
        %v2987 = vmul.f32 %v535, %v2955
        %v2988 = vmul.f32 %v535, %v2956
        %v2989 = vmul.f32 %v535, %v2957
        %v2990 = vmul.f32 %v535, %v2958
        %v2991 = vmul.f32 %v535, %v2959
        %v2992 = vmul.f32 %v535, %v2960
        %v2993 = vmul.f32 %v535, %v2961
        %v2994 = vmul.f32 %v535, %v2962
        %v2995 = vmul.f32 %v535, %v2963
        %v2996 = vmul.f32 %v535, %v2964
        %v2997 = vmul.f32 %v535, %v2965
        %v2998 = vmul.f32 %v535, %v2966
        %v2999 = vmul.f32 %v535, %v2967
        %v3000 = vmul.f32 %v535, %v2968
        %v3001 = vmul.f32 %v535, %v2969
        %v3002 = vsel %vm2970, %v2954, %v2986
        %v3003 = vsel %vm2971, %v2955, %v2987
        %v3004 = vsel %vm2972, %v2956, %v2988
        %v3005 = vsel %vm2973, %v2957, %v2989
        %v3006 = vsel %vm2974, %v2958, %v2990
        %v3007 = vsel %vm2975, %v2959, %v2991
        %v3008 = vsel %vm2976, %v2960, %v2992
        %v3009 = vsel %vm2977, %v2961, %v2993
        %v3010 = vsel %vm2978, %v2962, %v2994
        %v3011 = vsel %vm2979, %v2963, %v2995
        %v3012 = vsel %vm2980, %v2964, %v2996
        %v3013 = vsel %vm2981, %v2965, %v2997
        %v3014 = vsel %vm2982, %v2966, %v2998
        %v3015 = vsel %vm2983, %v2967, %v2999
        %v3016 = vsel %vm2984, %v2968, %v3000
        %v3017 = vsel %vm2985, %v2969, %v3001
        %v3018 = vld [vmem:[%s4] sm:$0xff]
        %v3019 = vld [vmem:[%s4 + $0x8] sm:$0xff]
        %v3020 = vld [vmem:[%s4 + $0x10] sm:$0xff]
        %v3021 = vld [vmem:[%s4 + $0x18] sm:$0xff]
        %v3022 = vld [vmem:[%s4 + $0x20] sm:$0xff]
        %v3023 = vld [vmem:[%s4 + $0x28] sm:$0xff]
        %v3024 = vld [vmem:[%s4 + $0x30] sm:$0xff]
        %v3025 = vld [vmem:[%s4 + $0x38] sm:$0xff]
        %v3026 = vld [vmem:[%s4 + $0x40] sm:$0xff]
        %v3027 = vld [vmem:[%s4 + $0x48] sm:$0xff]
        %v3028 = vld [vmem:[%s4 + $0x50] sm:$0xff]
        %v3029 = vld [vmem:[%s4 + $0x58] sm:$0xff]
        %v3030 = vld [vmem:[%s4 + $0x60] sm:$0xff]
        %v3031 = vld [vmem:[%s4 + $0x68] sm:$0xff]
        %v3032 = vld [vmem:[%s4 + $0x70] sm:$0xff]
        %v3033 = vld [vmem:[%s4 + $0x78] sm:$0xff]
        %v3034 = vld [vmem:[%s4 + $0x80] sm:$0xff]
        %v3035 = vld [vmem:[%s4 + $0x88] sm:$0xff]
        %v3036 = vld [vmem:[%s4 + $0x90] sm:$0xff]
        %v3037 = vld [vmem:[%s4 + $0x98] sm:$0xff]
        %v3038 = vld [vmem:[%s4 + $0xa0] sm:$0xff]
        %v3039 = vld [vmem:[%s4 + $0xa8] sm:$0xff]
        %v3040 = vld [vmem:[%s4 + $0xb0] sm:$0xff]
        %v3041 = vld [vmem:[%s4 + $0xb8] sm:$0xff]
        %v3042 = vld [vmem:[%s4 + $0xc0] sm:$0xff]
        %v3043 = vld [vmem:[%s4 + $0xc8] sm:$0xff]
        %v3044 = vld [vmem:[%s5] sm:$0xff]
        %v3045 = vld [vmem:[%s5 + $0x8] sm:$0xff]
        %v3046 = vld [vmem:[%s5 + $0x10] sm:$0xff]
        %v3047 = vld [vmem:[%s5 + $0x18] sm:$0xff]
        %v3048 = vld [vmem:[%s5 + $0x20] sm:$0xff]
        %v3049 = vld [vmem:[%s5 + $0x28] sm:$0xff]
        %v3050 = vld [vmem:[%s5 + $0x30] sm:$0xff]
        %v3051 = vld [vmem:[%s5 + $0x38] sm:$0xff]
        %v3052 = vld [vmem:[%s5 + $0x40] sm:$0xff]
        %v3053 = vld [vmem:[%s5 + $0x48] sm:$0xff]
        %v3054 = vld [vmem:[%s5 + $0x50] sm:$0xff]
        %v3055 = vld [vmem:[%s5 + $0x58] sm:$0xff]
        %v3056 = vld [vmem:[%s5 + $0x60] sm:$0xff]
        %v3057 = vld [vmem:[%s5 + $0x68] sm:$0xff]
        %v3058 = vld [vmem:[%s5 + $0x70] sm:$0xff]
        %v3059 = vld [vmem:[%s5 + $0x78] sm:$0xff]
        %v3060 = vld [vmem:[%s5 + $0x80] sm:$0xff]
        %v3061 = vld [vmem:[%s5 + $0x88] sm:$0xff]
        %v3062 = vld [vmem:[%s5 + $0x90] sm:$0xff]
        %v3063 = vld [vmem:[%s5 + $0x98] sm:$0xff]
        %v3064 = vld [vmem:[%s5 + $0xa0] sm:$0xff]
        %v3065 = vld [vmem:[%s5 + $0xa8] sm:$0xff]
        %v3066 = vld [vmem:[%s5 + $0xb0] sm:$0xff]
        %v3067 = vld [vmem:[%s5 + $0xb8] sm:$0xff]
        %v3068 = vld [vmem:[%s5 + $0xc0] sm:$0xff]
        %v3069 = vld [vmem:[%s5 + $0xc8] sm:$0xff]
        %3071 = vset.pattern.permute.xlu0 0
        %3072 = vperm.xlu0 %3071, %v3044
        %v3073 = vpop.permute.xlu0 %3072
        %3076 = vset.pattern.permute.xlu0 0
        %3077 = vperm.xlu0 %3076, %v3045
        %v3078 = vpop.permute.xlu0 %3077
        %3081 = vset.pattern.permute.xlu0 0
        %3082 = vperm.xlu0 %3081, %v3046
        %v3083 = vpop.permute.xlu0 %3082
        %3086 = vset.pattern.permute.xlu0 0
        %3087 = vperm.xlu0 %3086, %v3047
        %v3088 = vpop.permute.xlu0 %3087
        %3091 = vset.pattern.permute.xlu0 0
        %3092 = vperm.xlu0 %3091, %v3048
        %v3093 = vpop.permute.xlu0 %3092
        %3096 = vset.pattern.permute.xlu0 0
        %3097 = vperm.xlu0 %3096, %v3049
        %v3098 = vpop.permute.xlu0 %3097
        %3101 = vset.pattern.permute.xlu0 0
        %3102 = vperm.xlu0 %3101, %v3050
        %v3103 = vpop.permute.xlu0 %3102
        %3106 = vset.pattern.permute.xlu0 0
        %3107 = vperm.xlu0 %3106, %v3051
        %v3108 = vpop.permute.xlu0 %3107
        %3111 = vset.pattern.permute.xlu0 0
        %3112 = vperm.xlu0 %3111, %v3052
        %v3113 = vpop.permute.xlu0 %3112
        %3116 = vset.pattern.permute.xlu0 0
        %3117 = vperm.xlu0 %3116, %v3053
        %v3118 = vpop.permute.xlu0 %3117
        %3121 = vset.pattern.permute.xlu0 0
        %3122 = vperm.xlu0 %3121, %v3054
        %v3123 = vpop.permute.xlu0 %3122
        %3126 = vset.pattern.permute.xlu0 0
        %3127 = vperm.xlu0 %3126, %v3055
        %v3128 = vpop.permute.xlu0 %3127
        %3131 = vset.pattern.permute.xlu0 0
        %3132 = vperm.xlu0 %3131, %v3056
        %v3133 = vpop.permute.xlu0 %3132
        %3136 = vset.pattern.permute.xlu0 0
        %3137 = vperm.xlu0 %3136, %v3057
        %v3138 = vpop.permute.xlu0 %3137
        %3141 = vset.pattern.permute.xlu0 0
        %3142 = vperm.xlu0 %3141, %v3058
        %v3143 = vpop.permute.xlu0 %3142
        %3146 = vset.pattern.permute.xlu0 0
        %3147 = vperm.xlu0 %3146, %v3059
        %v3148 = vpop.permute.xlu0 %3147
        %3151 = vset.pattern.permute.xlu0 0
        %3152 = vperm.xlu0 %3151, %v3060
        %v3153 = vpop.permute.xlu0 %3152
        %3156 = vset.pattern.permute.xlu0 0
        %3157 = vperm.xlu0 %3156, %v3061
        %v3158 = vpop.permute.xlu0 %3157
        %3161 = vset.pattern.permute.xlu0 0
        %3162 = vperm.xlu0 %3161, %v3062
        %v3163 = vpop.permute.xlu0 %3162
        %3166 = vset.pattern.permute.xlu0 0
        %3167 = vperm.xlu0 %3166, %v3063
        %v3168 = vpop.permute.xlu0 %3167
        %3171 = vset.pattern.permute.xlu0 0
        %3172 = vperm.xlu0 %3171, %v3064
        %v3173 = vpop.permute.xlu0 %3172
        %3176 = vset.pattern.permute.xlu0 0
        %3177 = vperm.xlu0 %3176, %v3065
        %v3178 = vpop.permute.xlu0 %3177
        %3181 = vset.pattern.permute.xlu0 0
        %3182 = vperm.xlu0 %3181, %v3066
        %v3183 = vpop.permute.xlu0 %3182
        %3186 = vset.pattern.permute.xlu0 0
        %3187 = vperm.xlu0 %3186, %v3067
        %v3188 = vpop.permute.xlu0 %3187
        %3191 = vset.pattern.permute.xlu0 0
        %3192 = vperm.xlu0 %3191, %v3068
        %v3193 = vpop.permute.xlu0 %3192
        %3196 = vset.pattern.permute.xlu0 0
        %3197 = vperm.xlu0 %3196, %v3069
        %v3198 = vpop.permute.xlu0 %3197
        %3200 = vmatprep.subr.mxu0 0.0
        %3201 = vmatpush1.msra.mxu0 %v3002
        %3202 = vmatprep.subr.mxu0 0.0
        %3203 = vmatpush1.msra.mxu0 %v3003
        %3204 = vmatprep.subr.mxu0 0.0
        %3205 = vmatpush1.msra.mxu0 %v3004
        %3206 = vmatprep.subr.mxu0 0.0
        %3207 = vmatpush1.msra.mxu0 %v3005
        %3208 = vmatprep.subr.mxu0 0.0
        %3209 = vmatpush1.msra.mxu0 %v3006
        %3210 = vmatprep.subr.mxu0 0.0
        %3211 = vmatpush1.msra.mxu0 %v3007
        %3212 = vmatprep.subr.mxu0 0.0
        %3213 = vmatpush1.msra.mxu0 %v3008
        %3214 = vmatprep.subr.mxu0 0.0
        %3215 = vmatpush1.msra.mxu0 %v3009
        %3216 = vmatprep.subr.mxu0 0.0
        %3217 = vmatpush1.msra.mxu0 %v3010
        %3218 = vmatprep.subr.mxu0 0.0
        %3219 = vmatpush1.msra.mxu0 %v3011
        %3220 = vmatprep.subr.mxu0 0.0
        %3221 = vmatpush1.msra.mxu0 %v3012
        %3222 = vmatprep.subr.mxu0 0.0
        %3223 = vmatpush1.msra.mxu0 %v3013
        %3224 = vmatprep.subr.mxu0 0.0
        %3225 = vmatpush1.msra.mxu0 %v3014
        %3226 = vmatprep.subr.mxu0 0.0
        %3227 = vmatpush1.msra.mxu0 %v3015
        %3228 = vmatprep.subr.mxu0 0.0
        %3229 = vmatpush1.msra.mxu0 %v3016
        %3230 = vmatprep.subr.mxu0 0.0
        %3231 = vmatpush1.msra.mxu0 %v3017
        %3232 = vmatprep.subr.mxu0 0.0
        %3233 = vmatpush1.msra.mxu0 0.0
        %3234 = vmatprep.subr.mxu0 0.0
        %3235 = vmatpush1.msra.mxu0 0.0
        %3236 = vmatprep.subr.mxu0 0.0
        %3237 = vmatpush1.msra.mxu0 0.0
        %3238 = vmatprep.subr.mxu0 0.0
        %3239 = vmatpush1.msra.mxu0 0.0
        %3240 = vmatprep.subr.mxu0 0.0
        %3241 = vmatpush1.msra.mxu0 0.0
        %3242 = vmatprep.subr.mxu0 0.0
        %3243 = vmatpush1.msra.mxu0 0.0
        %3244 = vmatprep.subr.mxu0 0.0
        %3245 = vmatpush1.msra.mxu0 0.0
        %3246 = vmatprep.subr.mxu0 0.0
        %3247 = vmatpush1.msra.mxu0 0.0
        %3248 = vmatprep.subr.mxu0 0.0
        %3249 = vmatpush1.msra.mxu0 0.0
        %3250 = vmatprep.subr.mxu0 0.0
        %3251 = vmatpush1.msra.mxu0 0.0
        %3252 = vmatprep.subr.mxu0 0.0
        %3253 = vmatpush1.msra.mxu0 0.0
        %3254 = vmatprep.subr.mxu0 0.0
        %3255 = vmatpush1.msra.mxu0 0.0
        %3256 = vmatprep.subr.mxu0 0.0
        %3257 = vmatpush1.msra.mxu0 0.0
        %3258 = vmatprep.subr.mxu0 0.0
        %3259 = vmatpush1.msra.mxu0 0.0
        %3260 = vmatprep.subr.mxu0 0.0
        %3261 = vmatpush1.msra.mxu0 0.0
        %3262 = vmatprep.subr.mxu0 0.0
        %3263 = vmatpush1.msra.mxu0 0.0
        %3264 = vmatprep.mubr.f32.mxu0 0.0
        %3265 = vmatmul.mubr.f32.gmra.mrb[0].mxu0 %v3018
        %v3266 = vpop.f32.mrb[0].mxu0
        %v3267 = vadd.f32 %v3073, %v3266
        %v3268 = vpop.f32.mrb[0].mxu0
        %3269 = vmatprep.mubr.f32.mxu0 0.0
        %3270 = vmatmul.mubr.f32.gmra.mrb[0].mxu0 %v3019
        %v3271 = vpop.f32.mrb[0].mxu0
        %v3272 = vadd.f32 %v3078, %v3271
        %v3273 = vpop.f32.mrb[0].mxu0
        %3274 = vmatprep.mubr.f32.mxu0 0.0
        %3275 = vmatmul.mubr.f32.gmra.mrb[0].mxu0 %v3020
        %v3276 = vpop.f32.mrb[0].mxu0
        %v3277 = vadd.f32 %v3083, %v3276
        %v3278 = vpop.f32.mrb[0].mxu0
        %3279 = vmatprep.mubr.f32.mxu0 0.0
        %3280 = vmatmul.mubr.f32.gmra.mrb[0].mxu0 %v3021
        %v3281 = vpop.f32.mrb[0].mxu0
        %v3282 = vadd.f32 %v3088, %v3281
        %v3283 = vpop.f32.mrb[0].mxu0
        %3284 = vmatprep.mubr.f32.mxu0 0.0
        %3285 = vmatmul.mubr.f32.gmra.mrb[0].mxu0 %v3022
        %v3286 = vpop.f32.mrb[0].mxu0
        %v3287 = vadd.f32 %v3093, %v3286
        %v3288 = vpop.f32.mrb[0].mxu0
        %3289 = vmatprep.mubr.f32.mxu0 0.0
        %3290 = vmatmul.mubr.f32.gmra.mrb[0].mxu0 %v3023
        %v3291 = vpop.f32.mrb[0].mxu0
        %v3292 = vadd.f32 %v3098, %v3291
        %v3293 = vpop.f32.mrb[0].mxu0
        %3294 = vmatprep.mubr.f32.mxu0 0.0
        %3295 = vmatmul.mubr.f32.gmra.mrb[0].mxu0 %v3024
        %v3296 = vpop.f32.mrb[0].mxu0
        %v3297 = vadd.f32 %v3103, %v3296
        %v3298 = vpop.f32.mrb[0].mxu0
        %3299 = vmatprep.mubr.f32.mxu0 0.0
        %3300 = vmatmul.mubr.f32.gmra.mrb[0].mxu0 %v3025
        %v3301 = vpop.f32.mrb[0].mxu0
        %v3302 = vadd.f32 %v3108, %v3301
        %v3303 = vpop.f32.mrb[0].mxu0
        %3304 = vmatprep.mubr.f32.mxu0 0.0
        %3305 = vmatmul.mubr.f32.gmra.mrb[0].mxu0 %v3026
        %v3306 = vpop.f32.mrb[0].mxu0
        %v3307 = vadd.f32 %v3113, %v3306
        %v3308 = vpop.f32.mrb[0].mxu0
        %3309 = vmatprep.mubr.f32.mxu0 0.0
        %3310 = vmatmul.mubr.f32.gmra.mrb[0].mxu0 %v3027
        %v3311 = vpop.f32.mrb[0].mxu0
        %v3312 = vadd.f32 %v3118, %v3311
        %v3313 = vpop.f32.mrb[0].mxu0
        %3314 = vmatprep.mubr.f32.mxu0 0.0
        %3315 = vmatmul.mubr.f32.gmra.mrb[0].mxu0 %v3028
        %v3316 = vpop.f32.mrb[0].mxu0
        %v3317 = vadd.f32 %v3123, %v3316
        %v3318 = vpop.f32.mrb[0].mxu0
        %3319 = vmatprep.mubr.f32.mxu0 0.0
        %3320 = vmatmul.mubr.f32.gmra.mrb[0].mxu0 %v3029
        %v3321 = vpop.f32.mrb[0].mxu0
        %v3322 = vadd.f32 %v3128, %v3321
        %v3323 = vpop.f32.mrb[0].mxu0
        %3324 = vmatprep.mubr.f32.mxu0 0.0
        %3325 = vmatmul.mubr.f32.gmra.mrb[0].mxu0 %v3030
        %v3326 = vpop.f32.mrb[0].mxu0
        %v3327 = vadd.f32 %v3133, %v3326
        %v3328 = vpop.f32.mrb[0].mxu0
        %3329 = vmatprep.mubr.f32.mxu0 0.0
        %3330 = vmatmul.mubr.f32.gmra.mrb[0].mxu0 %v3031
        %v3331 = vpop.f32.mrb[0].mxu0
        %v3332 = vadd.f32 %v3138, %v3331
        %v3333 = vpop.f32.mrb[0].mxu0
        %3334 = vmatprep.mubr.f32.mxu0 0.0
        %3335 = vmatmul.mubr.f32.gmra.mrb[0].mxu0 %v3032
        %v3336 = vpop.f32.mrb[0].mxu0
        %v3337 = vadd.f32 %v3143, %v3336
        %v3338 = vpop.f32.mrb[0].mxu0
        %3339 = vmatprep.mubr.f32.mxu0 0.0
        %3340 = vmatmul.mubr.f32.gmra.mrb[0].mxu0 %v3033
        %v3341 = vpop.f32.mrb[0].mxu0
        %v3342 = vadd.f32 %v3148, %v3341
        %v3343 = vpop.f32.mrb[0].mxu0
        %3344 = vmatprep.mubr.f32.mxu0 0.0
        %3345 = vmatmul.mubr.f32.gmra.mrb[0].mxu0 %v3034
        %v3346 = vpop.f32.mrb[0].mxu0
        %v3347 = vadd.f32 %v3153, %v3346
        %v3348 = vpop.f32.mrb[0].mxu0
        %3349 = vmatprep.mubr.f32.mxu0 0.0
        %3350 = vmatmul.mubr.f32.gmra.mrb[0].mxu0 %v3035
        %v3351 = vpop.f32.mrb[0].mxu0
        %v3352 = vadd.f32 %v3158, %v3351
        %v3353 = vpop.f32.mrb[0].mxu0
        %3354 = vmatprep.mubr.f32.mxu0 0.0
        %3355 = vmatmul.mubr.f32.gmra.mrb[0].mxu0 %v3036
        %v3356 = vpop.f32.mrb[0].mxu0
        %v3357 = vadd.f32 %v3163, %v3356
        %v3358 = vpop.f32.mrb[0].mxu0
        %3359 = vmatprep.mubr.f32.mxu0 0.0
        %3360 = vmatmul.mubr.f32.gmra.mrb[0].mxu0 %v3037
        %v3361 = vpop.f32.mrb[0].mxu0
        %v3362 = vadd.f32 %v3168, %v3361
        %v3363 = vpop.f32.mrb[0].mxu0
        %3364 = vmatprep.mubr.f32.mxu0 0.0
        %3365 = vmatmul.mubr.f32.gmra.mrb[0].mxu0 %v3038
        %v3366 = vpop.f32.mrb[0].mxu0
        %v3367 = vadd.f32 %v3173, %v3366
        %v3368 = vpop.f32.mrb[0].mxu0
        %3369 = vmatprep.mubr.f32.mxu0 0.0
        %3370 = vmatmul.mubr.f32.gmra.mrb[0].mxu0 %v3039
        %v3371 = vpop.f32.mrb[0].mxu0
        %v3372 = vadd.f32 %v3178, %v3371
        %v3373 = vpop.f32.mrb[0].mxu0
        %3374 = vmatprep.mubr.f32.mxu0 0.0
        %3375 = vmatmul.mubr.f32.gmra.mrb[0].mxu0 %v3040
        %v3376 = vpop.f32.mrb[0].mxu0
        %v3377 = vadd.f32 %v3183, %v3376
        %v3378 = vpop.f32.mrb[0].mxu0
        %3379 = vmatprep.mubr.f32.mxu0 0.0
        %3380 = vmatmul.mubr.f32.gmra.mrb[0].mxu0 %v3041
        %v3381 = vpop.f32.mrb[0].mxu0
        %v3382 = vadd.f32 %v3188, %v3381
        %v3383 = vpop.f32.mrb[0].mxu0
        %3384 = vmatprep.mubr.f32.mxu0 0.0
        %3385 = vmatmul.mubr.f32.gmra.mrb[0].mxu0 %v3042
        %v3386 = vpop.f32.mrb[0].mxu0
        %v3387 = vadd.f32 %v3193, %v3386
        %v3388 = vpop.f32.mrb[0].mxu0
        %3389 = vmatprep.mubr.f32.mxu0 0.0
        %3390 = vmatmul.mubr.f32.gmra.mrb[0].mxu0 %v3043
        %v3391 = vpop.f32.mrb[0].mxu0
        %v3392 = vadd.f32 %v3198, %v3391
        %v3393 = vpop.f32.mrb[0].mxu0
        %3394 = vdwg.mxu0
        %vm3395 = vcmp.gt.f32.partialorder %v3267, 0.0
        %vm3396 = vcmp.gt.f32.partialorder %v3272, 0.0
        %vm3397 = vcmp.gt.f32.partialorder %v3277, 0.0
        %vm3398 = vcmp.gt.f32.partialorder %v3282, 0.0
        %vm3399 = vcmp.gt.f32.partialorder %v3287, 0.0
        %vm3400 = vcmp.gt.f32.partialorder %v3292, 0.0
        %vm3401 = vcmp.gt.f32.partialorder %v3297, 0.0
        %vm3402 = vcmp.gt.f32.partialorder %v3302, 0.0
        %vm3403 = vcmp.gt.f32.partialorder %v3307, 0.0
        %vm3404 = vcmp.gt.f32.partialorder %v3312, 0.0
        %vm3405 = vcmp.gt.f32.partialorder %v3317, 0.0
        %vm3406 = vcmp.gt.f32.partialorder %v3322, 0.0
        %vm3407 = vcmp.gt.f32.partialorder %v3327, 0.0
        %vm3408 = vcmp.gt.f32.partialorder %v3332, 0.0
        %vm3409 = vcmp.gt.f32.partialorder %v3337, 0.0
        %vm3410 = vcmp.gt.f32.partialorder %v3342, 0.0
        %vm3411 = vcmp.gt.f32.partialorder %v3347, 0.0
        %vm3412 = vcmp.gt.f32.partialorder %v3352, 0.0
        %vm3413 = vcmp.gt.f32.partialorder %v3357, 0.0
        %vm3414 = vcmp.gt.f32.partialorder %v3362, 0.0
        %vm3415 = vcmp.gt.f32.partialorder %v3367, 0.0
        %vm3416 = vcmp.gt.f32.partialorder %v3372, 0.0
        %vm3417 = vcmp.gt.f32.partialorder %v3377, 0.0
        %vm3418 = vcmp.gt.f32.partialorder %v3382, 0.0
        %vm3419 = vcmp.gt.f32.partialorder %v3387, 0.0
        %vm3420 = vcmp.gt.f32.partialorder %v3392, 0.0
        %v3421 = vmul.f32 %v535, %v3267
        %v3422 = vmul.f32 %v535, %v3272
        %v3423 = vmul.f32 %v535, %v3277
        %v3424 = vmul.f32 %v535, %v3282
        %v3425 = vmul.f32 %v535, %v3287
        %v3426 = vmul.f32 %v535, %v3292
        %v3427 = vmul.f32 %v535, %v3297
        %v3428 = vmul.f32 %v535, %v3302
        %v3429 = vmul.f32 %v535, %v3307
        %v3430 = vmul.f32 %v535, %v3312
        %v3431 = vmul.f32 %v535, %v3317
        %v3432 = vmul.f32 %v535, %v3322
        %v3433 = vmul.f32 %v535, %v3327
        %v3434 = vmul.f32 %v535, %v3332
        %v3435 = vmul.f32 %v535, %v3337
        %v3436 = vmul.f32 %v535, %v3342
        %v3437 = vmul.f32 %v535, %v3347
        %v3438 = vmul.f32 %v535, %v3352
        %v3439 = vmul.f32 %v535, %v3357
        %v3440 = vmul.f32 %v535, %v3362
        %v3441 = vmul.f32 %v535, %v3367
        %v3442 = vmul.f32 %v535, %v3372
        %v3443 = vmul.f32 %v535, %v3377
        %v3444 = vmul.f32 %v535, %v3382
        %v3445 = vmul.f32 %v535, %v3387
        %v3446 = vmul.f32 %v535, %v3392
        %v3447 = vsel %vm3395, %v3267, %v3421
        %v3448 = vsel %vm3396, %v3272, %v3422
        %v3449 = vsel %vm3397, %v3277, %v3423
        %v3450 = vsel %vm3398, %v3282, %v3424
        %v3451 = vsel %vm3399, %v3287, %v3425
        %v3452 = vsel %vm3400, %v3292, %v3426
        %v3453 = vsel %vm3401, %v3297, %v3427
        %v3454 = vsel %vm3402, %v3302, %v3428
        %v3455 = vsel %vm3403, %v3307, %v3429
        %v3456 = vsel %vm3404, %v3312, %v3430
        %v3457 = vsel %vm3405, %v3317, %v3431
        %v3458 = vsel %vm3406, %v3322, %v3432
        %v3459 = vsel %vm3407, %v3327, %v3433
        %v3460 = vsel %vm3408, %v3332, %v3434
        %v3461 = vsel %vm3409, %v3337, %v3435
        %v3462 = vsel %vm3410, %v3342, %v3436
        %v3463 = vsel %vm3411, %v3347, %v3437
        %v3464 = vsel %vm3412, %v3352, %v3438
        %v3465 = vsel %vm3413, %v3357, %v3439
        %v3466 = vsel %vm3414, %v3362, %v3440
        %v3467 = vsel %vm3415, %v3367, %v3441
        %v3468 = vsel %vm3416, %v3372, %v3442
        %v3469 = vsel %vm3417, %v3377, %v3443
        %v3470 = vsel %vm3418, %v3382, %v3444
        %v3471 = vsel %vm3419, %v3387, %v3445
        %v3472 = vsel %vm3420, %v3392, %v3446
        %v3473 = vld [vmem:[%s6] sm:$0x3]
        %v3475 = vlaneseq
        %v3476 = vshrl.u32 %v3475, 7
        %v3477 = vsub.s32 0, %v3476
        %v3478 = vrot.slane %v3473, %v3477
        %v3479 = vlaneseq
        %v3480 = vshrl.u32 %v3479, 7
        %v3481 = vsub.s32 1, %v3480
        %v3482 = vrot.slane %v3473, %v3481
        %v3484 = vsel %vm1035, %v3482, 0
        %3486 = vmatprep.subr.mxu0 0.0
        %3487 = vmatpush1.msra.mxu0 %v3447
        %3488 = vmatprep.subr.mxu0 0.0
        %3489 = vmatpush1.msra.mxu0 %v3448
        %3490 = vmatprep.subr.mxu0 0.0
        %3491 = vmatpush1.msra.mxu0 %v3449
        %3492 = vmatprep.subr.mxu0 0.0
        %3493 = vmatpush1.msra.mxu0 %v3450
        %3494 = vmatprep.subr.mxu0 0.0
        %3495 = vmatpush1.msra.mxu0 %v3451
        %3496 = vmatprep.subr.mxu0 0.0
        %3497 = vmatpush1.msra.mxu0 %v3452
        %3498 = vmatprep.subr.mxu0 0.0
        %3499 = vmatpush1.msra.mxu0 %v3453
        %3500 = vmatprep.subr.mxu0 0.0
        %3501 = vmatpush1.msra.mxu0 %v3454
        %3502 = vmatprep.subr.mxu0 0.0
        %3503 = vmatpush1.msra.mxu0 %v3455
        %3504 = vmatprep.subr.mxu0 0.0
        %3505 = vmatpush1.msra.mxu0 %v3456
        %3506 = vmatprep.subr.mxu0 0.0
        %3507 = vmatpush1.msra.mxu0 %v3457
        %3508 = vmatprep.subr.mxu0 0.0
        %3509 = vmatpush1.msra.mxu0 %v3458
        %3510 = vmatprep.subr.mxu0 0.0
        %3511 = vmatpush1.msra.mxu0 %v3459
        %3512 = vmatprep.subr.mxu0 0.0
        %3513 = vmatpush1.msra.mxu0 %v3460
        %3514 = vmatprep.subr.mxu0 0.0
        %3515 = vmatpush1.msra.mxu0 %v3461
        %3516 = vmatprep.subr.mxu0 0.0
        %3517 = vmatpush1.msra.mxu0 %v3462
        %3518 = vmatprep.subr.mxu0 0.0
        %3519 = vmatpush1.msra.mxu0 %v3463
        %3520 = vmatprep.subr.mxu0 0.0
        %3521 = vmatpush1.msra.mxu0 %v3464
        %3522 = vmatprep.subr.mxu0 0.0
        %3523 = vmatpush1.msra.mxu0 %v3465
        %3524 = vmatprep.subr.mxu0 0.0
        %3525 = vmatpush1.msra.mxu0 %v3466
        %3526 = vmatprep.subr.mxu0 0.0
        %3527 = vmatpush1.msra.mxu0 %v3467
        %3528 = vmatprep.subr.mxu0 0.0
        %3529 = vmatpush1.msra.mxu0 %v3468
        %3530 = vmatprep.subr.mxu0 0.0
        %3531 = vmatpush1.msra.mxu0 %v3469
        %3532 = vmatprep.subr.mxu0 0.0
        %3533 = vmatpush1.msra.mxu0 %v3470
        %3534 = vmatprep.subr.mxu0 0.0
        %3535 = vmatpush1.msra.mxu0 %v3471
        %3536 = vmatprep.subr.mxu0 0.0
        %3537 = vmatpush1.msra.mxu0 %v3472
        %3538 = vmatprep.subr.mxu0 0.0
        %3539 = vmatpush1.msra.mxu0 0.0
        %3540 = vmatprep.subr.mxu0 0.0
        %3541 = vmatpush1.msra.mxu0 0.0
        %3542 = vmatprep.subr.mxu0 0.0
        %3543 = vmatpush1.msra.mxu0 0.0
        %3544 = vmatprep.subr.mxu0 0.0
        %3545 = vmatpush1.msra.mxu0 0.0
        %3546 = vmatprep.subr.mxu0 0.0
        %3547 = vmatpush1.msra.mxu0 0.0
        %3548 = vmatprep.subr.mxu0 0.0
        %3549 = vmatpush1.msra.mxu0 0.0
        %3550 = vmatprep.mubr.f32.mxu0 %v3484
        %3551 = vmatmul.mubr.f32.gmra.mrb[0].mxu0 %v3478
        %v3552 = vpop.f32.mrb[0].mxu0
        %v3553 = vadd.f32 %v1024, %v3552
        %v3554 = vpop.f32.mrb[0].mxu0
        %3555 = vdwg.mxu0
        %3556 = vst [vmem:[%s283 + $0x3] sm:$0x1] %v3553
        %v3557 = vld [vmem:[%s287 + $0x4] sm:$0x1]
        %v3558 = vld [vmem:[%s2] sm:$0xff]
        %v3559 = vld [vmem:[%s2 + $0x8] sm:$0xff]
        %v3560 = vld [vmem:[%s2 + $0x10] sm:$0xff]
        %v3561 = vld [vmem:[%s2 + $0x18] sm:$0xff]
        %v3562 = vld [vmem:[%s2 + $0x20] sm:$0xff]
        %v3563 = vld [vmem:[%s2 + $0x28] sm:$0xff]
        %v3564 = vld [vmem:[%s2 + $0x30] sm:$0xff]
        %v3565 = vld [vmem:[%s2 + $0x38] sm:$0xff]
        %v3566 = vld [vmem:[%s2 + $0x40] sm:$0xff]
        %v3567 = vld [vmem:[%s2 + $0x48] sm:$0xff]
        %v3568 = vld [vmem:[%s2 + $0x50] sm:$0xff]
        %v3569 = vld [vmem:[%s2 + $0x58] sm:$0xff]
        %v3570 = vld [vmem:[%s2 + $0x60] sm:$0xff]
        %v3571 = vld [vmem:[%s2 + $0x68] sm:$0xff]
        %v3572 = vld [vmem:[%s2 + $0x70] sm:$0xff]
        %v3573 = vld [vmem:[%s2 + $0x78] sm:$0xff]
        %3575 = vset.pattern.permute.xlu0 0
        %3576 = vperm.xlu0 %3575, %v3558
        %v3577 = vpop.permute.xlu0 %3576
        %3580 = vset.pattern.permute.xlu0 0
        %3581 = vperm.xlu0 %3580, %v3559
        %v3582 = vpop.permute.xlu0 %3581
        %3585 = vset.pattern.permute.xlu0 0
        %3586 = vperm.xlu0 %3585, %v3560
        %v3587 = vpop.permute.xlu0 %3586
        %3590 = vset.pattern.permute.xlu0 0
        %3591 = vperm.xlu0 %3590, %v3561
        %v3592 = vpop.permute.xlu0 %3591
        %3595 = vset.pattern.permute.xlu0 0
        %3596 = vperm.xlu0 %3595, %v3562
        %v3597 = vpop.permute.xlu0 %3596
        %3600 = vset.pattern.permute.xlu0 0
        %3601 = vperm.xlu0 %3600, %v3563
        %v3602 = vpop.permute.xlu0 %3601
        %3605 = vset.pattern.permute.xlu0 0
        %3606 = vperm.xlu0 %3605, %v3564
        %v3607 = vpop.permute.xlu0 %3606
        %3610 = vset.pattern.permute.xlu0 0
        %3611 = vperm.xlu0 %3610, %v3565
        %v3612 = vpop.permute.xlu0 %3611
        %3615 = vset.pattern.permute.xlu0 0
        %3616 = vperm.xlu0 %3615, %v3566
        %v3617 = vpop.permute.xlu0 %3616
        %3620 = vset.pattern.permute.xlu0 0
        %3621 = vperm.xlu0 %3620, %v3567
        %v3622 = vpop.permute.xlu0 %3621
        %3625 = vset.pattern.permute.xlu0 0
        %3626 = vperm.xlu0 %3625, %v3568
        %v3627 = vpop.permute.xlu0 %3626
        %3630 = vset.pattern.permute.xlu0 0
        %3631 = vperm.xlu0 %3630, %v3569
        %v3632 = vpop.permute.xlu0 %3631
        %3635 = vset.pattern.permute.xlu0 0
        %3636 = vperm.xlu0 %3635, %v3570
        %v3637 = vpop.permute.xlu0 %3636
        %3640 = vset.pattern.permute.xlu0 0
        %3641 = vperm.xlu0 %3640, %v3571
        %v3642 = vpop.permute.xlu0 %3641
        %3645 = vset.pattern.permute.xlu0 0
        %3646 = vperm.xlu0 %3645, %v3572
        %v3647 = vpop.permute.xlu0 %3646
        %3650 = vset.pattern.permute.xlu0 0
        %3651 = vperm.xlu0 %3650, %v3573
        %v3652 = vpop.permute.xlu0 %3651
        %v3654 = vlaneseq
        %v3655 = vshrl.u32 %v3654, 7
        %v3656 = vsub.s32 0, %v3655
        %v3657 = vrot.slane %v3557, %v3656
        %v3658 = vmul.f32 %v3577, %v3657
        %v3659 = vmul.f32 %v3582, %v3657
        %v3660 = vmul.f32 %v3587, %v3657
        %v3661 = vmul.f32 %v3592, %v3657
        %v3662 = vmul.f32 %v3597, %v3657
        %v3663 = vmul.f32 %v3602, %v3657
        %v3664 = vmul.f32 %v3607, %v3657
        %v3665 = vmul.f32 %v3612, %v3657
        %v3666 = vmul.f32 %v3617, %v3657
        %v3667 = vmul.f32 %v3622, %v3657
        %v3668 = vmul.f32 %v3627, %v3657
        %v3669 = vmul.f32 %v3632, %v3657
        %v3670 = vmul.f32 %v3637, %v3657
        %v3671 = vmul.f32 %v3642, %v3657
        %v3672 = vmul.f32 %v3647, %v3657
        %v3673 = vmul.f32 %v3652, %v3657
        %v3674 = vld [vmem:[%s3] sm:$0xff]
        %v3675 = vld [vmem:[%s3 + $0x8] sm:$0xff]
        %v3676 = vld [vmem:[%s3 + $0x10] sm:$0xff]
        %v3677 = vld [vmem:[%s3 + $0x18] sm:$0xff]
        %v3678 = vld [vmem:[%s3 + $0x20] sm:$0xff]
        %v3679 = vld [vmem:[%s3 + $0x28] sm:$0xff]
        %v3680 = vld [vmem:[%s3 + $0x30] sm:$0xff]
        %v3681 = vld [vmem:[%s3 + $0x38] sm:$0xff]
        %v3682 = vld [vmem:[%s3 + $0x40] sm:$0xff]
        %v3683 = vld [vmem:[%s3 + $0x48] sm:$0xff]
        %v3684 = vld [vmem:[%s3 + $0x50] sm:$0xff]
        %v3685 = vld [vmem:[%s3 + $0x58] sm:$0xff]
        %v3686 = vld [vmem:[%s3 + $0x60] sm:$0xff]
        %v3687 = vld [vmem:[%s3 + $0x68] sm:$0xff]
        %v3688 = vld [vmem:[%s3 + $0x70] sm:$0xff]
        %v3689 = vld [vmem:[%s3 + $0x78] sm:$0xff]
        %3691 = vset.pattern.permute.xlu0 0
        %3692 = vperm.xlu0 %3691, %v3674
        %v3693 = vpop.permute.xlu0 %3692
        %3696 = vset.pattern.permute.xlu0 0
        %3697 = vperm.xlu0 %3696, %v3675
        %v3698 = vpop.permute.xlu0 %3697
        %3701 = vset.pattern.permute.xlu0 0
        %3702 = vperm.xlu0 %3701, %v3676
        %v3703 = vpop.permute.xlu0 %3702
        %3706 = vset.pattern.permute.xlu0 0
        %3707 = vperm.xlu0 %3706, %v3677
        %v3708 = vpop.permute.xlu0 %3707
        %3711 = vset.pattern.permute.xlu0 0
        %3712 = vperm.xlu0 %3711, %v3678
        %v3713 = vpop.permute.xlu0 %3712
        %3716 = vset.pattern.permute.xlu0 0
        %3717 = vperm.xlu0 %3716, %v3679
        %v3718 = vpop.permute.xlu0 %3717
        %3721 = vset.pattern.permute.xlu0 0
        %3722 = vperm.xlu0 %3721, %v3680
        %v3723 = vpop.permute.xlu0 %3722
        %3726 = vset.pattern.permute.xlu0 0
        %3727 = vperm.xlu0 %3726, %v3681
        %v3728 = vpop.permute.xlu0 %3727
        %3731 = vset.pattern.permute.xlu0 0
        %3732 = vperm.xlu0 %3731, %v3682
        %v3733 = vpop.permute.xlu0 %3732
        %3736 = vset.pattern.permute.xlu0 0
        %3737 = vperm.xlu0 %3736, %v3683
        %v3738 = vpop.permute.xlu0 %3737
        %3741 = vset.pattern.permute.xlu0 0
        %3742 = vperm.xlu0 %3741, %v3684
        %v3743 = vpop.permute.xlu0 %3742
        %3746 = vset.pattern.permute.xlu0 0
        %3747 = vperm.xlu0 %3746, %v3685
        %v3748 = vpop.permute.xlu0 %3747
        %3751 = vset.pattern.permute.xlu0 0
        %3752 = vperm.xlu0 %3751, %v3686
        %v3753 = vpop.permute.xlu0 %3752
        %3756 = vset.pattern.permute.xlu0 0
        %3757 = vperm.xlu0 %3756, %v3687
        %v3758 = vpop.permute.xlu0 %3757
        %3761 = vset.pattern.permute.xlu0 0
        %3762 = vperm.xlu0 %3761, %v3688
        %v3763 = vpop.permute.xlu0 %3762
        %3766 = vset.pattern.permute.xlu0 0
        %3767 = vperm.xlu0 %3766, %v3689
        %v3768 = vpop.permute.xlu0 %3767
        %v3770 = vadd.f32 %v3658, %v3693
        %v3771 = vadd.f32 %v3659, %v3698
        %v3772 = vadd.f32 %v3660, %v3703
        %v3773 = vadd.f32 %v3661, %v3708
        %v3774 = vadd.f32 %v3662, %v3713
        %v3775 = vadd.f32 %v3663, %v3718
        %v3776 = vadd.f32 %v3664, %v3723
        %v3777 = vadd.f32 %v3665, %v3728
        %v3778 = vadd.f32 %v3666, %v3733
        %v3779 = vadd.f32 %v3667, %v3738
        %v3780 = vadd.f32 %v3668, %v3743
        %v3781 = vadd.f32 %v3669, %v3748
        %v3782 = vadd.f32 %v3670, %v3753
        %v3783 = vadd.f32 %v3671, %v3758
        %v3784 = vadd.f32 %v3672, %v3763
        %v3785 = vadd.f32 %v3673, %v3768
        %vm3786 = vcmp.gt.f32.partialorder %v3770, 0.0
        %vm3787 = vcmp.gt.f32.partialorder %v3771, 0.0
        %vm3788 = vcmp.gt.f32.partialorder %v3772, 0.0
        %vm3789 = vcmp.gt.f32.partialorder %v3773, 0.0
        %vm3790 = vcmp.gt.f32.partialorder %v3774, 0.0
        %vm3791 = vcmp.gt.f32.partialorder %v3775, 0.0
        %vm3792 = vcmp.gt.f32.partialorder %v3776, 0.0
        %vm3793 = vcmp.gt.f32.partialorder %v3777, 0.0
        %vm3794 = vcmp.gt.f32.partialorder %v3778, 0.0
        %vm3795 = vcmp.gt.f32.partialorder %v3779, 0.0
        %vm3796 = vcmp.gt.f32.partialorder %v3780, 0.0
        %vm3797 = vcmp.gt.f32.partialorder %v3781, 0.0
        %vm3798 = vcmp.gt.f32.partialorder %v3782, 0.0
        %vm3799 = vcmp.gt.f32.partialorder %v3783, 0.0
        %vm3800 = vcmp.gt.f32.partialorder %v3784, 0.0
        %vm3801 = vcmp.gt.f32.partialorder %v3785, 0.0
        %v3802 = vmul.f32 %v535, %v3770
        %v3803 = vmul.f32 %v535, %v3771
        %v3804 = vmul.f32 %v535, %v3772
        %v3805 = vmul.f32 %v535, %v3773
        %v3806 = vmul.f32 %v535, %v3774
        %v3807 = vmul.f32 %v535, %v3775
        %v3808 = vmul.f32 %v535, %v3776
        %v3809 = vmul.f32 %v535, %v3777
        %v3810 = vmul.f32 %v535, %v3778
        %v3811 = vmul.f32 %v535, %v3779
        %v3812 = vmul.f32 %v535, %v3780
        %v3813 = vmul.f32 %v535, %v3781
        %v3814 = vmul.f32 %v535, %v3782
        %v3815 = vmul.f32 %v535, %v3783
        %v3816 = vmul.f32 %v535, %v3784
        %v3817 = vmul.f32 %v535, %v3785
        %v3818 = vsel %vm3786, %v3770, %v3802
        %v3819 = vsel %vm3787, %v3771, %v3803
        %v3820 = vsel %vm3788, %v3772, %v3804
        %v3821 = vsel %vm3789, %v3773, %v3805
        %v3822 = vsel %vm3790, %v3774, %v3806
        %v3823 = vsel %vm3791, %v3775, %v3807
        %v3824 = vsel %vm3792, %v3776, %v3808
        %v3825 = vsel %vm3793, %v3777, %v3809
        %v3826 = vsel %vm3794, %v3778, %v3810
        %v3827 = vsel %vm3795, %v3779, %v3811
        %v3828 = vsel %vm3796, %v3780, %v3812
        %v3829 = vsel %vm3797, %v3781, %v3813
        %v3830 = vsel %vm3798, %v3782, %v3814
        %v3831 = vsel %vm3799, %v3783, %v3815
        %v3832 = vsel %vm3800, %v3784, %v3816
        %v3833 = vsel %vm3801, %v3785, %v3817
        %v3834 = vld [vmem:[%s4] sm:$0xff]
        %v3835 = vld [vmem:[%s4 + $0x8] sm:$0xff]
        %v3836 = vld [vmem:[%s4 + $0x10] sm:$0xff]
        %v3837 = vld [vmem:[%s4 + $0x18] sm:$0xff]
        %v3838 = vld [vmem:[%s4 + $0x20] sm:$0xff]
        %v3839 = vld [vmem:[%s4 + $0x28] sm:$0xff]
        %v3840 = vld [vmem:[%s4 + $0x30] sm:$0xff]
        %v3841 = vld [vmem:[%s4 + $0x38] sm:$0xff]
        %v3842 = vld [vmem:[%s4 + $0x40] sm:$0xff]
        %v3843 = vld [vmem:[%s4 + $0x48] sm:$0xff]
        %v3844 = vld [vmem:[%s4 + $0x50] sm:$0xff]
        %v3845 = vld [vmem:[%s4 + $0x58] sm:$0xff]
        %v3846 = vld [vmem:[%s4 + $0x60] sm:$0xff]
        %v3847 = vld [vmem:[%s4 + $0x68] sm:$0xff]
        %v3848 = vld [vmem:[%s4 + $0x70] sm:$0xff]
        %v3849 = vld [vmem:[%s4 + $0x78] sm:$0xff]
        %v3850 = vld [vmem:[%s4 + $0x80] sm:$0xff]
        %v3851 = vld [vmem:[%s4 + $0x88] sm:$0xff]
        %v3852 = vld [vmem:[%s4 + $0x90] sm:$0xff]
        %v3853 = vld [vmem:[%s4 + $0x98] sm:$0xff]
        %v3854 = vld [vmem:[%s4 + $0xa0] sm:$0xff]
        %v3855 = vld [vmem:[%s4 + $0xa8] sm:$0xff]
        %v3856 = vld [vmem:[%s4 + $0xb0] sm:$0xff]
        %v3857 = vld [vmem:[%s4 + $0xb8] sm:$0xff]
        %v3858 = vld [vmem:[%s4 + $0xc0] sm:$0xff]
        %v3859 = vld [vmem:[%s4 + $0xc8] sm:$0xff]
        %v3860 = vld [vmem:[%s5] sm:$0xff]
        %v3861 = vld [vmem:[%s5 + $0x8] sm:$0xff]
        %v3862 = vld [vmem:[%s5 + $0x10] sm:$0xff]
        %v3863 = vld [vmem:[%s5 + $0x18] sm:$0xff]
        %v3864 = vld [vmem:[%s5 + $0x20] sm:$0xff]
        %v3865 = vld [vmem:[%s5 + $0x28] sm:$0xff]
        %v3866 = vld [vmem:[%s5 + $0x30] sm:$0xff]
        %v3867 = vld [vmem:[%s5 + $0x38] sm:$0xff]
        %v3868 = vld [vmem:[%s5 + $0x40] sm:$0xff]
        %v3869 = vld [vmem:[%s5 + $0x48] sm:$0xff]
        %v3870 = vld [vmem:[%s5 + $0x50] sm:$0xff]
        %v3871 = vld [vmem:[%s5 + $0x58] sm:$0xff]
        %v3872 = vld [vmem:[%s5 + $0x60] sm:$0xff]
        %v3873 = vld [vmem:[%s5 + $0x68] sm:$0xff]
        %v3874 = vld [vmem:[%s5 + $0x70] sm:$0xff]
        %v3875 = vld [vmem:[%s5 + $0x78] sm:$0xff]
        %v3876 = vld [vmem:[%s5 + $0x80] sm:$0xff]
        %v3877 = vld [vmem:[%s5 + $0x88] sm:$0xff]
        %v3878 = vld [vmem:[%s5 + $0x90] sm:$0xff]
        %v3879 = vld [vmem:[%s5 + $0x98] sm:$0xff]
        %v3880 = vld [vmem:[%s5 + $0xa0] sm:$0xff]
        %v3881 = vld [vmem:[%s5 + $0xa8] sm:$0xff]
        %v3882 = vld [vmem:[%s5 + $0xb0] sm:$0xff]
        %v3883 = vld [vmem:[%s5 + $0xb8] sm:$0xff]
        %v3884 = vld [vmem:[%s5 + $0xc0] sm:$0xff]
        %v3885 = vld [vmem:[%s5 + $0xc8] sm:$0xff]
        %3887 = vset.pattern.permute.xlu0 0
        %3888 = vperm.xlu0 %3887, %v3860
        %v3889 = vpop.permute.xlu0 %3888
        %3892 = vset.pattern.permute.xlu0 0
        %3893 = vperm.xlu0 %3892, %v3861
        %v3894 = vpop.permute.xlu0 %3893
        %3897 = vset.pattern.permute.xlu0 0
        %3898 = vperm.xlu0 %3897, %v3862
        %v3899 = vpop.permute.xlu0 %3898
        %3902 = vset.pattern.permute.xlu0 0
        %3903 = vperm.xlu0 %3902, %v3863
        %v3904 = vpop.permute.xlu0 %3903
        %3907 = vset.pattern.permute.xlu0 0
        %3908 = vperm.xlu0 %3907, %v3864
        %v3909 = vpop.permute.xlu0 %3908
        %3912 = vset.pattern.permute.xlu0 0
        %3913 = vperm.xlu0 %3912, %v3865
        %v3914 = vpop.permute.xlu0 %3913
        %3917 = vset.pattern.permute.xlu0 0
        %3918 = vperm.xlu0 %3917, %v3866
        %v3919 = vpop.permute.xlu0 %3918
        %3922 = vset.pattern.permute.xlu0 0
        %3923 = vperm.xlu0 %3922, %v3867
        %v3924 = vpop.permute.xlu0 %3923
        %3927 = vset.pattern.permute.xlu0 0
        %3928 = vperm.xlu0 %3927, %v3868
        %v3929 = vpop.permute.xlu0 %3928
        %3932 = vset.pattern.permute.xlu0 0
        %3933 = vperm.xlu0 %3932, %v3869
        %v3934 = vpop.permute.xlu0 %3933
        %3937 = vset.pattern.permute.xlu0 0
        %3938 = vperm.xlu0 %3937, %v3870
        %v3939 = vpop.permute.xlu0 %3938
        %3942 = vset.pattern.permute.xlu0 0
        %3943 = vperm.xlu0 %3942, %v3871
        %v3944 = vpop.permute.xlu0 %3943
        %3947 = vset.pattern.permute.xlu0 0
        %3948 = vperm.xlu0 %3947, %v3872
        %v3949 = vpop.permute.xlu0 %3948
        %3952 = vset.pattern.permute.xlu0 0
        %3953 = vperm.xlu0 %3952, %v3873
        %v3954 = vpop.permute.xlu0 %3953
        %3957 = vset.pattern.permute.xlu0 0
        %3958 = vperm.xlu0 %3957, %v3874
        %v3959 = vpop.permute.xlu0 %3958
        %3962 = vset.pattern.permute.xlu0 0
        %3963 = vperm.xlu0 %3962, %v3875
        %v3964 = vpop.permute.xlu0 %3963
        %3967 = vset.pattern.permute.xlu0 0
        %3968 = vperm.xlu0 %3967, %v3876
        %v3969 = vpop.permute.xlu0 %3968
        %3972 = vset.pattern.permute.xlu0 0
        %3973 = vperm.xlu0 %3972, %v3877
        %v3974 = vpop.permute.xlu0 %3973
        %3977 = vset.pattern.permute.xlu0 0
        %3978 = vperm.xlu0 %3977, %v3878
        %v3979 = vpop.permute.xlu0 %3978
        %3982 = vset.pattern.permute.xlu0 0
        %3983 = vperm.xlu0 %3982, %v3879
        %v3984 = vpop.permute.xlu0 %3983
        %3987 = vset.pattern.permute.xlu0 0
        %3988 = vperm.xlu0 %3987, %v3880
        %v3989 = vpop.permute.xlu0 %3988
        %3992 = vset.pattern.permute.xlu0 0
        %3993 = vperm.xlu0 %3992, %v3881
        %v3994 = vpop.permute.xlu0 %3993
        %3997 = vset.pattern.permute.xlu0 0
        %3998 = vperm.xlu0 %3997, %v3882
        %v3999 = vpop.permute.xlu0 %3998
        %4002 = vset.pattern.permute.xlu0 0
        %4003 = vperm.xlu0 %4002, %v3883
        %v4004 = vpop.permute.xlu0 %4003
        %4007 = vset.pattern.permute.xlu0 0
        %4008 = vperm.xlu0 %4007, %v3884
        %v4009 = vpop.permute.xlu0 %4008
        %4012 = vset.pattern.permute.xlu0 0
        %4013 = vperm.xlu0 %4012, %v3885
        %v4014 = vpop.permute.xlu0 %4013
        %4016 = vmatprep.subr.mxu0 0.0
        %4017 = vmatpush1.msra.mxu0 %v3818
        %4018 = vmatprep.subr.mxu0 0.0
        %4019 = vmatpush1.msra.mxu0 %v3819
        %4020 = vmatprep.subr.mxu0 0.0
        %4021 = vmatpush1.msra.mxu0 %v3820
        %4022 = vmatprep.subr.mxu0 0.0
        %4023 = vmatpush1.msra.mxu0 %v3821
        %4024 = vmatprep.subr.mxu0 0.0
        %4025 = vmatpush1.msra.mxu0 %v3822
        %4026 = vmatprep.subr.mxu0 0.0
        %4027 = vmatpush1.msra.mxu0 %v3823
        %4028 = vmatprep.subr.mxu0 0.0
        %4029 = vmatpush1.msra.mxu0 %v3824
        %4030 = vmatprep.subr.mxu0 0.0
        %4031 = vmatpush1.msra.mxu0 %v3825
        %4032 = vmatprep.subr.mxu0 0.0
        %4033 = vmatpush1.msra.mxu0 %v3826
        %4034 = vmatprep.subr.mxu0 0.0
        %4035 = vmatpush1.msra.mxu0 %v3827
        %4036 = vmatprep.subr.mxu0 0.0
        %4037 = vmatpush1.msra.mxu0 %v3828
        %4038 = vmatprep.subr.mxu0 0.0
        %4039 = vmatpush1.msra.mxu0 %v3829
        %4040 = vmatprep.subr.mxu0 0.0
        %4041 = vmatpush1.msra.mxu0 %v3830
        %4042 = vmatprep.subr.mxu0 0.0
        %4043 = vmatpush1.msra.mxu0 %v3831
        %4044 = vmatprep.subr.mxu0 0.0
        %4045 = vmatpush1.msra.mxu0 %v3832
        %4046 = vmatprep.subr.mxu0 0.0
        %4047 = vmatpush1.msra.mxu0 %v3833
        %4048 = vmatprep.subr.mxu0 0.0
        %4049 = vmatpush1.msra.mxu0 0.0
        %4050 = vmatprep.subr.mxu0 0.0
        %4051 = vmatpush1.msra.mxu0 0.0
        %4052 = vmatprep.subr.mxu0 0.0
        %4053 = vmatpush1.msra.mxu0 0.0
        %4054 = vmatprep.subr.mxu0 0.0
        %4055 = vmatpush1.msra.mxu0 0.0
        %4056 = vmatprep.subr.mxu0 0.0
        %4057 = vmatpush1.msra.mxu0 0.0
        %4058 = vmatprep.subr.mxu0 0.0
        %4059 = vmatpush1.msra.mxu0 0.0
        %4060 = vmatprep.subr.mxu0 0.0
        %4061 = vmatpush1.msra.mxu0 0.0
        %4062 = vmatprep.subr.mxu0 0.0
        %4063 = vmatpush1.msra.mxu0 0.0
        %4064 = vmatprep.subr.mxu0 0.0
        %4065 = vmatpush1.msra.mxu0 0.0
        %4066 = vmatprep.subr.mxu0 0.0
        %4067 = vmatpush1.msra.mxu0 0.0
        %4068 = vmatprep.subr.mxu0 0.0
        %4069 = vmatpush1.msra.mxu0 0.0
        %4070 = vmatprep.subr.mxu0 0.0
        %4071 = vmatpush1.msra.mxu0 0.0
        %4072 = vmatprep.subr.mxu0 0.0
        %4073 = vmatpush1.msra.mxu0 0.0
        %4074 = vmatprep.subr.mxu0 0.0
        %4075 = vmatpush1.msra.mxu0 0.0
        %4076 = vmatprep.subr.mxu0 0.0
        %4077 = vmatpush1.msra.mxu0 0.0
        %4078 = vmatprep.subr.mxu0 0.0
        %4079 = vmatpush1.msra.mxu0 0.0
        %4080 = vmatprep.mubr.f32.mxu0 0.0
        %4081 = vmatmul.mubr.f32.gmra.mrb[0].mxu0 %v3834
        %v4082 = vpop.f32.mrb[0].mxu0
        %v4083 = vadd.f32 %v3889, %v4082
        %v4084 = vpop.f32.mrb[0].mxu0
        %4085 = vmatprep.mubr.f32.mxu0 0.0
        %4086 = vmatmul.mubr.f32.gmra.mrb[0].mxu0 %v3835
        %v4087 = vpop.f32.mrb[0].mxu0
        %v4088 = vadd.f32 %v3894, %v4087
        %v4089 = vpop.f32.mrb[0].mxu0
        %4090 = vmatprep.mubr.f32.mxu0 0.0
        %4091 = vmatmul.mubr.f32.gmra.mrb[0].mxu0 %v3836
        %v4092 = vpop.f32.mrb[0].mxu0
        %v4093 = vadd.f32 %v3899, %v4092
        %v4094 = vpop.f32.mrb[0].mxu0
        %4095 = vmatprep.mubr.f32.mxu0 0.0
        %4096 = vmatmul.mubr.f32.gmra.mrb[0].mxu0 %v3837
        %v4097 = vpop.f32.mrb[0].mxu0
        %v4098 = vadd.f32 %v3904, %v4097
        %v4099 = vpop.f32.mrb[0].mxu0
        %4100 = vmatprep.mubr.f32.mxu0 0.0
        %4101 = vmatmul.mubr.f32.gmra.mrb[0].mxu0 %v3838
        %v4102 = vpop.f32.mrb[0].mxu0
        %v4103 = vadd.f32 %v3909, %v4102
        %v4104 = vpop.f32.mrb[0].mxu0
        %4105 = vmatprep.mubr.f32.mxu0 0.0
        %4106 = vmatmul.mubr.f32.gmra.mrb[0].mxu0 %v3839
        %v4107 = vpop.f32.mrb[0].mxu0
        %v4108 = vadd.f32 %v3914, %v4107
        %v4109 = vpop.f32.mrb[0].mxu0
        %4110 = vmatprep.mubr.f32.mxu0 0.0
        %4111 = vmatmul.mubr.f32.gmra.mrb[0].mxu0 %v3840
        %v4112 = vpop.f32.mrb[0].mxu0
        %v4113 = vadd.f32 %v3919, %v4112
        %v4114 = vpop.f32.mrb[0].mxu0
        %4115 = vmatprep.mubr.f32.mxu0 0.0
        %4116 = vmatmul.mubr.f32.gmra.mrb[0].mxu0 %v3841
        %v4117 = vpop.f32.mrb[0].mxu0
        %v4118 = vadd.f32 %v3924, %v4117
        %v4119 = vpop.f32.mrb[0].mxu0
        %4120 = vmatprep.mubr.f32.mxu0 0.0
        %4121 = vmatmul.mubr.f32.gmra.mrb[0].mxu0 %v3842
        %v4122 = vpop.f32.mrb[0].mxu0
        %v4123 = vadd.f32 %v3929, %v4122
        %v4124 = vpop.f32.mrb[0].mxu0
        %4125 = vmatprep.mubr.f32.mxu0 0.0
        %4126 = vmatmul.mubr.f32.gmra.mrb[0].mxu0 %v3843
        %v4127 = vpop.f32.mrb[0].mxu0
        %v4128 = vadd.f32 %v3934, %v4127
        %v4129 = vpop.f32.mrb[0].mxu0
        %4130 = vmatprep.mubr.f32.mxu0 0.0
        %4131 = vmatmul.mubr.f32.gmra.mrb[0].mxu0 %v3844
        %v4132 = vpop.f32.mrb[0].mxu0
        %v4133 = vadd.f32 %v3939, %v4132
        %v4134 = vpop.f32.mrb[0].mxu0
        %4135 = vmatprep.mubr.f32.mxu0 0.0
        %4136 = vmatmul.mubr.f32.gmra.mrb[0].mxu0 %v3845
        %v4137 = vpop.f32.mrb[0].mxu0
        %v4138 = vadd.f32 %v3944, %v4137
        %v4139 = vpop.f32.mrb[0].mxu0
        %4140 = vmatprep.mubr.f32.mxu0 0.0
        %4141 = vmatmul.mubr.f32.gmra.mrb[0].mxu0 %v3846
        %v4142 = vpop.f32.mrb[0].mxu0
        %v4143 = vadd.f32 %v3949, %v4142
        %v4144 = vpop.f32.mrb[0].mxu0
        %4145 = vmatprep.mubr.f32.mxu0 0.0
        %4146 = vmatmul.mubr.f32.gmra.mrb[0].mxu0 %v3847
        %v4147 = vpop.f32.mrb[0].mxu0
        %v4148 = vadd.f32 %v3954, %v4147
        %v4149 = vpop.f32.mrb[0].mxu0
        %4150 = vmatprep.mubr.f32.mxu0 0.0
        %4151 = vmatmul.mubr.f32.gmra.mrb[0].mxu0 %v3848
        %v4152 = vpop.f32.mrb[0].mxu0
        %v4153 = vadd.f32 %v3959, %v4152
        %v4154 = vpop.f32.mrb[0].mxu0
        %4155 = vmatprep.mubr.f32.mxu0 0.0
        %4156 = vmatmul.mubr.f32.gmra.mrb[0].mxu0 %v3849
        %v4157 = vpop.f32.mrb[0].mxu0
        %v4158 = vadd.f32 %v3964, %v4157
        %v4159 = vpop.f32.mrb[0].mxu0
        %4160 = vmatprep.mubr.f32.mxu0 0.0
        %4161 = vmatmul.mubr.f32.gmra.mrb[0].mxu0 %v3850
        %v4162 = vpop.f32.mrb[0].mxu0
        %v4163 = vadd.f32 %v3969, %v4162
        %v4164 = vpop.f32.mrb[0].mxu0
        %4165 = vmatprep.mubr.f32.mxu0 0.0
        %4166 = vmatmul.mubr.f32.gmra.mrb[0].mxu0 %v3851
        %v4167 = vpop.f32.mrb[0].mxu0
        %v4168 = vadd.f32 %v3974, %v4167
        %v4169 = vpop.f32.mrb[0].mxu0
        %4170 = vmatprep.mubr.f32.mxu0 0.0
        %4171 = vmatmul.mubr.f32.gmra.mrb[0].mxu0 %v3852
        %v4172 = vpop.f32.mrb[0].mxu0
        %v4173 = vadd.f32 %v3979, %v4172
        %v4174 = vpop.f32.mrb[0].mxu0
        %4175 = vmatprep.mubr.f32.mxu0 0.0
        %4176 = vmatmul.mubr.f32.gmra.mrb[0].mxu0 %v3853
        %v4177 = vpop.f32.mrb[0].mxu0
        %v4178 = vadd.f32 %v3984, %v4177
        %v4179 = vpop.f32.mrb[0].mxu0
        %4180 = vmatprep.mubr.f32.mxu0 0.0
        %4181 = vmatmul.mubr.f32.gmra.mrb[0].mxu0 %v3854
        %v4182 = vpop.f32.mrb[0].mxu0
        %v4183 = vadd.f32 %v3989, %v4182
        %v4184 = vpop.f32.mrb[0].mxu0
        %4185 = vmatprep.mubr.f32.mxu0 0.0
        %4186 = vmatmul.mubr.f32.gmra.mrb[0].mxu0 %v3855
        %v4187 = vpop.f32.mrb[0].mxu0
        %v4188 = vadd.f32 %v3994, %v4187
        %v4189 = vpop.f32.mrb[0].mxu0
        %4190 = vmatprep.mubr.f32.mxu0 0.0
        %4191 = vmatmul.mubr.f32.gmra.mrb[0].mxu0 %v3856
        %v4192 = vpop.f32.mrb[0].mxu0
        %v4193 = vadd.f32 %v3999, %v4192
        %v4194 = vpop.f32.mrb[0].mxu0
        %4195 = vmatprep.mubr.f32.mxu0 0.0
        %4196 = vmatmul.mubr.f32.gmra.mrb[0].mxu0 %v3857
        %v4197 = vpop.f32.mrb[0].mxu0
        %v4198 = vadd.f32 %v4004, %v4197
        %v4199 = vpop.f32.mrb[0].mxu0
        %4200 = vmatprep.mubr.f32.mxu0 0.0
        %4201 = vmatmul.mubr.f32.gmra.mrb[0].mxu0 %v3858
        %v4202 = vpop.f32.mrb[0].mxu0
        %v4203 = vadd.f32 %v4009, %v4202
        %v4204 = vpop.f32.mrb[0].mxu0
        %4205 = vmatprep.mubr.f32.mxu0 0.0
        %4206 = vmatmul.mubr.f32.gmra.mrb[0].mxu0 %v3859
        %v4207 = vpop.f32.mrb[0].mxu0
        %v4208 = vadd.f32 %v4014, %v4207
        %v4209 = vpop.f32.mrb[0].mxu0
        %4210 = vdwg.mxu0
        %vm4211 = vcmp.gt.f32.partialorder %v4083, 0.0
        %vm4212 = vcmp.gt.f32.partialorder %v4088, 0.0
        %vm4213 = vcmp.gt.f32.partialorder %v4093, 0.0
        %vm4214 = vcmp.gt.f32.partialorder %v4098, 0.0
        %vm4215 = vcmp.gt.f32.partialorder %v4103, 0.0
        %vm4216 = vcmp.gt.f32.partialorder %v4108, 0.0
        %vm4217 = vcmp.gt.f32.partialorder %v4113, 0.0
        %vm4218 = vcmp.gt.f32.partialorder %v4118, 0.0
        %vm4219 = vcmp.gt.f32.partialorder %v4123, 0.0
        %vm4220 = vcmp.gt.f32.partialorder %v4128, 0.0
        %vm4221 = vcmp.gt.f32.partialorder %v4133, 0.0
        %vm4222 = vcmp.gt.f32.partialorder %v4138, 0.0
        %vm4223 = vcmp.gt.f32.partialorder %v4143, 0.0
        %vm4224 = vcmp.gt.f32.partialorder %v4148, 0.0
        %vm4225 = vcmp.gt.f32.partialorder %v4153, 0.0
        %vm4226 = vcmp.gt.f32.partialorder %v4158, 0.0
        %vm4227 = vcmp.gt.f32.partialorder %v4163, 0.0
        %vm4228 = vcmp.gt.f32.partialorder %v4168, 0.0
        %vm4229 = vcmp.gt.f32.partialorder %v4173, 0.0
        %vm4230 = vcmp.gt.f32.partialorder %v4178, 0.0
        %vm4231 = vcmp.gt.f32.partialorder %v4183, 0.0
        %vm4232 = vcmp.gt.f32.partialorder %v4188, 0.0
        %vm4233 = vcmp.gt.f32.partialorder %v4193, 0.0
        %vm4234 = vcmp.gt.f32.partialorder %v4198, 0.0
        %vm4235 = vcmp.gt.f32.partialorder %v4203, 0.0
        %vm4236 = vcmp.gt.f32.partialorder %v4208, 0.0
        %v4237 = vmul.f32 %v535, %v4083
        %v4238 = vmul.f32 %v535, %v4088
        %v4239 = vmul.f32 %v535, %v4093
        %v4240 = vmul.f32 %v535, %v4098
        %v4241 = vmul.f32 %v535, %v4103
        %v4242 = vmul.f32 %v535, %v4108
        %v4243 = vmul.f32 %v535, %v4113
        %v4244 = vmul.f32 %v535, %v4118
        %v4245 = vmul.f32 %v535, %v4123
        %v4246 = vmul.f32 %v535, %v4128
        %v4247 = vmul.f32 %v535, %v4133
        %v4248 = vmul.f32 %v535, %v4138
        %v4249 = vmul.f32 %v535, %v4143
        %v4250 = vmul.f32 %v535, %v4148
        %v4251 = vmul.f32 %v535, %v4153
        %v4252 = vmul.f32 %v535, %v4158
        %v4253 = vmul.f32 %v535, %v4163
        %v4254 = vmul.f32 %v535, %v4168
        %v4255 = vmul.f32 %v535, %v4173
        %v4256 = vmul.f32 %v535, %v4178
        %v4257 = vmul.f32 %v535, %v4183
        %v4258 = vmul.f32 %v535, %v4188
        %v4259 = vmul.f32 %v535, %v4193
        %v4260 = vmul.f32 %v535, %v4198
        %v4261 = vmul.f32 %v535, %v4203
        %v4262 = vmul.f32 %v535, %v4208
        %v4263 = vsel %vm4211, %v4083, %v4237
        %v4264 = vsel %vm4212, %v4088, %v4238
        %v4265 = vsel %vm4213, %v4093, %v4239
        %v4266 = vsel %vm4214, %v4098, %v4240
        %v4267 = vsel %vm4215, %v4103, %v4241
        %v4268 = vsel %vm4216, %v4108, %v4242
        %v4269 = vsel %vm4217, %v4113, %v4243
        %v4270 = vsel %vm4218, %v4118, %v4244
        %v4271 = vsel %vm4219, %v4123, %v4245
        %v4272 = vsel %vm4220, %v4128, %v4246
        %v4273 = vsel %vm4221, %v4133, %v4247
        %v4274 = vsel %vm4222, %v4138, %v4248
        %v4275 = vsel %vm4223, %v4143, %v4249
        %v4276 = vsel %vm4224, %v4148, %v4250
        %v4277 = vsel %vm4225, %v4153, %v4251
        %v4278 = vsel %vm4226, %v4158, %v4252
        %v4279 = vsel %vm4227, %v4163, %v4253
        %v4280 = vsel %vm4228, %v4168, %v4254
        %v4281 = vsel %vm4229, %v4173, %v4255
        %v4282 = vsel %vm4230, %v4178, %v4256
        %v4283 = vsel %vm4231, %v4183, %v4257
        %v4284 = vsel %vm4232, %v4188, %v4258
        %v4285 = vsel %vm4233, %v4193, %v4259
        %v4286 = vsel %vm4234, %v4198, %v4260
        %v4287 = vsel %vm4235, %v4203, %v4261
        %v4288 = vsel %vm4236, %v4208, %v4262
        %v4289 = vld [vmem:[%s6] sm:$0x3]
        %v4291 = vlaneseq
        %v4292 = vshrl.u32 %v4291, 7
        %v4293 = vsub.s32 0, %v4292
        %v4294 = vrot.slane %v4289, %v4293
        %v4295 = vlaneseq
        %v4296 = vshrl.u32 %v4295, 7
        %v4297 = vsub.s32 1, %v4296
        %v4298 = vrot.slane %v4289, %v4297
        %v4300 = vsel %vm1035, %v4298, 0
        %4302 = vmatprep.subr.mxu0 0.0
        %4303 = vmatpush1.msra.mxu0 %v4263
        %4304 = vmatprep.subr.mxu0 0.0
        %4305 = vmatpush1.msra.mxu0 %v4264
        %4306 = vmatprep.subr.mxu0 0.0
        %4307 = vmatpush1.msra.mxu0 %v4265
        %4308 = vmatprep.subr.mxu0 0.0
        %4309 = vmatpush1.msra.mxu0 %v4266
        %4310 = vmatprep.subr.mxu0 0.0
        %4311 = vmatpush1.msra.mxu0 %v4267
        %4312 = vmatprep.subr.mxu0 0.0
        %4313 = vmatpush1.msra.mxu0 %v4268
        %4314 = vmatprep.subr.mxu0 0.0
        %4315 = vmatpush1.msra.mxu0 %v4269
        %4316 = vmatprep.subr.mxu0 0.0
        %4317 = vmatpush1.msra.mxu0 %v4270
        %4318 = vmatprep.subr.mxu0 0.0
        %4319 = vmatpush1.msra.mxu0 %v4271
        %4320 = vmatprep.subr.mxu0 0.0
        %4321 = vmatpush1.msra.mxu0 %v4272
        %4322 = vmatprep.subr.mxu0 0.0
        %4323 = vmatpush1.msra.mxu0 %v4273
        %4324 = vmatprep.subr.mxu0 0.0
        %4325 = vmatpush1.msra.mxu0 %v4274
        %4326 = vmatprep.subr.mxu0 0.0
        %4327 = vmatpush1.msra.mxu0 %v4275
        %4328 = vmatprep.subr.mxu0 0.0
        %4329 = vmatpush1.msra.mxu0 %v4276
        %4330 = vmatprep.subr.mxu0 0.0
        %4331 = vmatpush1.msra.mxu0 %v4277
        %4332 = vmatprep.subr.mxu0 0.0
        %4333 = vmatpush1.msra.mxu0 %v4278
        %4334 = vmatprep.subr.mxu0 0.0
        %4335 = vmatpush1.msra.mxu0 %v4279
        %4336 = vmatprep.subr.mxu0 0.0
        %4337 = vmatpush1.msra.mxu0 %v4280
        %4338 = vmatprep.subr.mxu0 0.0
        %4339 = vmatpush1.msra.mxu0 %v4281
        %4340 = vmatprep.subr.mxu0 0.0
        %4341 = vmatpush1.msra.mxu0 %v4282
        %4342 = vmatprep.subr.mxu0 0.0
        %4343 = vmatpush1.msra.mxu0 %v4283
        %4344 = vmatprep.subr.mxu0 0.0
        %4345 = vmatpush1.msra.mxu0 %v4284
        %4346 = vmatprep.subr.mxu0 0.0
        %4347 = vmatpush1.msra.mxu0 %v4285
        %4348 = vmatprep.subr.mxu0 0.0
        %4349 = vmatpush1.msra.mxu0 %v4286
        %4350 = vmatprep.subr.mxu0 0.0
        %4351 = vmatpush1.msra.mxu0 %v4287
        %4352 = vmatprep.subr.mxu0 0.0
        %4353 = vmatpush1.msra.mxu0 %v4288
        %4354 = vmatprep.subr.mxu0 0.0
        %4355 = vmatpush1.msra.mxu0 0.0
        %4356 = vmatprep.subr.mxu0 0.0
        %4357 = vmatpush1.msra.mxu0 0.0
        %4358 = vmatprep.subr.mxu0 0.0
        %4359 = vmatpush1.msra.mxu0 0.0
        %4360 = vmatprep.subr.mxu0 0.0
        %4361 = vmatpush1.msra.mxu0 0.0
        %4362 = vmatprep.subr.mxu0 0.0
        %4363 = vmatpush1.msra.mxu0 0.0
        %4364 = vmatprep.subr.mxu0 0.0
        %4365 = vmatpush1.msra.mxu0 0.0
        %4366 = vmatprep.mubr.f32.mxu0 %v4300
        %4367 = vmatmul.mubr.f32.gmra.mrb[0].mxu0 %v4294
        %v4368 = vpop.f32.mrb[0].mxu0
        %v4369 = vadd.f32 %v1024, %v4368
        %v4370 = vpop.f32.mrb[0].mxu0
        %4371 = vdwg.mxu0
        %4372 = vst [vmem:[%s283 + $0x4] sm:$0x1] %v4369
        %v4373 = vld [vmem:[%s287 + $0x5] sm:$0x1]
        %v4374 = vld [vmem:[%s2] sm:$0xff]
        %v4375 = vld [vmem:[%s2 + $0x8] sm:$0xff]
        %v4376 = vld [vmem:[%s2 + $0x10] sm:$0xff]
        %v4377 = vld [vmem:[%s2 + $0x18] sm:$0xff]
        %v4378 = vld [vmem:[%s2 + $0x20] sm:$0xff]
        %v4379 = vld [vmem:[%s2 + $0x28] sm:$0xff]
        %v4380 = vld [vmem:[%s2 + $0x30] sm:$0xff]
        %v4381 = vld [vmem:[%s2 + $0x38] sm:$0xff]
        %v4382 = vld [vmem:[%s2 + $0x40] sm:$0xff]
        %v4383 = vld [vmem:[%s2 + $0x48] sm:$0xff]
        %v4384 = vld [vmem:[%s2 + $0x50] sm:$0xff]
        %v4385 = vld [vmem:[%s2 + $0x58] sm:$0xff]
        %v4386 = vld [vmem:[%s2 + $0x60] sm:$0xff]
        %v4387 = vld [vmem:[%s2 + $0x68] sm:$0xff]
        %v4388 = vld [vmem:[%s2 + $0x70] sm:$0xff]
        %v4389 = vld [vmem:[%s2 + $0x78] sm:$0xff]
        %4391 = vset.pattern.permute.xlu0 0
        %4392 = vperm.xlu0 %4391, %v4374
        %v4393 = vpop.permute.xlu0 %4392
        %4396 = vset.pattern.permute.xlu0 0
        %4397 = vperm.xlu0 %4396, %v4375
        %v4398 = vpop.permute.xlu0 %4397
        %4401 = vset.pattern.permute.xlu0 0
        %4402 = vperm.xlu0 %4401, %v4376
        %v4403 = vpop.permute.xlu0 %4402
        %4406 = vset.pattern.permute.xlu0 0
        %4407 = vperm.xlu0 %4406, %v4377
        %v4408 = vpop.permute.xlu0 %4407
        %4411 = vset.pattern.permute.xlu0 0
        %4412 = vperm.xlu0 %4411, %v4378
        %v4413 = vpop.permute.xlu0 %4412
        %4416 = vset.pattern.permute.xlu0 0
        %4417 = vperm.xlu0 %4416, %v4379
        %v4418 = vpop.permute.xlu0 %4417
        %4421 = vset.pattern.permute.xlu0 0
        %4422 = vperm.xlu0 %4421, %v4380
        %v4423 = vpop.permute.xlu0 %4422
        %4426 = vset.pattern.permute.xlu0 0
        %4427 = vperm.xlu0 %4426, %v4381
        %v4428 = vpop.permute.xlu0 %4427
        %4431 = vset.pattern.permute.xlu0 0
        %4432 = vperm.xlu0 %4431, %v4382
        %v4433 = vpop.permute.xlu0 %4432
        %4436 = vset.pattern.permute.xlu0 0
        %4437 = vperm.xlu0 %4436, %v4383
        %v4438 = vpop.permute.xlu0 %4437
        %4441 = vset.pattern.permute.xlu0 0
        %4442 = vperm.xlu0 %4441, %v4384
        %v4443 = vpop.permute.xlu0 %4442
        %4446 = vset.pattern.permute.xlu0 0
        %4447 = vperm.xlu0 %4446, %v4385
        %v4448 = vpop.permute.xlu0 %4447
        %4451 = vset.pattern.permute.xlu0 0
        %4452 = vperm.xlu0 %4451, %v4386
        %v4453 = vpop.permute.xlu0 %4452
        %4456 = vset.pattern.permute.xlu0 0
        %4457 = vperm.xlu0 %4456, %v4387
        %v4458 = vpop.permute.xlu0 %4457
        %4461 = vset.pattern.permute.xlu0 0
        %4462 = vperm.xlu0 %4461, %v4388
        %v4463 = vpop.permute.xlu0 %4462
        %4466 = vset.pattern.permute.xlu0 0
        %4467 = vperm.xlu0 %4466, %v4389
        %v4468 = vpop.permute.xlu0 %4467
        %v4470 = vlaneseq
        %v4471 = vshrl.u32 %v4470, 7
        %v4472 = vsub.s32 0, %v4471
        %v4473 = vrot.slane %v4373, %v4472
        %v4474 = vmul.f32 %v4393, %v4473
        %v4475 = vmul.f32 %v4398, %v4473
        %v4476 = vmul.f32 %v4403, %v4473
        %v4477 = vmul.f32 %v4408, %v4473
        %v4478 = vmul.f32 %v4413, %v4473
        %v4479 = vmul.f32 %v4418, %v4473
        %v4480 = vmul.f32 %v4423, %v4473
        %v4481 = vmul.f32 %v4428, %v4473
        %v4482 = vmul.f32 %v4433, %v4473
        %v4483 = vmul.f32 %v4438, %v4473
        %v4484 = vmul.f32 %v4443, %v4473
        %v4485 = vmul.f32 %v4448, %v4473
        %v4486 = vmul.f32 %v4453, %v4473
        %v4487 = vmul.f32 %v4458, %v4473
        %v4488 = vmul.f32 %v4463, %v4473
        %v4489 = vmul.f32 %v4468, %v4473
        %v4490 = vld [vmem:[%s3] sm:$0xff]
        %v4491 = vld [vmem:[%s3 + $0x8] sm:$0xff]
        %v4492 = vld [vmem:[%s3 + $0x10] sm:$0xff]
        %v4493 = vld [vmem:[%s3 + $0x18] sm:$0xff]
        %v4494 = vld [vmem:[%s3 + $0x20] sm:$0xff]
        %v4495 = vld [vmem:[%s3 + $0x28] sm:$0xff]
        %v4496 = vld [vmem:[%s3 + $0x30] sm:$0xff]
        %v4497 = vld [vmem:[%s3 + $0x38] sm:$0xff]
        %v4498 = vld [vmem:[%s3 + $0x40] sm:$0xff]
        %v4499 = vld [vmem:[%s3 + $0x48] sm:$0xff]
        %v4500 = vld [vmem:[%s3 + $0x50] sm:$0xff]
        %v4501 = vld [vmem:[%s3 + $0x58] sm:$0xff]
        %v4502 = vld [vmem:[%s3 + $0x60] sm:$0xff]
        %v4503 = vld [vmem:[%s3 + $0x68] sm:$0xff]
        %v4504 = vld [vmem:[%s3 + $0x70] sm:$0xff]
        %v4505 = vld [vmem:[%s3 + $0x78] sm:$0xff]
        %4507 = vset.pattern.permute.xlu0 0
        %4508 = vperm.xlu0 %4507, %v4490
        %v4509 = vpop.permute.xlu0 %4508
        %4512 = vset.pattern.permute.xlu0 0
        %4513 = vperm.xlu0 %4512, %v4491
        %v4514 = vpop.permute.xlu0 %4513
        %4517 = vset.pattern.permute.xlu0 0
        %4518 = vperm.xlu0 %4517, %v4492
        %v4519 = vpop.permute.xlu0 %4518
        %4522 = vset.pattern.permute.xlu0 0
        %4523 = vperm.xlu0 %4522, %v4493
        %v4524 = vpop.permute.xlu0 %4523
        %4527 = vset.pattern.permute.xlu0 0
        %4528 = vperm.xlu0 %4527, %v4494
        %v4529 = vpop.permute.xlu0 %4528
        %4532 = vset.pattern.permute.xlu0 0
        %4533 = vperm.xlu0 %4532, %v4495
        %v4534 = vpop.permute.xlu0 %4533
        %4537 = vset.pattern.permute.xlu0 0
        %4538 = vperm.xlu0 %4537, %v4496
        %v4539 = vpop.permute.xlu0 %4538
        %4542 = vset.pattern.permute.xlu0 0
        %4543 = vperm.xlu0 %4542, %v4497
        %v4544 = vpop.permute.xlu0 %4543
        %4547 = vset.pattern.permute.xlu0 0
        %4548 = vperm.xlu0 %4547, %v4498
        %v4549 = vpop.permute.xlu0 %4548
        %4552 = vset.pattern.permute.xlu0 0
        %4553 = vperm.xlu0 %4552, %v4499
        %v4554 = vpop.permute.xlu0 %4553
        %4557 = vset.pattern.permute.xlu0 0
        %4558 = vperm.xlu0 %4557, %v4500
        %v4559 = vpop.permute.xlu0 %4558
        %4562 = vset.pattern.permute.xlu0 0
        %4563 = vperm.xlu0 %4562, %v4501
        %v4564 = vpop.permute.xlu0 %4563
        %4567 = vset.pattern.permute.xlu0 0
        %4568 = vperm.xlu0 %4567, %v4502
        %v4569 = vpop.permute.xlu0 %4568
        %4572 = vset.pattern.permute.xlu0 0
        %4573 = vperm.xlu0 %4572, %v4503
        %v4574 = vpop.permute.xlu0 %4573
        %4577 = vset.pattern.permute.xlu0 0
        %4578 = vperm.xlu0 %4577, %v4504
        %v4579 = vpop.permute.xlu0 %4578
        %4582 = vset.pattern.permute.xlu0 0
        %4583 = vperm.xlu0 %4582, %v4505
        %v4584 = vpop.permute.xlu0 %4583
        %v4586 = vadd.f32 %v4474, %v4509
        %v4587 = vadd.f32 %v4475, %v4514
        %v4588 = vadd.f32 %v4476, %v4519
        %v4589 = vadd.f32 %v4477, %v4524
        %v4590 = vadd.f32 %v4478, %v4529
        %v4591 = vadd.f32 %v4479, %v4534
        %v4592 = vadd.f32 %v4480, %v4539
        %v4593 = vadd.f32 %v4481, %v4544
        %v4594 = vadd.f32 %v4482, %v4549
        %v4595 = vadd.f32 %v4483, %v4554
        %v4596 = vadd.f32 %v4484, %v4559
        %v4597 = vadd.f32 %v4485, %v4564
        %v4598 = vadd.f32 %v4486, %v4569
        %v4599 = vadd.f32 %v4487, %v4574
        %v4600 = vadd.f32 %v4488, %v4579
        %v4601 = vadd.f32 %v4489, %v4584
        %vm4602 = vcmp.gt.f32.partialorder %v4586, 0.0
        %vm4603 = vcmp.gt.f32.partialorder %v4587, 0.0
        %vm4604 = vcmp.gt.f32.partialorder %v4588, 0.0
        %vm4605 = vcmp.gt.f32.partialorder %v4589, 0.0
        %vm4606 = vcmp.gt.f32.partialorder %v4590, 0.0
        %vm4607 = vcmp.gt.f32.partialorder %v4591, 0.0
        %vm4608 = vcmp.gt.f32.partialorder %v4592, 0.0
        %vm4609 = vcmp.gt.f32.partialorder %v4593, 0.0
        %vm4610 = vcmp.gt.f32.partialorder %v4594, 0.0
        %vm4611 = vcmp.gt.f32.partialorder %v4595, 0.0
        %vm4612 = vcmp.gt.f32.partialorder %v4596, 0.0
        %vm4613 = vcmp.gt.f32.partialorder %v4597, 0.0
        %vm4614 = vcmp.gt.f32.partialorder %v4598, 0.0
        %vm4615 = vcmp.gt.f32.partialorder %v4599, 0.0
        %vm4616 = vcmp.gt.f32.partialorder %v4600, 0.0
        %vm4617 = vcmp.gt.f32.partialorder %v4601, 0.0
        %v4618 = vmul.f32 %v535, %v4586
        %v4619 = vmul.f32 %v535, %v4587
        %v4620 = vmul.f32 %v535, %v4588
        %v4621 = vmul.f32 %v535, %v4589
        %v4622 = vmul.f32 %v535, %v4590
        %v4623 = vmul.f32 %v535, %v4591
        %v4624 = vmul.f32 %v535, %v4592
        %v4625 = vmul.f32 %v535, %v4593
        %v4626 = vmul.f32 %v535, %v4594
        %v4627 = vmul.f32 %v535, %v4595
        %v4628 = vmul.f32 %v535, %v4596
        %v4629 = vmul.f32 %v535, %v4597
        %v4630 = vmul.f32 %v535, %v4598
        %v4631 = vmul.f32 %v535, %v4599
        %v4632 = vmul.f32 %v535, %v4600
        %v4633 = vmul.f32 %v535, %v4601
        %v4634 = vsel %vm4602, %v4586, %v4618
        %v4635 = vsel %vm4603, %v4587, %v4619
        %v4636 = vsel %vm4604, %v4588, %v4620
        %v4637 = vsel %vm4605, %v4589, %v4621
        %v4638 = vsel %vm4606, %v4590, %v4622
        %v4639 = vsel %vm4607, %v4591, %v4623
        %v4640 = vsel %vm4608, %v4592, %v4624
        %v4641 = vsel %vm4609, %v4593, %v4625
        %v4642 = vsel %vm4610, %v4594, %v4626
        %v4643 = vsel %vm4611, %v4595, %v4627
        %v4644 = vsel %vm4612, %v4596, %v4628
        %v4645 = vsel %vm4613, %v4597, %v4629
        %v4646 = vsel %vm4614, %v4598, %v4630
        %v4647 = vsel %vm4615, %v4599, %v4631
        %v4648 = vsel %vm4616, %v4600, %v4632
        %v4649 = vsel %vm4617, %v4601, %v4633
        %v4650 = vld [vmem:[%s4] sm:$0xff]
        %v4651 = vld [vmem:[%s4 + $0x8] sm:$0xff]
        %v4652 = vld [vmem:[%s4 + $0x10] sm:$0xff]
        %v4653 = vld [vmem:[%s4 + $0x18] sm:$0xff]
        %v4654 = vld [vmem:[%s4 + $0x20] sm:$0xff]
        %v4655 = vld [vmem:[%s4 + $0x28] sm:$0xff]
        %v4656 = vld [vmem:[%s4 + $0x30] sm:$0xff]
        %v4657 = vld [vmem:[%s4 + $0x38] sm:$0xff]
        %v4658 = vld [vmem:[%s4 + $0x40] sm:$0xff]
        %v4659 = vld [vmem:[%s4 + $0x48] sm:$0xff]
        %v4660 = vld [vmem:[%s4 + $0x50] sm:$0xff]
        %v4661 = vld [vmem:[%s4 + $0x58] sm:$0xff]
        %v4662 = vld [vmem:[%s4 + $0x60] sm:$0xff]
        %v4663 = vld [vmem:[%s4 + $0x68] sm:$0xff]
        %v4664 = vld [vmem:[%s4 + $0x70] sm:$0xff]
        %v4665 = vld [vmem:[%s4 + $0x78] sm:$0xff]
        %v4666 = vld [vmem:[%s4 + $0x80] sm:$0xff]
        %v4667 = vld [vmem:[%s4 + $0x88] sm:$0xff]
        %v4668 = vld [vmem:[%s4 + $0x90] sm:$0xff]
        %v4669 = vld [vmem:[%s4 + $0x98] sm:$0xff]
        %v4670 = vld [vmem:[%s4 + $0xa0] sm:$0xff]
        %v4671 = vld [vmem:[%s4 + $0xa8] sm:$0xff]
        %v4672 = vld [vmem:[%s4 + $0xb0] sm:$0xff]
        %v4673 = vld [vmem:[%s4 + $0xb8] sm:$0xff]
        %v4674 = vld [vmem:[%s4 + $0xc0] sm:$0xff]
        %v4675 = vld [vmem:[%s4 + $0xc8] sm:$0xff]
        %v4676 = vld [vmem:[%s5] sm:$0xff]
        %v4677 = vld [vmem:[%s5 + $0x8] sm:$0xff]
        %v4678 = vld [vmem:[%s5 + $0x10] sm:$0xff]
        %v4679 = vld [vmem:[%s5 + $0x18] sm:$0xff]
        %v4680 = vld [vmem:[%s5 + $0x20] sm:$0xff]
        %v4681 = vld [vmem:[%s5 + $0x28] sm:$0xff]
        %v4682 = vld [vmem:[%s5 + $0x30] sm:$0xff]
        %v4683 = vld [vmem:[%s5 + $0x38] sm:$0xff]
        %v4684 = vld [vmem:[%s5 + $0x40] sm:$0xff]
        %v4685 = vld [vmem:[%s5 + $0x48] sm:$0xff]
        %v4686 = vld [vmem:[%s5 + $0x50] sm:$0xff]
        %v4687 = vld [vmem:[%s5 + $0x58] sm:$0xff]
        %v4688 = vld [vmem:[%s5 + $0x60] sm:$0xff]
        %v4689 = vld [vmem:[%s5 + $0x68] sm:$0xff]
        %v4690 = vld [vmem:[%s5 + $0x70] sm:$0xff]
        %v4691 = vld [vmem:[%s5 + $0x78] sm:$0xff]
        %v4692 = vld [vmem:[%s5 + $0x80] sm:$0xff]
        %v4693 = vld [vmem:[%s5 + $0x88] sm:$0xff]
        %v4694 = vld [vmem:[%s5 + $0x90] sm:$0xff]
        %v4695 = vld [vmem:[%s5 + $0x98] sm:$0xff]
        %v4696 = vld [vmem:[%s5 + $0xa0] sm:$0xff]
        %v4697 = vld [vmem:[%s5 + $0xa8] sm:$0xff]
        %v4698 = vld [vmem:[%s5 + $0xb0] sm:$0xff]
        %v4699 = vld [vmem:[%s5 + $0xb8] sm:$0xff]
        %v4700 = vld [vmem:[%s5 + $0xc0] sm:$0xff]
        %v4701 = vld [vmem:[%s5 + $0xc8] sm:$0xff]
        %4703 = vset.pattern.permute.xlu0 0
        %4704 = vperm.xlu0 %4703, %v4676
        %v4705 = vpop.permute.xlu0 %4704
        %4708 = vset.pattern.permute.xlu0 0
        %4709 = vperm.xlu0 %4708, %v4677
        %v4710 = vpop.permute.xlu0 %4709
        %4713 = vset.pattern.permute.xlu0 0
        %4714 = vperm.xlu0 %4713, %v4678
        %v4715 = vpop.permute.xlu0 %4714
        %4718 = vset.pattern.permute.xlu0 0
        %4719 = vperm.xlu0 %4718, %v4679
        %v4720 = vpop.permute.xlu0 %4719
        %4723 = vset.pattern.permute.xlu0 0
        %4724 = vperm.xlu0 %4723, %v4680
        %v4725 = vpop.permute.xlu0 %4724
        %4728 = vset.pattern.permute.xlu0 0
        %4729 = vperm.xlu0 %4728, %v4681
        %v4730 = vpop.permute.xlu0 %4729
        %4733 = vset.pattern.permute.xlu0 0
        %4734 = vperm.xlu0 %4733, %v4682
        %v4735 = vpop.permute.xlu0 %4734
        %4738 = vset.pattern.permute.xlu0 0
        %4739 = vperm.xlu0 %4738, %v4683
        %v4740 = vpop.permute.xlu0 %4739
        %4743 = vset.pattern.permute.xlu0 0
        %4744 = vperm.xlu0 %4743, %v4684
        %v4745 = vpop.permute.xlu0 %4744
        %4748 = vset.pattern.permute.xlu0 0
        %4749 = vperm.xlu0 %4748, %v4685
        %v4750 = vpop.permute.xlu0 %4749
        %4753 = vset.pattern.permute.xlu0 0
        %4754 = vperm.xlu0 %4753, %v4686
        %v4755 = vpop.permute.xlu0 %4754
        %4758 = vset.pattern.permute.xlu0 0
        %4759 = vperm.xlu0 %4758, %v4687
        %v4760 = vpop.permute.xlu0 %4759
        %4763 = vset.pattern.permute.xlu0 0
        %4764 = vperm.xlu0 %4763, %v4688
        %v4765 = vpop.permute.xlu0 %4764
        %4768 = vset.pattern.permute.xlu0 0
        %4769 = vperm.xlu0 %4768, %v4689
        %v4770 = vpop.permute.xlu0 %4769
        %4773 = vset.pattern.permute.xlu0 0
        %4774 = vperm.xlu0 %4773, %v4690
        %v4775 = vpop.permute.xlu0 %4774
        %4778 = vset.pattern.permute.xlu0 0
        %4779 = vperm.xlu0 %4778, %v4691
        %v4780 = vpop.permute.xlu0 %4779
        %4783 = vset.pattern.permute.xlu0 0
        %4784 = vperm.xlu0 %4783, %v4692
        %v4785 = vpop.permute.xlu0 %4784
        %4788 = vset.pattern.permute.xlu0 0
        %4789 = vperm.xlu0 %4788, %v4693
        %v4790 = vpop.permute.xlu0 %4789
        %4793 = vset.pattern.permute.xlu0 0
        %4794 = vperm.xlu0 %4793, %v4694
        %v4795 = vpop.permute.xlu0 %4794
        %4798 = vset.pattern.permute.xlu0 0
        %4799 = vperm.xlu0 %4798, %v4695
        %v4800 = vpop.permute.xlu0 %4799
        %4803 = vset.pattern.permute.xlu0 0
        %4804 = vperm.xlu0 %4803, %v4696
        %v4805 = vpop.permute.xlu0 %4804
        %4808 = vset.pattern.permute.xlu0 0
        %4809 = vperm.xlu0 %4808, %v4697
        %v4810 = vpop.permute.xlu0 %4809
        %4813 = vset.pattern.permute.xlu0 0
        %4814 = vperm.xlu0 %4813, %v4698
        %v4815 = vpop.permute.xlu0 %4814
        %4818 = vset.pattern.permute.xlu0 0
        %4819 = vperm.xlu0 %4818, %v4699
        %v4820 = vpop.permute.xlu0 %4819
        %4823 = vset.pattern.permute.xlu0 0
        %4824 = vperm.xlu0 %4823, %v4700
        %v4825 = vpop.permute.xlu0 %4824
        %4828 = vset.pattern.permute.xlu0 0
        %4829 = vperm.xlu0 %4828, %v4701
        %v4830 = vpop.permute.xlu0 %4829
        %4832 = vmatprep.subr.mxu0 0.0
        %4833 = vmatpush1.msra.mxu0 %v4634
        %4834 = vmatprep.subr.mxu0 0.0
        %4835 = vmatpush1.msra.mxu0 %v4635
        %4836 = vmatprep.subr.mxu0 0.0
        %4837 = vmatpush1.msra.mxu0 %v4636
        %4838 = vmatprep.subr.mxu0 0.0
        %4839 = vmatpush1.msra.mxu0 %v4637
        %4840 = vmatprep.subr.mxu0 0.0
        %4841 = vmatpush1.msra.mxu0 %v4638
        %4842 = vmatprep.subr.mxu0 0.0
        %4843 = vmatpush1.msra.mxu0 %v4639
        %4844 = vmatprep.subr.mxu0 0.0
        %4845 = vmatpush1.msra.mxu0 %v4640
        %4846 = vmatprep.subr.mxu0 0.0
        %4847 = vmatpush1.msra.mxu0 %v4641
        %4848 = vmatprep.subr.mxu0 0.0
        %4849 = vmatpush1.msra.mxu0 %v4642
        %4850 = vmatprep.subr.mxu0 0.0
        %4851 = vmatpush1.msra.mxu0 %v4643
        %4852 = vmatprep.subr.mxu0 0.0
        %4853 = vmatpush1.msra.mxu0 %v4644
        %4854 = vmatprep.subr.mxu0 0.0
        %4855 = vmatpush1.msra.mxu0 %v4645
        %4856 = vmatprep.subr.mxu0 0.0
        %4857 = vmatpush1.msra.mxu0 %v4646
        %4858 = vmatprep.subr.mxu0 0.0
        %4859 = vmatpush1.msra.mxu0 %v4647
        %4860 = vmatprep.subr.mxu0 0.0
        %4861 = vmatpush1.msra.mxu0 %v4648
        %4862 = vmatprep.subr.mxu0 0.0
        %4863 = vmatpush1.msra.mxu0 %v4649
        %4864 = vmatprep.subr.mxu0 0.0
        %4865 = vmatpush1.msra.mxu0 0.0
        %4866 = vmatprep.subr.mxu0 0.0
        %4867 = vmatpush1.msra.mxu0 0.0
        %4868 = vmatprep.subr.mxu0 0.0
        %4869 = vmatpush1.msra.mxu0 0.0
        %4870 = vmatprep.subr.mxu0 0.0
        %4871 = vmatpush1.msra.mxu0 0.0
        %4872 = vmatprep.subr.mxu0 0.0
        %4873 = vmatpush1.msra.mxu0 0.0
        %4874 = vmatprep.subr.mxu0 0.0
        %4875 = vmatpush1.msra.mxu0 0.0
        %4876 = vmatprep.subr.mxu0 0.0
        %4877 = vmatpush1.msra.mxu0 0.0
        %4878 = vmatprep.subr.mxu0 0.0
        %4879 = vmatpush1.msra.mxu0 0.0
        %4880 = vmatprep.subr.mxu0 0.0
        %4881 = vmatpush1.msra.mxu0 0.0
        %4882 = vmatprep.subr.mxu0 0.0
        %4883 = vmatpush1.msra.mxu0 0.0
        %4884 = vmatprep.subr.mxu0 0.0
        %4885 = vmatpush1.msra.mxu0 0.0
        %4886 = vmatprep.subr.mxu0 0.0
        %4887 = vmatpush1.msra.mxu0 0.0
        %4888 = vmatprep.subr.mxu0 0.0
        %4889 = vmatpush1.msra.mxu0 0.0
        %4890 = vmatprep.subr.mxu0 0.0
        %4891 = vmatpush1.msra.mxu0 0.0
        %4892 = vmatprep.subr.mxu0 0.0
        %4893 = vmatpush1.msra.mxu0 0.0
        %4894 = vmatprep.subr.mxu0 0.0
        %4895 = vmatpush1.msra.mxu0 0.0
        %4896 = vmatprep.mubr.f32.mxu0 0.0
        %4897 = vmatmul.mubr.f32.gmra.mrb[0].mxu0 %v4650
        %v4898 = vpop.f32.mrb[0].mxu0
        %v4899 = vadd.f32 %v4705, %v4898
        %v4900 = vpop.f32.mrb[0].mxu0
        %4901 = vmatprep.mubr.f32.mxu0 0.0
        %4902 = vmatmul.mubr.f32.gmra.mrb[0].mxu0 %v4651
        %v4903 = vpop.f32.mrb[0].mxu0
        %v4904 = vadd.f32 %v4710, %v4903
        %v4905 = vpop.f32.mrb[0].mxu0
        %4906 = vmatprep.mubr.f32.mxu0 0.0
        %4907 = vmatmul.mubr.f32.gmra.mrb[0].mxu0 %v4652
        %v4908 = vpop.f32.mrb[0].mxu0
        %v4909 = vadd.f32 %v4715, %v4908
        %v4910 = vpop.f32.mrb[0].mxu0
        %4911 = vmatprep.mubr.f32.mxu0 0.0
        %4912 = vmatmul.mubr.f32.gmra.mrb[0].mxu0 %v4653
        %v4913 = vpop.f32.mrb[0].mxu0
        %v4914 = vadd.f32 %v4720, %v4913
        %v4915 = vpop.f32.mrb[0].mxu0
        %4916 = vmatprep.mubr.f32.mxu0 0.0
        %4917 = vmatmul.mubr.f32.gmra.mrb[0].mxu0 %v4654
        %v4918 = vpop.f32.mrb[0].mxu0
        %v4919 = vadd.f32 %v4725, %v4918
        %v4920 = vpop.f32.mrb[0].mxu0
        %4921 = vmatprep.mubr.f32.mxu0 0.0
        %4922 = vmatmul.mubr.f32.gmra.mrb[0].mxu0 %v4655
        %v4923 = vpop.f32.mrb[0].mxu0
        %v4924 = vadd.f32 %v4730, %v4923
        %v4925 = vpop.f32.mrb[0].mxu0
        %4926 = vmatprep.mubr.f32.mxu0 0.0
        %4927 = vmatmul.mubr.f32.gmra.mrb[0].mxu0 %v4656
        %v4928 = vpop.f32.mrb[0].mxu0
        %v4929 = vadd.f32 %v4735, %v4928
        %v4930 = vpop.f32.mrb[0].mxu0
        %4931 = vmatprep.mubr.f32.mxu0 0.0
        %4932 = vmatmul.mubr.f32.gmra.mrb[0].mxu0 %v4657
        %v4933 = vpop.f32.mrb[0].mxu0
        %v4934 = vadd.f32 %v4740, %v4933
        %v4935 = vpop.f32.mrb[0].mxu0
        %4936 = vmatprep.mubr.f32.mxu0 0.0
        %4937 = vmatmul.mubr.f32.gmra.mrb[0].mxu0 %v4658
        %v4938 = vpop.f32.mrb[0].mxu0
        %v4939 = vadd.f32 %v4745, %v4938
        %v4940 = vpop.f32.mrb[0].mxu0
        %4941 = vmatprep.mubr.f32.mxu0 0.0
        %4942 = vmatmul.mubr.f32.gmra.mrb[0].mxu0 %v4659
        %v4943 = vpop.f32.mrb[0].mxu0
        %v4944 = vadd.f32 %v4750, %v4943
        %v4945 = vpop.f32.mrb[0].mxu0
        %4946 = vmatprep.mubr.f32.mxu0 0.0
        %4947 = vmatmul.mubr.f32.gmra.mrb[0].mxu0 %v4660
        %v4948 = vpop.f32.mrb[0].mxu0
        %v4949 = vadd.f32 %v4755, %v4948
        %v4950 = vpop.f32.mrb[0].mxu0
        %4951 = vmatprep.mubr.f32.mxu0 0.0
        %4952 = vmatmul.mubr.f32.gmra.mrb[0].mxu0 %v4661
        %v4953 = vpop.f32.mrb[0].mxu0
        %v4954 = vadd.f32 %v4760, %v4953
        %v4955 = vpop.f32.mrb[0].mxu0
        %4956 = vmatprep.mubr.f32.mxu0 0.0
        %4957 = vmatmul.mubr.f32.gmra.mrb[0].mxu0 %v4662
        %v4958 = vpop.f32.mrb[0].mxu0
        %v4959 = vadd.f32 %v4765, %v4958
        %v4960 = vpop.f32.mrb[0].mxu0
        %4961 = vmatprep.mubr.f32.mxu0 0.0
        %4962 = vmatmul.mubr.f32.gmra.mrb[0].mxu0 %v4663
        %v4963 = vpop.f32.mrb[0].mxu0
        %v4964 = vadd.f32 %v4770, %v4963
        %v4965 = vpop.f32.mrb[0].mxu0
        %4966 = vmatprep.mubr.f32.mxu0 0.0
        %4967 = vmatmul.mubr.f32.gmra.mrb[0].mxu0 %v4664
        %v4968 = vpop.f32.mrb[0].mxu0
        %v4969 = vadd.f32 %v4775, %v4968
        %v4970 = vpop.f32.mrb[0].mxu0
        %4971 = vmatprep.mubr.f32.mxu0 0.0
        %4972 = vmatmul.mubr.f32.gmra.mrb[0].mxu0 %v4665
        %v4973 = vpop.f32.mrb[0].mxu0
        %v4974 = vadd.f32 %v4780, %v4973
        %v4975 = vpop.f32.mrb[0].mxu0
        %4976 = vmatprep.mubr.f32.mxu0 0.0
        %4977 = vmatmul.mubr.f32.gmra.mrb[0].mxu0 %v4666
        %v4978 = vpop.f32.mrb[0].mxu0
        %v4979 = vadd.f32 %v4785, %v4978
        %v4980 = vpop.f32.mrb[0].mxu0
        %4981 = vmatprep.mubr.f32.mxu0 0.0
        %4982 = vmatmul.mubr.f32.gmra.mrb[0].mxu0 %v4667
        %v4983 = vpop.f32.mrb[0].mxu0
        %v4984 = vadd.f32 %v4790, %v4983
        %v4985 = vpop.f32.mrb[0].mxu0
        %4986 = vmatprep.mubr.f32.mxu0 0.0
        %4987 = vmatmul.mubr.f32.gmra.mrb[0].mxu0 %v4668
        %v4988 = vpop.f32.mrb[0].mxu0
        %v4989 = vadd.f32 %v4795, %v4988
        %v4990 = vpop.f32.mrb[0].mxu0
        %4991 = vmatprep.mubr.f32.mxu0 0.0
        %4992 = vmatmul.mubr.f32.gmra.mrb[0].mxu0 %v4669
        %v4993 = vpop.f32.mrb[0].mxu0
        %v4994 = vadd.f32 %v4800, %v4993
        %v4995 = vpop.f32.mrb[0].mxu0
        %4996 = vmatprep.mubr.f32.mxu0 0.0
        %4997 = vmatmul.mubr.f32.gmra.mrb[0].mxu0 %v4670
        %v4998 = vpop.f32.mrb[0].mxu0
        %v4999 = vadd.f32 %v4805, %v4998
        %v5000 = vpop.f32.mrb[0].mxu0
        %5001 = vmatprep.mubr.f32.mxu0 0.0
        %5002 = vmatmul.mubr.f32.gmra.mrb[0].mxu0 %v4671
        %v5003 = vpop.f32.mrb[0].mxu0
        %v5004 = vadd.f32 %v4810, %v5003
        %v5005 = vpop.f32.mrb[0].mxu0
        %5006 = vmatprep.mubr.f32.mxu0 0.0
        %5007 = vmatmul.mubr.f32.gmra.mrb[0].mxu0 %v4672
        %v5008 = vpop.f32.mrb[0].mxu0
        %v5009 = vadd.f32 %v4815, %v5008
        %v5010 = vpop.f32.mrb[0].mxu0
        %5011 = vmatprep.mubr.f32.mxu0 0.0
        %5012 = vmatmul.mubr.f32.gmra.mrb[0].mxu0 %v4673
        %v5013 = vpop.f32.mrb[0].mxu0
        %v5014 = vadd.f32 %v4820, %v5013
        %v5015 = vpop.f32.mrb[0].mxu0
        %5016 = vmatprep.mubr.f32.mxu0 0.0
        %5017 = vmatmul.mubr.f32.gmra.mrb[0].mxu0 %v4674
        %v5018 = vpop.f32.mrb[0].mxu0
        %v5019 = vadd.f32 %v4825, %v5018
        %v5020 = vpop.f32.mrb[0].mxu0
        %5021 = vmatprep.mubr.f32.mxu0 0.0
        %5022 = vmatmul.mubr.f32.gmra.mrb[0].mxu0 %v4675
        %v5023 = vpop.f32.mrb[0].mxu0
        %v5024 = vadd.f32 %v4830, %v5023
        %v5025 = vpop.f32.mrb[0].mxu0
        %5026 = vdwg.mxu0
        %vm5027 = vcmp.gt.f32.partialorder %v4899, 0.0
        %vm5028 = vcmp.gt.f32.partialorder %v4904, 0.0
        %vm5029 = vcmp.gt.f32.partialorder %v4909, 0.0
        %vm5030 = vcmp.gt.f32.partialorder %v4914, 0.0
        %vm5031 = vcmp.gt.f32.partialorder %v4919, 0.0
        %vm5032 = vcmp.gt.f32.partialorder %v4924, 0.0
        %vm5033 = vcmp.gt.f32.partialorder %v4929, 0.0
        %vm5034 = vcmp.gt.f32.partialorder %v4934, 0.0
        %vm5035 = vcmp.gt.f32.partialorder %v4939, 0.0
        %vm5036 = vcmp.gt.f32.partialorder %v4944, 0.0
        %vm5037 = vcmp.gt.f32.partialorder %v4949, 0.0
        %vm5038 = vcmp.gt.f32.partialorder %v4954, 0.0
        %vm5039 = vcmp.gt.f32.partialorder %v4959, 0.0
        %vm5040 = vcmp.gt.f32.partialorder %v4964, 0.0
        %vm5041 = vcmp.gt.f32.partialorder %v4969, 0.0
        %vm5042 = vcmp.gt.f32.partialorder %v4974, 0.0
        %vm5043 = vcmp.gt.f32.partialorder %v4979, 0.0
        %vm5044 = vcmp.gt.f32.partialorder %v4984, 0.0
        %vm5045 = vcmp.gt.f32.partialorder %v4989, 0.0
        %vm5046 = vcmp.gt.f32.partialorder %v4994, 0.0
        %vm5047 = vcmp.gt.f32.partialorder %v4999, 0.0
        %vm5048 = vcmp.gt.f32.partialorder %v5004, 0.0
        %vm5049 = vcmp.gt.f32.partialorder %v5009, 0.0
        %vm5050 = vcmp.gt.f32.partialorder %v5014, 0.0
        %vm5051 = vcmp.gt.f32.partialorder %v5019, 0.0
        %vm5052 = vcmp.gt.f32.partialorder %v5024, 0.0
        %v5053 = vmul.f32 %v535, %v4899
        %v5054 = vmul.f32 %v535, %v4904
        %v5055 = vmul.f32 %v535, %v4909
        %v5056 = vmul.f32 %v535, %v4914
        %v5057 = vmul.f32 %v535, %v4919
        %v5058 = vmul.f32 %v535, %v4924
        %v5059 = vmul.f32 %v535, %v4929
        %v5060 = vmul.f32 %v535, %v4934
        %v5061 = vmul.f32 %v535, %v4939
        %v5062 = vmul.f32 %v535, %v4944
        %v5063 = vmul.f32 %v535, %v4949
        %v5064 = vmul.f32 %v535, %v4954
        %v5065 = vmul.f32 %v535, %v4959
        %v5066 = vmul.f32 %v535, %v4964
        %v5067 = vmul.f32 %v535, %v4969
        %v5068 = vmul.f32 %v535, %v4974
        %v5069 = vmul.f32 %v535, %v4979
        %v5070 = vmul.f32 %v535, %v4984
        %v5071 = vmul.f32 %v535, %v4989
        %v5072 = vmul.f32 %v535, %v4994
        %v5073 = vmul.f32 %v535, %v4999
        %v5074 = vmul.f32 %v535, %v5004
        %v5075 = vmul.f32 %v535, %v5009
        %v5076 = vmul.f32 %v535, %v5014
        %v5077 = vmul.f32 %v535, %v5019
        %v5078 = vmul.f32 %v535, %v5024
        %v5079 = vsel %vm5027, %v4899, %v5053
        %v5080 = vsel %vm5028, %v4904, %v5054
        %v5081 = vsel %vm5029, %v4909, %v5055
        %v5082 = vsel %vm5030, %v4914, %v5056
        %v5083 = vsel %vm5031, %v4919, %v5057
        %v5084 = vsel %vm5032, %v4924, %v5058
        %v5085 = vsel %vm5033, %v4929, %v5059
        %v5086 = vsel %vm5034, %v4934, %v5060
        %v5087 = vsel %vm5035, %v4939, %v5061
        %v5088 = vsel %vm5036, %v4944, %v5062
        %v5089 = vsel %vm5037, %v4949, %v5063
        %v5090 = vsel %vm5038, %v4954, %v5064
        %v5091 = vsel %vm5039, %v4959, %v5065
        %v5092 = vsel %vm5040, %v4964, %v5066
        %v5093 = vsel %vm5041, %v4969, %v5067
        %v5094 = vsel %vm5042, %v4974, %v5068
        %v5095 = vsel %vm5043, %v4979, %v5069
        %v5096 = vsel %vm5044, %v4984, %v5070
        %v5097 = vsel %vm5045, %v4989, %v5071
        %v5098 = vsel %vm5046, %v4994, %v5072
        %v5099 = vsel %vm5047, %v4999, %v5073
        %v5100 = vsel %vm5048, %v5004, %v5074
        %v5101 = vsel %vm5049, %v5009, %v5075
        %v5102 = vsel %vm5050, %v5014, %v5076
        %v5103 = vsel %vm5051, %v5019, %v5077
        %v5104 = vsel %vm5052, %v5024, %v5078
        %v5105 = vld [vmem:[%s6] sm:$0x3]
        %v5107 = vlaneseq
        %v5108 = vshrl.u32 %v5107, 7
        %v5109 = vsub.s32 0, %v5108
        %v5110 = vrot.slane %v5105, %v5109
        %v5111 = vlaneseq
        %v5112 = vshrl.u32 %v5111, 7
        %v5113 = vsub.s32 1, %v5112
        %v5114 = vrot.slane %v5105, %v5113
        %v5116 = vsel %vm1035, %v5114, 0
        %5118 = vmatprep.subr.mxu0 0.0
        %5119 = vmatpush1.msra.mxu0 %v5079
        %5120 = vmatprep.subr.mxu0 0.0
        %5121 = vmatpush1.msra.mxu0 %v5080
        %5122 = vmatprep.subr.mxu0 0.0
        %5123 = vmatpush1.msra.mxu0 %v5081
        %5124 = vmatprep.subr.mxu0 0.0
        %5125 = vmatpush1.msra.mxu0 %v5082
        %5126 = vmatprep.subr.mxu0 0.0
        %5127 = vmatpush1.msra.mxu0 %v5083
        %5128 = vmatprep.subr.mxu0 0.0
        %5129 = vmatpush1.msra.mxu0 %v5084
        %5130 = vmatprep.subr.mxu0 0.0
        %5131 = vmatpush1.msra.mxu0 %v5085
        %5132 = vmatprep.subr.mxu0 0.0
        %5133 = vmatpush1.msra.mxu0 %v5086
        %5134 = vmatprep.subr.mxu0 0.0
        %5135 = vmatpush1.msra.mxu0 %v5087
        %5136 = vmatprep.subr.mxu0 0.0
        %5137 = vmatpush1.msra.mxu0 %v5088
        %5138 = vmatprep.subr.mxu0 0.0
        %5139 = vmatpush1.msra.mxu0 %v5089
        %5140 = vmatprep.subr.mxu0 0.0
        %5141 = vmatpush1.msra.mxu0 %v5090
        %5142 = vmatprep.subr.mxu0 0.0
        %5143 = vmatpush1.msra.mxu0 %v5091
        %5144 = vmatprep.subr.mxu0 0.0
        %5145 = vmatpush1.msra.mxu0 %v5092
        %5146 = vmatprep.subr.mxu0 0.0
        %5147 = vmatpush1.msra.mxu0 %v5093
        %5148 = vmatprep.subr.mxu0 0.0
        %5149 = vmatpush1.msra.mxu0 %v5094
        %5150 = vmatprep.subr.mxu0 0.0
        %5151 = vmatpush1.msra.mxu0 %v5095
        %5152 = vmatprep.subr.mxu0 0.0
        %5153 = vmatpush1.msra.mxu0 %v5096
        %5154 = vmatprep.subr.mxu0 0.0
        %5155 = vmatpush1.msra.mxu0 %v5097
        %5156 = vmatprep.subr.mxu0 0.0
        %5157 = vmatpush1.msra.mxu0 %v5098
        %5158 = vmatprep.subr.mxu0 0.0
        %5159 = vmatpush1.msra.mxu0 %v5099
        %5160 = vmatprep.subr.mxu0 0.0
        %5161 = vmatpush1.msra.mxu0 %v5100
        %5162 = vmatprep.subr.mxu0 0.0
        %5163 = vmatpush1.msra.mxu0 %v5101
        %5164 = vmatprep.subr.mxu0 0.0
        %5165 = vmatpush1.msra.mxu0 %v5102
        %5166 = vmatprep.subr.mxu0 0.0
        %5167 = vmatpush1.msra.mxu0 %v5103
        %5168 = vmatprep.subr.mxu0 0.0
        %5169 = vmatpush1.msra.mxu0 %v5104
        %5170 = vmatprep.subr.mxu0 0.0
        %5171 = vmatpush1.msra.mxu0 0.0
        %5172 = vmatprep.subr.mxu0 0.0
        %5173 = vmatpush1.msra.mxu0 0.0
        %5174 = vmatprep.subr.mxu0 0.0
        %5175 = vmatpush1.msra.mxu0 0.0
        %5176 = vmatprep.subr.mxu0 0.0
        %5177 = vmatpush1.msra.mxu0 0.0
        %5178 = vmatprep.subr.mxu0 0.0
        %5179 = vmatpush1.msra.mxu0 0.0
        %5180 = vmatprep.subr.mxu0 0.0
        %5181 = vmatpush1.msra.mxu0 0.0
        %5182 = vmatprep.mubr.f32.mxu0 %v5116
        %5183 = vmatmul.mubr.f32.gmra.mrb[0].mxu0 %v5110
        %v5184 = vpop.f32.mrb[0].mxu0
        %v5185 = vadd.f32 %v1024, %v5184
        %v5186 = vpop.f32.mrb[0].mxu0
        %5187 = vdwg.mxu0
        %5188 = vst [vmem:[%s283 + $0x5] sm:$0x1] %v5185
        %v5189 = vld [vmem:[%s287 + $0x6] sm:$0x1]
        %v5190 = vld [vmem:[%s2] sm:$0xff]
        %v5191 = vld [vmem:[%s2 + $0x8] sm:$0xff]
        %v5192 = vld [vmem:[%s2 + $0x10] sm:$0xff]
        %v5193 = vld [vmem:[%s2 + $0x18] sm:$0xff]
        %v5194 = vld [vmem:[%s2 + $0x20] sm:$0xff]
        %v5195 = vld [vmem:[%s2 + $0x28] sm:$0xff]
        %v5196 = vld [vmem:[%s2 + $0x30] sm:$0xff]
        %v5197 = vld [vmem:[%s2 + $0x38] sm:$0xff]
        %v5198 = vld [vmem:[%s2 + $0x40] sm:$0xff]
        %v5199 = vld [vmem:[%s2 + $0x48] sm:$0xff]
        %v5200 = vld [vmem:[%s2 + $0x50] sm:$0xff]
        %v5201 = vld [vmem:[%s2 + $0x58] sm:$0xff]
        %v5202 = vld [vmem:[%s2 + $0x60] sm:$0xff]
        %v5203 = vld [vmem:[%s2 + $0x68] sm:$0xff]
        %v5204 = vld [vmem:[%s2 + $0x70] sm:$0xff]
        %v5205 = vld [vmem:[%s2 + $0x78] sm:$0xff]
        %5207 = vset.pattern.permute.xlu0 0
        %5208 = vperm.xlu0 %5207, %v5190
        %v5209 = vpop.permute.xlu0 %5208
        %5212 = vset.pattern.permute.xlu0 0
        %5213 = vperm.xlu0 %5212, %v5191
        %v5214 = vpop.permute.xlu0 %5213
        %5217 = vset.pattern.permute.xlu0 0
        %5218 = vperm.xlu0 %5217, %v5192
        %v5219 = vpop.permute.xlu0 %5218
        %5222 = vset.pattern.permute.xlu0 0
        %5223 = vperm.xlu0 %5222, %v5193
        %v5224 = vpop.permute.xlu0 %5223
        %5227 = vset.pattern.permute.xlu0 0
        %5228 = vperm.xlu0 %5227, %v5194
        %v5229 = vpop.permute.xlu0 %5228
        %5232 = vset.pattern.permute.xlu0 0
        %5233 = vperm.xlu0 %5232, %v5195
        %v5234 = vpop.permute.xlu0 %5233
        %5237 = vset.pattern.permute.xlu0 0
        %5238 = vperm.xlu0 %5237, %v5196
        %v5239 = vpop.permute.xlu0 %5238
        %5242 = vset.pattern.permute.xlu0 0
        %5243 = vperm.xlu0 %5242, %v5197
        %v5244 = vpop.permute.xlu0 %5243
        %5247 = vset.pattern.permute.xlu0 0
        %5248 = vperm.xlu0 %5247, %v5198
        %v5249 = vpop.permute.xlu0 %5248
        %5252 = vset.pattern.permute.xlu0 0
        %5253 = vperm.xlu0 %5252, %v5199
        %v5254 = vpop.permute.xlu0 %5253
        %5257 = vset.pattern.permute.xlu0 0
        %5258 = vperm.xlu0 %5257, %v5200
        %v5259 = vpop.permute.xlu0 %5258
        %5262 = vset.pattern.permute.xlu0 0
        %5263 = vperm.xlu0 %5262, %v5201
        %v5264 = vpop.permute.xlu0 %5263
        %5267 = vset.pattern.permute.xlu0 0
        %5268 = vperm.xlu0 %5267, %v5202
        %v5269 = vpop.permute.xlu0 %5268
        %5272 = vset.pattern.permute.xlu0 0
        %5273 = vperm.xlu0 %5272, %v5203
        %v5274 = vpop.permute.xlu0 %5273
        %5277 = vset.pattern.permute.xlu0 0
        %5278 = vperm.xlu0 %5277, %v5204
        %v5279 = vpop.permute.xlu0 %5278
        %5282 = vset.pattern.permute.xlu0 0
        %5283 = vperm.xlu0 %5282, %v5205
        %v5284 = vpop.permute.xlu0 %5283
        %v5286 = vlaneseq
        %v5287 = vshrl.u32 %v5286, 7
        %v5288 = vsub.s32 0, %v5287
        %v5289 = vrot.slane %v5189, %v5288
        %v5290 = vmul.f32 %v5209, %v5289
        %v5291 = vmul.f32 %v5214, %v5289
        %v5292 = vmul.f32 %v5219, %v5289
        %v5293 = vmul.f32 %v5224, %v5289
        %v5294 = vmul.f32 %v5229, %v5289
        %v5295 = vmul.f32 %v5234, %v5289
        %v5296 = vmul.f32 %v5239, %v5289
        %v5297 = vmul.f32 %v5244, %v5289
        %v5298 = vmul.f32 %v5249, %v5289
        %v5299 = vmul.f32 %v5254, %v5289
        %v5300 = vmul.f32 %v5259, %v5289
        %v5301 = vmul.f32 %v5264, %v5289
        %v5302 = vmul.f32 %v5269, %v5289
        %v5303 = vmul.f32 %v5274, %v5289
        %v5304 = vmul.f32 %v5279, %v5289
        %v5305 = vmul.f32 %v5284, %v5289
        %v5306 = vld [vmem:[%s3] sm:$0xff]
        %v5307 = vld [vmem:[%s3 + $0x8] sm:$0xff]
        %v5308 = vld [vmem:[%s3 + $0x10] sm:$0xff]
        %v5309 = vld [vmem:[%s3 + $0x18] sm:$0xff]
        %v5310 = vld [vmem:[%s3 + $0x20] sm:$0xff]
        %v5311 = vld [vmem:[%s3 + $0x28] sm:$0xff]
        %v5312 = vld [vmem:[%s3 + $0x30] sm:$0xff]
        %v5313 = vld [vmem:[%s3 + $0x38] sm:$0xff]
        %v5314 = vld [vmem:[%s3 + $0x40] sm:$0xff]
        %v5315 = vld [vmem:[%s3 + $0x48] sm:$0xff]
        %v5316 = vld [vmem:[%s3 + $0x50] sm:$0xff]
        %v5317 = vld [vmem:[%s3 + $0x58] sm:$0xff]
        %v5318 = vld [vmem:[%s3 + $0x60] sm:$0xff]
        %v5319 = vld [vmem:[%s3 + $0x68] sm:$0xff]
        %v5320 = vld [vmem:[%s3 + $0x70] sm:$0xff]
        %v5321 = vld [vmem:[%s3 + $0x78] sm:$0xff]
        %5323 = vset.pattern.permute.xlu0 0
        %5324 = vperm.xlu0 %5323, %v5306
        %v5325 = vpop.permute.xlu0 %5324
        %5328 = vset.pattern.permute.xlu0 0
        %5329 = vperm.xlu0 %5328, %v5307
        %v5330 = vpop.permute.xlu0 %5329
        %5333 = vset.pattern.permute.xlu0 0
        %5334 = vperm.xlu0 %5333, %v5308
        %v5335 = vpop.permute.xlu0 %5334
        %5338 = vset.pattern.permute.xlu0 0
        %5339 = vperm.xlu0 %5338, %v5309
        %v5340 = vpop.permute.xlu0 %5339
        %5343 = vset.pattern.permute.xlu0 0
        %5344 = vperm.xlu0 %5343, %v5310
        %v5345 = vpop.permute.xlu0 %5344
        %5348 = vset.pattern.permute.xlu0 0
        %5349 = vperm.xlu0 %5348, %v5311
        %v5350 = vpop.permute.xlu0 %5349
        %5353 = vset.pattern.permute.xlu0 0
        %5354 = vperm.xlu0 %5353, %v5312
        %v5355 = vpop.permute.xlu0 %5354
        %5358 = vset.pattern.permute.xlu0 0
        %5359 = vperm.xlu0 %5358, %v5313
        %v5360 = vpop.permute.xlu0 %5359
        %5363 = vset.pattern.permute.xlu0 0
        %5364 = vperm.xlu0 %5363, %v5314
        %v5365 = vpop.permute.xlu0 %5364
        %5368 = vset.pattern.permute.xlu0 0
        %5369 = vperm.xlu0 %5368, %v5315
        %v5370 = vpop.permute.xlu0 %5369
        %5373 = vset.pattern.permute.xlu0 0
        %5374 = vperm.xlu0 %5373, %v5316
        %v5375 = vpop.permute.xlu0 %5374
        %5378 = vset.pattern.permute.xlu0 0
        %5379 = vperm.xlu0 %5378, %v5317
        %v5380 = vpop.permute.xlu0 %5379
        %5383 = vset.pattern.permute.xlu0 0
        %5384 = vperm.xlu0 %5383, %v5318
        %v5385 = vpop.permute.xlu0 %5384
        %5388 = vset.pattern.permute.xlu0 0
        %5389 = vperm.xlu0 %5388, %v5319
        %v5390 = vpop.permute.xlu0 %5389
        %5393 = vset.pattern.permute.xlu0 0
        %5394 = vperm.xlu0 %5393, %v5320
        %v5395 = vpop.permute.xlu0 %5394
        %5398 = vset.pattern.permute.xlu0 0
        %5399 = vperm.xlu0 %5398, %v5321
        %v5400 = vpop.permute.xlu0 %5399
        %v5402 = vadd.f32 %v5290, %v5325
        %v5403 = vadd.f32 %v5291, %v5330
        %v5404 = vadd.f32 %v5292, %v5335
        %v5405 = vadd.f32 %v5293, %v5340
        %v5406 = vadd.f32 %v5294, %v5345
        %v5407 = vadd.f32 %v5295, %v5350
        %v5408 = vadd.f32 %v5296, %v5355
        %v5409 = vadd.f32 %v5297, %v5360
        %v5410 = vadd.f32 %v5298, %v5365
        %v5411 = vadd.f32 %v5299, %v5370
        %v5412 = vadd.f32 %v5300, %v5375
        %v5413 = vadd.f32 %v5301, %v5380
        %v5414 = vadd.f32 %v5302, %v5385
        %v5415 = vadd.f32 %v5303, %v5390
        %v5416 = vadd.f32 %v5304, %v5395
        %v5417 = vadd.f32 %v5305, %v5400
        %vm5418 = vcmp.gt.f32.partialorder %v5402, 0.0
        %vm5419 = vcmp.gt.f32.partialorder %v5403, 0.0
        %vm5420 = vcmp.gt.f32.partialorder %v5404, 0.0
        %vm5421 = vcmp.gt.f32.partialorder %v5405, 0.0
        %vm5422 = vcmp.gt.f32.partialorder %v5406, 0.0
        %vm5423 = vcmp.gt.f32.partialorder %v5407, 0.0
        %vm5424 = vcmp.gt.f32.partialorder %v5408, 0.0
        %vm5425 = vcmp.gt.f32.partialorder %v5409, 0.0
        %vm5426 = vcmp.gt.f32.partialorder %v5410, 0.0
        %vm5427 = vcmp.gt.f32.partialorder %v5411, 0.0
        %vm5428 = vcmp.gt.f32.partialorder %v5412, 0.0
        %vm5429 = vcmp.gt.f32.partialorder %v5413, 0.0
        %vm5430 = vcmp.gt.f32.partialorder %v5414, 0.0
        %vm5431 = vcmp.gt.f32.partialorder %v5415, 0.0
        %vm5432 = vcmp.gt.f32.partialorder %v5416, 0.0
        %vm5433 = vcmp.gt.f32.partialorder %v5417, 0.0
        %v5434 = vmul.f32 %v535, %v5402
        %v5435 = vmul.f32 %v535, %v5403
        %v5436 = vmul.f32 %v535, %v5404
        %v5437 = vmul.f32 %v535, %v5405
        %v5438 = vmul.f32 %v535, %v5406
        %v5439 = vmul.f32 %v535, %v5407
        %v5440 = vmul.f32 %v535, %v5408
        %v5441 = vmul.f32 %v535, %v5409
        %v5442 = vmul.f32 %v535, %v5410
        %v5443 = vmul.f32 %v535, %v5411
        %v5444 = vmul.f32 %v535, %v5412
        %v5445 = vmul.f32 %v535, %v5413
        %v5446 = vmul.f32 %v535, %v5414
        %v5447 = vmul.f32 %v535, %v5415
        %v5448 = vmul.f32 %v535, %v5416
        %v5449 = vmul.f32 %v535, %v5417
        %v5450 = vsel %vm5418, %v5402, %v5434
        %v5451 = vsel %vm5419, %v5403, %v5435
        %v5452 = vsel %vm5420, %v5404, %v5436
        %v5453 = vsel %vm5421, %v5405, %v5437
        %v5454 = vsel %vm5422, %v5406, %v5438
        %v5455 = vsel %vm5423, %v5407, %v5439
        %v5456 = vsel %vm5424, %v5408, %v5440
        %v5457 = vsel %vm5425, %v5409, %v5441
        %v5458 = vsel %vm5426, %v5410, %v5442
        %v5459 = vsel %vm5427, %v5411, %v5443
        %v5460 = vsel %vm5428, %v5412, %v5444
        %v5461 = vsel %vm5429, %v5413, %v5445
        %v5462 = vsel %vm5430, %v5414, %v5446
        %v5463 = vsel %vm5431, %v5415, %v5447
        %v5464 = vsel %vm5432, %v5416, %v5448
        %v5465 = vsel %vm5433, %v5417, %v5449
        %v5466 = vld [vmem:[%s4] sm:$0xff]
        %v5467 = vld [vmem:[%s4 + $0x8] sm:$0xff]
        %v5468 = vld [vmem:[%s4 + $0x10] sm:$0xff]
        %v5469 = vld [vmem:[%s4 + $0x18] sm:$0xff]
        %v5470 = vld [vmem:[%s4 + $0x20] sm:$0xff]
        %v5471 = vld [vmem:[%s4 + $0x28] sm:$0xff]
        %v5472 = vld [vmem:[%s4 + $0x30] sm:$0xff]
        %v5473 = vld [vmem:[%s4 + $0x38] sm:$0xff]
        %v5474 = vld [vmem:[%s4 + $0x40] sm:$0xff]
        %v5475 = vld [vmem:[%s4 + $0x48] sm:$0xff]
        %v5476 = vld [vmem:[%s4 + $0x50] sm:$0xff]
        %v5477 = vld [vmem:[%s4 + $0x58] sm:$0xff]
        %v5478 = vld [vmem:[%s4 + $0x60] sm:$0xff]
        %v5479 = vld [vmem:[%s4 + $0x68] sm:$0xff]
        %v5480 = vld [vmem:[%s4 + $0x70] sm:$0xff]
        %v5481 = vld [vmem:[%s4 + $0x78] sm:$0xff]
        %v5482 = vld [vmem:[%s4 + $0x80] sm:$0xff]
        %v5483 = vld [vmem:[%s4 + $0x88] sm:$0xff]
        %v5484 = vld [vmem:[%s4 + $0x90] sm:$0xff]
        %v5485 = vld [vmem:[%s4 + $0x98] sm:$0xff]
        %v5486 = vld [vmem:[%s4 + $0xa0] sm:$0xff]
        %v5487 = vld [vmem:[%s4 + $0xa8] sm:$0xff]
        %v5488 = vld [vmem:[%s4 + $0xb0] sm:$0xff]
        %v5489 = vld [vmem:[%s4 + $0xb8] sm:$0xff]
        %v5490 = vld [vmem:[%s4 + $0xc0] sm:$0xff]
        %v5491 = vld [vmem:[%s4 + $0xc8] sm:$0xff]
        %v5492 = vld [vmem:[%s5] sm:$0xff]
        %v5493 = vld [vmem:[%s5 + $0x8] sm:$0xff]
        %v5494 = vld [vmem:[%s5 + $0x10] sm:$0xff]
        %v5495 = vld [vmem:[%s5 + $0x18] sm:$0xff]
        %v5496 = vld [vmem:[%s5 + $0x20] sm:$0xff]
        %v5497 = vld [vmem:[%s5 + $0x28] sm:$0xff]
        %v5498 = vld [vmem:[%s5 + $0x30] sm:$0xff]
        %v5499 = vld [vmem:[%s5 + $0x38] sm:$0xff]
        %v5500 = vld [vmem:[%s5 + $0x40] sm:$0xff]
        %v5501 = vld [vmem:[%s5 + $0x48] sm:$0xff]
        %v5502 = vld [vmem:[%s5 + $0x50] sm:$0xff]
        %v5503 = vld [vmem:[%s5 + $0x58] sm:$0xff]
        %v5504 = vld [vmem:[%s5 + $0x60] sm:$0xff]
        %v5505 = vld [vmem:[%s5 + $0x68] sm:$0xff]
        %v5506 = vld [vmem:[%s5 + $0x70] sm:$0xff]
        %v5507 = vld [vmem:[%s5 + $0x78] sm:$0xff]
        %v5508 = vld [vmem:[%s5 + $0x80] sm:$0xff]
        %v5509 = vld [vmem:[%s5 + $0x88] sm:$0xff]
        %v5510 = vld [vmem:[%s5 + $0x90] sm:$0xff]
        %v5511 = vld [vmem:[%s5 + $0x98] sm:$0xff]
        %v5512 = vld [vmem:[%s5 + $0xa0] sm:$0xff]
        %v5513 = vld [vmem:[%s5 + $0xa8] sm:$0xff]
        %v5514 = vld [vmem:[%s5 + $0xb0] sm:$0xff]
        %v5515 = vld [vmem:[%s5 + $0xb8] sm:$0xff]
        %v5516 = vld [vmem:[%s5 + $0xc0] sm:$0xff]
        %v5517 = vld [vmem:[%s5 + $0xc8] sm:$0xff]
        %5519 = vset.pattern.permute.xlu0 0
        %5520 = vperm.xlu0 %5519, %v5492
        %v5521 = vpop.permute.xlu0 %5520
        %5524 = vset.pattern.permute.xlu0 0
        %5525 = vperm.xlu0 %5524, %v5493
        %v5526 = vpop.permute.xlu0 %5525
        %5529 = vset.pattern.permute.xlu0 0
        %5530 = vperm.xlu0 %5529, %v5494
        %v5531 = vpop.permute.xlu0 %5530
        %5534 = vset.pattern.permute.xlu0 0
        %5535 = vperm.xlu0 %5534, %v5495
        %v5536 = vpop.permute.xlu0 %5535
        %5539 = vset.pattern.permute.xlu0 0
        %5540 = vperm.xlu0 %5539, %v5496
        %v5541 = vpop.permute.xlu0 %5540
        %5544 = vset.pattern.permute.xlu0 0
        %5545 = vperm.xlu0 %5544, %v5497
        %v5546 = vpop.permute.xlu0 %5545
        %5549 = vset.pattern.permute.xlu0 0
        %5550 = vperm.xlu0 %5549, %v5498
        %v5551 = vpop.permute.xlu0 %5550
        %5554 = vset.pattern.permute.xlu0 0
        %5555 = vperm.xlu0 %5554, %v5499
        %v5556 = vpop.permute.xlu0 %5555
        %5559 = vset.pattern.permute.xlu0 0
        %5560 = vperm.xlu0 %5559, %v5500
        %v5561 = vpop.permute.xlu0 %5560
        %5564 = vset.pattern.permute.xlu0 0
        %5565 = vperm.xlu0 %5564, %v5501
        %v5566 = vpop.permute.xlu0 %5565
        %5569 = vset.pattern.permute.xlu0 0
        %5570 = vperm.xlu0 %5569, %v5502
        %v5571 = vpop.permute.xlu0 %5570
        %5574 = vset.pattern.permute.xlu0 0
        %5575 = vperm.xlu0 %5574, %v5503
        %v5576 = vpop.permute.xlu0 %5575
        %5579 = vset.pattern.permute.xlu0 0
        %5580 = vperm.xlu0 %5579, %v5504
        %v5581 = vpop.permute.xlu0 %5580
        %5584 = vset.pattern.permute.xlu0 0
        %5585 = vperm.xlu0 %5584, %v5505
        %v5586 = vpop.permute.xlu0 %5585
        %5589 = vset.pattern.permute.xlu0 0
        %5590 = vperm.xlu0 %5589, %v5506
        %v5591 = vpop.permute.xlu0 %5590
        %5594 = vset.pattern.permute.xlu0 0
        %5595 = vperm.xlu0 %5594, %v5507
        %v5596 = vpop.permute.xlu0 %5595
        %5599 = vset.pattern.permute.xlu0 0
        %5600 = vperm.xlu0 %5599, %v5508
        %v5601 = vpop.permute.xlu0 %5600
        %5604 = vset.pattern.permute.xlu0 0
        %5605 = vperm.xlu0 %5604, %v5509
        %v5606 = vpop.permute.xlu0 %5605
        %5609 = vset.pattern.permute.xlu0 0
        %5610 = vperm.xlu0 %5609, %v5510
        %v5611 = vpop.permute.xlu0 %5610
        %5614 = vset.pattern.permute.xlu0 0
        %5615 = vperm.xlu0 %5614, %v5511
        %v5616 = vpop.permute.xlu0 %5615
        %5619 = vset.pattern.permute.xlu0 0
        %5620 = vperm.xlu0 %5619, %v5512
        %v5621 = vpop.permute.xlu0 %5620
        %5624 = vset.pattern.permute.xlu0 0
        %5625 = vperm.xlu0 %5624, %v5513
        %v5626 = vpop.permute.xlu0 %5625
        %5629 = vset.pattern.permute.xlu0 0
        %5630 = vperm.xlu0 %5629, %v5514
        %v5631 = vpop.permute.xlu0 %5630
        %5634 = vset.pattern.permute.xlu0 0
        %5635 = vperm.xlu0 %5634, %v5515
        %v5636 = vpop.permute.xlu0 %5635
        %5639 = vset.pattern.permute.xlu0 0
        %5640 = vperm.xlu0 %5639, %v5516
        %v5641 = vpop.permute.xlu0 %5640
        %5644 = vset.pattern.permute.xlu0 0
        %5645 = vperm.xlu0 %5644, %v5517
        %v5646 = vpop.permute.xlu0 %5645
        %5648 = vmatprep.subr.mxu0 0.0
        %5649 = vmatpush1.msra.mxu0 %v5450
        %5650 = vmatprep.subr.mxu0 0.0
        %5651 = vmatpush1.msra.mxu0 %v5451
        %5652 = vmatprep.subr.mxu0 0.0
        %5653 = vmatpush1.msra.mxu0 %v5452
        %5654 = vmatprep.subr.mxu0 0.0
        %5655 = vmatpush1.msra.mxu0 %v5453
        %5656 = vmatprep.subr.mxu0 0.0
        %5657 = vmatpush1.msra.mxu0 %v5454
        %5658 = vmatprep.subr.mxu0 0.0
        %5659 = vmatpush1.msra.mxu0 %v5455
        %5660 = vmatprep.subr.mxu0 0.0
        %5661 = vmatpush1.msra.mxu0 %v5456
        %5662 = vmatprep.subr.mxu0 0.0
        %5663 = vmatpush1.msra.mxu0 %v5457
        %5664 = vmatprep.subr.mxu0 0.0
        %5665 = vmatpush1.msra.mxu0 %v5458
        %5666 = vmatprep.subr.mxu0 0.0
        %5667 = vmatpush1.msra.mxu0 %v5459
        %5668 = vmatprep.subr.mxu0 0.0
        %5669 = vmatpush1.msra.mxu0 %v5460
        %5670 = vmatprep.subr.mxu0 0.0
        %5671 = vmatpush1.msra.mxu0 %v5461
        %5672 = vmatprep.subr.mxu0 0.0
        %5673 = vmatpush1.msra.mxu0 %v5462
        %5674 = vmatprep.subr.mxu0 0.0
        %5675 = vmatpush1.msra.mxu0 %v5463
        %5676 = vmatprep.subr.mxu0 0.0
        %5677 = vmatpush1.msra.mxu0 %v5464
        %5678 = vmatprep.subr.mxu0 0.0
        %5679 = vmatpush1.msra.mxu0 %v5465
        %5680 = vmatprep.subr.mxu0 0.0
        %5681 = vmatpush1.msra.mxu0 0.0
        %5682 = vmatprep.subr.mxu0 0.0
        %5683 = vmatpush1.msra.mxu0 0.0
        %5684 = vmatprep.subr.mxu0 0.0
        %5685 = vmatpush1.msra.mxu0 0.0
        %5686 = vmatprep.subr.mxu0 0.0
        %5687 = vmatpush1.msra.mxu0 0.0
        %5688 = vmatprep.subr.mxu0 0.0
        %5689 = vmatpush1.msra.mxu0 0.0
        %5690 = vmatprep.subr.mxu0 0.0
        %5691 = vmatpush1.msra.mxu0 0.0
        %5692 = vmatprep.subr.mxu0 0.0
        %5693 = vmatpush1.msra.mxu0 0.0
        %5694 = vmatprep.subr.mxu0 0.0
        %5695 = vmatpush1.msra.mxu0 0.0
        %5696 = vmatprep.subr.mxu0 0.0
        %5697 = vmatpush1.msra.mxu0 0.0
        %5698 = vmatprep.subr.mxu0 0.0
        %5699 = vmatpush1.msra.mxu0 0.0
        %5700 = vmatprep.subr.mxu0 0.0
        %5701 = vmatpush1.msra.mxu0 0.0
        %5702 = vmatprep.subr.mxu0 0.0
        %5703 = vmatpush1.msra.mxu0 0.0
        %5704 = vmatprep.subr.mxu0 0.0
        %5705 = vmatpush1.msra.mxu0 0.0
        %5706 = vmatprep.subr.mxu0 0.0
        %5707 = vmatpush1.msra.mxu0 0.0
        %5708 = vmatprep.subr.mxu0 0.0
        %5709 = vmatpush1.msra.mxu0 0.0
        %5710 = vmatprep.subr.mxu0 0.0
        %5711 = vmatpush1.msra.mxu0 0.0
        %5712 = vmatprep.mubr.f32.mxu0 0.0
        %5713 = vmatmul.mubr.f32.gmra.mrb[0].mxu0 %v5466
        %v5714 = vpop.f32.mrb[0].mxu0
        %v5715 = vadd.f32 %v5521, %v5714
        %v5716 = vpop.f32.mrb[0].mxu0
        %5717 = vmatprep.mubr.f32.mxu0 0.0
        %5718 = vmatmul.mubr.f32.gmra.mrb[0].mxu0 %v5467
        %v5719 = vpop.f32.mrb[0].mxu0
        %v5720 = vadd.f32 %v5526, %v5719
        %v5721 = vpop.f32.mrb[0].mxu0
        %5722 = vmatprep.mubr.f32.mxu0 0.0
        %5723 = vmatmul.mubr.f32.gmra.mrb[0].mxu0 %v5468
        %v5724 = vpop.f32.mrb[0].mxu0
        %v5725 = vadd.f32 %v5531, %v5724
        %v5726 = vpop.f32.mrb[0].mxu0
        %5727 = vmatprep.mubr.f32.mxu0 0.0
        %5728 = vmatmul.mubr.f32.gmra.mrb[0].mxu0 %v5469
        %v5729 = vpop.f32.mrb[0].mxu0
        %v5730 = vadd.f32 %v5536, %v5729
        %v5731 = vpop.f32.mrb[0].mxu0
        %5732 = vmatprep.mubr.f32.mxu0 0.0
        %5733 = vmatmul.mubr.f32.gmra.mrb[0].mxu0 %v5470
        %v5734 = vpop.f32.mrb[0].mxu0
        %v5735 = vadd.f32 %v5541, %v5734
        %v5736 = vpop.f32.mrb[0].mxu0
        %5737 = vmatprep.mubr.f32.mxu0 0.0
        %5738 = vmatmul.mubr.f32.gmra.mrb[0].mxu0 %v5471
        %v5739 = vpop.f32.mrb[0].mxu0
        %v5740 = vadd.f32 %v5546, %v5739
        %v5741 = vpop.f32.mrb[0].mxu0
        %5742 = vmatprep.mubr.f32.mxu0 0.0
        %5743 = vmatmul.mubr.f32.gmra.mrb[0].mxu0 %v5472
        %v5744 = vpop.f32.mrb[0].mxu0
        %v5745 = vadd.f32 %v5551, %v5744
        %v5746 = vpop.f32.mrb[0].mxu0
        %5747 = vmatprep.mubr.f32.mxu0 0.0
        %5748 = vmatmul.mubr.f32.gmra.mrb[0].mxu0 %v5473
        %v5749 = vpop.f32.mrb[0].mxu0
        %v5750 = vadd.f32 %v5556, %v5749
        %v5751 = vpop.f32.mrb[0].mxu0
        %5752 = vmatprep.mubr.f32.mxu0 0.0
        %5753 = vmatmul.mubr.f32.gmra.mrb[0].mxu0 %v5474
        %v5754 = vpop.f32.mrb[0].mxu0
        %v5755 = vadd.f32 %v5561, %v5754
        %v5756 = vpop.f32.mrb[0].mxu0
        %5757 = vmatprep.mubr.f32.mxu0 0.0
        %5758 = vmatmul.mubr.f32.gmra.mrb[0].mxu0 %v5475
        %v5759 = vpop.f32.mrb[0].mxu0
        %v5760 = vadd.f32 %v5566, %v5759
        %v5761 = vpop.f32.mrb[0].mxu0
        %5762 = vmatprep.mubr.f32.mxu0 0.0
        %5763 = vmatmul.mubr.f32.gmra.mrb[0].mxu0 %v5476
        %v5764 = vpop.f32.mrb[0].mxu0
        %v5765 = vadd.f32 %v5571, %v5764
        %v5766 = vpop.f32.mrb[0].mxu0
        %5767 = vmatprep.mubr.f32.mxu0 0.0
        %5768 = vmatmul.mubr.f32.gmra.mrb[0].mxu0 %v5477
        %v5769 = vpop.f32.mrb[0].mxu0
        %v5770 = vadd.f32 %v5576, %v5769
        %v5771 = vpop.f32.mrb[0].mxu0
        %5772 = vmatprep.mubr.f32.mxu0 0.0
        %5773 = vmatmul.mubr.f32.gmra.mrb[0].mxu0 %v5478
        %v5774 = vpop.f32.mrb[0].mxu0
        %v5775 = vadd.f32 %v5581, %v5774
        %v5776 = vpop.f32.mrb[0].mxu0
        %5777 = vmatprep.mubr.f32.mxu0 0.0
        %5778 = vmatmul.mubr.f32.gmra.mrb[0].mxu0 %v5479
        %v5779 = vpop.f32.mrb[0].mxu0
        %v5780 = vadd.f32 %v5586, %v5779
        %v5781 = vpop.f32.mrb[0].mxu0
        %5782 = vmatprep.mubr.f32.mxu0 0.0
        %5783 = vmatmul.mubr.f32.gmra.mrb[0].mxu0 %v5480
        %v5784 = vpop.f32.mrb[0].mxu0
        %v5785 = vadd.f32 %v5591, %v5784
        %v5786 = vpop.f32.mrb[0].mxu0
        %5787 = vmatprep.mubr.f32.mxu0 0.0
        %5788 = vmatmul.mubr.f32.gmra.mrb[0].mxu0 %v5481
        %v5789 = vpop.f32.mrb[0].mxu0
        %v5790 = vadd.f32 %v5596, %v5789
        %v5791 = vpop.f32.mrb[0].mxu0
        %5792 = vmatprep.mubr.f32.mxu0 0.0
        %5793 = vmatmul.mubr.f32.gmra.mrb[0].mxu0 %v5482
        %v5794 = vpop.f32.mrb[0].mxu0
        %v5795 = vadd.f32 %v5601, %v5794
        %v5796 = vpop.f32.mrb[0].mxu0
        %5797 = vmatprep.mubr.f32.mxu0 0.0
        %5798 = vmatmul.mubr.f32.gmra.mrb[0].mxu0 %v5483
        %v5799 = vpop.f32.mrb[0].mxu0
        %v5800 = vadd.f32 %v5606, %v5799
        %v5801 = vpop.f32.mrb[0].mxu0
        %5802 = vmatprep.mubr.f32.mxu0 0.0
        %5803 = vmatmul.mubr.f32.gmra.mrb[0].mxu0 %v5484
        %v5804 = vpop.f32.mrb[0].mxu0
        %v5805 = vadd.f32 %v5611, %v5804
        %v5806 = vpop.f32.mrb[0].mxu0
        %5807 = vmatprep.mubr.f32.mxu0 0.0
        %5808 = vmatmul.mubr.f32.gmra.mrb[0].mxu0 %v5485
        %v5809 = vpop.f32.mrb[0].mxu0
        %v5810 = vadd.f32 %v5616, %v5809
        %v5811 = vpop.f32.mrb[0].mxu0
        %5812 = vmatprep.mubr.f32.mxu0 0.0
        %5813 = vmatmul.mubr.f32.gmra.mrb[0].mxu0 %v5486
        %v5814 = vpop.f32.mrb[0].mxu0
        %v5815 = vadd.f32 %v5621, %v5814
        %v5816 = vpop.f32.mrb[0].mxu0
        %5817 = vmatprep.mubr.f32.mxu0 0.0
        %5818 = vmatmul.mubr.f32.gmra.mrb[0].mxu0 %v5487
        %v5819 = vpop.f32.mrb[0].mxu0
        %v5820 = vadd.f32 %v5626, %v5819
        %v5821 = vpop.f32.mrb[0].mxu0
        %5822 = vmatprep.mubr.f32.mxu0 0.0
        %5823 = vmatmul.mubr.f32.gmra.mrb[0].mxu0 %v5488
        %v5824 = vpop.f32.mrb[0].mxu0
        %v5825 = vadd.f32 %v5631, %v5824
        %v5826 = vpop.f32.mrb[0].mxu0
        %5827 = vmatprep.mubr.f32.mxu0 0.0
        %5828 = vmatmul.mubr.f32.gmra.mrb[0].mxu0 %v5489
        %v5829 = vpop.f32.mrb[0].mxu0
        %v5830 = vadd.f32 %v5636, %v5829
        %v5831 = vpop.f32.mrb[0].mxu0
        %5832 = vmatprep.mubr.f32.mxu0 0.0
        %5833 = vmatmul.mubr.f32.gmra.mrb[0].mxu0 %v5490
        %v5834 = vpop.f32.mrb[0].mxu0
        %v5835 = vadd.f32 %v5641, %v5834
        %v5836 = vpop.f32.mrb[0].mxu0
        %5837 = vmatprep.mubr.f32.mxu0 0.0
        %5838 = vmatmul.mubr.f32.gmra.mrb[0].mxu0 %v5491
        %v5839 = vpop.f32.mrb[0].mxu0
        %v5840 = vadd.f32 %v5646, %v5839
        %v5841 = vpop.f32.mrb[0].mxu0
        %5842 = vdwg.mxu0
        %vm5843 = vcmp.gt.f32.partialorder %v5715, 0.0
        %vm5844 = vcmp.gt.f32.partialorder %v5720, 0.0
        %vm5845 = vcmp.gt.f32.partialorder %v5725, 0.0
        %vm5846 = vcmp.gt.f32.partialorder %v5730, 0.0
        %vm5847 = vcmp.gt.f32.partialorder %v5735, 0.0
        %vm5848 = vcmp.gt.f32.partialorder %v5740, 0.0
        %vm5849 = vcmp.gt.f32.partialorder %v5745, 0.0
        %vm5850 = vcmp.gt.f32.partialorder %v5750, 0.0
        %vm5851 = vcmp.gt.f32.partialorder %v5755, 0.0
        %vm5852 = vcmp.gt.f32.partialorder %v5760, 0.0
        %vm5853 = vcmp.gt.f32.partialorder %v5765, 0.0
        %vm5854 = vcmp.gt.f32.partialorder %v5770, 0.0
        %vm5855 = vcmp.gt.f32.partialorder %v5775, 0.0
        %vm5856 = vcmp.gt.f32.partialorder %v5780, 0.0
        %vm5857 = vcmp.gt.f32.partialorder %v5785, 0.0
        %vm5858 = vcmp.gt.f32.partialorder %v5790, 0.0
        %vm5859 = vcmp.gt.f32.partialorder %v5795, 0.0
        %vm5860 = vcmp.gt.f32.partialorder %v5800, 0.0
        %vm5861 = vcmp.gt.f32.partialorder %v5805, 0.0
        %vm5862 = vcmp.gt.f32.partialorder %v5810, 0.0
        %vm5863 = vcmp.gt.f32.partialorder %v5815, 0.0
        %vm5864 = vcmp.gt.f32.partialorder %v5820, 0.0
        %vm5865 = vcmp.gt.f32.partialorder %v5825, 0.0
        %vm5866 = vcmp.gt.f32.partialorder %v5830, 0.0
        %vm5867 = vcmp.gt.f32.partialorder %v5835, 0.0
        %vm5868 = vcmp.gt.f32.partialorder %v5840, 0.0
        %v5869 = vmul.f32 %v535, %v5715
        %v5870 = vmul.f32 %v535, %v5720
        %v5871 = vmul.f32 %v535, %v5725
        %v5872 = vmul.f32 %v535, %v5730
        %v5873 = vmul.f32 %v535, %v5735
        %v5874 = vmul.f32 %v535, %v5740
        %v5875 = vmul.f32 %v535, %v5745
        %v5876 = vmul.f32 %v535, %v5750
        %v5877 = vmul.f32 %v535, %v5755
        %v5878 = vmul.f32 %v535, %v5760
        %v5879 = vmul.f32 %v535, %v5765
        %v5880 = vmul.f32 %v535, %v5770
        %v5881 = vmul.f32 %v535, %v5775
        %v5882 = vmul.f32 %v535, %v5780
        %v5883 = vmul.f32 %v535, %v5785
        %v5884 = vmul.f32 %v535, %v5790
        %v5885 = vmul.f32 %v535, %v5795
        %v5886 = vmul.f32 %v535, %v5800
        %v5887 = vmul.f32 %v535, %v5805
        %v5888 = vmul.f32 %v535, %v5810
        %v5889 = vmul.f32 %v535, %v5815
        %v5890 = vmul.f32 %v535, %v5820
        %v5891 = vmul.f32 %v535, %v5825
        %v5892 = vmul.f32 %v535, %v5830
        %v5893 = vmul.f32 %v535, %v5835
        %v5894 = vmul.f32 %v535, %v5840
        %v5895 = vsel %vm5843, %v5715, %v5869
        %v5896 = vsel %vm5844, %v5720, %v5870
        %v5897 = vsel %vm5845, %v5725, %v5871
        %v5898 = vsel %vm5846, %v5730, %v5872
        %v5899 = vsel %vm5847, %v5735, %v5873
        %v5900 = vsel %vm5848, %v5740, %v5874
        %v5901 = vsel %vm5849, %v5745, %v5875
        %v5902 = vsel %vm5850, %v5750, %v5876
        %v5903 = vsel %vm5851, %v5755, %v5877
        %v5904 = vsel %vm5852, %v5760, %v5878
        %v5905 = vsel %vm5853, %v5765, %v5879
        %v5906 = vsel %vm5854, %v5770, %v5880
        %v5907 = vsel %vm5855, %v5775, %v5881
        %v5908 = vsel %vm5856, %v5780, %v5882
        %v5909 = vsel %vm5857, %v5785, %v5883
        %v5910 = vsel %vm5858, %v5790, %v5884
        %v5911 = vsel %vm5859, %v5795, %v5885
        %v5912 = vsel %vm5860, %v5800, %v5886
        %v5913 = vsel %vm5861, %v5805, %v5887
        %v5914 = vsel %vm5862, %v5810, %v5888
        %v5915 = vsel %vm5863, %v5815, %v5889
        %v5916 = vsel %vm5864, %v5820, %v5890
        %v5917 = vsel %vm5865, %v5825, %v5891
        %v5918 = vsel %vm5866, %v5830, %v5892
        %v5919 = vsel %vm5867, %v5835, %v5893
        %v5920 = vsel %vm5868, %v5840, %v5894
        %v5921 = vld [vmem:[%s6] sm:$0x3]
        %v5923 = vlaneseq
        %v5924 = vshrl.u32 %v5923, 7
        %v5925 = vsub.s32 0, %v5924
        %v5926 = vrot.slane %v5921, %v5925
        %v5927 = vlaneseq
        %v5928 = vshrl.u32 %v5927, 7
        %v5929 = vsub.s32 1, %v5928
        %v5930 = vrot.slane %v5921, %v5929
        %v5932 = vsel %vm1035, %v5930, 0
        %5934 = vmatprep.subr.mxu0 0.0
        %5935 = vmatpush1.msra.mxu0 %v5895
        %5936 = vmatprep.subr.mxu0 0.0
        %5937 = vmatpush1.msra.mxu0 %v5896
        %5938 = vmatprep.subr.mxu0 0.0
        %5939 = vmatpush1.msra.mxu0 %v5897
        %5940 = vmatprep.subr.mxu0 0.0
        %5941 = vmatpush1.msra.mxu0 %v5898
        %5942 = vmatprep.subr.mxu0 0.0
        %5943 = vmatpush1.msra.mxu0 %v5899
        %5944 = vmatprep.subr.mxu0 0.0
        %5945 = vmatpush1.msra.mxu0 %v5900
        %5946 = vmatprep.subr.mxu0 0.0
        %5947 = vmatpush1.msra.mxu0 %v5901
        %5948 = vmatprep.subr.mxu0 0.0
        %5949 = vmatpush1.msra.mxu0 %v5902
        %5950 = vmatprep.subr.mxu0 0.0
        %5951 = vmatpush1.msra.mxu0 %v5903
        %5952 = vmatprep.subr.mxu0 0.0
        %5953 = vmatpush1.msra.mxu0 %v5904
        %5954 = vmatprep.subr.mxu0 0.0
        %5955 = vmatpush1.msra.mxu0 %v5905
        %5956 = vmatprep.subr.mxu0 0.0
        %5957 = vmatpush1.msra.mxu0 %v5906
        %5958 = vmatprep.subr.mxu0 0.0
        %5959 = vmatpush1.msra.mxu0 %v5907
        %5960 = vmatprep.subr.mxu0 0.0
        %5961 = vmatpush1.msra.mxu0 %v5908
        %5962 = vmatprep.subr.mxu0 0.0
        %5963 = vmatpush1.msra.mxu0 %v5909
        %5964 = vmatprep.subr.mxu0 0.0
        %5965 = vmatpush1.msra.mxu0 %v5910
        %5966 = vmatprep.subr.mxu0 0.0
        %5967 = vmatpush1.msra.mxu0 %v5911
        %5968 = vmatprep.subr.mxu0 0.0
        %5969 = vmatpush1.msra.mxu0 %v5912
        %5970 = vmatprep.subr.mxu0 0.0
        %5971 = vmatpush1.msra.mxu0 %v5913
        %5972 = vmatprep.subr.mxu0 0.0
        %5973 = vmatpush1.msra.mxu0 %v5914
        %5974 = vmatprep.subr.mxu0 0.0
        %5975 = vmatpush1.msra.mxu0 %v5915
        %5976 = vmatprep.subr.mxu0 0.0
        %5977 = vmatpush1.msra.mxu0 %v5916
        %5978 = vmatprep.subr.mxu0 0.0
        %5979 = vmatpush1.msra.mxu0 %v5917
        %5980 = vmatprep.subr.mxu0 0.0
        %5981 = vmatpush1.msra.mxu0 %v5918
        %5982 = vmatprep.subr.mxu0 0.0
        %5983 = vmatpush1.msra.mxu0 %v5919
        %5984 = vmatprep.subr.mxu0 0.0
        %5985 = vmatpush1.msra.mxu0 %v5920
        %5986 = vmatprep.subr.mxu0 0.0
        %5987 = vmatpush1.msra.mxu0 0.0
        %5988 = vmatprep.subr.mxu0 0.0
        %5989 = vmatpush1.msra.mxu0 0.0
        %5990 = vmatprep.subr.mxu0 0.0
        %5991 = vmatpush1.msra.mxu0 0.0
        %5992 = vmatprep.subr.mxu0 0.0
        %5993 = vmatpush1.msra.mxu0 0.0
        %5994 = vmatprep.subr.mxu0 0.0
        %5995 = vmatpush1.msra.mxu0 0.0
        %5996 = vmatprep.subr.mxu0 0.0
        %5997 = vmatpush1.msra.mxu0 0.0
        %5998 = vmatprep.mubr.f32.mxu0 %v5932
        %5999 = vmatmul.mubr.f32.gmra.mrb[0].mxu0 %v5926
        %v6000 = vpop.f32.mrb[0].mxu0
        %v6001 = vadd.f32 %v1024, %v6000
        %v6002 = vpop.f32.mrb[0].mxu0
        %6003 = vdwg.mxu0
        %6004 = vst [vmem:[%s283 + $0x6] sm:$0x1] %v6001
        %v6005 = vld [vmem:[%s287 + $0x7] sm:$0x1]
        %v6006 = vld [vmem:[%s2] sm:$0xff]
        %v6007 = vld [vmem:[%s2 + $0x8] sm:$0xff]
        %v6008 = vld [vmem:[%s2 + $0x10] sm:$0xff]
        %v6009 = vld [vmem:[%s2 + $0x18] sm:$0xff]
        %v6010 = vld [vmem:[%s2 + $0x20] sm:$0xff]
        %v6011 = vld [vmem:[%s2 + $0x28] sm:$0xff]
        %v6012 = vld [vmem:[%s2 + $0x30] sm:$0xff]
        %v6013 = vld [vmem:[%s2 + $0x38] sm:$0xff]
        %v6014 = vld [vmem:[%s2 + $0x40] sm:$0xff]
        %v6015 = vld [vmem:[%s2 + $0x48] sm:$0xff]
        %v6016 = vld [vmem:[%s2 + $0x50] sm:$0xff]
        %v6017 = vld [vmem:[%s2 + $0x58] sm:$0xff]
        %v6018 = vld [vmem:[%s2 + $0x60] sm:$0xff]
        %v6019 = vld [vmem:[%s2 + $0x68] sm:$0xff]
        %v6020 = vld [vmem:[%s2 + $0x70] sm:$0xff]
        %v6021 = vld [vmem:[%s2 + $0x78] sm:$0xff]
        %6023 = vset.pattern.permute.xlu0 0
        %6024 = vperm.xlu0 %6023, %v6006
        %v6025 = vpop.permute.xlu0 %6024
        %6028 = vset.pattern.permute.xlu0 0
        %6029 = vperm.xlu0 %6028, %v6007
        %v6030 = vpop.permute.xlu0 %6029
        %6033 = vset.pattern.permute.xlu0 0
        %6034 = vperm.xlu0 %6033, %v6008
        %v6035 = vpop.permute.xlu0 %6034
        %6038 = vset.pattern.permute.xlu0 0
        %6039 = vperm.xlu0 %6038, %v6009
        %v6040 = vpop.permute.xlu0 %6039
        %6043 = vset.pattern.permute.xlu0 0
        %6044 = vperm.xlu0 %6043, %v6010
        %v6045 = vpop.permute.xlu0 %6044
        %6048 = vset.pattern.permute.xlu0 0
        %6049 = vperm.xlu0 %6048, %v6011
        %v6050 = vpop.permute.xlu0 %6049
        %6053 = vset.pattern.permute.xlu0 0
        %6054 = vperm.xlu0 %6053, %v6012
        %v6055 = vpop.permute.xlu0 %6054
        %6058 = vset.pattern.permute.xlu0 0
        %6059 = vperm.xlu0 %6058, %v6013
        %v6060 = vpop.permute.xlu0 %6059
        %6063 = vset.pattern.permute.xlu0 0
        %6064 = vperm.xlu0 %6063, %v6014
        %v6065 = vpop.permute.xlu0 %6064
        %6068 = vset.pattern.permute.xlu0 0
        %6069 = vperm.xlu0 %6068, %v6015
        %v6070 = vpop.permute.xlu0 %6069
        %6073 = vset.pattern.permute.xlu0 0
        %6074 = vperm.xlu0 %6073, %v6016
        %v6075 = vpop.permute.xlu0 %6074
        %6078 = vset.pattern.permute.xlu0 0
        %6079 = vperm.xlu0 %6078, %v6017
        %v6080 = vpop.permute.xlu0 %6079
        %6083 = vset.pattern.permute.xlu0 0
        %6084 = vperm.xlu0 %6083, %v6018
        %v6085 = vpop.permute.xlu0 %6084
        %6088 = vset.pattern.permute.xlu0 0
        %6089 = vperm.xlu0 %6088, %v6019
        %v6090 = vpop.permute.xlu0 %6089
        %6093 = vset.pattern.permute.xlu0 0
        %6094 = vperm.xlu0 %6093, %v6020
        %v6095 = vpop.permute.xlu0 %6094
        %6098 = vset.pattern.permute.xlu0 0
        %6099 = vperm.xlu0 %6098, %v6021
        %v6100 = vpop.permute.xlu0 %6099
        %v6102 = vlaneseq
        %v6103 = vshrl.u32 %v6102, 7
        %v6104 = vsub.s32 0, %v6103
        %v6105 = vrot.slane %v6005, %v6104
        %v6106 = vmul.f32 %v6025, %v6105
        %v6107 = vmul.f32 %v6030, %v6105
        %v6108 = vmul.f32 %v6035, %v6105
        %v6109 = vmul.f32 %v6040, %v6105
        %v6110 = vmul.f32 %v6045, %v6105
        %v6111 = vmul.f32 %v6050, %v6105
        %v6112 = vmul.f32 %v6055, %v6105
        %v6113 = vmul.f32 %v6060, %v6105
        %v6114 = vmul.f32 %v6065, %v6105
        %v6115 = vmul.f32 %v6070, %v6105
        %v6116 = vmul.f32 %v6075, %v6105
        %v6117 = vmul.f32 %v6080, %v6105
        %v6118 = vmul.f32 %v6085, %v6105
        %v6119 = vmul.f32 %v6090, %v6105
        %v6120 = vmul.f32 %v6095, %v6105
        %v6121 = vmul.f32 %v6100, %v6105
        %v6122 = vld [vmem:[%s3] sm:$0xff]
        %v6123 = vld [vmem:[%s3 + $0x8] sm:$0xff]
        %v6124 = vld [vmem:[%s3 + $0x10] sm:$0xff]
        %v6125 = vld [vmem:[%s3 + $0x18] sm:$0xff]
        %v6126 = vld [vmem:[%s3 + $0x20] sm:$0xff]
        %v6127 = vld [vmem:[%s3 + $0x28] sm:$0xff]
        %v6128 = vld [vmem:[%s3 + $0x30] sm:$0xff]
        %v6129 = vld [vmem:[%s3 + $0x38] sm:$0xff]
        %v6130 = vld [vmem:[%s3 + $0x40] sm:$0xff]
        %v6131 = vld [vmem:[%s3 + $0x48] sm:$0xff]
        %v6132 = vld [vmem:[%s3 + $0x50] sm:$0xff]
        %v6133 = vld [vmem:[%s3 + $0x58] sm:$0xff]
        %v6134 = vld [vmem:[%s3 + $0x60] sm:$0xff]
        %v6135 = vld [vmem:[%s3 + $0x68] sm:$0xff]
        %v6136 = vld [vmem:[%s3 + $0x70] sm:$0xff]
        %v6137 = vld [vmem:[%s3 + $0x78] sm:$0xff]
        %6139 = vset.pattern.permute.xlu0 0
        %6140 = vperm.xlu0 %6139, %v6122
        %v6141 = vpop.permute.xlu0 %6140
        %6144 = vset.pattern.permute.xlu0 0
        %6145 = vperm.xlu0 %6144, %v6123
        %v6146 = vpop.permute.xlu0 %6145
        %6149 = vset.pattern.permute.xlu0 0
        %6150 = vperm.xlu0 %6149, %v6124
        %v6151 = vpop.permute.xlu0 %6150
        %6154 = vset.pattern.permute.xlu0 0
        %6155 = vperm.xlu0 %6154, %v6125
        %v6156 = vpop.permute.xlu0 %6155
        %6159 = vset.pattern.permute.xlu0 0
        %6160 = vperm.xlu0 %6159, %v6126
        %v6161 = vpop.permute.xlu0 %6160
        %6164 = vset.pattern.permute.xlu0 0
        %6165 = vperm.xlu0 %6164, %v6127
        %v6166 = vpop.permute.xlu0 %6165
        %6169 = vset.pattern.permute.xlu0 0
        %6170 = vperm.xlu0 %6169, %v6128
        %v6171 = vpop.permute.xlu0 %6170
        %6174 = vset.pattern.permute.xlu0 0
        %6175 = vperm.xlu0 %6174, %v6129
        %v6176 = vpop.permute.xlu0 %6175
        %6179 = vset.pattern.permute.xlu0 0
        %6180 = vperm.xlu0 %6179, %v6130
        %v6181 = vpop.permute.xlu0 %6180
        %6184 = vset.pattern.permute.xlu0 0
        %6185 = vperm.xlu0 %6184, %v6131
        %v6186 = vpop.permute.xlu0 %6185
        %6189 = vset.pattern.permute.xlu0 0
        %6190 = vperm.xlu0 %6189, %v6132
        %v6191 = vpop.permute.xlu0 %6190
        %6194 = vset.pattern.permute.xlu0 0
        %6195 = vperm.xlu0 %6194, %v6133
        %v6196 = vpop.permute.xlu0 %6195
        %6199 = vset.pattern.permute.xlu0 0
        %6200 = vperm.xlu0 %6199, %v6134
        %v6201 = vpop.permute.xlu0 %6200
        %6204 = vset.pattern.permute.xlu0 0
        %6205 = vperm.xlu0 %6204, %v6135
        %v6206 = vpop.permute.xlu0 %6205
        %6209 = vset.pattern.permute.xlu0 0
        %6210 = vperm.xlu0 %6209, %v6136
        %v6211 = vpop.permute.xlu0 %6210
        %6214 = vset.pattern.permute.xlu0 0
        %6215 = vperm.xlu0 %6214, %v6137
        %v6216 = vpop.permute.xlu0 %6215
        %v6218 = vadd.f32 %v6106, %v6141
        %v6219 = vadd.f32 %v6107, %v6146
        %v6220 = vadd.f32 %v6108, %v6151
        %v6221 = vadd.f32 %v6109, %v6156
        %v6222 = vadd.f32 %v6110, %v6161
        %v6223 = vadd.f32 %v6111, %v6166
        %v6224 = vadd.f32 %v6112, %v6171
        %v6225 = vadd.f32 %v6113, %v6176
        %v6226 = vadd.f32 %v6114, %v6181
        %v6227 = vadd.f32 %v6115, %v6186
        %v6228 = vadd.f32 %v6116, %v6191
        %v6229 = vadd.f32 %v6117, %v6196
        %v6230 = vadd.f32 %v6118, %v6201
        %v6231 = vadd.f32 %v6119, %v6206
        %v6232 = vadd.f32 %v6120, %v6211
        %v6233 = vadd.f32 %v6121, %v6216
        %vm6234 = vcmp.gt.f32.partialorder %v6218, 0.0
        %vm6235 = vcmp.gt.f32.partialorder %v6219, 0.0
        %vm6236 = vcmp.gt.f32.partialorder %v6220, 0.0
        %vm6237 = vcmp.gt.f32.partialorder %v6221, 0.0
        %vm6238 = vcmp.gt.f32.partialorder %v6222, 0.0
        %vm6239 = vcmp.gt.f32.partialorder %v6223, 0.0
        %vm6240 = vcmp.gt.f32.partialorder %v6224, 0.0
        %vm6241 = vcmp.gt.f32.partialorder %v6225, 0.0
        %vm6242 = vcmp.gt.f32.partialorder %v6226, 0.0
        %vm6243 = vcmp.gt.f32.partialorder %v6227, 0.0
        %vm6244 = vcmp.gt.f32.partialorder %v6228, 0.0
        %vm6245 = vcmp.gt.f32.partialorder %v6229, 0.0
        %vm6246 = vcmp.gt.f32.partialorder %v6230, 0.0
        %vm6247 = vcmp.gt.f32.partialorder %v6231, 0.0
        %vm6248 = vcmp.gt.f32.partialorder %v6232, 0.0
        %vm6249 = vcmp.gt.f32.partialorder %v6233, 0.0
        %v6250 = vmul.f32 %v535, %v6218
        %v6251 = vmul.f32 %v535, %v6219
        %v6252 = vmul.f32 %v535, %v6220
        %v6253 = vmul.f32 %v535, %v6221
        %v6254 = vmul.f32 %v535, %v6222
        %v6255 = vmul.f32 %v535, %v6223
        %v6256 = vmul.f32 %v535, %v6224
        %v6257 = vmul.f32 %v535, %v6225
        %v6258 = vmul.f32 %v535, %v6226
        %v6259 = vmul.f32 %v535, %v6227
        %v6260 = vmul.f32 %v535, %v6228
        %v6261 = vmul.f32 %v535, %v6229
        %v6262 = vmul.f32 %v535, %v6230
        %v6263 = vmul.f32 %v535, %v6231
        %v6264 = vmul.f32 %v535, %v6232
        %v6265 = vmul.f32 %v535, %v6233
        %v6266 = vsel %vm6234, %v6218, %v6250
        %v6267 = vsel %vm6235, %v6219, %v6251
        %v6268 = vsel %vm6236, %v6220, %v6252
        %v6269 = vsel %vm6237, %v6221, %v6253
        %v6270 = vsel %vm6238, %v6222, %v6254
        %v6271 = vsel %vm6239, %v6223, %v6255
        %v6272 = vsel %vm6240, %v6224, %v6256
        %v6273 = vsel %vm6241, %v6225, %v6257
        %v6274 = vsel %vm6242, %v6226, %v6258
        %v6275 = vsel %vm6243, %v6227, %v6259
        %v6276 = vsel %vm6244, %v6228, %v6260
        %v6277 = vsel %vm6245, %v6229, %v6261
        %v6278 = vsel %vm6246, %v6230, %v6262
        %v6279 = vsel %vm6247, %v6231, %v6263
        %v6280 = vsel %vm6248, %v6232, %v6264
        %v6281 = vsel %vm6249, %v6233, %v6265
        %v6282 = vld [vmem:[%s4] sm:$0xff]
        %v6283 = vld [vmem:[%s4 + $0x8] sm:$0xff]
        %v6284 = vld [vmem:[%s4 + $0x10] sm:$0xff]
        %v6285 = vld [vmem:[%s4 + $0x18] sm:$0xff]
        %v6286 = vld [vmem:[%s4 + $0x20] sm:$0xff]
        %v6287 = vld [vmem:[%s4 + $0x28] sm:$0xff]
        %v6288 = vld [vmem:[%s4 + $0x30] sm:$0xff]
        %v6289 = vld [vmem:[%s4 + $0x38] sm:$0xff]
        %v6290 = vld [vmem:[%s4 + $0x40] sm:$0xff]
        %v6291 = vld [vmem:[%s4 + $0x48] sm:$0xff]
        %v6292 = vld [vmem:[%s4 + $0x50] sm:$0xff]
        %v6293 = vld [vmem:[%s4 + $0x58] sm:$0xff]
        %v6294 = vld [vmem:[%s4 + $0x60] sm:$0xff]
        %v6295 = vld [vmem:[%s4 + $0x68] sm:$0xff]
        %v6296 = vld [vmem:[%s4 + $0x70] sm:$0xff]
        %v6297 = vld [vmem:[%s4 + $0x78] sm:$0xff]
        %v6298 = vld [vmem:[%s4 + $0x80] sm:$0xff]
        %v6299 = vld [vmem:[%s4 + $0x88] sm:$0xff]
        %v6300 = vld [vmem:[%s4 + $0x90] sm:$0xff]
        %v6301 = vld [vmem:[%s4 + $0x98] sm:$0xff]
        %v6302 = vld [vmem:[%s4 + $0xa0] sm:$0xff]
        %v6303 = vld [vmem:[%s4 + $0xa8] sm:$0xff]
        %v6304 = vld [vmem:[%s4 + $0xb0] sm:$0xff]
        %v6305 = vld [vmem:[%s4 + $0xb8] sm:$0xff]
        %v6306 = vld [vmem:[%s4 + $0xc0] sm:$0xff]
        %v6307 = vld [vmem:[%s4 + $0xc8] sm:$0xff]
        %v6308 = vld [vmem:[%s5] sm:$0xff]
        %v6309 = vld [vmem:[%s5 + $0x8] sm:$0xff]
        %v6310 = vld [vmem:[%s5 + $0x10] sm:$0xff]
        %v6311 = vld [vmem:[%s5 + $0x18] sm:$0xff]
        %v6312 = vld [vmem:[%s5 + $0x20] sm:$0xff]
        %v6313 = vld [vmem:[%s5 + $0x28] sm:$0xff]
        %v6314 = vld [vmem:[%s5 + $0x30] sm:$0xff]
        %v6315 = vld [vmem:[%s5 + $0x38] sm:$0xff]
        %v6316 = vld [vmem:[%s5 + $0x40] sm:$0xff]
        %v6317 = vld [vmem:[%s5 + $0x48] sm:$0xff]
        %v6318 = vld [vmem:[%s5 + $0x50] sm:$0xff]
        %v6319 = vld [vmem:[%s5 + $0x58] sm:$0xff]
        %v6320 = vld [vmem:[%s5 + $0x60] sm:$0xff]
        %v6321 = vld [vmem:[%s5 + $0x68] sm:$0xff]
        %v6322 = vld [vmem:[%s5 + $0x70] sm:$0xff]
        %v6323 = vld [vmem:[%s5 + $0x78] sm:$0xff]
        %v6324 = vld [vmem:[%s5 + $0x80] sm:$0xff]
        %v6325 = vld [vmem:[%s5 + $0x88] sm:$0xff]
        %v6326 = vld [vmem:[%s5 + $0x90] sm:$0xff]
        %v6327 = vld [vmem:[%s5 + $0x98] sm:$0xff]
        %v6328 = vld [vmem:[%s5 + $0xa0] sm:$0xff]
        %v6329 = vld [vmem:[%s5 + $0xa8] sm:$0xff]
        %v6330 = vld [vmem:[%s5 + $0xb0] sm:$0xff]
        %v6331 = vld [vmem:[%s5 + $0xb8] sm:$0xff]
        %v6332 = vld [vmem:[%s5 + $0xc0] sm:$0xff]
        %v6333 = vld [vmem:[%s5 + $0xc8] sm:$0xff]
        %6335 = vset.pattern.permute.xlu0 0
        %6336 = vperm.xlu0 %6335, %v6308
        %v6337 = vpop.permute.xlu0 %6336
        %6340 = vset.pattern.permute.xlu0 0
        %6341 = vperm.xlu0 %6340, %v6309
        %v6342 = vpop.permute.xlu0 %6341
        %6345 = vset.pattern.permute.xlu0 0
        %6346 = vperm.xlu0 %6345, %v6310
        %v6347 = vpop.permute.xlu0 %6346
        %6350 = vset.pattern.permute.xlu0 0
        %6351 = vperm.xlu0 %6350, %v6311
        %v6352 = vpop.permute.xlu0 %6351
        %6355 = vset.pattern.permute.xlu0 0
        %6356 = vperm.xlu0 %6355, %v6312
        %v6357 = vpop.permute.xlu0 %6356
        %6360 = vset.pattern.permute.xlu0 0
        %6361 = vperm.xlu0 %6360, %v6313
        %v6362 = vpop.permute.xlu0 %6361
        %6365 = vset.pattern.permute.xlu0 0
        %6366 = vperm.xlu0 %6365, %v6314
        %v6367 = vpop.permute.xlu0 %6366
        %6370 = vset.pattern.permute.xlu0 0
        %6371 = vperm.xlu0 %6370, %v6315
        %v6372 = vpop.permute.xlu0 %6371
        %6375 = vset.pattern.permute.xlu0 0
        %6376 = vperm.xlu0 %6375, %v6316
        %v6377 = vpop.permute.xlu0 %6376
        %6380 = vset.pattern.permute.xlu0 0
        %6381 = vperm.xlu0 %6380, %v6317
        %v6382 = vpop.permute.xlu0 %6381
        %6385 = vset.pattern.permute.xlu0 0
        %6386 = vperm.xlu0 %6385, %v6318
        %v6387 = vpop.permute.xlu0 %6386
        %6390 = vset.pattern.permute.xlu0 0
        %6391 = vperm.xlu0 %6390, %v6319
        %v6392 = vpop.permute.xlu0 %6391
        %6395 = vset.pattern.permute.xlu0 0
        %6396 = vperm.xlu0 %6395, %v6320
        %v6397 = vpop.permute.xlu0 %6396
        %6400 = vset.pattern.permute.xlu0 0
        %6401 = vperm.xlu0 %6400, %v6321
        %v6402 = vpop.permute.xlu0 %6401
        %6405 = vset.pattern.permute.xlu0 0
        %6406 = vperm.xlu0 %6405, %v6322
        %v6407 = vpop.permute.xlu0 %6406
        %6410 = vset.pattern.permute.xlu0 0
        %6411 = vperm.xlu0 %6410, %v6323
        %v6412 = vpop.permute.xlu0 %6411
        %6415 = vset.pattern.permute.xlu0 0
        %6416 = vperm.xlu0 %6415, %v6324
        %v6417 = vpop.permute.xlu0 %6416
        %6420 = vset.pattern.permute.xlu0 0
        %6421 = vperm.xlu0 %6420, %v6325
        %v6422 = vpop.permute.xlu0 %6421
        %6425 = vset.pattern.permute.xlu0 0
        %6426 = vperm.xlu0 %6425, %v6326
        %v6427 = vpop.permute.xlu0 %6426
        %6430 = vset.pattern.permute.xlu0 0
        %6431 = vperm.xlu0 %6430, %v6327
        %v6432 = vpop.permute.xlu0 %6431
        %6435 = vset.pattern.permute.xlu0 0
        %6436 = vperm.xlu0 %6435, %v6328
        %v6437 = vpop.permute.xlu0 %6436
        %6440 = vset.pattern.permute.xlu0 0
        %6441 = vperm.xlu0 %6440, %v6329
        %v6442 = vpop.permute.xlu0 %6441
        %6445 = vset.pattern.permute.xlu0 0
        %6446 = vperm.xlu0 %6445, %v6330
        %v6447 = vpop.permute.xlu0 %6446
        %6450 = vset.pattern.permute.xlu0 0
        %6451 = vperm.xlu0 %6450, %v6331
        %v6452 = vpop.permute.xlu0 %6451
        %6455 = vset.pattern.permute.xlu0 0
        %6456 = vperm.xlu0 %6455, %v6332
        %v6457 = vpop.permute.xlu0 %6456
        %6460 = vset.pattern.permute.xlu0 0
        %6461 = vperm.xlu0 %6460, %v6333
        %v6462 = vpop.permute.xlu0 %6461
        %6464 = vmatprep.subr.mxu0 0.0
        %6465 = vmatpush1.msra.mxu0 %v6266
        %6466 = vmatprep.subr.mxu0 0.0
        %6467 = vmatpush1.msra.mxu0 %v6267
        %6468 = vmatprep.subr.mxu0 0.0
        %6469 = vmatpush1.msra.mxu0 %v6268
        %6470 = vmatprep.subr.mxu0 0.0
        %6471 = vmatpush1.msra.mxu0 %v6269
        %6472 = vmatprep.subr.mxu0 0.0
        %6473 = vmatpush1.msra.mxu0 %v6270
        %6474 = vmatprep.subr.mxu0 0.0
        %6475 = vmatpush1.msra.mxu0 %v6271
        %6476 = vmatprep.subr.mxu0 0.0
        %6477 = vmatpush1.msra.mxu0 %v6272
        %6478 = vmatprep.subr.mxu0 0.0
        %6479 = vmatpush1.msra.mxu0 %v6273
        %6480 = vmatprep.subr.mxu0 0.0
        %6481 = vmatpush1.msra.mxu0 %v6274
        %6482 = vmatprep.subr.mxu0 0.0
        %6483 = vmatpush1.msra.mxu0 %v6275
        %6484 = vmatprep.subr.mxu0 0.0
        %6485 = vmatpush1.msra.mxu0 %v6276
        %6486 = vmatprep.subr.mxu0 0.0
        %6487 = vmatpush1.msra.mxu0 %v6277
        %6488 = vmatprep.subr.mxu0 0.0
        %6489 = vmatpush1.msra.mxu0 %v6278
        %6490 = vmatprep.subr.mxu0 0.0
        %6491 = vmatpush1.msra.mxu0 %v6279
        %6492 = vmatprep.subr.mxu0 0.0
        %6493 = vmatpush1.msra.mxu0 %v6280
        %6494 = vmatprep.subr.mxu0 0.0
        %6495 = vmatpush1.msra.mxu0 %v6281
        %6496 = vmatprep.subr.mxu0 0.0
        %6497 = vmatpush1.msra.mxu0 0.0
        %6498 = vmatprep.subr.mxu0 0.0
        %6499 = vmatpush1.msra.mxu0 0.0
        %6500 = vmatprep.subr.mxu0 0.0
        %6501 = vmatpush1.msra.mxu0 0.0
        %6502 = vmatprep.subr.mxu0 0.0
        %6503 = vmatpush1.msra.mxu0 0.0
        %6504 = vmatprep.subr.mxu0 0.0
        %6505 = vmatpush1.msra.mxu0 0.0
        %6506 = vmatprep.subr.mxu0 0.0
        %6507 = vmatpush1.msra.mxu0 0.0
        %6508 = vmatprep.subr.mxu0 0.0
        %6509 = vmatpush1.msra.mxu0 0.0
        %6510 = vmatprep.subr.mxu0 0.0
        %6511 = vmatpush1.msra.mxu0 0.0
        %6512 = vmatprep.subr.mxu0 0.0
        %6513 = vmatpush1.msra.mxu0 0.0
        %6514 = vmatprep.subr.mxu0 0.0
        %6515 = vmatpush1.msra.mxu0 0.0
        %6516 = vmatprep.subr.mxu0 0.0
        %6517 = vmatpush1.msra.mxu0 0.0
        %6518 = vmatprep.subr.mxu0 0.0
        %6519 = vmatpush1.msra.mxu0 0.0
        %6520 = vmatprep.subr.mxu0 0.0
        %6521 = vmatpush1.msra.mxu0 0.0
        %6522 = vmatprep.subr.mxu0 0.0
        %6523 = vmatpush1.msra.mxu0 0.0
        %6524 = vmatprep.subr.mxu0 0.0
        %6525 = vmatpush1.msra.mxu0 0.0
        %6526 = vmatprep.subr.mxu0 0.0
        %6527 = vmatpush1.msra.mxu0 0.0
        %6528 = vmatprep.mubr.f32.mxu0 0.0
        %6529 = vmatmul.mubr.f32.gmra.mrb[0].mxu0 %v6282
        %v6530 = vpop.f32.mrb[0].mxu0
        %v6531 = vadd.f32 %v6337, %v6530
        %v6532 = vpop.f32.mrb[0].mxu0
        %6533 = vmatprep.mubr.f32.mxu0 0.0
        %6534 = vmatmul.mubr.f32.gmra.mrb[0].mxu0 %v6283
        %v6535 = vpop.f32.mrb[0].mxu0
        %v6536 = vadd.f32 %v6342, %v6535
        %v6537 = vpop.f32.mrb[0].mxu0
        %6538 = vmatprep.mubr.f32.mxu0 0.0
        %6539 = vmatmul.mubr.f32.gmra.mrb[0].mxu0 %v6284
        %v6540 = vpop.f32.mrb[0].mxu0
        %v6541 = vadd.f32 %v6347, %v6540
        %v6542 = vpop.f32.mrb[0].mxu0
        %6543 = vmatprep.mubr.f32.mxu0 0.0
        %6544 = vmatmul.mubr.f32.gmra.mrb[0].mxu0 %v6285
        %v6545 = vpop.f32.mrb[0].mxu0
        %v6546 = vadd.f32 %v6352, %v6545
        %v6547 = vpop.f32.mrb[0].mxu0
        %6548 = vmatprep.mubr.f32.mxu0 0.0
        %6549 = vmatmul.mubr.f32.gmra.mrb[0].mxu0 %v6286
        %v6550 = vpop.f32.mrb[0].mxu0
        %v6551 = vadd.f32 %v6357, %v6550
        %v6552 = vpop.f32.mrb[0].mxu0
        %6553 = vmatprep.mubr.f32.mxu0 0.0
        %6554 = vmatmul.mubr.f32.gmra.mrb[0].mxu0 %v6287
        %v6555 = vpop.f32.mrb[0].mxu0
        %v6556 = vadd.f32 %v6362, %v6555
        %v6557 = vpop.f32.mrb[0].mxu0
        %6558 = vmatprep.mubr.f32.mxu0 0.0
        %6559 = vmatmul.mubr.f32.gmra.mrb[0].mxu0 %v6288
        %v6560 = vpop.f32.mrb[0].mxu0
        %v6561 = vadd.f32 %v6367, %v6560
        %v6562 = vpop.f32.mrb[0].mxu0
        %6563 = vmatprep.mubr.f32.mxu0 0.0
        %6564 = vmatmul.mubr.f32.gmra.mrb[0].mxu0 %v6289
        %v6565 = vpop.f32.mrb[0].mxu0
        %v6566 = vadd.f32 %v6372, %v6565
        %v6567 = vpop.f32.mrb[0].mxu0
        %6568 = vmatprep.mubr.f32.mxu0 0.0
        %6569 = vmatmul.mubr.f32.gmra.mrb[0].mxu0 %v6290
        %v6570 = vpop.f32.mrb[0].mxu0
        %v6571 = vadd.f32 %v6377, %v6570
        %v6572 = vpop.f32.mrb[0].mxu0
        %6573 = vmatprep.mubr.f32.mxu0 0.0
        %6574 = vmatmul.mubr.f32.gmra.mrb[0].mxu0 %v6291
        %v6575 = vpop.f32.mrb[0].mxu0
        %v6576 = vadd.f32 %v6382, %v6575
        %v6577 = vpop.f32.mrb[0].mxu0
        %6578 = vmatprep.mubr.f32.mxu0 0.0
        %6579 = vmatmul.mubr.f32.gmra.mrb[0].mxu0 %v6292
        %v6580 = vpop.f32.mrb[0].mxu0
        %v6581 = vadd.f32 %v6387, %v6580
        %v6582 = vpop.f32.mrb[0].mxu0
        %6583 = vmatprep.mubr.f32.mxu0 0.0
        %6584 = vmatmul.mubr.f32.gmra.mrb[0].mxu0 %v6293
        %v6585 = vpop.f32.mrb[0].mxu0
        %v6586 = vadd.f32 %v6392, %v6585
        %v6587 = vpop.f32.mrb[0].mxu0
        %6588 = vmatprep.mubr.f32.mxu0 0.0
        %6589 = vmatmul.mubr.f32.gmra.mrb[0].mxu0 %v6294
        %v6590 = vpop.f32.mrb[0].mxu0
        %v6591 = vadd.f32 %v6397, %v6590
        %v6592 = vpop.f32.mrb[0].mxu0
        %6593 = vmatprep.mubr.f32.mxu0 0.0
        %6594 = vmatmul.mubr.f32.gmra.mrb[0].mxu0 %v6295
        %v6595 = vpop.f32.mrb[0].mxu0
        %v6596 = vadd.f32 %v6402, %v6595
        %v6597 = vpop.f32.mrb[0].mxu0
        %6598 = vmatprep.mubr.f32.mxu0 0.0
        %6599 = vmatmul.mubr.f32.gmra.mrb[0].mxu0 %v6296
        %v6600 = vpop.f32.mrb[0].mxu0
        %v6601 = vadd.f32 %v6407, %v6600
        %v6602 = vpop.f32.mrb[0].mxu0
        %6603 = vmatprep.mubr.f32.mxu0 0.0
        %6604 = vmatmul.mubr.f32.gmra.mrb[0].mxu0 %v6297
        %v6605 = vpop.f32.mrb[0].mxu0
        %v6606 = vadd.f32 %v6412, %v6605
        %v6607 = vpop.f32.mrb[0].mxu0
        %6608 = vmatprep.mubr.f32.mxu0 0.0
        %6609 = vmatmul.mubr.f32.gmra.mrb[0].mxu0 %v6298
        %v6610 = vpop.f32.mrb[0].mxu0
        %v6611 = vadd.f32 %v6417, %v6610
        %v6612 = vpop.f32.mrb[0].mxu0
        %6613 = vmatprep.mubr.f32.mxu0 0.0
        %6614 = vmatmul.mubr.f32.gmra.mrb[0].mxu0 %v6299
        %v6615 = vpop.f32.mrb[0].mxu0
        %v6616 = vadd.f32 %v6422, %v6615
        %v6617 = vpop.f32.mrb[0].mxu0
        %6618 = vmatprep.mubr.f32.mxu0 0.0
        %6619 = vmatmul.mubr.f32.gmra.mrb[0].mxu0 %v6300
        %v6620 = vpop.f32.mrb[0].mxu0
        %v6621 = vadd.f32 %v6427, %v6620
        %v6622 = vpop.f32.mrb[0].mxu0
        %6623 = vmatprep.mubr.f32.mxu0 0.0
        %6624 = vmatmul.mubr.f32.gmra.mrb[0].mxu0 %v6301
        %v6625 = vpop.f32.mrb[0].mxu0
        %v6626 = vadd.f32 %v6432, %v6625
        %v6627 = vpop.f32.mrb[0].mxu0
        %6628 = vmatprep.mubr.f32.mxu0 0.0
        %6629 = vmatmul.mubr.f32.gmra.mrb[0].mxu0 %v6302
        %v6630 = vpop.f32.mrb[0].mxu0
        %v6631 = vadd.f32 %v6437, %v6630
        %v6632 = vpop.f32.mrb[0].mxu0
        %6633 = vmatprep.mubr.f32.mxu0 0.0
        %6634 = vmatmul.mubr.f32.gmra.mrb[0].mxu0 %v6303
        %v6635 = vpop.f32.mrb[0].mxu0
        %v6636 = vadd.f32 %v6442, %v6635
        %v6637 = vpop.f32.mrb[0].mxu0
        %6638 = vmatprep.mubr.f32.mxu0 0.0
        %6639 = vmatmul.mubr.f32.gmra.mrb[0].mxu0 %v6304
        %v6640 = vpop.f32.mrb[0].mxu0
        %v6641 = vadd.f32 %v6447, %v6640
        %v6642 = vpop.f32.mrb[0].mxu0
        %6643 = vmatprep.mubr.f32.mxu0 0.0
        %6644 = vmatmul.mubr.f32.gmra.mrb[0].mxu0 %v6305
        %v6645 = vpop.f32.mrb[0].mxu0
        %v6646 = vadd.f32 %v6452, %v6645
        %v6647 = vpop.f32.mrb[0].mxu0
        %6648 = vmatprep.mubr.f32.mxu0 0.0
        %6649 = vmatmul.mubr.f32.gmra.mrb[0].mxu0 %v6306
        %v6650 = vpop.f32.mrb[0].mxu0
        %v6651 = vadd.f32 %v6457, %v6650
        %v6652 = vpop.f32.mrb[0].mxu0
        %6653 = vmatprep.mubr.f32.mxu0 0.0
        %6654 = vmatmul.mubr.f32.gmra.mrb[0].mxu0 %v6307
        %v6655 = vpop.f32.mrb[0].mxu0
        %v6656 = vadd.f32 %v6462, %v6655
        %v6657 = vpop.f32.mrb[0].mxu0
        %6658 = vdwg.mxu0
        %vm6659 = vcmp.gt.f32.partialorder %v6531, 0.0
        %vm6660 = vcmp.gt.f32.partialorder %v6536, 0.0
        %vm6661 = vcmp.gt.f32.partialorder %v6541, 0.0
        %vm6662 = vcmp.gt.f32.partialorder %v6546, 0.0
        %vm6663 = vcmp.gt.f32.partialorder %v6551, 0.0
        %vm6664 = vcmp.gt.f32.partialorder %v6556, 0.0
        %vm6665 = vcmp.gt.f32.partialorder %v6561, 0.0
        %vm6666 = vcmp.gt.f32.partialorder %v6566, 0.0
        %vm6667 = vcmp.gt.f32.partialorder %v6571, 0.0
        %vm6668 = vcmp.gt.f32.partialorder %v6576, 0.0
        %vm6669 = vcmp.gt.f32.partialorder %v6581, 0.0
        %vm6670 = vcmp.gt.f32.partialorder %v6586, 0.0
        %vm6671 = vcmp.gt.f32.partialorder %v6591, 0.0
        %vm6672 = vcmp.gt.f32.partialorder %v6596, 0.0
        %vm6673 = vcmp.gt.f32.partialorder %v6601, 0.0
        %vm6674 = vcmp.gt.f32.partialorder %v6606, 0.0
        %vm6675 = vcmp.gt.f32.partialorder %v6611, 0.0
        %vm6676 = vcmp.gt.f32.partialorder %v6616, 0.0
        %vm6677 = vcmp.gt.f32.partialorder %v6621, 0.0
        %vm6678 = vcmp.gt.f32.partialorder %v6626, 0.0
        %vm6679 = vcmp.gt.f32.partialorder %v6631, 0.0
        %vm6680 = vcmp.gt.f32.partialorder %v6636, 0.0
        %vm6681 = vcmp.gt.f32.partialorder %v6641, 0.0
        %vm6682 = vcmp.gt.f32.partialorder %v6646, 0.0
        %vm6683 = vcmp.gt.f32.partialorder %v6651, 0.0
        %vm6684 = vcmp.gt.f32.partialorder %v6656, 0.0
        %v6685 = vmul.f32 %v535, %v6531
        %v6686 = vmul.f32 %v535, %v6536
        %v6687 = vmul.f32 %v535, %v6541
        %v6688 = vmul.f32 %v535, %v6546
        %v6689 = vmul.f32 %v535, %v6551
        %v6690 = vmul.f32 %v535, %v6556
        %v6691 = vmul.f32 %v535, %v6561
        %v6692 = vmul.f32 %v535, %v6566
        %v6693 = vmul.f32 %v535, %v6571
        %v6694 = vmul.f32 %v535, %v6576
        %v6695 = vmul.f32 %v535, %v6581
        %v6696 = vmul.f32 %v535, %v6586
        %v6697 = vmul.f32 %v535, %v6591
        %v6698 = vmul.f32 %v535, %v6596
        %v6699 = vmul.f32 %v535, %v6601
        %v6700 = vmul.f32 %v535, %v6606
        %v6701 = vmul.f32 %v535, %v6611
        %v6702 = vmul.f32 %v535, %v6616
        %v6703 = vmul.f32 %v535, %v6621
        %v6704 = vmul.f32 %v535, %v6626
        %v6705 = vmul.f32 %v535, %v6631
        %v6706 = vmul.f32 %v535, %v6636
        %v6707 = vmul.f32 %v535, %v6641
        %v6708 = vmul.f32 %v535, %v6646
        %v6709 = vmul.f32 %v535, %v6651
        %v6710 = vmul.f32 %v535, %v6656
        %v6711 = vsel %vm6659, %v6531, %v6685
        %v6712 = vsel %vm6660, %v6536, %v6686
        %v6713 = vsel %vm6661, %v6541, %v6687
        %v6714 = vsel %vm6662, %v6546, %v6688
        %v6715 = vsel %vm6663, %v6551, %v6689
        %v6716 = vsel %vm6664, %v6556, %v6690
        %v6717 = vsel %vm6665, %v6561, %v6691
        %v6718 = vsel %vm6666, %v6566, %v6692
        %v6719 = vsel %vm6667, %v6571, %v6693
        %v6720 = vsel %vm6668, %v6576, %v6694
        %v6721 = vsel %vm6669, %v6581, %v6695
        %v6722 = vsel %vm6670, %v6586, %v6696
        %v6723 = vsel %vm6671, %v6591, %v6697
        %v6724 = vsel %vm6672, %v6596, %v6698
        %v6725 = vsel %vm6673, %v6601, %v6699
        %v6726 = vsel %vm6674, %v6606, %v6700
        %v6727 = vsel %vm6675, %v6611, %v6701
        %v6728 = vsel %vm6676, %v6616, %v6702
        %v6729 = vsel %vm6677, %v6621, %v6703
        %v6730 = vsel %vm6678, %v6626, %v6704
        %v6731 = vsel %vm6679, %v6631, %v6705
        %v6732 = vsel %vm6680, %v6636, %v6706
        %v6733 = vsel %vm6681, %v6641, %v6707
        %v6734 = vsel %vm6682, %v6646, %v6708
        %v6735 = vsel %vm6683, %v6651, %v6709
        %v6736 = vsel %vm6684, %v6656, %v6710
        %v6737 = vld [vmem:[%s6] sm:$0x3]
        %v6739 = vlaneseq
        %v6740 = vshrl.u32 %v6739, 7
        %v6741 = vsub.s32 0, %v6740
        %v6742 = vrot.slane %v6737, %v6741
        %v6743 = vlaneseq
        %v6744 = vshrl.u32 %v6743, 7
        %v6745 = vsub.s32 1, %v6744
        %v6746 = vrot.slane %v6737, %v6745
        %v6748 = vsel %vm1035, %v6746, 0
        %6750 = vmatprep.subr.mxu0 0.0
        %6751 = vmatpush1.msra.mxu0 %v6711
        %6752 = vmatprep.subr.mxu0 0.0
        %6753 = vmatpush1.msra.mxu0 %v6712
        %6754 = vmatprep.subr.mxu0 0.0
        %6755 = vmatpush1.msra.mxu0 %v6713
        %6756 = vmatprep.subr.mxu0 0.0
        %6757 = vmatpush1.msra.mxu0 %v6714
        %6758 = vmatprep.subr.mxu0 0.0
        %6759 = vmatpush1.msra.mxu0 %v6715
        %6760 = vmatprep.subr.mxu0 0.0
        %6761 = vmatpush1.msra.mxu0 %v6716
        %6762 = vmatprep.subr.mxu0 0.0
        %6763 = vmatpush1.msra.mxu0 %v6717
        %6764 = vmatprep.subr.mxu0 0.0
        %6765 = vmatpush1.msra.mxu0 %v6718
        %6766 = vmatprep.subr.mxu0 0.0
        %6767 = vmatpush1.msra.mxu0 %v6719
        %6768 = vmatprep.subr.mxu0 0.0
        %6769 = vmatpush1.msra.mxu0 %v6720
        %6770 = vmatprep.subr.mxu0 0.0
        %6771 = vmatpush1.msra.mxu0 %v6721
        %6772 = vmatprep.subr.mxu0 0.0
        %6773 = vmatpush1.msra.mxu0 %v6722
        %6774 = vmatprep.subr.mxu0 0.0
        %6775 = vmatpush1.msra.mxu0 %v6723
        %6776 = vmatprep.subr.mxu0 0.0
        %6777 = vmatpush1.msra.mxu0 %v6724
        %6778 = vmatprep.subr.mxu0 0.0
        %6779 = vmatpush1.msra.mxu0 %v6725
        %6780 = vmatprep.subr.mxu0 0.0
        %6781 = vmatpush1.msra.mxu0 %v6726
        %6782 = vmatprep.subr.mxu0 0.0
        %6783 = vmatpush1.msra.mxu0 %v6727
        %6784 = vmatprep.subr.mxu0 0.0
        %6785 = vmatpush1.msra.mxu0 %v6728
        %6786 = vmatprep.subr.mxu0 0.0
        %6787 = vmatpush1.msra.mxu0 %v6729
        %6788 = vmatprep.subr.mxu0 0.0
        %6789 = vmatpush1.msra.mxu0 %v6730
        %6790 = vmatprep.subr.mxu0 0.0
        %6791 = vmatpush1.msra.mxu0 %v6731
        %6792 = vmatprep.subr.mxu0 0.0
        %6793 = vmatpush1.msra.mxu0 %v6732
        %6794 = vmatprep.subr.mxu0 0.0
        %6795 = vmatpush1.msra.mxu0 %v6733
        %6796 = vmatprep.subr.mxu0 0.0
        %6797 = vmatpush1.msra.mxu0 %v6734
        %6798 = vmatprep.subr.mxu0 0.0
        %6799 = vmatpush1.msra.mxu0 %v6735
        %6800 = vmatprep.subr.mxu0 0.0
        %6801 = vmatpush1.msra.mxu0 %v6736
        %6802 = vmatprep.subr.mxu0 0.0
        %6803 = vmatpush1.msra.mxu0 0.0
        %6804 = vmatprep.subr.mxu0 0.0
        %6805 = vmatpush1.msra.mxu0 0.0
        %6806 = vmatprep.subr.mxu0 0.0
        %6807 = vmatpush1.msra.mxu0 0.0
        %6808 = vmatprep.subr.mxu0 0.0
        %6809 = vmatpush1.msra.mxu0 0.0
        %6810 = vmatprep.subr.mxu0 0.0
        %6811 = vmatpush1.msra.mxu0 0.0
        %6812 = vmatprep.subr.mxu0 0.0
        %6813 = vmatpush1.msra.mxu0 0.0
        %6814 = vmatprep.mubr.f32.mxu0 %v6748
        %6815 = vmatmul.mubr.f32.gmra.mrb[0].mxu0 %v6742
        %v6816 = vpop.f32.mrb[0].mxu0
        %v6817 = vadd.f32 %v1024, %v6816
        %v6818 = vpop.f32.mrb[0].mxu0
        %6819 = vdwg.mxu0
        %6820 = vst [vmem:[%s283 + $0x7] sm:$0x1] %v6817
        %s6821 = sand.u32 %s182, 1
        %s6822 = scalar_lea.sflag [#allocation3], %s6821
        %s6823 = sand.u32 %s182, 1
        %s6824 = smul.addr %s6823, 8
        %s6825 = scalar_lea.vmem [#allocation5], %s6824
        // Predicated region
        $region53: #{tpu_custom_call.1} parent=47 // pred_check
          %p6826 = pneg %p192
        $region54: #{tpu_custom_call.1} parent=47 // pred_check_branch
          %6828 = sbr.rel (%p6826) target = $region56
        $region55: #{tpu_custom_call.1} parent=47 // pred_region
          %s6830 = ssub.s32 128, 128
          %6831 = vsyncadd %s6822, %s6830
          %s6832 = smul.addr %s22, 128
          %s6833 = scalar_lea.hbm %s7, %s6832
          %s6835 = sshll.u32 %s6825, 4
          %s6836 = int_to_ptr.vmem [resolvable:$true] %s6835
          %6838 = dma.vmem_to_hbm [thread:$0]  %s6836, 128, %s6833, %s6822
        $region56: #{tpu_custom_call.1} parent=47 // pred_fallthru
          _
      $region48: #{tpu_custom_call.1} parent=5 // pred_fallthru
        _
      %p6839 = scmp.le.s32.totalorder 2, %s17
      // Predicated region
      $region57: #{tpu_custom_call.1} parent=5 // pred_check
        %p6840 = pneg %p6839
      $region58: #{tpu_custom_call.1} parent=5 // pred_check_branch
        %6842 = sbr.rel (%p6840) target = $region60
      $region59: #{tpu_custom_call.1} parent=5 // pred_region
        %s6843 = ssub.s32 %s17, 2
        // Predicated region
        $region61: #{tpu_custom_call.1} parent=59 // pred_check
          %p6844 = pneg %p198
        $region62: #{tpu_custom_call.1} parent=59 // pred_check_branch
          %6846 = sbr.rel (%p6844) target = $region64
        $region63: #{tpu_custom_call.1} parent=59 // pred_region
          %s6847 = sand.u32 %s183, 1
          %s6848 = scalar_lea.sflag [#allocation3], %s6847
          %s6849 = sand.u32 %s183, 1
          %s6850 = smul.addr %s6849, 8
          %s6851 = scalar_lea.vmem [#allocation5], %s6850
          %6852 = dma.done %s6848, 128
        $region64: #{tpu_custom_call.1} parent=59 // pred_fallthru
          _
      $region60: #{tpu_custom_call.1} parent=5 // pred_fallthru
        _
    $region6: #{tpu_custom_call.1} parent=1 // loop_footer
      %s21 = sadd.s32 1, %s17
    $region7: #{tpu_custom_call.1} parent=1 // loop_footer_branch
      %16 = sbr.rel target = $region3
    $region8: #{tpu_custom_call.1} parent=1 // loop_exit
      _
    %6853 = vsyncpa [#allocation3], 1
    %s6854 = scalar_lea.sflag [#allocation3], 1
    %6855 = vsyncpa %s6854, 1
    %6856 = vsyncpa [#allocation4], 1
    %s6857 = scalar_lea.sflag [#allocation4], 1
    %6858 = vsyncpa %s6857, 1

</llo_original>
